<compile_context>
chip_gen: v7x
topology: tpu7x:2x2x1
jax: 0.10.0
libtpu: 0.0.40
codegen_flags: <defaults>
</compile_context>

<pallas_src>
import math
import functools

import jax
import jax.numpy as jnp
from jax.experimental import pallas as pl
from jax.experimental.pallas import tpu as pltpu

NEG_INF = -1e30  # additive mask value (avoids inf-inf NaN risk)


# --------------------------- in-kernel helpers -------------------------------

def _ln(y, g, b, eps=1e-5):
    """LayerNorm over the last dim, f32 math. g, b broadcast as (1, E)."""
    mean = jnp.mean(y, axis=-1, keepdims=True)
    var = jnp.mean((y - mean) ** 2, axis=-1, keepdims=True)
    return (y - mean) * jax.lax.rsqrt(var + eps) * g + b


def _mm(a, w, b=None):
    """a: f32 activation, w: pre-cast bf16 weight; f32 MXU accumulation."""
    y = jnp.dot(a.astype(jnp.bfloat16), w, preferred_element_type=jnp.float32)
    if b is not None:
        y = y + b
    return y


def _attend(q2, k2, v2, mask, batch, sq, sk, nhead):
    """Batch-folded multi-head attention.

    q2:(B*Sq,E), k2,v2:(B*Sk,E) f32; mask additive, broadcastable to (B,Sq,Sk).
    The 1/sqrt(Dh) scale is already folded into the Q projection weights.
    Returns (B*Sq, E) f32.
    """
    E = q2.shape[-1]
    dh = E // nhead
    q2 = q2.astype(jnp.bfloat16)
    k2 = k2.astype(jnp.bfloat16)
    v2 = v2.astype(jnp.bfloat16)
    outs = []
    for h in range(nhead):  # static unroll; each head is one batched einsum pair
        sl = slice(h * dh, (h + 1) * dh)
        qh = q2[:, sl].reshape(batch, sq, dh)   # leading-dim split: free
        kh = k2[:, sl].reshape(batch, sk, dh)
        vh = v2[:, sl].reshape(batch, sk, dh)
        s = jnp.einsum('bqd,bkd->bqk', qh, kh,
                       preferred_element_type=jnp.float32)        # (B,Sq,Sk)
        s = s + mask
        mx = jnp.max(s, axis=-1, keepdims=True)
        p = jnp.exp(s - mx)
        denom = jnp.sum(p, axis=-1, keepdims=True)
        p = p * pl.reciprocal(denom, approx=True)                  # divide -> EUP
        o = jnp.einsum('bqk,bkd->bqd', p.astype(jnp.bfloat16), vh,
                       preferred_element_type=jnp.float32)         # (B,Sq,Dh)
        outs.append(o.reshape(batch * sq, dh))
    return jnp.concatenate(outs, axis=-1)                          # (B*Sq, E)


# ----------------------------- Pallas kernels --------------------------------

def _enc_stack_kernel(x_ref, mask_ref,
                      wqkv_ref, bqkv_ref, wo_ref, bo_ref,
                      ln1g_ref, ln1b_ref,
                      w1_ref, b1_ref, w2_ref, b2_ref,
                      ln2g_ref, ln2b_ref,
                      fng_ref, fnb_ref,
                      o_ref, *, nhead, batch):
    """One grid step == one encoder layer; o_ref is the resident running activation."""
    l = pl.program_id(0)

    @pl.when(l == 0)
    def _():
        o_ref[...] = x_ref[...]                       # tok*sqrt(E) + pos (prebuilt)

    x = o_ref[...]                                    # (B*Ss, E) f32
    E = x.shape[-1]
    ss = x.shape[0] // batch
    mask = mask_ref[...]                              # (B, Ss, Ss) additive

    qkv = _mm(x, wqkv_ref[...], bqkv_ref[...])        # fused QKV projection
    a = _attend(qkv[:, :E], qkv[:, E:2 * E], qkv[:, 2 * E:], mask,
                batch, ss, ss, nhead)
    y = _ln(x + _mm(a, wo_ref[...], bo_ref[...]), ln1g_ref[...], ln1b_ref[...])

    hid = jnp.maximum(_mm(y, w1_ref[...], b1_ref[...]), 0.0)
    y = _ln(y + _mm(hid, w2_ref[...], b2_ref[...]), ln2g_ref[...], ln2b_ref[...])

    o_ref[...] = y

    @pl.when(l == pl.num_programs(0) - 1)             # fold final encoder norm
    def _():
        o_ref[...] = _ln(y, fng_ref[...], fnb_ref[...])


def _dec_stack_kernel(y0_ref, mem_ref, smask_ref, cmask_ref,
                      wqkv_ref, bqkv_ref, wo_ref, bo_ref,
                      ln1g_ref, ln1b_ref,
                      cwq_ref, cbq_ref, cwkv_ref, cbkv_ref, cwo_ref, cbo_ref,
                      ln2g_ref, ln2b_ref,
                      w1_ref, b1_ref, w2_ref, b2_ref,
                      ln3g_ref, ln3b_ref,
                      fng_ref, fnb_ref, genw_ref, genb_ref,
                      o_ref, act_ref, *, nhead, batch):
    """One grid step == one decoder layer; act_ref (VMEM scratch) is the running
    activation; the final LayerNorm + generator run only on the last step and write
    lane-dense (vocab padded to 128) logits to o_ref."""
    l = pl.program_id(0)

    @pl.when(l == 0)
    def _():
        act_ref[...] = y0_ref[...]

    x = act_ref[...]                                  # (B*St, E)
    mem = mem_ref[...]                                # (B*Ss, E)
    E = x.shape[-1]
    st = x.shape[0] // batch
    ss = mem.shape[0] // batch

    # masked self-attention (fused QKV)
    qkv = _mm(x, wqkv_ref[...], bqkv_ref[...])
    a = _attend(qkv[:, :E], qkv[:, E:2 * E], qkv[:, 2 * E:], smask_ref[...],
                batch, st, st, nhead)
    y = _ln(x + _mm(a, wo_ref[...], bo_ref[...]), ln1g_ref[...], ln1b_ref[...])

    # cross-attention (fused KV projection of memory)
    cq = _mm(y, cwq_ref[...], cbq_ref[...])
    ckv = _mm(mem, cwkv_ref[...], cbkv_ref[...])
    c = _attend(cq, ckv[:, :E], ckv[:, E:], cmask_ref[...], batch, st, ss, nhead)
    z = _ln(y + _mm(c, cwo_ref[...], cbo_ref[...]), ln2g_ref[...], ln2b_ref[...])

    # FFN
    hid = jnp.maximum(_mm(z, w1_ref[...], b1_ref[...]), 0.0)
    z = _ln(z + _mm(hid, w2_ref[...], b2_ref[...]), ln3g_ref[...], ln3b_ref[...])

    act_ref[...] = z

    @pl.when(l == pl.num_programs(0) - 1)             # fold final norm + generator
    def _():
        zf = _ln(z, fng_ref[...], fnb_ref[...])
        o_ref[...] = _mm(zf, genw_ref[...], genb_ref[...])


# ------------------------------ wrappers --------------------------------------

def _fixed(shape):
    n = len(shape)
    return pl.BlockSpec(shape, lambda l, _n=n: (0,) * _n)


def _stacked(shape):
    n = len(shape)
    return pl.BlockSpec((None,) + shape, lambda l, _n=n: (l,) + (0,) * _n)


def encoder_stack(params, x0, mask, *, nhead, batch):
    """x0: (B*Ss, E) = scaled token emb + pos; mask: (B, Ss, Ss) additive."""
    ep = params["enc"]
    L, E, _ = ep["wqkv"].shape
    F = ep["w1"].shape[2]
    M = x0.shape[0]
    ss = M // batch
    return pl.pallas_call(
        functools.partial(_enc_stack_kernel, nhead=nhead, batch=batch),
        out_shape=jax.ShapeDtypeStruct((M, E), jnp.float32),
        grid=(L,),
        in_specs=[
            _fixed((M, E)),                 # x0
            _fixed((batch, ss, ss)),        # additive mask
            _stacked((E, 3 * E)), _stacked((1, 3 * E)),    # fused qkv
            _stacked((E, E)), _stacked((1, E)),            # out proj
            _stacked((1, E)), _stacked((1, E)),            # ln1
            _stacked((E, F)), _stacked((1, F)),            # ffn w1
            _stacked((F, E)), _stacked((1, E)),            # ffn w2
            _stacked((1, E)), _stacked((1, E)),            # ln2
            _fixed((1, E)), _fixed((1, E)),                # final encoder norm
        ],
        out_specs=_fixed((M, E)),
        compiler_params=pltpu.CompilerParams(dimension_semantics=("arbitrary",)),
    )(x0, mask,
      ep["wqkv"], ep["bqkv"], ep["wo"], ep["bo"],
      ep["ln1_g"], ep["ln1_b"],
      ep["w1"], ep["b1"], ep["w2"], ep["b2"],
      ep["ln2_g"], ep["ln2_b"],
      params["enc_norm_g"], params["enc_norm_b"])


def decoder_stack(params, y0, memory, smask, cmask, *, nhead, batch):
    """y0: (B*St, E); memory: (B*Ss, E); smask: (B,St,St); cmask: (B,1,Ss).
    Returns lane-dense padded logits (B*St, Vp)."""
    dp = params["dec"]
    L, E, _ = dp["wqkv"].shape
    F = dp["w1"].shape[2]
    Mt = y0.shape[0]
    Ms = memory.shape[0]
    st = Mt // batch
    ss = Ms // batch
    Vp = params["gen_w"].shape[1]
    return pl.pallas_call(
        functools.partial(_dec_stack_kernel, nhead=nhead, batch=batch),
        out_shape=jax.ShapeDtypeStruct((Mt, Vp), jnp.float32),
        grid=(L,),
        in_specs=[
            _fixed((Mt, E)), _fixed((Ms, E)),
            _fixed((batch, st, st)),        # tgt attn + tgt key padding (additive)
            _fixed((batch, 1, ss)),         # memory key padding (additive)
            _stacked((E, 3 * E)), _stacked((1, 3 * E)),    # self qkv
            _stacked((E, E)), _stacked((1, E)),            # self out proj
            _stacked((1, E)), _stacked((1, E)),            # ln1
            _stacked((E, E)), _stacked((1, E)),            # cross q
            _stacked((E, 2 * E)), _stacked((1, 2 * E)),    # cross kv
            _stacked((E, E)), _stacked((1, E)),            # cross out proj
            _stacked((1, E)), _stacked((1, E)),            # ln2
            _stacked((E, F)), _stacked((1, F)),            # ffn w1
            _stacked((F, E)), _stacked((1, E)),            # ffn w2
            _stacked((1, E)), _stacked((1, E)),            # ln3
            _fixed((1, E)), _fixed((1, E)),                # final decoder norm
            _fixed((E, Vp)), _fixed((1, Vp)),              # generator (padded to 128)
        ],
        out_specs=_fixed((Mt, Vp)),
        scratch_shapes=[pltpu.VMEM((Mt, E), jnp.float32)],
        compiler_params=pltpu.CompilerParams(dimension_semantics=("arbitrary",)),
    )(y0, memory, smask, cmask,
      dp["wqkv"], dp["bqkv"], dp["wo"], dp["bo"],
      dp["ln1_g"], dp["ln1_b"],
      dp["cwq"], dp["cbq"], dp["cwkv"], dp["cbkv"], dp["cwo"], dp["cbo"],
      dp["ln2_g"], dp["ln2_b"],
      dp["w1"], dp["b1"], dp["w2"], dp["b2"],
      dp["ln3_g"], dp["ln3_b"],
      params["dec_norm_g"], params["dec_norm_b"],
      params["gen_w"], params["gen_b"])


# ------------------------------- model glue -----------------------------------

def make_pos_embedding(emb_size, maxlen=64):
    # exactly the PyTorch PositionalEncoding buffer
    den = jnp.exp(-jnp.arange(0, emb_size, 2, dtype=jnp.float32)
                  * math.log(10000.0) / emb_size)
    pos = jnp.arange(0, maxlen, dtype=jnp.float32).reshape(maxlen, 1)
    pd = pos * den                                   # (maxlen, E/2)
    pe = jnp.zeros((maxlen, emb_size), jnp.float32)
    pe = pe.at[:, 0::2].set(jnp.sin(pd))
    pe = pe.at[:, 1::2].set(jnp.cos(pd))
    return pe[:, None, :]                            # (maxlen, 1, E)


def seq2seq_forward(params, src, trg, src_mask, tgt_mask,
                    src_padding_mask, tgt_padding_mask, memory_key_padding_mask,
                    *, emb_size, nhead, tgt_vocab):
    B, Ss = src.shape
    _, St = trg.shape
    E = emb_size

    # token embedding lookup (gather) is XLA glue; sqrt(E) scale baked into the tables.
    # NOTE: positional encoding reproduces the original code bug-for-bug: the pos table is
    # indexed by dim-0 of the batch-first tensor (the batch index), broadcast over sequence.
    pe = params["pe"]                                           # (maxlen, 1, E)
    src_tok = jnp.take(params["src_emb"], src, axis=0)          # (B, Ss, E), already * sqrt(E)
    tgt_tok = jnp.take(params["tgt_emb"], trg, axis=0)          # (B, St, E)
    x0 = (src_tok + jnp.broadcast_to(pe[:B], (B, Ss, E))).reshape(B * Ss, E)
    y0 = (tgt_tok + jnp.broadcast_to(pe[:B], (B, St, E))).reshape(B * St, E)

    # bool key-padding masks -> additive rows, combined once with the attn masks (tiny XLA)
    src_pad = jnp.where(src_padding_mask, NEG_INF, 0.0).astype(jnp.float32)[:, None, :]
    tgt_pad = jnp.where(tgt_padding_mask, NEG_INF, 0.0).astype(jnp.float32)[:, None, :]
    mem_pad = jnp.where(memory_key_padding_mask, NEG_INF, 0.0).astype(jnp.float32)[:, None, :]
    enc_mask = src_mask.astype(jnp.float32)[None, :, :] + src_pad     # (B, Ss, Ss)
    dec_smask = tgt_mask.astype(jnp.float32)[None, :, :] + tgt_pad    # (B, St, St)

    memory = encoder_stack(params, x0, enc_mask, nhead=nhead, batch=B)        # (B*Ss, E)
    logits = decoder_stack(params, y0, memory, dec_smask, mem_pad,
                           nhead=nhead, batch=B)                              # (B*St, Vp)
    return logits[:, :tgt_vocab].reshape(B, St, tgt_vocab)


# ------------------------------- parameters -----------------------------------

_BF16_WEIGHT_KEYS = {"wqkv", "wo", "w1", "w2", "cwq", "cwkv", "cwo"}


def init_params(emb_size, nhead, ffn, src_vocab, tgt_vocab, n_enc, n_dec, seed=0):
    assert emb_size % nhead == 0
    E = emb_size
    dh = E // nhead
    attn_scale = 1.0 / math.sqrt(dh)
    key = jax.random.PRNGKey(seed)
    keys = iter(jax.random.split(key, 4096))

    def nrm(shape, scale=0.02):
        return scale * jax.random.normal(next(keys), shape, jnp.float32)

    zeros = lambda s: jnp.zeros(s, jnp.float32)
    ones = lambda s: jnp.ones(s, jnp.float32)

    def enc_layer_p():
        wqkv = nrm((E, 3 * E))
        bqkv = zeros((1, 3 * E))
        # fold 1/sqrt(Dh) attention scale into the Q projection
        wqkv = wqkv.at[:, :E].multiply(attn_scale)
        bqkv = bqkv.at[:, :E].multiply(attn_scale)
        return dict(wqkv=wqkv, bqkv=bqkv, wo=nrm((E, E)), bo=zeros((1, E)),
                    ln1_g=ones((1, E)), ln1_b=zeros((1, E)),
                    w1=nrm((E, ffn)), b1=zeros((1, ffn)),
                    w2=nrm((ffn, E)), b2=zeros((1, E)),
                    ln2_g=ones((1, E)), ln2_b=zeros((1, E)))

    def dec_layer_p():
        d = enc_layer_p()
        d.update(cwq=nrm((E, E)) * attn_scale, cbq=zeros((1, E)),   # scale folded into cross-Q
                 cwkv=nrm((E, 2 * E)), cbkv=zeros((1, 2 * E)),
                 cwo=nrm((E, E)), cbo=zeros((1, E)),
                 ln3_g=ones((1, E)), ln3_b=zeros((1, E)))
        return d

    def stack(layers):
        out = {}
        for k in layers[0]:
            a = jnp.stack([lyr[k] for lyr in layers], axis=0)
            out[k] = a.astype(jnp.bfloat16) if k in _BF16_WEIGHT_KEYS else a
        return out

    # generator padded once to a lane-dense 128 multiple, weight pre-cast to bf16
    Vp = ((tgt_vocab + 127) // 128) * 128
    gen_w = jnp.pad(nrm((E, tgt_vocab)), ((0, 0), (0, Vp - tgt_vocab))).astype(jnp.bfloat16)
    gen_b = jnp.pad(zeros((1, tgt_vocab)), ((0, 0), (0, Vp - tgt_vocab)))

    return dict(
        src_emb=nrm((src_vocab, E), 1.0) * math.sqrt(E),   # sqrt(E) scale baked in
        tgt_emb=nrm((tgt_vocab, E), 1.0) * math.sqrt(E),
        pe=make_pos_embedding(E),
        enc=stack([enc_layer_p() for _ in range(n_enc)]),
        dec=stack([dec_layer_p() for _ in range(n_dec)]),
        enc_norm_g=ones((1, E)), enc_norm_b=zeros((1, E)),
        dec_norm_g=ones((1, E)), dec_norm_b=zeros((1, E)),
        gen_w=gen_w, gen_b=gen_b,
    )


# ---------------------------------- main ---------------------------------------

if __name__ == "__main__":
    EMB, NHEAD, FFN = 32, 4, 64
    SRC_VOCAB, TGT_VOCAB = 50, 60
    N_ENC, N_DEC = 2, 2
    B, S_SRC, S_TGT = 2, 8, 8

    params = init_params(EMB, NHEAD, FFN, SRC_VOCAB, TGT_VOCAB, N_ENC, N_DEC, seed=0)

    key = jax.random.PRNGKey(0)
    k1, k2 = jax.random.split(key)
    src = jax.random.randint(k1, (B, S_SRC), 0, SRC_VOCAB, dtype=jnp.int32)
    trg = jax.random.randint(k2, (B, S_TGT), 0, TGT_VOCAB, dtype=jnp.int32)

    # masks, as PyTorch would build them
    src_mask = jnp.zeros((S_SRC, S_SRC), jnp.float32)
    tgt_mask = jnp.where(
        jnp.triu(jnp.ones((S_TGT, S_TGT), jnp.bool_), k=1), NEG_INF, 0.0
    ).astype(jnp.float32)
    src_padding_mask = jnp.zeros((B, S_SRC), jnp.bool_).at[1, -2:].set(True)
    tgt_padding_mask = jnp.zeros((B, S_TGT), jnp.bool_).at[1, -1:].set(True)
    memory_key_padding_mask = src_padding_mask

    # TODO(synk): dropout layers are identity here (inference semantics); training-mode
    # dropout would need pltpu PRNG, which changes numerics vs. the PyTorch RNG anyway.
    fwd = jax.jit(functools.partial(seq2seq_forward, emb_size=EMB, nhead=NHEAD,
                                    tgt_vocab=TGT_VOCAB))
    logits = fwd(params, src, trg, src_mask, tgt_mask,
                 src_padding_mask, tgt_padding_mask, memory_key_padding_mask)
    logits = jax.block_until_ready(logits)
    assert logits.shape == (B, S_TGT, TGT_VOCAB)
    assert bool(jnp.all(jnp.isfinite(logits)))
    print("KERNEL_OK")
</pallas_src>

<mosaic_0001>
module attributes {stable_mosaic.version = 11 : i64} {
  func.func @_enc_stack_kernel(%arg0: i32, %arg1: memref<16x32xf32, #tpu.memory_space<vmem>>, %arg2: memref<2x8x8xf32, #tpu.memory_space<vmem>>, %arg3: memref<1x32x96xbf16, #tpu.memory_space<vmem>>, %arg4: memref<1x1x96xf32, #tpu.memory_space<vmem>>, %arg5: memref<1x32x32xbf16, #tpu.memory_space<vmem>>, %arg6: memref<1x1x32xf32, #tpu.memory_space<vmem>>, %arg7: memref<1x1x32xf32, #tpu.memory_space<vmem>>, %arg8: memref<1x1x32xf32, #tpu.memory_space<vmem>>, %arg9: memref<1x32x64xbf16, #tpu.memory_space<vmem>>, %arg10: memref<1x1x64xf32, #tpu.memory_space<vmem>>, %arg11: memref<1x64x32xbf16, #tpu.memory_space<vmem>>, %arg12: memref<1x1x32xf32, #tpu.memory_space<vmem>>, %arg13: memref<1x1x32xf32, #tpu.memory_space<vmem>>, %arg14: memref<1x1x32xf32, #tpu.memory_space<vmem>>, %arg15: memref<1x32xf32, #tpu.memory_space<vmem>>, %arg16: memref<1x32xf32, #tpu.memory_space<vmem>>, %arg17: memref<16x32xf32, #tpu.memory_space<vmem>>) attributes {dimension_semantics = [#tpu.dimension_semantics<arbitrary>], iteration_bounds = array<i64: 2>, scalar_prefetch = 0 : i64, scratch_operands = 0 : i64, tpu.core_type = #tpu.core_type<tc>, window_params = [{pipeline_mode = #tpu.pipeline_mode<synchronous>, transform_indices = @transform_0, window_bounds = array<i64: 16, 32>}, {pipeline_mode = #tpu.pipeline_mode<synchronous>, transform_indices = @transform_1, window_bounds = array<i64: 2, 8, 8>}, {transform_indices = @transform_2, window_bounds = array<i64: 1, 32, 96>}, {transform_indices = @transform_3, window_bounds = array<i64: 1, 1, 96>}, {transform_indices = @transform_4, window_bounds = array<i64: 1, 32, 32>}, {transform_indices = @transform_5, window_bounds = array<i64: 1, 1, 32>}, {transform_indices = @transform_6, window_bounds = array<i64: 1, 1, 32>}, {transform_indices = @transform_7, window_bounds = array<i64: 1, 1, 32>}, {transform_indices = @transform_8, window_bounds = array<i64: 1, 32, 64>}, {transform_indices = @transform_9, window_bounds = array<i64: 1, 1, 64>}, {transform_indices = @transform_10, window_bounds = array<i64: 1, 64, 32>}, {transform_indices = @transform_11, window_bounds = array<i64: 1, 1, 32>}, {transform_indices = @transform_12, window_bounds = array<i64: 1, 1, 32>}, {transform_indices = @transform_13, window_bounds = array<i64: 1, 1, 32>}, {pipeline_mode = #tpu.pipeline_mode<synchronous>, transform_indices = @transform_14, window_bounds = array<i64: 1, 32>}, {pipeline_mode = #tpu.pipeline_mode<synchronous>, transform_indices = @transform_15, window_bounds = array<i64: 1, 32>}, {pipeline_mode = #tpu.pipeline_mode<synchronous>, transform_indices = @transform_16, window_bounds = array<i64: 16, 32>}]} {
    %c0_i32 = arith.constant 0 : i32
    %0 = arith.cmpi eq, %arg0, %c0_i32 : i32
    %1 = arith.extui %0 : i1 to i32
    %c0_i32_0 = arith.constant 0 : i32
    %2 = arith.cmpi ne, %1, %c0_i32_0 : i32
    scf.if %2 {
      %c0_74 = arith.constant 0 : index
      %c0_75 = arith.constant 0 : index
      %188 = vector.load %arg1[%c0_74, %c0_75] : memref<16x32xf32, #tpu.memory_space<vmem>>, vector<16x32xf32>
      %c0_76 = arith.constant 0 : index
      %c0_77 = arith.constant 0 : index
      %189 = vector.load %arg17[%c0_76, %c0_77] : memref<16x32xf32, #tpu.memory_space<vmem>>, vector<16x32xf32>
      tpu.vector_store %arg17[%c0_76, %c0_77], %188 {strides = array<i32>} : memref<16x32xf32, #tpu.memory_space<vmem>>, vector<16x32xf32>,
    } else {
    }
    %c0 = arith.constant 0 : index
    %c0_1 = arith.constant 0 : index
    %3 = vector.load %arg17[%c0, %c0_1] : memref<16x32xf32, #tpu.memory_space<vmem>>, vector<16x32xf32>
    %c0_2 = arith.constant 0 : index
    %c0_3 = arith.constant 0 : index
    %c0_4 = arith.constant 0 : index
    %4 = vector.load %arg2[%c0_2, %c0_3, %c0_4] : memref<2x8x8xf32, #tpu.memory_space<vmem>>, vector<2x8x8xf32>
    %c0_5 = arith.constant 0 : index
    %c0_6 = arith.constant 0 : index
    %c0_7 = arith.constant 0 : index
    %5 = vector.load %arg3[%c0_5, %c0_6, %c0_7] : memref<1x32x96xbf16, #tpu.memory_space<vmem>>, vector<1x32x96xbf16>
    %6 = vector.shape_cast %5 : vector<1x32x96xbf16> to vector<32x96xbf16>
    %c0_8 = arith.constant 0 : index
    %c0_9 = arith.constant 0 : index
    %c0_10 = arith.constant 0 : index
    %7 = vector.load %arg4[%c0_8, %c0_9, %c0_10] : memref<1x1x96xf32, #tpu.memory_space<vmem>>, vector<1x1x96xf32>
    %8 = vector.shape_cast %7 : vector<1x1x96xf32> to vector<1x96xf32>
    %9 = arith.truncf %3 : vector<16x32xf32> to vector<16x32xbf16>
    %cst = arith.constant dense<0.000000e+00> : vector<16x96xf32>
    %10 = tpu.matmul %9, %6, %cst {dimension_numbers = #tpu.dot_dimension_numbers<[1], [0], [0], [1], [0, 0, 1, 1], [], []>} : vector<16x32xbf16>, vector<32x96xbf16>, vector<16x96xf32> -> vector<16x96xf32>
    %11 = vector.broadcast %8 : vector<1x96xf32> to vector<16x96xf32>
    %12 = arith.addf %10, %11 : vector<16x96xf32>
    %13 = vector.extract_strided_slice %12 {offsets = [0, 0], sizes = [16, 32], strides = [1, 1]} : vector<16x96xf32> to vector<16x32xf32>
    %14 = vector.extract_strided_slice %12 {offsets = [0, 32], sizes = [16, 32], strides = [1, 1]} : vector<16x96xf32> to vector<16x32xf32>
    %15 = vector.extract_strided_slice %12 {offsets = [0, 64], sizes = [16, 32], strides = [1, 1]} : vector<16x96xf32> to vector<16x32xf32>
    %16 = arith.truncf %13 : vector<16x32xf32> to vector<16x32xbf16>
    %17 = arith.truncf %14 : vector<16x32xf32> to vector<16x32xbf16>
    %18 = arith.truncf %15 : vector<16x32xf32> to vector<16x32xbf16>
    %19 = vector.extract_strided_slice %16 {offsets = [0, 0], sizes = [16, 8], strides = [1, 1]} : vector<16x32xbf16> to vector<16x8xbf16>
    %20 = vector.shape_cast %19 : vector<16x8xbf16> to vector<2x8x8xbf16>
    %21 = vector.extract_strided_slice %17 {offsets = [0, 0], sizes = [16, 8], strides = [1, 1]} : vector<16x32xbf16> to vector<16x8xbf16>
    %22 = vector.shape_cast %21 : vector<16x8xbf16> to vector<2x8x8xbf16>
    %23 = vector.extract_strided_slice %18 {offsets = [0, 0], sizes = [16, 8], strides = [1, 1]} : vector<16x32xbf16> to vector<16x8xbf16>
    %24 = vector.shape_cast %23 : vector<16x8xbf16> to vector<2x8x8xbf16>
    "tpu.trace_start"() <{level = 10 : i32, message = "bqd,bkd->bqk"}> : () -> ()
    %cst_11 = arith.constant dense<0.000000e+00> : vector<2x8x8xf32>
    %25 = tpu.matmul %20, %22, %cst_11 {dimension_numbers = #tpu.dot_dimension_numbers<[2], [2], [1], [1], [0, 0, 0, 1, 1, 1], [0], [0]>} : vector<2x8x8xbf16>, vector<2x8x8xbf16>, vector<2x8x8xf32> -> vector<2x8x8xf32>
    "tpu.trace_stop"() : () -> ()
    %26 = arith.addf %25, %4 : vector<2x8x8xf32>
    %cst_12 = arith.constant dense<0xFF800000> : vector<2x8xf32>
    %27 = vector.multi_reduction <maximumf>, %26, %cst_12 [2] : vector<2x8x8xf32> to vector<2x8xf32>
    %28 = vector.shape_cast %27 : vector<2x8xf32> to vector<2x8x1xf32>
    %29 = vector.broadcast %28 : vector<2x8x1xf32> to vector<2x8x8xf32>
    %30 = arith.subf %26, %29 : vector<2x8x8xf32>
    %31 = math.exp %30 : vector<2x8x8xf32>
    %cst_13 = arith.constant dense<0.000000e+00> : vector<2x8xf32>
    %32 = vector.multi_reduction <add>, %31, %cst_13 [2] : vector<2x8x8xf32> to vector<2x8xf32>
    %33 = vector.shape_cast %32 : vector<2x8xf32> to vector<2x8x1xf32>
    %34 = tpu.reciprocal %33 {approx = true} : vector<2x8x1xf32> -> vector<2x8x1xf32>
    %35 = vector.broadcast %34 : vector<2x8x1xf32> to vector<2x8x8xf32>
    %36 = arith.mulf %31, %35 : vector<2x8x8xf32>
    %37 = arith.truncf %36 : vector<2x8x8xf32> to vector<2x8x8xbf16>
    "tpu.trace_start"() <{level = 10 : i32, message = "bqk,bkd->bqd"}> : () -> ()
    %cst_14 = arith.constant dense<0.000000e+00> : vector<2x8x8xf32>
    %38 = tpu.matmul %37, %24, %cst_14 {dimension_numbers = #tpu.dot_dimension_numbers<[2], [1], [1], [2], [0, 0, 0, 1, 1, 2], [0], [0]>} : vector<2x8x8xbf16>, vector<2x8x8xbf16>, vector<2x8x8xf32> -> vector<2x8x8xf32>
    "tpu.trace_stop"() : () -> ()
    %39 = vector.shape_cast %38 : vector<2x8x8xf32> to vector<16x8xf32>
    %40 = vector.extract_strided_slice %16 {offsets = [0, 8], sizes = [16, 8], strides = [1, 1]} : vector<16x32xbf16> to vector<16x8xbf16>
    %41 = vector.shape_cast %40 : vector<16x8xbf16> to vector<2x8x8xbf16>
    %42 = vector.extract_strided_slice %17 {offsets = [0, 8], sizes = [16, 8], strides = [1, 1]} : vector<16x32xbf16> to vector<16x8xbf16>
    %43 = vector.shape_cast %42 : vector<16x8xbf16> to vector<2x8x8xbf16>
    %44 = vector.extract_strided_slice %18 {offsets = [0, 8], sizes = [16, 8], strides = [1, 1]} : vector<16x32xbf16> to vector<16x8xbf16>
    %45 = vector.shape_cast %44 : vector<16x8xbf16> to vector<2x8x8xbf16>
    "tpu.trace_start"() <{level = 10 : i32, message = "bqd,bkd->bqk"}> : () -> ()
    %cst_15 = arith.constant dense<0.000000e+00> : vector<2x8x8xf32>
    %46 = tpu.matmul %41, %43, %cst_15 {dimension_numbers = #tpu.dot_dimension_numbers<[2], [2], [1], [1], [0, 0, 0, 1, 1, 1], [0], [0]>} : vector<2x8x8xbf16>, vector<2x8x8xbf16>, vector<2x8x8xf32> -> vector<2x8x8xf32>
    "tpu.trace_stop"() : () -> ()
    %47 = arith.addf %46, %4 : vector<2x8x8xf32>
    %cst_16 = arith.constant dense<0xFF800000> : vector<2x8xf32>
    %48 = vector.multi_reduction <maximumf>, %47, %cst_16 [2] : vector<2x8x8xf32> to vector<2x8xf32>
    %49 = vector.shape_cast %48 : vector<2x8xf32> to vector<2x8x1xf32>
    %50 = vector.broadcast %49 : vector<2x8x1xf32> to vector<2x8x8xf32>
    %51 = arith.subf %47, %50 : vector<2x8x8xf32>
    %52 = math.exp %51 : vector<2x8x8xf32>
    %cst_17 = arith.constant dense<0.000000e+00> : vector<2x8xf32>
    %53 = vector.multi_reduction <add>, %52, %cst_17 [2] : vector<2x8x8xf32> to vector<2x8xf32>
    %54 = vector.shape_cast %53 : vector<2x8xf32> to vector<2x8x1xf32>
    %55 = tpu.reciprocal %54 {approx = true} : vector<2x8x1xf32> -> vector<2x8x1xf32>
    %56 = vector.broadcast %55 : vector<2x8x1xf32> to vector<2x8x8xf32>
    %57 = arith.mulf %52, %56 : vector<2x8x8xf32>
    %58 = arith.truncf %57 : vector<2x8x8xf32> to vector<2x8x8xbf16>
    "tpu.trace_start"() <{level = 10 : i32, message = "bqk,bkd->bqd"}> : () -> ()
    %cst_18 = arith.constant dense<0.000000e+00> : vector<2x8x8xf32>
    %59 = tpu.matmul %58, %45, %cst_18 {dimension_numbers = #tpu.dot_dimension_numbers<[2], [1], [1], [2], [0, 0, 0, 1, 1, 2], [0], [0]>} : vector<2x8x8xbf16>, vector<2x8x8xbf16>, vector<2x8x8xf32> -> vector<2x8x8xf32>
    "tpu.trace_stop"() : () -> ()
    %60 = vector.shape_cast %59 : vector<2x8x8xf32> to vector<16x8xf32>
    %61 = vector.extract_strided_slice %16 {offsets = [0, 16], sizes = [16, 8], strides = [1, 1]} : vector<16x32xbf16> to vector<16x8xbf16>
    %62 = vector.shape_cast %61 : vector<16x8xbf16> to vector<2x8x8xbf16>
    %63 = vector.extract_strided_slice %17 {offsets = [0, 16], sizes = [16, 8], strides = [1, 1]} : vector<16x32xbf16> to vector<16x8xbf16>
    %64 = vector.shape_cast %63 : vector<16x8xbf16> to vector<2x8x8xbf16>
    %65 = vector.extract_strided_slice %18 {offsets = [0, 16], sizes = [16, 8], strides = [1, 1]} : vector<16x32xbf16> to vector<16x8xbf16>
    %66 = vector.shape_cast %65 : vector<16x8xbf16> to vector<2x8x8xbf16>
    "tpu.trace_start"() <{level = 10 : i32, message = "bqd,bkd->bqk"}> : () -> ()
    %cst_19 = arith.constant dense<0.000000e+00> : vector<2x8x8xf32>
    %67 = tpu.matmul %62, %64, %cst_19 {dimension_numbers = #tpu.dot_dimension_numbers<[2], [2], [1], [1], [0, 0, 0, 1, 1, 1], [0], [0]>} : vector<2x8x8xbf16>, vector<2x8x8xbf16>, vector<2x8x8xf32> -> vector<2x8x8xf32>
    "tpu.trace_stop"() : () -> ()
    %68 = arith.addf %67, %4 : vector<2x8x8xf32>
    %cst_20 = arith.constant dense<0xFF800000> : vector<2x8xf32>
    %69 = vector.multi_reduction <maximumf>, %68, %cst_20 [2] : vector<2x8x8xf32> to vector<2x8xf32>
    %70 = vector.shape_cast %69 : vector<2x8xf32> to vector<2x8x1xf32>
    %71 = vector.broadcast %70 : vector<2x8x1xf32> to vector<2x8x8xf32>
    %72 = arith.subf %68, %71 : vector<2x8x8xf32>
    %73 = math.exp %72 : vector<2x8x8xf32>
    %cst_21 = arith.constant dense<0.000000e+00> : vector<2x8xf32>
    %74 = vector.multi_reduction <add>, %73, %cst_21 [2] : vector<2x8x8xf32> to vector<2x8xf32>
    %75 = vector.shape_cast %74 : vector<2x8xf32> to vector<2x8x1xf32>
    %76 = tpu.reciprocal %75 {approx = true} : vector<2x8x1xf32> -> vector<2x8x1xf32>
    %77 = vector.broadcast %76 : vector<2x8x1xf32> to vector<2x8x8xf32>
    %78 = arith.mulf %73, %77 : vector<2x8x8xf32>
    %79 = arith.truncf %78 : vector<2x8x8xf32> to vector<2x8x8xbf16>
    "tpu.trace_start"() <{level = 10 : i32, message = "bqk,bkd->bqd"}> : () -> ()
    %cst_22 = arith.constant dense<0.000000e+00> : vector<2x8x8xf32>
    %80 = tpu.matmul %79, %66, %cst_22 {dimension_numbers = #tpu.dot_dimension_numbers<[2], [1], [1], [2], [0, 0, 0, 1, 1, 2], [0], [0]>} : vector<2x8x8xbf16>, vector<2x8x8xbf16>, vector<2x8x8xf32> -> vector<2x8x8xf32>
    "tpu.trace_stop"() : () -> ()
    %81 = vector.shape_cast %80 : vector<2x8x8xf32> to vector<16x8xf32>
    %82 = vector.extract_strided_slice %16 {offsets = [0, 24], sizes = [16, 8], strides = [1, 1]} : vector<16x32xbf16> to vector<16x8xbf16>
    %83 = vector.shape_cast %82 : vector<16x8xbf16> to vector<2x8x8xbf16>
    %84 = vector.extract_strided_slice %17 {offsets = [0, 24], sizes = [16, 8], strides = [1, 1]} : vector<16x32xbf16> to vector<16x8xbf16>
    %85 = vector.shape_cast %84 : vector<16x8xbf16> to vector<2x8x8xbf16>
    %86 = vector.extract_strided_slice %18 {offsets = [0, 24], sizes = [16, 8], strides = [1, 1]} : vector<16x32xbf16> to vector<16x8xbf16>
    %87 = vector.shape_cast %86 : vector<16x8xbf16> to vector<2x8x8xbf16>
    "tpu.trace_start"() <{level = 10 : i32, message = "bqd,bkd->bqk"}> : () -> ()
    %cst_23 = arith.constant dense<0.000000e+00> : vector<2x8x8xf32>
    %88 = tpu.matmul %83, %85, %cst_23 {dimension_numbers = #tpu.dot_dimension_numbers<[2], [2], [1], [1], [0, 0, 0, 1, 1, 1], [0], [0]>} : vector<2x8x8xbf16>, vector<2x8x8xbf16>, vector<2x8x8xf32> -> vector<2x8x8xf32>
    "tpu.trace_stop"() : () -> ()
    %89 = arith.addf %88, %4 : vector<2x8x8xf32>
    %cst_24 = arith.constant dense<0xFF800000> : vector<2x8xf32>
    %90 = vector.multi_reduction <maximumf>, %89, %cst_24 [2] : vector<2x8x8xf32> to vector<2x8xf32>
    %91 = vector.shape_cast %90 : vector<2x8xf32> to vector<2x8x1xf32>
    %92 = vector.broadcast %91 : vector<2x8x1xf32> to vector<2x8x8xf32>
    %93 = arith.subf %89, %92 : vector<2x8x8xf32>
    %94 = math.exp %93 : vector<2x8x8xf32>
    %cst_25 = arith.constant dense<0.000000e+00> : vector<2x8xf32>
    %95 = vector.multi_reduction <add>, %94, %cst_25 [2] : vector<2x8x8xf32> to vector<2x8xf32>
    %96 = vector.shape_cast %95 : vector<2x8xf32> to vector<2x8x1xf32>
    %97 = tpu.reciprocal %96 {approx = true} : vector<2x8x1xf32> -> vector<2x8x1xf32>
    %98 = vector.broadcast %97 : vector<2x8x1xf32> to vector<2x8x8xf32>
    %99 = arith.mulf %94, %98 : vector<2x8x8xf32>
    %100 = arith.truncf %99 : vector<2x8x8xf32> to vector<2x8x8xbf16>
    "tpu.trace_start"() <{level = 10 : i32, message = "bqk,bkd->bqd"}> : () -> ()
    %cst_26 = arith.constant dense<0.000000e+00> : vector<2x8x8xf32>
    %101 = tpu.matmul %100, %87, %cst_26 {dimension_numbers = #tpu.dot_dimension_numbers<[2], [1], [1], [2], [0, 0, 0, 1, 1, 2], [0], [0]>} : vector<2x8x8xbf16>, vector<2x8x8xbf16>, vector<2x8x8xf32> -> vector<2x8x8xf32>
    "tpu.trace_stop"() : () -> ()
    %102 = vector.shape_cast %101 : vector<2x8x8xf32> to vector<16x8xf32>
    %103 = tpu.concatenate %39, %60, %81, %102 in 1 : vector<16x8xf32>, vector<16x8xf32>, vector<16x8xf32>, vector<16x8xf32> -> vector<16x32xf32>
    %c0_27 = arith.constant 0 : index
    %c0_28 = arith.constant 0 : index
    %c0_29 = arith.constant 0 : index
    %104 = vector.load %arg5[%c0_27, %c0_28, %c0_29] : memref<1x32x32xbf16, #tpu.memory_space<vmem>>, vector<1x32x32xbf16>
    %105 = vector.shape_cast %104 : vector<1x32x32xbf16> to vector<32x32xbf16>
    %c0_30 = arith.constant 0 : index
    %c0_31 = arith.constant 0 : index
    %c0_32 = arith.constant 0 : index
    %106 = vector.load %arg6[%c0_30, %c0_31, %c0_32] : memref<1x1x32xf32, #tpu.memory_space<vmem>>, vector<1x1x32xf32>
    %107 = vector.shape_cast %106 : vector<1x1x32xf32> to vector<1x32xf32>
    %108 = arith.truncf %103 : vector<16x32xf32> to vector<16x32xbf16>
    %cst_33 = arith.constant dense<0.000000e+00> : vector<16x32xf32>
    %109 = tpu.matmul %108, %105, %cst_33 {dimension_numbers = #tpu.dot_dimension_numbers<[1], [0], [0], [1], [0, 0, 1, 1], [], []>} : vector<16x32xbf16>, vector<32x32xbf16>, vector<16x32xf32> -> vector<16x32xf32>
    %110 = vector.broadcast %107 : vector<1x32xf32> to vector<16x32xf32>
    %111 = arith.addf %109, %110 : vector<16x32xf32>
    %112 = arith.addf %3, %111 : vector<16x32xf32>
    %c0_34 = arith.constant 0 : index
    %c0_35 = arith.constant 0 : index
    %c0_36 = arith.constant 0 : index
    %113 = vector.load %arg7[%c0_34, %c0_35, %c0_36] : memref<1x1x32xf32, #tpu.memory_space<vmem>>, vector<1x1x32xf32>
    %114 = vector.shape_cast %113 : vector<1x1x32xf32> to vector<1x32xf32>
    %c0_37 = arith.constant 0 : index
    %c0_38 = arith.constant 0 : index
    %c0_39 = arith.constant 0 : index
    %115 = vector.load %arg8[%c0_37, %c0_38, %c0_39] : memref<1x1x32xf32, #tpu.memory_space<vmem>>, vector<1x1x32xf32>
    %116 = vector.shape_cast %115 : vector<1x1x32xf32> to vector<1x32xf32>
    %cst_40 = arith.constant dense<0.000000e+00> : vector<16xf32>
    %117 = vector.multi_reduction <add>, %112, %cst_40 [1] : vector<16x32xf32> to vector<16xf32>
    %118 = vector.shape_cast %117 : vector<16xf32> to vector<16x1xf32>
    %cst_41 = arith.constant 3.200000e+01 : f32
    %119 = vector.broadcast %cst_41 : f32 to vector<16x1xf32>
    %120 = arith.divf %118, %119 : vector<16x1xf32>
    %121 = vector.broadcast %120 : vector<16x1xf32> to vector<16x32xf32>
    %122 = arith.subf %112, %121 : vector<16x32xf32>
    %123 = arith.mulf %122, %122 : vector<16x32xf32>
    %cst_42 = arith.constant dense<0.000000e+00> : vector<16xf32>
    %124 = vector.multi_reduction <add>, %123, %cst_42 [1] : vector<16x32xf32> to vector<16xf32>
    %125 = vector.shape_cast %124 : vector<16xf32> to vector<16x1xf32>
    %cst_43 = arith.constant 3.200000e+01 : f32
    %126 = vector.broadcast %cst_43 : f32 to vector<16x1xf32>
    %127 = arith.divf %125, %126 : vector<16x1xf32>
    %128 = vector.broadcast %120 : vector<16x1xf32> to vector<16x32xf32>
    %129 = arith.subf %112, %128 : vector<16x32xf32>
    %cst_44 = arith.constant 9.99999974E-6 : f32
    %130 = vector.broadcast %cst_44 : f32 to vector<16x1xf32>
    %131 = arith.addf %127, %130 : vector<16x1xf32>
    %132 = math.rsqrt %131 : vector<16x1xf32>
    %133 = vector.broadcast %132 : vector<16x1xf32> to vector<16x32xf32>
    %134 = arith.mulf %129, %133 : vector<16x32xf32>
    %135 = vector.broadcast %114 : vector<1x32xf32> to vector<16x32xf32>
    %136 = arith.mulf %134, %135 : vector<16x32xf32>
    %137 = vector.broadcast %116 : vector<1x32xf32> to vector<16x32xf32>
    %138 = arith.addf %136, %137 : vector<16x32xf32>
    %c0_45 = arith.constant 0 : index
    %c0_46 = arith.constant 0 : index
    %c0_47 = arith.constant 0 : index
    %139 = vector.load %arg9[%c0_45, %c0_46, %c0_47] : memref<1x32x64xbf16, #tpu.memory_space<vmem>>, vector<1x32x64xbf16>
    %140 = vector.shape_cast %139 : vector<1x32x64xbf16> to vector<32x64xbf16>
    %c0_48 = arith.constant 0 : index
    %c0_49 = arith.constant 0 : index
    %c0_50 = arith.constant 0 : index
    %141 = vector.load %arg10[%c0_48, %c0_49, %c0_50] : memref<1x1x64xf32, #tpu.memory_space<vmem>>, vector<1x1x64xf32>
    %142 = vector.shape_cast %141 : vector<1x1x64xf32> to vector<1x64xf32>
    %143 = arith.truncf %138 : vector<16x32xf32> to vector<16x32xbf16>
    %cst_51 = arith.constant dense<0.000000e+00> : vector<16x64xf32>
    %144 = tpu.matmul %143, %140, %cst_51 {dimension_numbers = #tpu.dot_dimension_numbers<[1], [0], [0], [1], [0, 0, 1, 1], [], []>} : vector<16x32xbf16>, vector<32x64xbf16>, vector<16x64xf32> -> vector<16x64xf32>
    %145 = vector.broadcast %142 : vector<1x64xf32> to vector<16x64xf32>
    %146 = arith.addf %144, %145 : vector<16x64xf32>
    %cst_52 = arith.constant 0.000000e+00 : f32
    %147 = vector.broadcast %cst_52 : f32 to vector<16x64xf32>
    %148 = arith.maximumf %146, %147 : vector<16x64xf32>
    %c0_53 = arith.constant 0 : index
    %c0_54 = arith.constant 0 : index
    %c0_55 = arith.constant 0 : index
    %149 = vector.load %arg11[%c0_53, %c0_54, %c0_55] : memref<1x64x32xbf16, #tpu.memory_space<vmem>>, vector<1x64x32xbf16>
    %150 = vector.shape_cast %149 : vector<1x64x32xbf16> to vector<64x32xbf16>
    %c0_56 = arith.constant 0 : index
    %c0_57 = arith.constant 0 : index
    %c0_58 = arith.constant 0 : index
    %151 = vector.load %arg12[%c0_56, %c0_57, %c0_58] : memref<1x1x32xf32, #tpu.memory_space<vmem>>, vector<1x1x32xf32>
    %152 = vector.shape_cast %151 : vector<1x1x32xf32> to vector<1x32xf32>
    %153 = arith.truncf %148 : vector<16x64xf32> to vector<16x64xbf16>
    %cst_59 = arith.constant dense<0.000000e+00> : vector<16x32xf32>
    %154 = tpu.matmul %153, %150, %cst_59 {dimension_numbers = #tpu.dot_dimension_numbers<[1], [0], [0], [1], [0, 0, 1, 1], [], []>} : vector<16x64xbf16>, vector<64x32xbf16>, vector<16x32xf32> -> vector<16x32xf32>
    %155 = vector.broadcast %152 : vector<1x32xf32> to vector<16x32xf32>
    %156 = arith.addf %154, %155 : vector<16x32xf32>
    %157 = arith.addf %138, %156 : vector<16x32xf32>
    %c0_60 = arith.constant 0 : index
    %c0_61 = arith.constant 0 : index
    %c0_62 = arith.constant 0 : index
    %158 = vector.load %arg13[%c0_60, %c0_61, %c0_62] : memref<1x1x32xf32, #tpu.memory_space<vmem>>, vector<1x1x32xf32>
    %159 = vector.shape_cast %158 : vector<1x1x32xf32> to vector<1x32xf32>
    %c0_63 = arith.constant 0 : index
    %c0_64 = arith.constant 0 : index
    %c0_65 = arith.constant 0 : index
    %160 = vector.load %arg14[%c0_63, %c0_64, %c0_65] : memref<1x1x32xf32, #tpu.memory_space<vmem>>, vector<1x1x32xf32>
    %161 = vector.shape_cast %160 : vector<1x1x32xf32> to vector<1x32xf32>
    %cst_66 = arith.constant dense<0.000000e+00> : vector<16xf32>
    %162 = vector.multi_reduction <add>, %157, %cst_66 [1] : vector<16x32xf32> to vector<16xf32>
    %163 = vector.shape_cast %162 : vector<16xf32> to vector<16x1xf32>
    %cst_67 = arith.constant 3.200000e+01 : f32
    %164 = vector.broadcast %cst_67 : f32 to vector<16x1xf32>
    %165 = arith.divf %163, %164 : vector<16x1xf32>
    %166 = vector.broadcast %165 : vector<16x1xf32> to vector<16x32xf32>
    %167 = arith.subf %157, %166 : vector<16x32xf32>
    %168 = arith.mulf %167, %167 : vector<16x32xf32>
    %cst_68 = arith.constant dense<0.000000e+00> : vector<16xf32>
    %169 = vector.multi_reduction <add>, %168, %cst_68 [1] : vector<16x32xf32> to vector<16xf32>
    %170 = vector.shape_cast %169 : vector<16xf32> to vector<16x1xf32>
    %cst_69 = arith.constant 3.200000e+01 : f32
    %171 = vector.broadcast %cst_69 : f32 to vector<16x1xf32>
    %172 = arith.divf %170, %171 : vector<16x1xf32>
    %173 = vector.broadcast %165 : vector<16x1xf32> to vector<16x32xf32>
    %174 = arith.subf %157, %173 : vector<16x32xf32>
    %cst_70 = arith.constant 9.99999974E-6 : f32
    %175 = vector.broadcast %cst_70 : f32 to vector<16x1xf32>
    %176 = arith.addf %172, %175 : vector<16x1xf32>
    %177 = math.rsqrt %176 : vector<16x1xf32>
    %178 = vector.broadcast %177 : vector<16x1xf32> to vector<16x32xf32>
    %179 = arith.mulf %174, %178 : vector<16x32xf32>
    %180 = vector.broadcast %159 : vector<1x32xf32> to vector<16x32xf32>
    %181 = arith.mulf %179, %180 : vector<16x32xf32>
    %182 = vector.broadcast %161 : vector<1x32xf32> to vector<16x32xf32>
    %183 = arith.addf %181, %182 : vector<16x32xf32>
    %c0_71 = arith.constant 0 : index
    %c0_72 = arith.constant 0 : index
    %184 = vector.load %arg17[%c0_71, %c0_72] : memref<16x32xf32, #tpu.memory_space<vmem>>, vector<16x32xf32>
    tpu.vector_store %arg17[%c0_71, %c0_72], %183 {strides = array<i32>} : memref<16x32xf32, #tpu.memory_space<vmem>>, vector<16x32xf32>,
    %c1_i32 = arith.constant 1 : i32
    %185 = arith.cmpi eq, %arg0, %c1_i32 : i32
    %186 = arith.extui %185 : i1 to i32
    %c0_i32_73 = arith.constant 0 : i32
    %187 = arith.cmpi ne, %186, %c0_i32_73 : i32
    scf.if %187 {
      %c0_74 = arith.constant 0 : index
      %c0_75 = arith.constant 0 : index
      %188 = vector.load %arg15[%c0_74, %c0_75] : memref<1x32xf32, #tpu.memory_space<vmem>>, vector<1x32xf32>
      %c0_76 = arith.constant 0 : index
      %c0_77 = arith.constant 0 : index
      %189 = vector.load %arg16[%c0_76, %c0_77] : memref<1x32xf32, #tpu.memory_space<vmem>>, vector<1x32xf32>
      %cst_78 = arith.constant dense<0.000000e+00> : vector<16xf32>
      %190 = vector.multi_reduction <add>, %183, %cst_78 [1] : vector<16x32xf32> to vector<16xf32>
      %191 = vector.shape_cast %190 : vector<16xf32> to vector<16x1xf32>
      %cst_79 = arith.constant 3.200000e+01 : f32
      %192 = vector.broadcast %cst_79 : f32 to vector<16x1xf32>
      %193 = arith.divf %191, %192 : vector<16x1xf32>
      %194 = vector.broadcast %193 : vector<16x1xf32> to vector<16x32xf32>
      %195 = arith.subf %183, %194 : vector<16x32xf32>
      %196 = arith.mulf %195, %195 : vector<16x32xf32>
      %cst_80 = arith.constant dense<0.000000e+00> : vector<16xf32>
      %197 = vector.multi_reduction <add>, %196, %cst_80 [1] : vector<16x32xf32> to vector<16xf32>
      %198 = vector.shape_cast %197 : vector<16xf32> to vector<16x1xf32>
      %cst_81 = arith.constant 3.200000e+01 : f32
      %199 = vector.broadcast %cst_81 : f32 to vector<16x1xf32>
      %200 = arith.divf %198, %199 : vector<16x1xf32>
      %201 = vector.broadcast %193 : vector<16x1xf32> to vector<16x32xf32>
      %202 = arith.subf %183, %201 : vector<16x32xf32>
      %cst_82 = arith.constant 9.99999974E-6 : f32
      %203 = vector.broadcast %cst_82 : f32 to vector<16x1xf32>
      %204 = arith.addf %200, %203 : vector<16x1xf32>
      %205 = math.rsqrt %204 : vector<16x1xf32>
      %206 = vector.broadcast %205 : vector<16x1xf32> to vector<16x32xf32>
      %207 = arith.mulf %202, %206 : vector<16x32xf32>
      %208 = vector.broadcast %188 : vector<1x32xf32> to vector<16x32xf32>
      %209 = arith.mulf %207, %208 : vector<16x32xf32>
      %210 = vector.broadcast %189 : vector<1x32xf32> to vector<16x32xf32>
      %211 = arith.addf %209, %210 : vector<16x32xf32>
      %c0_83 = arith.constant 0 : index
      %c0_84 = arith.constant 0 : index
      %212 = vector.load %arg17[%c0_83, %c0_84] : memref<16x32xf32, #tpu.memory_space<vmem>>, vector<16x32xf32>
      tpu.vector_store %arg17[%c0_83, %c0_84], %211 {strides = array<i32>} : memref<16x32xf32, #tpu.memory_space<vmem>>, vector<16x32xf32>,
    } else {
    }
    return
  }
  func.func @transform_0(%arg0: i32) -> (i32, i32) {
    %c0_i32 = arith.constant 0 : i32
    %c0_i32_0 = arith.constant 0 : i32
    %c0_i32_1 = arith.constant 0 : i32
    return %c0_i32, %c0_i32_0 : i32, i32
  }
  func.func @transform_1(%arg0: i32) -> (i32, i32, i32) {
    %c0_i32 = arith.constant 0 : i32
    %c0_i32_0 = arith.constant 0 : i32
    %c0_i32_1 = arith.constant 0 : i32
    %c0_i32_2 = arith.constant 0 : i32
    return %c0_i32, %c0_i32_0, %c0_i32_1 : i32, i32, i32
  }
  func.func @transform_2(%arg0: i32) -> (i32, i32, i32) {
    %c0_i32 = arith.constant 0 : i32
    %c0_i32_0 = arith.constant 0 : i32
    %c0_i32_1 = arith.constant 0 : i32
    return %arg0, %c0_i32, %c0_i32_0 : i32, i32, i32
  }
  func.func @transform_3(%arg0: i32) -> (i32, i32, i32) {
    %c0_i32 = arith.constant 0 : i32
    %c0_i32_0 = arith.constant 0 : i32
    %c0_i32_1 = arith.constant 0 : i32
    return %arg0, %c0_i32, %c0_i32_0 : i32, i32, i32
  }
  func.func @transform_4(%arg0: i32) -> (i32, i32, i32) {
    %c0_i32 = arith.constant 0 : i32
    %c0_i32_0 = arith.constant 0 : i32
    %c0_i32_1 = arith.constant 0 : i32
    return %arg0, %c0_i32, %c0_i32_0 : i32, i32, i32
  }
  func.func @transform_5(%arg0: i32) -> (i32, i32, i32) {
    %c0_i32 = arith.constant 0 : i32
    %c0_i32_0 = arith.constant 0 : i32
    %c0_i32_1 = arith.constant 0 : i32
    return %arg0, %c0_i32, %c0_i32_0 : i32, i32, i32
  }
  func.func @transform_6(%arg0: i32) -> (i32, i32, i32) {
    %c0_i32 = arith.constant 0 : i32
    %c0_i32_0 = arith.constant 0 : i32
    %c0_i32_1 = arith.constant 0 : i32
    return %arg0, %c0_i32, %c0_i32_0 : i32, i32, i32
  }
  func.func @transform_7(%arg0: i32) -> (i32, i32, i32) {
    %c0_i32 = arith.constant 0 : i32
    %c0_i32_0 = arith.constant 0 : i32
    %c0_i32_1 = arith.constant 0 : i32
    return %arg0, %c0_i32, %c0_i32_0 : i32, i32, i32
  }
  func.func @transform_8(%arg0: i32) -> (i32, i32, i32) {
    %c0_i32 = arith.constant 0 : i32
    %c0_i32_0 = arith.constant 0 : i32
    %c0_i32_1 = arith.constant 0 : i32
    return %arg0, %c0_i32, %c0_i32_0 : i32, i32, i32
  }
  func.func @transform_9(%arg0: i32) -> (i32, i32, i32) {
    %c0_i32 = arith.constant 0 : i32
    %c0_i32_0 = arith.constant 0 : i32
    %c0_i32_1 = arith.constant 0 : i32
    return %arg0, %c0_i32, %c0_i32_0 : i32, i32, i32
  }
  func.func @transform_10(%arg0: i32) -> (i32, i32, i32) {
    %c0_i32 = arith.constant 0 : i32
    %c0_i32_0 = arith.constant 0 : i32
    %c0_i32_1 = arith.constant 0 : i32
    return %arg0, %c0_i32, %c0_i32_0 : i32, i32, i32
  }
  func.func @transform_11(%arg0: i32) -> (i32, i32, i32) {
    %c0_i32 = arith.constant 0 : i32
    %c0_i32_0 = arith.constant 0 : i32
    %c0_i32_1 = arith.constant 0 : i32
    return %arg0, %c0_i32, %c0_i32_0 : i32, i32, i32
  }
  func.func @transform_12(%arg0: i32) -> (i32, i32, i32) {
    %c0_i32 = arith.constant 0 : i32
    %c0_i32_0 = arith.constant 0 : i32
    %c0_i32_1 = arith.constant 0 : i32
    return %arg0, %c0_i32, %c0_i32_0 : i32, i32, i32
  }
  func.func @transform_13(%arg0: i32) -> (i32, i32, i32) {
    %c0_i32 = arith.constant 0 : i32
    %c0_i32_0 = arith.constant 0 : i32
    %c0_i32_1 = arith.constant 0 : i32
    return %arg0, %c0_i32, %c0_i32_0 : i32, i32, i32
  }
  func.func @transform_14(%arg0: i32) -> (i32, i32) {
    %c0_i32 = arith.constant 0 : i32
    %c0_i32_0 = arith.constant 0 : i32
    %c0_i32_1 = arith.constant 0 : i32
    return %c0_i32, %c0_i32_0 : i32, i32
  }
  func.func @transform_15(%arg0: i32) -> (i32, i32) {
    %c0_i32 = arith.constant 0 : i32
    %c0_i32_0 = arith.constant 0 : i32
    %c0_i32_1 = arith.constant 0 : i32
    return %c0_i32, %c0_i32_0 : i32, i32
  }
  func.func @transform_16(%arg0: i32) -> (i32, i32) {
    %c0_i32 = arith.constant 0 : i32
    %c0_i32_0 = arith.constant 0 : i32
    %c0_i32_1 = arith.constant 0 : i32
    return %c0_i32, %c0_i32_0 : i32, i32
  }
}

module attributes {stable_mosaic.version = 11 : i64} {
  func.func @_dec_stack_kernel(%arg0: i32, %arg1: memref<16x32xf32, #tpu.memory_space<vmem>>, %arg2: memref<16x32xf32, #tpu.memory_space<vmem>>, %arg3: memref<2x8x8xf32, #tpu.memory_space<vmem>>, %arg4: memref<2x1x8xf32, #tpu.memory_space<vmem>>, %arg5: memref<1x32x96xbf16, #tpu.memory_space<vmem>>, %arg6: memref<1x1x96xf32, #tpu.memory_space<vmem>>, %arg7: memref<1x32x32xbf16, #tpu.memory_space<vmem>>, %arg8: memref<1x1x32xf32, #tpu.memory_space<vmem>>, %arg9: memref<1x1x32xf32, #tpu.memory_space<vmem>>, %arg10: memref<1x1x32xf32, #tpu.memory_space<vmem>>, %arg11: memref<1x32x32xbf16, #tpu.memory_space<vmem>>, %arg12: memref<1x1x32xf32, #tpu.memory_space<vmem>>, %arg13: memref<1x32x64xbf16, #tpu.memory_space<vmem>>, %arg14: memref<1x1x64xf32, #tpu.memory_space<vmem>>, %arg15: memref<1x32x32xbf16, #tpu.memory_space<vmem>>, %arg16: memref<1x1x32xf32, #tpu.memory_space<vmem>>, %arg17: memref<1x1x32xf32, #tpu.memory_space<vmem>>, %arg18: memref<1x1x32xf32, #tpu.memory_space<vmem>>, %arg19: memref<1x32x64xbf16, #tpu.memory_space<vmem>>, %arg20: memref<1x1x64xf32, #tpu.memory_space<vmem>>, %arg21: memref<1x64x32xbf16, #tpu.memory_space<vmem>>, %arg22: memref<1x1x32xf32, #tpu.memory_space<vmem>>, %arg23: memref<1x1x32xf32, #tpu.memory_space<vmem>>, %arg24: memref<1x1x32xf32, #tpu.memory_space<vmem>>, %arg25: memref<1x32xf32, #tpu.memory_space<vmem>>, %arg26: memref<1x32xf32, #tpu.memory_space<vmem>>, %arg27: memref<32x128xbf16, #tpu.memory_space<vmem>>, %arg28: memref<1x128xf32, #tpu.memory_space<vmem>>, %arg29: memref<16x128xf32, #tpu.memory_space<vmem>>, %arg30: memref<16x32xf32, #tpu.memory_space<vmem>>) attributes {dimension_semantics = [#tpu.dimension_semantics<arbitrary>], iteration_bounds = array<i64: 2>, scalar_prefetch = 0 : i64, scratch_operands = 1 : i64, tpu.core_type = #tpu.core_type<tc>, window_params = [{pipeline_mode = #tpu.pipeline_mode<synchronous>, transform_indices = @transform_0, window_bounds = array<i64: 16, 32>}, {pipeline_mode = #tpu.pipeline_mode<synchronous>, transform_indices = @transform_1, window_bounds = array<i64: 16, 32>}, {pipeline_mode = #tpu.pipeline_mode<synchronous>, transform_indices = @transform_2, window_bounds = array<i64: 2, 8, 8>}, {pipeline_mode = #tpu.pipeline_mode<synchronous>, transform_indices = @transform_3, window_bounds = array<i64: 2, 1, 8>}, {transform_indices = @transform_4, window_bounds = array<i64: 1, 32, 96>}, {transform_indices = @transform_5, window_bounds = array<i64: 1, 1, 96>}, {transform_indices = @transform_6, window_bounds = array<i64: 1, 32, 32>}, {transform_indices = @transform_7, window_bounds = array<i64: 1, 1, 32>}, {transform_indices = @transform_8, window_bounds = array<i64: 1, 1, 32>}, {transform_indices = @transform_9, window_bounds = array<i64: 1, 1, 32>}, {transform_indices = @transform_10, window_bounds = array<i64: 1, 32, 32>}, {transform_indices = @transform_11, window_bounds = array<i64: 1, 1, 32>}, {transform_indices = @transform_12, window_bounds = array<i64: 1, 32, 64>}, {transform_indices = @transform_13, window_bounds = array<i64: 1, 1, 64>}, {transform_indices = @transform_14, window_bounds = array<i64: 1, 32, 32>}, {transform_indices = @transform_15, window_bounds = array<i64: 1, 1, 32>}, {transform_indices = @transform_16, window_bounds = array<i64: 1, 1, 32>}, {transform_indices = @transform_17, window_bounds = array<i64: 1, 1, 32>}, {transform_indices = @transform_18, window_bounds = array<i64: 1, 32, 64>}, {transform_indices = @transform_19, window_bounds = array<i64: 1, 1, 64>}, {transform_indices = @transform_20, window_bounds = array<i64: 1, 64, 32>}, {transform_indices = @transform_21, window_bounds = array<i64: 1, 1, 32>}, {transform_indices = @transform_22, window_bounds = array<i64: 1, 1, 32>}, {transform_indices = @transform_23, window_bounds = array<i64: 1, 1, 32>}, {pipeline_mode = #tpu.pipeline_mode<synchronous>, transform_indices = @transform_24, window_bounds = array<i64: 1, 32>}, {pipeline_mode = #tpu.pipeline_mode<synchronous>, transform_indices = @transform_25, window_bounds = array<i64: 1, 32>}, {pipeline_mode = #tpu.pipeline_mode<synchronous>, transform_indices = @transform_26, window_bounds = array<i64: 32, 128>}, {pipeline_mode = #tpu.pipeline_mode<synchronous>, transform_indices = @transform_27, window_bounds = array<i64: 1, 128>}, {pipeline_mode = #tpu.pipeline_mode<synchronous>, transform_indices = @transform_28, window_bounds = array<i64: 16, 128>}]} {
    %c0_i32 = arith.constant 0 : i32
    %0 = arith.cmpi eq, %arg0, %c0_i32 : i32
    %1 = arith.extui %0 : i1 to i32
    %c0_i32_0 = arith.constant 0 : i32
    %2 = arith.cmpi ne, %1, %c0_i32_0 : i32
    scf.if %2 {
      %c0_127 = arith.constant 0 : index
      %c0_128 = arith.constant 0 : index
      %335 = vector.load %arg1[%c0_127, %c0_128] : memref<16x32xf32, #tpu.memory_space<vmem>>, vector<16x32xf32>
      %c0_129 = arith.constant 0 : index
      %c0_130 = arith.constant 0 : index
      %336 = vector.load %arg30[%c0_129, %c0_130] : memref<16x32xf32, #tpu.memory_space<vmem>>, vector<16x32xf32>
      tpu.vector_store %arg30[%c0_129, %c0_130], %335 {strides = array<i32>} : memref<16x32xf32, #tpu.memory_space<vmem>>, vector<16x32xf32>,
    } else {
    }
    %c0 = arith.constant 0 : index
    %c0_1 = arith.constant 0 : index
    %3 = vector.load %arg30[%c0, %c0_1] : memref<16x32xf32, #tpu.memory_space<vmem>>, vector<16x32xf32>
    %c0_2 = arith.constant 0 : index
    %c0_3 = arith.constant 0 : index
    %4 = vector.load %arg2[%c0_2, %c0_3] : memref<16x32xf32, #tpu.memory_space<vmem>>, vector<16x32xf32>
    %c0_4 = arith.constant 0 : index
    %c0_5 = arith.constant 0 : index
    %c0_6 = arith.constant 0 : index
    %5 = vector.load %arg5[%c0_4, %c0_5, %c0_6] : memref<1x32x96xbf16, #tpu.memory_space<vmem>>, vector<1x32x96xbf16>
    %6 = vector.shape_cast %5 : vector<1x32x96xbf16> to vector<32x96xbf16>
    %c0_7 = arith.constant 0 : index
    %c0_8 = arith.constant 0 : index
    %c0_9 = arith.constant 0 : index
    %7 = vector.load %arg6[%c0_7, %c0_8, %c0_9] : memref<1x1x96xf32, #tpu.memory_space<vmem>>, vector<1x1x96xf32>
    %8 = vector.shape_cast %7 : vector<1x1x96xf32> to vector<1x96xf32>
    %9 = arith.truncf %3 : vector<16x32xf32> to vector<16x32xbf16>
    %cst = arith.constant dense<0.000000e+00> : vector<16x96xf32>
    %10 = tpu.matmul %9, %6, %cst {dimension_numbers = #tpu.dot_dimension_numbers<[1], [0], [0], [1], [0, 0, 1, 1], [], []>} : vector<16x32xbf16>, vector<32x96xbf16>, vector<16x96xf32> -> vector<16x96xf32>
    %11 = vector.broadcast %8 : vector<1x96xf32> to vector<16x96xf32>
    %12 = arith.addf %10, %11 : vector<16x96xf32>
    %13 = vector.extract_strided_slice %12 {offsets = [0, 0], sizes = [16, 32], strides = [1, 1]} : vector<16x96xf32> to vector<16x32xf32>
    %14 = vector.extract_strided_slice %12 {offsets = [0, 32], sizes = [16, 32], strides = [1, 1]} : vector<16x96xf32> to vector<16x32xf32>
    %15 = vector.extract_strided_slice %12 {offsets = [0, 64], sizes = [16, 32], strides = [1, 1]} : vector<16x96xf32> to vector<16x32xf32>
    %c0_10 = arith.constant 0 : index
    %c0_11 = arith.constant 0 : index
    %c0_12 = arith.constant 0 : index
    %16 = vector.load %arg3[%c0_10, %c0_11, %c0_12] : memref<2x8x8xf32, #tpu.memory_space<vmem>>, vector<2x8x8xf32>
    %17 = arith.truncf %13 : vector<16x32xf32> to vector<16x32xbf16>
    %18 = arith.truncf %14 : vector<16x32xf32> to vector<16x32xbf16>
    %19 = arith.truncf %15 : vector<16x32xf32> to vector<16x32xbf16>
    %20 = vector.extract_strided_slice %17 {offsets = [0, 0], sizes = [16, 8], strides = [1, 1]} : vector<16x32xbf16> to vector<16x8xbf16>
    %21 = vector.shape_cast %20 : vector<16x8xbf16> to vector<2x8x8xbf16>
    %22 = vector.extract_strided_slice %18 {offsets = [0, 0], sizes = [16, 8], strides = [1, 1]} : vector<16x32xbf16> to vector<16x8xbf16>
    %23 = vector.shape_cast %22 : vector<16x8xbf16> to vector<2x8x8xbf16>
    %24 = vector.extract_strided_slice %19 {offsets = [0, 0], sizes = [16, 8], strides = [1, 1]} : vector<16x32xbf16> to vector<16x8xbf16>
    %25 = vector.shape_cast %24 : vector<16x8xbf16> to vector<2x8x8xbf16>
    "tpu.trace_start"() <{level = 10 : i32, message = "bqd,bkd->bqk"}> : () -> ()
    %cst_13 = arith.constant dense<0.000000e+00> : vector<2x8x8xf32>
    %26 = tpu.matmul %21, %23, %cst_13 {dimension_numbers = #tpu.dot_dimension_numbers<[2], [2], [1], [1], [0, 0, 0, 1, 1, 1], [0], [0]>} : vector<2x8x8xbf16>, vector<2x8x8xbf16>, vector<2x8x8xf32> -> vector<2x8x8xf32>
    "tpu.trace_stop"() : () -> ()
    %27 = arith.addf %26, %16 : vector<2x8x8xf32>
    %cst_14 = arith.constant dense<0xFF800000> : vector<2x8xf32>
    %28 = vector.multi_reduction <maximumf>, %27, %cst_14 [2] : vector<2x8x8xf32> to vector<2x8xf32>
    %29 = vector.shape_cast %28 : vector<2x8xf32> to vector<2x8x1xf32>
    %30 = vector.broadcast %29 : vector<2x8x1xf32> to vector<2x8x8xf32>
    %31 = arith.subf %27, %30 : vector<2x8x8xf32>
    %32 = math.exp %31 : vector<2x8x8xf32>
    %cst_15 = arith.constant dense<0.000000e+00> : vector<2x8xf32>
    %33 = vector.multi_reduction <add>, %32, %cst_15 [2] : vector<2x8x8xf32> to vector<2x8xf32>
    %34 = vector.shape_cast %33 : vector<2x8xf32> to vector<2x8x1xf32>
    %35 = tpu.reciprocal %34 {approx = true} : vector<2x8x1xf32> -> vector<2x8x1xf32>
    %36 = vector.broadcast %35 : vector<2x8x1xf32> to vector<2x8x8xf32>
    %37 = arith.mulf %32, %36 : vector<2x8x8xf32>
    %38 = arith.truncf %37 : vector<2x8x8xf32> to vector<2x8x8xbf16>
    "tpu.trace_start"() <{level = 10 : i32, message = "bqk,bkd->bqd"}> : () -> ()
    %cst_16 = arith.constant dense<0.000000e+00> : vector<2x8x8xf32>
    %39 = tpu.matmul %38, %25, %cst_16 {dimension_numbers = #tpu.dot_dimension_numbers<[2], [1], [1], [2], [0, 0, 0, 1, 1, 2], [0], [0]>} : vector<2x8x8xbf16>, vector<2x8x8xbf16>, vector<2x8x8xf32> -> vector<2x8x8xf32>
    "tpu.trace_stop"() : () -> ()
    %40 = vector.shape_cast %39 : vector<2x8x8xf32> to vector<16x8xf32>
    %41 = vector.extract_strided_slice %17 {offsets = [0, 8], sizes = [16, 8], strides = [1, 1]} : vector<16x32xbf16> to vector<16x8xbf16>
    %42 = vector.shape_cast %41 : vector<16x8xbf16> to vector<2x8x8xbf16>
    %43 = vector.extract_strided_slice %18 {offsets = [0, 8], sizes = [16, 8], strides = [1, 1]} : vector<16x32xbf16> to vector<16x8xbf16>
    %44 = vector.shape_cast %43 : vector<16x8xbf16> to vector<2x8x8xbf16>
    %45 = vector.extract_strided_slice %19 {offsets = [0, 8], sizes = [16, 8], strides = [1, 1]} : vector<16x32xbf16> to vector<16x8xbf16>
    %46 = vector.shape_cast %45 : vector<16x8xbf16> to vector<2x8x8xbf16>
    "tpu.trace_start"() <{level = 10 : i32, message = "bqd,bkd->bqk"}> : () -> ()
    %cst_17 = arith.constant dense<0.000000e+00> : vector<2x8x8xf32>
    %47 = tpu.matmul %42, %44, %cst_17 {dimension_numbers = #tpu.dot_dimension_numbers<[2], [2], [1], [1], [0, 0, 0, 1, 1, 1], [0], [0]>} : vector<2x8x8xbf16>, vector<2x8x8xbf16>, vector<2x8x8xf32> -> vector<2x8x8xf32>
    "tpu.trace_stop"() : () -> ()
    %48 = arith.addf %47, %16 : vector<2x8x8xf32>
    %cst_18 = arith.constant dense<0xFF800000> : vector<2x8xf32>
    %49 = vector.multi_reduction <maximumf>, %48, %cst_18 [2] : vector<2x8x8xf32> to vector<2x8xf32>
    %50 = vector.shape_cast %49 : vector<2x8xf32> to vector<2x8x1xf32>
    %51 = vector.broadcast %50 : vector<2x8x1xf32> to vector<2x8x8xf32>
    %52 = arith.subf %48, %51 : vector<2x8x8xf32>
    %53 = math.exp %52 : vector<2x8x8xf32>
    %cst_19 = arith.constant dense<0.000000e+00> : vector<2x8xf32>
    %54 = vector.multi_reduction <add>, %53, %cst_19 [2] : vector<2x8x8xf32> to vector<2x8xf32>
    %55 = vector.shape_cast %54 : vector<2x8xf32> to vector<2x8x1xf32>
    %56 = tpu.reciprocal %55 {approx = true} : vector<2x8x1xf32> -> vector<2x8x1xf32>
    %57 = vector.broadcast %56 : vector<2x8x1xf32> to vector<2x8x8xf32>
    %58 = arith.mulf %53, %57 : vector<2x8x8xf32>
    %59 = arith.truncf %58 : vector<2x8x8xf32> to vector<2x8x8xbf16>
    "tpu.trace_start"() <{level = 10 : i32, message = "bqk,bkd->bqd"}> : () -> ()
    %cst_20 = arith.constant dense<0.000000e+00> : vector<2x8x8xf32>
    %60 = tpu.matmul %59, %46, %cst_20 {dimension_numbers = #tpu.dot_dimension_numbers<[2], [1], [1], [2], [0, 0, 0, 1, 1, 2], [0], [0]>} : vector<2x8x8xbf16>, vector<2x8x8xbf16>, vector<2x8x8xf32> -> vector<2x8x8xf32>
    "tpu.trace_stop"() : () -> ()
    %61 = vector.shape_cast %60 : vector<2x8x8xf32> to vector<16x8xf32>
    %62 = vector.extract_strided_slice %17 {offsets = [0, 16], sizes = [16, 8], strides = [1, 1]} : vector<16x32xbf16> to vector<16x8xbf16>
    %63 = vector.shape_cast %62 : vector<16x8xbf16> to vector<2x8x8xbf16>
    %64 = vector.extract_strided_slice %18 {offsets = [0, 16], sizes = [16, 8], strides = [1, 1]} : vector<16x32xbf16> to vector<16x8xbf16>
    %65 = vector.shape_cast %64 : vector<16x8xbf16> to vector<2x8x8xbf16>
    %66 = vector.extract_strided_slice %19 {offsets = [0, 16], sizes = [16, 8], strides = [1, 1]} : vector<16x32xbf16> to vector<16x8xbf16>
    %67 = vector.shape_cast %66 : vector<16x8xbf16> to vector<2x8x8xbf16>
    "tpu.trace_start"() <{level = 10 : i32, message = "bqd,bkd->bqk"}> : () -> ()
    %cst_21 = arith.constant dense<0.000000e+00> : vector<2x8x8xf32>
    %68 = tpu.matmul %63, %65, %cst_21 {dimension_numbers = #tpu.dot_dimension_numbers<[2], [2], [1], [1], [0, 0, 0, 1, 1, 1], [0], [0]>} : vector<2x8x8xbf16>, vector<2x8x8xbf16>, vector<2x8x8xf32> -> vector<2x8x8xf32>
    "tpu.trace_stop"() : () -> ()
    %69 = arith.addf %68, %16 : vector<2x8x8xf32>
    %cst_22 = arith.constant dense<0xFF800000> : vector<2x8xf32>
    %70 = vector.multi_reduction <maximumf>, %69, %cst_22 [2] : vector<2x8x8xf32> to vector<2x8xf32>
    %71 = vector.shape_cast %70 : vector<2x8xf32> to vector<2x8x1xf32>
    %72 = vector.broadcast %71 : vector<2x8x1xf32> to vector<2x8x8xf32>
    %73 = arith.subf %69, %72 : vector<2x8x8xf32>
    %74 = math.exp %73 : vector<2x8x8xf32>
    %cst_23 = arith.constant dense<0.000000e+00> : vector<2x8xf32>
    %75 = vector.multi_reduction <add>, %74, %cst_23 [2] : vector<2x8x8xf32> to vector<2x8xf32>
    %76 = vector.shape_cast %75 : vector<2x8xf32> to vector<2x8x1xf32>
    %77 = tpu.reciprocal %76 {approx = true} : vector<2x8x1xf32> -> vector<2x8x1xf32>
    %78 = vector.broadcast %77 : vector<2x8x1xf32> to vector<2x8x8xf32>
    %79 = arith.mulf %74, %78 : vector<2x8x8xf32>
    %80 = arith.truncf %79 : vector<2x8x8xf32> to vector<2x8x8xbf16>
    "tpu.trace_start"() <{level = 10 : i32, message = "bqk,bkd->bqd"}> : () -> ()
    %cst_24 = arith.constant dense<0.000000e+00> : vector<2x8x8xf32>
    %81 = tpu.matmul %80, %67, %cst_24 {dimension_numbers = #tpu.dot_dimension_numbers<[2], [1], [1], [2], [0, 0, 0, 1, 1, 2], [0], [0]>} : vector<2x8x8xbf16>, vector<2x8x8xbf16>, vector<2x8x8xf32> -> vector<2x8x8xf32>
    "tpu.trace_stop"() : () -> ()
    %82 = vector.shape_cast %81 : vector<2x8x8xf32> to vector<16x8xf32>
    %83 = vector.extract_strided_slice %17 {offsets = [0, 24], sizes = [16, 8], strides = [1, 1]} : vector<16x32xbf16> to vector<16x8xbf16>
    %84 = vector.shape_cast %83 : vector<16x8xbf16> to vector<2x8x8xbf16>
    %85 = vector.extract_strided_slice %18 {offsets = [0, 24], sizes = [16, 8], strides = [1, 1]} : vector<16x32xbf16> to vector<16x8xbf16>
    %86 = vector.shape_cast %85 : vector<16x8xbf16> to vector<2x8x8xbf16>
    %87 = vector.extract_strided_slice %19 {offsets = [0, 24], sizes = [16, 8], strides = [1, 1]} : vector<16x32xbf16> to vector<16x8xbf16>
    %88 = vector.shape_cast %87 : vector<16x8xbf16> to vector<2x8x8xbf16>
    "tpu.trace_start"() <{level = 10 : i32, message = "bqd,bkd->bqk"}> : () -> ()
    %cst_25 = arith.constant dense<0.000000e+00> : vector<2x8x8xf32>
    %89 = tpu.matmul %84, %86, %cst_25 {dimension_numbers = #tpu.dot_dimension_numbers<[2], [2], [1], [1], [0, 0, 0, 1, 1, 1], [0], [0]>} : vector<2x8x8xbf16>, vector<2x8x8xbf16>, vector<2x8x8xf32> -> vector<2x8x8xf32>
    "tpu.trace_stop"() : () -> ()
    %90 = arith.addf %89, %16 : vector<2x8x8xf32>
    %cst_26 = arith.constant dense<0xFF800000> : vector<2x8xf32>
    %91 = vector.multi_reduction <maximumf>, %90, %cst_26 [2] : vector<2x8x8xf32> to vector<2x8xf32>
    %92 = vector.shape_cast %91 : vector<2x8xf32> to vector<2x8x1xf32>
    %93 = vector.broadcast %92 : vector<2x8x1xf32> to vector<2x8x8xf32>
    %94 = arith.subf %90, %93 : vector<2x8x8xf32>
    %95 = math.exp %94 : vector<2x8x8xf32>
    %cst_27 = arith.constant dense<0.000000e+00> : vector<2x8xf32>
    %96 = vector.multi_reduction <add>, %95, %cst_27 [2] : vector<2x8x8xf32> to vector<2x8xf32>
    %97 = vector.shape_cast %96 : vector<2x8xf32> to vector<2x8x1xf32>
    %98 = tpu.reciprocal %97 {approx = true} : vector<2x8x1xf32> -> vector<2x8x1xf32>
    %99 = vector.broadcast %98 : vector<2x8x1xf32> to vector<2x8x8xf32>
    %100 = arith.mulf %95, %99 : vector<2x8x8xf32>
    %101 = arith.truncf %100 : vector<2x8x8xf32> to vector<2x8x8xbf16>
    "tpu.trace_start"() <{level = 10 : i32, message = "bqk,bkd->bqd"}> : () -> ()
    %cst_28 = arith.constant dense<0.000000e+00> : vector<2x8x8xf32>
    %102 = tpu.matmul %101, %88, %cst_28 {dimension_numbers = #tpu.dot_dimension_numbers<[2], [1], [1], [2], [0, 0, 0, 1, 1, 2], [0], [0]>} : vector<2x8x8xbf16>, vector<2x8x8xbf16>, vector<2x8x8xf32> -> vector<2x8x8xf32>
    "tpu.trace_stop"() : () -> ()
    %103 = vector.shape_cast %102 : vector<2x8x8xf32> to vector<16x8xf32>
    %104 = tpu.concatenate %40, %61, %82, %103 in 1 : vector<16x8xf32>, vector<16x8xf32>, vector<16x8xf32>, vector<16x8xf32> -> vector<16x32xf32>
    %c0_29 = arith.constant 0 : index
    %c0_30 = arith.constant 0 : index
    %c0_31 = arith.constant 0 : index
    %105 = vector.load %arg7[%c0_29, %c0_30, %c0_31] : memref<1x32x32xbf16, #tpu.memory_space<vmem>>, vector<1x32x32xbf16>
    %106 = vector.shape_cast %105 : vector<1x32x32xbf16> to vector<32x32xbf16>
    %c0_32 = arith.constant 0 : index
    %c0_33 = arith.constant 0 : index
    %c0_34 = arith.constant 0 : index
    %107 = vector.load %arg8[%c0_32, %c0_33, %c0_34] : memref<1x1x32xf32, #tpu.memory_space<vmem>>, vector<1x1x32xf32>
    %108 = vector.shape_cast %107 : vector<1x1x32xf32> to vector<1x32xf32>
    %109 = arith.truncf %104 : vector<16x32xf32> to vector<16x32xbf16>
    %cst_35 = arith.constant dense<0.000000e+00> : vector<16x32xf32>
    %110 = tpu.matmul %109, %106, %cst_35 {dimension_numbers = #tpu.dot_dimension_numbers<[1], [0], [0], [1], [0, 0, 1, 1], [], []>} : vector<16x32xbf16>, vector<32x32xbf16>, vector<16x32xf32> -> vector<16x32xf32>
    %111 = vector.broadcast %108 : vector<1x32xf32> to vector<16x32xf32>
    %112 = arith.addf %110, %111 : vector<16x32xf32>
    %113 = arith.addf %3, %112 : vector<16x32xf32>
    %c0_36 = arith.constant 0 : index
    %c0_37 = arith.constant 0 : index
    %c0_38 = arith.constant 0 : index
    %114 = vector.load %arg9[%c0_36, %c0_37, %c0_38] : memref<1x1x32xf32, #tpu.memory_space<vmem>>, vector<1x1x32xf32>
    %115 = vector.shape_cast %114 : vector<1x1x32xf32> to vector<1x32xf32>
    %c0_39 = arith.constant 0 : index
    %c0_40 = arith.constant 0 : index
    %c0_41 = arith.constant 0 : index
    %116 = vector.load %arg10[%c0_39, %c0_40, %c0_41] : memref<1x1x32xf32, #tpu.memory_space<vmem>>, vector<1x1x32xf32>
    %117 = vector.shape_cast %116 : vector<1x1x32xf32> to vector<1x32xf32>
    %cst_42 = arith.constant dense<0.000000e+00> : vector<16xf32>
    %118 = vector.multi_reduction <add>, %113, %cst_42 [1] : vector<16x32xf32> to vector<16xf32>
    %119 = vector.shape_cast %118 : vector<16xf32> to vector<16x1xf32>
    %cst_43 = arith.constant 3.200000e+01 : f32
    %120 = vector.broadcast %cst_43 : f32 to vector<16x1xf32>
    %121 = arith.divf %119, %120 : vector<16x1xf32>
    %122 = vector.broadcast %121 : vector<16x1xf32> to vector<16x32xf32>
    %123 = arith.subf %113, %122 : vector<16x32xf32>
    %124 = arith.mulf %123, %123 : vector<16x32xf32>
    %cst_44 = arith.constant dense<0.000000e+00> : vector<16xf32>
    %125 = vector.multi_reduction <add>, %124, %cst_44 [1] : vector<16x32xf32> to vector<16xf32>
    %126 = vector.shape_cast %125 : vector<16xf32> to vector<16x1xf32>
    %cst_45 = arith.constant 3.200000e+01 : f32
    %127 = vector.broadcast %cst_45 : f32 to vector<16x1xf32>
    %128 = arith.divf %126, %127 : vector<16x1xf32>
    %129 = vector.broadcast %121 : vector<16x1xf32> to vector<16x32xf32>
    %130 = arith.subf %113, %129 : vector<16x32xf32>
    %cst_46 = arith.constant 9.99999974E-6 : f32
    %131 = vector.broadcast %cst_46 : f32 to vector<16x1xf32>
    %132 = arith.addf %128, %131 : vector<16x1xf32>
    %133 = math.rsqrt %132 : vector<16x1xf32>
    %134 = vector.broadcast %133 : vector<16x1xf32> to vector<16x32xf32>
    %135 = arith.mulf %130, %134 : vector<16x32xf32>
    %136 = vector.broadcast %115 : vector<1x32xf32> to vector<16x32xf32>
    %137 = arith.mulf %135, %136 : vector<16x32xf32>
    %138 = vector.broadcast %117 : vector<1x32xf32> to vector<16x32xf32>
    %139 = arith.addf %137, %138 : vector<16x32xf32>
    %c0_47 = arith.constant 0 : index
    %c0_48 = arith.constant 0 : index
    %c0_49 = arith.constant 0 : index
    %140 = vector.load %arg11[%c0_47, %c0_48, %c0_49] : memref<1x32x32xbf16, #tpu.memory_space<vmem>>, vector<1x32x32xbf16>
    %141 = vector.shape_cast %140 : vector<1x32x32xbf16> to vector<32x32xbf16>
    %c0_50 = arith.constant 0 : index
    %c0_51 = arith.constant 0 : index
    %c0_52 = arith.constant 0 : index
    %142 = vector.load %arg12[%c0_50, %c0_51, %c0_52] : memref<1x1x32xf32, #tpu.memory_space<vmem>>, vector<1x1x32xf32>
    %143 = vector.shape_cast %142 : vector<1x1x32xf32> to vector<1x32xf32>
    %144 = arith.truncf %139 : vector<16x32xf32> to vector<16x32xbf16>
    %cst_53 = arith.constant dense<0.000000e+00> : vector<16x32xf32>
    %145 = tpu.matmul %144, %141, %cst_53 {dimension_numbers = #tpu.dot_dimension_numbers<[1], [0], [0], [1], [0, 0, 1, 1], [], []>} : vector<16x32xbf16>, vector<32x32xbf16>, vector<16x32xf32> -> vector<16x32xf32>
    %146 = vector.broadcast %143 : vector<1x32xf32> to vector<16x32xf32>
    %147 = arith.addf %145, %146 : vector<16x32xf32>
    %c0_54 = arith.constant 0 : index
    %c0_55 = arith.constant 0 : index
    %c0_56 = arith.constant 0 : index
    %148 = vector.load %arg13[%c0_54, %c0_55, %c0_56] : memref<1x32x64xbf16, #tpu.memory_space<vmem>>, vector<1x32x64xbf16>
    %149 = vector.shape_cast %148 : vector<1x32x64xbf16> to vector<32x64xbf16>
    %c0_57 = arith.constant 0 : index
    %c0_58 = arith.constant 0 : index
    %c0_59 = arith.constant 0 : index
    %150 = vector.load %arg14[%c0_57, %c0_58, %c0_59] : memref<1x1x64xf32, #tpu.memory_space<vmem>>, vector<1x1x64xf32>
    %151 = vector.shape_cast %150 : vector<1x1x64xf32> to vector<1x64xf32>
    %152 = arith.truncf %4 : vector<16x32xf32> to vector<16x32xbf16>
    %cst_60 = arith.constant dense<0.000000e+00> : vector<16x64xf32>
    %153 = tpu.matmul %152, %149, %cst_60 {dimension_numbers = #tpu.dot_dimension_numbers<[1], [0], [0], [1], [0, 0, 1, 1], [], []>} : vector<16x32xbf16>, vector<32x64xbf16>, vector<16x64xf32> -> vector<16x64xf32>
    %154 = vector.broadcast %151 : vector<1x64xf32> to vector<16x64xf32>
    %155 = arith.addf %153, %154 : vector<16x64xf32>
    %156 = vector.extract_strided_slice %155 {offsets = [0, 0], sizes = [16, 32], strides = [1, 1]} : vector<16x64xf32> to vector<16x32xf32>
    %157 = vector.extract_strided_slice %155 {offsets = [0, 32], sizes = [16, 32], strides = [1, 1]} : vector<16x64xf32> to vector<16x32xf32>
    %c0_61 = arith.constant 0 : index
    %c0_62 = arith.constant 0 : index
    %c0_63 = arith.constant 0 : index
    %158 = vector.load %arg4[%c0_61, %c0_62, %c0_63] : memref<2x1x8xf32, #tpu.memory_space<vmem>>, vector<2x1x8xf32>
    %159 = arith.truncf %147 : vector<16x32xf32> to vector<16x32xbf16>
    %160 = arith.truncf %156 : vector<16x32xf32> to vector<16x32xbf16>
    %161 = arith.truncf %157 : vector<16x32xf32> to vector<16x32xbf16>
    %162 = vector.extract_strided_slice %159 {offsets = [0, 0], sizes = [16, 8], strides = [1, 1]} : vector<16x32xbf16> to vector<16x8xbf16>
    %163 = vector.shape_cast %162 : vector<16x8xbf16> to vector<2x8x8xbf16>
    %164 = vector.extract_strided_slice %160 {offsets = [0, 0], sizes = [16, 8], strides = [1, 1]} : vector<16x32xbf16> to vector<16x8xbf16>
    %165 = vector.shape_cast %164 : vector<16x8xbf16> to vector<2x8x8xbf16>
    %166 = vector.extract_strided_slice %161 {offsets = [0, 0], sizes = [16, 8], strides = [1, 1]} : vector<16x32xbf16> to vector<16x8xbf16>
    %167 = vector.shape_cast %166 : vector<16x8xbf16> to vector<2x8x8xbf16>
    "tpu.trace_start"() <{level = 10 : i32, message = "bqd,bkd->bqk"}> : () -> ()
    %cst_64 = arith.constant dense<0.000000e+00> : vector<2x8x8xf32>
    %168 = tpu.matmul %163, %165, %cst_64 {dimension_numbers = #tpu.dot_dimension_numbers<[2], [2], [1], [1], [0, 0, 0, 1, 1, 1], [0], [0]>} : vector<2x8x8xbf16>, vector<2x8x8xbf16>, vector<2x8x8xf32> -> vector<2x8x8xf32>
    "tpu.trace_stop"() : () -> ()
    %169 = vector.broadcast %158 : vector<2x1x8xf32> to vector<2x8x8xf32>
    %170 = arith.addf %168, %169 : vector<2x8x8xf32>
    %cst_65 = arith.constant dense<0xFF800000> : vector<2x8xf32>
    %171 = vector.multi_reduction <maximumf>, %170, %cst_65 [2] : vector<2x8x8xf32> to vector<2x8xf32>
    %172 = vector.shape_cast %171 : vector<2x8xf32> to vector<2x8x1xf32>
    %173 = vector.broadcast %172 : vector<2x8x1xf32> to vector<2x8x8xf32>
    %174 = arith.subf %170, %173 : vector<2x8x8xf32>
    %175 = math.exp %174 : vector<2x8x8xf32>
    %cst_66 = arith.constant dense<0.000000e+00> : vector<2x8xf32>
    %176 = vector.multi_reduction <add>, %175, %cst_66 [2] : vector<2x8x8xf32> to vector<2x8xf32>
    %177 = vector.shape_cast %176 : vector<2x8xf32> to vector<2x8x1xf32>
    %178 = tpu.reciprocal %177 {approx = true} : vector<2x8x1xf32> -> vector<2x8x1xf32>
    %179 = vector.broadcast %178 : vector<2x8x1xf32> to vector<2x8x8xf32>
    %180 = arith.mulf %175, %179 : vector<2x8x8xf32>
    %181 = arith.truncf %180 : vector<2x8x8xf32> to vector<2x8x8xbf16>
    "tpu.trace_start"() <{level = 10 : i32, message = "bqk,bkd->bqd"}> : () -> ()
    %cst_67 = arith.constant dense<0.000000e+00> : vector<2x8x8xf32>
    %182 = tpu.matmul %181, %167, %cst_67 {dimension_numbers = #tpu.dot_dimension_numbers<[2], [1], [1], [2], [0, 0, 0, 1, 1, 2], [0], [0]>} : vector<2x8x8xbf16>, vector<2x8x8xbf16>, vector<2x8x8xf32> -> vector<2x8x8xf32>
    "tpu.trace_stop"() : () -> ()
    %183 = vector.shape_cast %182 : vector<2x8x8xf32> to vector<16x8xf32>
    %184 = vector.extract_strided_slice %159 {offsets = [0, 8], sizes = [16, 8], strides = [1, 1]} : vector<16x32xbf16> to vector<16x8xbf16>
    %185 = vector.shape_cast %184 : vector<16x8xbf16> to vector<2x8x8xbf16>
    %186 = vector.extract_strided_slice %160 {offsets = [0, 8], sizes = [16, 8], strides = [1, 1]} : vector<16x32xbf16> to vector<16x8xbf16>
    %187 = vector.shape_cast %186 : vector<16x8xbf16> to vector<2x8x8xbf16>
    %188 = vector.extract_strided_slice %161 {offsets = [0, 8], sizes = [16, 8], strides = [1, 1]} : vector<16x32xbf16> to vector<16x8xbf16>
    %189 = vector.shape_cast %188 : vector<16x8xbf16> to vector<2x8x8xbf16>
    "tpu.trace_start"() <{level = 10 : i32, message = "bqd,bkd->bqk"}> : () -> ()
    %cst_68 = arith.constant dense<0.000000e+00> : vector<2x8x8xf32>
    %190 = tpu.matmul %185, %187, %cst_68 {dimension_numbers = #tpu.dot_dimension_numbers<[2], [2], [1], [1], [0, 0, 0, 1, 1, 1], [0], [0]>} : vector<2x8x8xbf16>, vector<2x8x8xbf16>, vector<2x8x8xf32> -> vector<2x8x8xf32>
    "tpu.trace_stop"() : () -> ()
    %191 = vector.broadcast %158 : vector<2x1x8xf32> to vector<2x8x8xf32>
    %192 = arith.addf %190, %191 : vector<2x8x8xf32>
    %cst_69 = arith.constant dense<0xFF800000> : vector<2x8xf32>
    %193 = vector.multi_reduction <maximumf>, %192, %cst_69 [2] : vector<2x8x8xf32> to vector<2x8xf32>
    %194 = vector.shape_cast %193 : vector<2x8xf32> to vector<2x8x1xf32>
    %195 = vector.broadcast %194 : vector<2x8x1xf32> to vector<2x8x8xf32>
    %196 = arith.subf %192, %195 : vector<2x8x8xf32>
    %197 = math.exp %196 : vector<2x8x8xf32>
    %cst_70 = arith.constant dense<0.000000e+00> : vector<2x8xf32>
    %198 = vector.multi_reduction <add>, %197, %cst_70 [2] : vector<2x8x8xf32> to vector<2x8xf32>
    %199 = vector.shape_cast %198 : vector<2x8xf32> to vector<2x8x1xf32>
    %200 = tpu.reciprocal %199 {approx = true} : vector<2x8x1xf32> -> vector<2x8x1xf32>
    %201 = vector.broadcast %200 : vector<2x8x1xf32> to vector<2x8x8xf32>
    %202 = arith.mulf %197, %201 : vector<2x8x8xf32>
    %203 = arith.truncf %202 : vector<2x8x8xf32> to vector<2x8x8xbf16>
    "tpu.trace_start"() <{level = 10 : i32, message = "bqk,bkd->bqd"}> : () -> ()
    %cst_71 = arith.constant dense<0.000000e+00> : vector<2x8x8xf32>
    %204 = tpu.matmul %203, %189, %cst_71 {dimension_numbers = #tpu.dot_dimension_numbers<[2], [1], [1], [2], [0, 0, 0, 1, 1, 2], [0], [0]>} : vector<2x8x8xbf16>, vector<2x8x8xbf16>, vector<2x8x8xf32> -> vector<2x8x8xf32>
    "tpu.trace_stop"() : () -> ()
    %205 = vector.shape_cast %204 : vector<2x8x8xf32> to vector<16x8xf32>
    %206 = vector.extract_strided_slice %159 {offsets = [0, 16], sizes = [16, 8], strides = [1, 1]} : vector<16x32xbf16> to vector<16x8xbf16>
    %207 = vector.shape_cast %206 : vector<16x8xbf16> to vector<2x8x8xbf16>
    %208 = vector.extract_strided_slice %160 {offsets = [0, 16], sizes = [16, 8], strides = [1, 1]} : vector<16x32xbf16> to vector<16x8xbf16>
    %209 = vector.shape_cast %208 : vector<16x8xbf16> to vector<2x8x8xbf16>
    %210 = vector.extract_strided_slice %161 {offsets = [0, 16], sizes = [16, 8], strides = [1, 1]} : vector<16x32xbf16> to vector<16x8xbf16>
    %211 = vector.shape_cast %210 : vector<16x8xbf16> to vector<2x8x8xbf16>
    "tpu.trace_start"() <{level = 10 : i32, message = "bqd,bkd->bqk"}> : () -> ()
    %cst_72 = arith.constant dense<0.000000e+00> : vector<2x8x8xf32>
    %212 = tpu.matmul %207, %209, %cst_72 {dimension_numbers = #tpu.dot_dimension_numbers<[2], [2], [1], [1], [0, 0, 0, 1, 1, 1], [0], [0]>} : vector<2x8x8xbf16>, vector<2x8x8xbf16>, vector<2x8x8xf32> -> vector<2x8x8xf32>
    "tpu.trace_stop"() : () -> ()
    %213 = vector.broadcast %158 : vector<2x1x8xf32> to vector<2x8x8xf32>
    %214 = arith.addf %212, %213 : vector<2x8x8xf32>
    %cst_73 = arith.constant dense<0xFF800000> : vector<2x8xf32>
    %215 = vector.multi_reduction <maximumf>, %214, %cst_73 [2] : vector<2x8x8xf32> to vector<2x8xf32>
    %216 = vector.shape_cast %215 : vector<2x8xf32> to vector<2x8x1xf32>
    %217 = vector.broadcast %216 : vector<2x8x1xf32> to vector<2x8x8xf32>
    %218 = arith.subf %214, %217 : vector<2x8x8xf32>
    %219 = math.exp %218 : vector<2x8x8xf32>
    %cst_74 = arith.constant dense<0.000000e+00> : vector<2x8xf32>
    %220 = vector.multi_reduction <add>, %219, %cst_74 [2] : vector<2x8x8xf32> to vector<2x8xf32>
    %221 = vector.shape_cast %220 : vector<2x8xf32> to vector<2x8x1xf32>
    %222 = tpu.reciprocal %221 {approx = true} : vector<2x8x1xf32> -> vector<2x8x1xf32>
    %223 = vector.broadcast %222 : vector<2x8x1xf32> to vector<2x8x8xf32>
    %224 = arith.mulf %219, %223 : vector<2x8x8xf32>
    %225 = arith.truncf %224 : vector<2x8x8xf32> to vector<2x8x8xbf16>
    "tpu.trace_start"() <{level = 10 : i32, message = "bqk,bkd->bqd"}> : () -> ()
    %cst_75 = arith.constant dense<0.000000e+00> : vector<2x8x8xf32>
    %226 = tpu.matmul %225, %211, %cst_75 {dimension_numbers = #tpu.dot_dimension_numbers<[2], [1], [1], [2], [0, 0, 0, 1, 1, 2], [0], [0]>} : vector<2x8x8xbf16>, vector<2x8x8xbf16>, vector<2x8x8xf32> -> vector<2x8x8xf32>
    "tpu.trace_stop"() : () -> ()
    %227 = vector.shape_cast %226 : vector<2x8x8xf32> to vector<16x8xf32>
    %228 = vector.extract_strided_slice %159 {offsets = [0, 24], sizes = [16, 8], strides = [1, 1]} : vector<16x32xbf16> to vector<16x8xbf16>
    %229 = vector.shape_cast %228 : vector<16x8xbf16> to vector<2x8x8xbf16>
    %230 = vector.extract_strided_slice %160 {offsets = [0, 24], sizes = [16, 8], strides = [1, 1]} : vector<16x32xbf16> to vector<16x8xbf16>
    %231 = vector.shape_cast %230 : vector<16x8xbf16> to vector<2x8x8xbf16>
    %232 = vector.extract_strided_slice %161 {offsets = [0, 24], sizes = [16, 8], strides = [1, 1]} : vector<16x32xbf16> to vector<16x8xbf16>
    %233 = vector.shape_cast %232 : vector<16x8xbf16> to vector<2x8x8xbf16>
    "tpu.trace_start"() <{level = 10 : i32, message = "bqd,bkd->bqk"}> : () -> ()
    %cst_76 = arith.constant dense<0.000000e+00> : vector<2x8x8xf32>
    %234 = tpu.matmul %229, %231, %cst_76 {dimension_numbers = #tpu.dot_dimension_numbers<[2], [2], [1], [1], [0, 0, 0, 1, 1, 1], [0], [0]>} : vector<2x8x8xbf16>, vector<2x8x8xbf16>, vector<2x8x8xf32> -> vector<2x8x8xf32>
    "tpu.trace_stop"() : () -> ()
    %235 = vector.broadcast %158 : vector<2x1x8xf32> to vector<2x8x8xf32>
    %236 = arith.addf %234, %235 : vector<2x8x8xf32>
    %cst_77 = arith.constant dense<0xFF800000> : vector<2x8xf32>
    %237 = vector.multi_reduction <maximumf>, %236, %cst_77 [2] : vector<2x8x8xf32> to vector<2x8xf32>
    %238 = vector.shape_cast %237 : vector<2x8xf32> to vector<2x8x1xf32>
    %239 = vector.broadcast %238 : vector<2x8x1xf32> to vector<2x8x8xf32>
    %240 = arith.subf %236, %239 : vector<2x8x8xf32>
    %241 = math.exp %240 : vector<2x8x8xf32>
    %cst_78 = arith.constant dense<0.000000e+00> : vector<2x8xf32>
    %242 = vector.multi_reduction <add>, %241, %cst_78 [2] : vector<2x8x8xf32> to vector<2x8xf32>
    %243 = vector.shape_cast %242 : vector<2x8xf32> to vector<2x8x1xf32>
    %244 = tpu.reciprocal %243 {approx = true} : vector<2x8x1xf32> -> vector<2x8x1xf32>
    %245 = vector.broadcast %244 : vector<2x8x1xf32> to vector<2x8x8xf32>
    %246 = arith.mulf %241, %245 : vector<2x8x8xf32>
    %247 = arith.truncf %246 : vector<2x8x8xf32> to vector<2x8x8xbf16>
    "tpu.trace_start"() <{level = 10 : i32, message = "bqk,bkd->bqd"}> : () -> ()
    %cst_79 = arith.constant dense<0.000000e+00> : vector<2x8x8xf32>
    %248 = tpu.matmul %247, %233, %cst_79 {dimension_numbers = #tpu.dot_dimension_numbers<[2], [1], [1], [2], [0, 0, 0, 1, 1, 2], [0], [0]>} : vector<2x8x8xbf16>, vector<2x8x8xbf16>, vector<2x8x8xf32> -> vector<2x8x8xf32>
    "tpu.trace_stop"() : () -> ()
    %249 = vector.shape_cast %248 : vector<2x8x8xf32> to vector<16x8xf32>
    %250 = tpu.concatenate %183, %205, %227, %249 in 1 : vector<16x8xf32>, vector<16x8xf32>, vector<16x8xf32>, vector<16x8xf32> -> vector<16x32xf32>
    %c0_80 = arith.constant 0 : index
    %c0_81 = arith.constant 0 : index
    %c0_82 = arith.constant 0 : index
    %251 = vector.load %arg15[%c0_80, %c0_81, %c0_82] : memref<1x32x32xbf16, #tpu.memory_space<vmem>>, vector<1x32x32xbf16>
    %252 = vector.shape_cast %251 : vector<1x32x32xbf16> to vector<32x32xbf16>
    %c0_83 = arith.constant 0 : index
    %c0_84 = arith.constant 0 : index
    %c0_85 = arith.constant 0 : index
    %253 = vector.load %arg16[%c0_83, %c0_84, %c0_85] : memref<1x1x32xf32, #tpu.memory_space<vmem>>, vector<1x1x32xf32>
    %254 = vector.shape_cast %253 : vector<1x1x32xf32> to vector<1x32xf32>
    %255 = arith.truncf %250 : vector<16x32xf32> to vector<16x32xbf16>
    %cst_86 = arith.constant dense<0.000000e+00> : vector<16x32xf32>
    %256 = tpu.matmul %255, %252, %cst_86 {dimension_numbers = #tpu.dot_dimension_numbers<[1], [0], [0], [1], [0, 0, 1, 1], [], []>} : vector<16x32xbf16>, vector<32x32xbf16>, vector<16x32xf32> -> vector<16x32xf32>
    %257 = vector.broadcast %254 : vector<1x32xf32> to vector<16x32xf32>
    %258 = arith.addf %256, %257 : vector<16x32xf32>
    %259 = arith.addf %139, %258 : vector<16x32xf32>
    %c0_87 = arith.constant 0 : index
    %c0_88 = arith.constant 0 : index
    %c0_89 = arith.constant 0 : index
    %260 = vector.load %arg17[%c0_87, %c0_88, %c0_89] : memref<1x1x32xf32, #tpu.memory_space<vmem>>, vector<1x1x32xf32>
    %261 = vector.shape_cast %260 : vector<1x1x32xf32> to vector<1x32xf32>
    %c0_90 = arith.constant 0 : index
    %c0_91 = arith.constant 0 : index
    %c0_92 = arith.constant 0 : index
    %262 = vector.load %arg18[%c0_90, %c0_91, %c0_92] : memref<1x1x32xf32, #tpu.memory_space<vmem>>, vector<1x1x32xf32>
    %263 = vector.shape_cast %262 : vector<1x1x32xf32> to vector<1x32xf32>
    %cst_93 = arith.constant dense<0.000000e+00> : vector<16xf32>
    %264 = vector.multi_reduction <add>, %259, %cst_93 [1] : vector<16x32xf32> to vector<16xf32>
    %265 = vector.shape_cast %264 : vector<16xf32> to vector<16x1xf32>
    %cst_94 = arith.constant 3.200000e+01 : f32
    %266 = vector.broadcast %cst_94 : f32 to vector<16x1xf32>
    %267 = arith.divf %265, %266 : vector<16x1xf32>
    %268 = vector.broadcast %267 : vector<16x1xf32> to vector<16x32xf32>
    %269 = arith.subf %259, %268 : vector<16x32xf32>
    %270 = arith.mulf %269, %269 : vector<16x32xf32>
    %cst_95 = arith.constant dense<0.000000e+00> : vector<16xf32>
    %271 = vector.multi_reduction <add>, %270, %cst_95 [1] : vector<16x32xf32> to vector<16xf32>
    %272 = vector.shape_cast %271 : vector<16xf32> to vector<16x1xf32>
    %cst_96 = arith.constant 3.200000e+01 : f32
    %273 = vector.broadcast %cst_96 : f32 to vector<16x1xf32>
    %274 = arith.divf %272, %273 : vector<16x1xf32>
    %275 = vector.broadcast %267 : vector<16x1xf32> to vector<16x32xf32>
    %276 = arith.subf %259, %275 : vector<16x32xf32>
    %cst_97 = arith.constant 9.99999974E-6 : f32
    %277 = vector.broadcast %cst_97 : f32 to vector<16x1xf32>
    %278 = arith.addf %274, %277 : vector<16x1xf32>
    %279 = math.rsqrt %278 : vector<16x1xf32>
    %280 = vector.broadcast %279 : vector<16x1xf32> to vector<16x32xf32>
    %281 = arith.mulf %276, %280 : vector<16x32xf32>
    %282 = vector.broadcast %261 : vector<1x32xf32> to vector<16x32xf32>
    %283 = arith.mulf %281, %282 : vector<16x32xf32>
    %284 = vector.broadcast %263 : vector<1x32xf32> to vector<16x32xf32>
    %285 = arith.addf %283, %284 : vector<16x32xf32>
    %c0_98 = arith.constant 0 : index
    %c0_99 = arith.constant 0 : index
    %c0_100 = arith.constant 0 : index
    %286 = vector.load %arg19[%c0_98, %c0_99, %c0_100] : memref<1x32x64xbf16, #tpu.memory_space<vmem>>, vector<1x32x64xbf16>
    %287 = vector.shape_cast %286 : vector<1x32x64xbf16> to vector<32x64xbf16>
    %c0_101 = arith.constant 0 : index
    %c0_102 = arith.constant 0 : index
    %c0_103 = arith.constant 0 : index
    %288 = vector.load %arg20[%c0_101, %c0_102, %c0_103] : memref<1x1x64xf32, #tpu.memory_space<vmem>>, vector<1x1x64xf32>
    %289 = vector.shape_cast %288 : vector<1x1x64xf32> to vector<1x64xf32>
    %290 = arith.truncf %285 : vector<16x32xf32> to vector<16x32xbf16>
    %cst_104 = arith.constant dense<0.000000e+00> : vector<16x64xf32>
    %291 = tpu.matmul %290, %287, %cst_104 {dimension_numbers = #tpu.dot_dimension_numbers<[1], [0], [0], [1], [0, 0, 1, 1], [], []>} : vector<16x32xbf16>, vector<32x64xbf16>, vector<16x64xf32> -> vector<16x64xf32>
    %292 = vector.broadcast %289 : vector<1x64xf32> to vector<16x64xf32>
    %293 = arith.addf %291, %292 : vector<16x64xf32>
    %cst_105 = arith.constant 0.000000e+00 : f32
    %294 = vector.broadcast %cst_105 : f32 to vector<16x64xf32>
    %295 = arith.maximumf %293, %294 : vector<16x64xf32>
    %c0_106 = arith.constant 0 : index
    %c0_107 = arith.constant 0 : index
    %c0_108 = arith.constant 0 : index
    %296 = vector.load %arg21[%c0_106, %c0_107, %c0_108] : memref<1x64x32xbf16, #tpu.memory_space<vmem>>, vector<1x64x32xbf16>
    %297 = vector.shape_cast %296 : vector<1x64x32xbf16> to vector<64x32xbf16>
    %c0_109 = arith.constant 0 : index
    %c0_110 = arith.constant 0 : index
    %c0_111 = arith.constant 0 : index
    %298 = vector.load %arg22[%c0_109, %c0_110, %c0_111] : memref<1x1x32xf32, #tpu.memory_space<vmem>>, vector<1x1x32xf32>
    %299 = vector.shape_cast %298 : vector<1x1x32xf32> to vector<1x32xf32>
    %300 = arith.truncf %295 : vector<16x64xf32> to vector<16x64xbf16>
    %cst_112 = arith.constant dense<0.000000e+00> : vector<16x32xf32>
    %301 = tpu.matmul %300, %297, %cst_112 {dimension_numbers = #tpu.dot_dimension_numbers<[1], [0], [0], [1], [0, 0, 1, 1], [], []>} : vector<16x64xbf16>, vector<64x32xbf16>, vector<16x32xf32> -> vector<16x32xf32>
    %302 = vector.broadcast %299 : vector<1x32xf32> to vector<16x32xf32>
    %303 = arith.addf %301, %302 : vector<16x32xf32>
    %304 = arith.addf %285, %303 : vector<16x32xf32>
    %c0_113 = arith.constant 0 : index
    %c0_114 = arith.constant 0 : index
    %c0_115 = arith.constant 0 : index
    %305 = vector.load %arg23[%c0_113, %c0_114, %c0_115] : memref<1x1x32xf32, #tpu.memory_space<vmem>>, vector<1x1x32xf32>
    %306 = vector.shape_cast %305 : vector<1x1x32xf32> to vector<1x32xf32>
    %c0_116 = arith.constant 0 : index
    %c0_117 = arith.constant 0 : index
    %c0_118 = arith.constant 0 : index
    %307 = vector.load %arg24[%c0_116, %c0_117, %c0_118] : memref<1x1x32xf32, #tpu.memory_space<vmem>>, vector<1x1x32xf32>
    %308 = vector.shape_cast %307 : vector<1x1x32xf32> to vector<1x32xf32>
    %cst_119 = arith.constant dense<0.000000e+00> : vector<16xf32>
    %309 = vector.multi_reduction <add>, %304, %cst_119 [1] : vector<16x32xf32> to vector<16xf32>
    %310 = vector.shape_cast %309 : vector<16xf32> to vector<16x1xf32>
    %cst_120 = arith.constant 3.200000e+01 : f32
    %311 = vector.broadcast %cst_120 : f32 to vector<16x1xf32>
    %312 = arith.divf %310, %311 : vector<16x1xf32>
    %313 = vector.broadcast %312 : vector<16x1xf32> to vector<16x32xf32>
    %314 = arith.subf %304, %313 : vector<16x32xf32>
    %315 = arith.mulf %314, %314 : vector<16x32xf32>
    %cst_121 = arith.constant dense<0.000000e+00> : vector<16xf32>
    %316 = vector.multi_reduction <add>, %315, %cst_121 [1] : vector<16x32xf32> to vector<16xf32>
    %317 = vector.shape_cast %316 : vector<16xf32> to vector<16x1xf32>
    %cst_122 = arith.constant 3.200000e+01 : f32
    %318 = vector.broadcast %cst_122 : f32 to vector<16x1xf32>
    %319 = arith.divf %317, %318 : vector<16x1xf32>
    %320 = vector.broadcast %312 : vector<16x1xf32> to vector<16x32xf32>
    %321 = arith.subf %304, %320 : vector<16x32xf32>
    %cst_123 = arith.constant 9.99999974E-6 : f32
    %322 = vector.broadcast %cst_123 : f32 to vector<16x1xf32>
    %323 = arith.addf %319, %322 : vector<16x1xf32>
    %324 = math.rsqrt %323 : vector<16x1xf32>
    %325 = vector.broadcast %324 : vector<16x1xf32> to vector<16x32xf32>
    %326 = arith.mulf %321, %325 : vector<16x32xf32>
    %327 = vector.broadcast %306 : vector<1x32xf32> to vector<16x32xf32>
    %328 = arith.mulf %326, %327 : vector<16x32xf32>
    %329 = vector.broadcast %308 : vector<1x32xf32> to vector<16x32xf32>
    %330 = arith.addf %328, %329 : vector<16x32xf32>
    %c0_124 = arith.constant 0 : index
    %c0_125 = arith.constant 0 : index
    %331 = vector.load %arg30[%c0_124, %c0_125] : memref<16x32xf32, #tpu.memory_space<vmem>>, vector<16x32xf32>
    tpu.vector_store %arg30[%c0_124, %c0_125], %330 {strides = array<i32>} : memref<16x32xf32, #tpu.memory_space<vmem>>, vector<16x32xf32>,
    %c1_i32 = arith.constant 1 : i32
    %332 = arith.cmpi eq, %arg0, %c1_i32 : i32
    %333 = arith.extui %332 : i1 to i32
    %c0_i32_126 = arith.constant 0 : i32
    %334 = arith.cmpi ne, %333, %c0_i32_126 : i32
    scf.if %334 {
      %c0_127 = arith.constant 0 : index
      %c0_128 = arith.constant 0 : index
      %335 = vector.load %arg25[%c0_127, %c0_128] : memref<1x32xf32, #tpu.memory_space<vmem>>, vector<1x32xf32>
      %c0_129 = arith.constant 0 : index
      %c0_130 = arith.constant 0 : index
      %336 = vector.load %arg26[%c0_129, %c0_130] : memref<1x32xf32, #tpu.memory_space<vmem>>, vector<1x32xf32>
      %cst_131 = arith.constant dense<0.000000e+00> : vector<16xf32>
      %337 = vector.multi_reduction <add>, %330, %cst_131 [1] : vector<16x32xf32> to vector<16xf32>
      %338 = vector.shape_cast %337 : vector<16xf32> to vector<16x1xf32>
      %cst_132 = arith.constant 3.200000e+01 : f32
      %339 = vector.broadcast %cst_132 : f32 to vector<16x1xf32>
      %340 = arith.divf %338, %339 : vector<16x1xf32>
      %341 = vector.broadcast %340 : vector<16x1xf32> to vector<16x32xf32>
      %342 = arith.subf %330, %341 : vector<16x32xf32>
      %343 = arith.mulf %342, %342 : vector<16x32xf32>
      %cst_133 = arith.constant dense<0.000000e+00> : vector<16xf32>
      %344 = vector.multi_reduction <add>, %343, %cst_133 [1] : vector<16x32xf32> to vector<16xf32>
      %345 = vector.shape_cast %344 : vector<16xf32> to vector<16x1xf32>
      %cst_134 = arith.constant 3.200000e+01 : f32
      %346 = vector.broadcast %cst_134 : f32 to vector<16x1xf32>
      %347 = arith.divf %345, %346 : vector<16x1xf32>
      %348 = vector.broadcast %340 : vector<16x1xf32> to vector<16x32xf32>
      %349 = arith.subf %330, %348 : vector<16x32xf32>
      %cst_135 = arith.constant 9.99999974E-6 : f32
      %350 = vector.broadcast %cst_135 : f32 to vector<16x1xf32>
      %351 = arith.addf %347, %350 : vector<16x1xf32>
      %352 = math.rsqrt %351 : vector<16x1xf32>
      %353 = vector.broadcast %352 : vector<16x1xf32> to vector<16x32xf32>
      %354 = arith.mulf %349, %353 : vector<16x32xf32>
      %355 = vector.broadcast %335 : vector<1x32xf32> to vector<16x32xf32>
      %356 = arith.mulf %354, %355 : vector<16x32xf32>
      %357 = vector.broadcast %336 : vector<1x32xf32> to vector<16x32xf32>
      %358 = arith.addf %356, %357 : vector<16x32xf32>
      %c0_136 = arith.constant 0 : index
      %c0_137 = arith.constant 0 : index
      %359 = vector.load %arg27[%c0_136, %c0_137] : memref<32x128xbf16, #tpu.memory_space<vmem>>, vector<32x128xbf16>
      %c0_138 = arith.constant 0 : index
      %c0_139 = arith.constant 0 : index
      %360 = vector.load %arg28[%c0_138, %c0_139] : memref<1x128xf32, #tpu.memory_space<vmem>>, vector<1x128xf32>
      %361 = arith.truncf %358 : vector<16x32xf32> to vector<16x32xbf16>
      %cst_140 = arith.constant dense<0.000000e+00> : vector<16x128xf32>
      %362 = tpu.matmul %361, %359, %cst_140 {dimension_numbers = #tpu.dot_dimension_numbers<[1], [0], [0], [1], [0, 0, 1, 1], [], []>} : vector<16x32xbf16>, vector<32x128xbf16>, vector<16x128xf32> -> vector<16x128xf32>
      %363 = vector.broadcast %360 : vector<1x128xf32> to vector<16x128xf32>
      %364 = arith.addf %362, %363 : vector<16x128xf32>
      %c0_141 = arith.constant 0 : index
      %c0_142 = arith.constant 0 : index
      %365 = vector.load %arg29[%c0_141, %c0_142] : memref<16x128xf32, #tpu.memory_space<vmem>>, vector<16x128xf32>
      tpu.vector_store %arg29[%c0_141, %c0_142], %364 {strides = array<i32>} : memref<16x128xf32, #tpu.memory_space<vmem>>, vector<16x128xf32>,
    } else {
    }
    return
  }
  func.func @transform_0(%arg0: i32) -> (i32, i32) {
    %c0_i32 = arith.constant 0 : i32
    %c0_i32_0 = arith.constant 0 : i32
    %c0_i32_1 = arith.constant 0 : i32
    return %c0_i32, %c0_i32_0 : i32, i32
  }
  func.func @transform_1(%arg0: i32) -> (i32, i32) {
    %c0_i32 = arith.constant 0 : i32
    %c0_i32_0 = arith.constant 0 : i32
    %c0_i32_1 = arith.constant 0 : i32
    return %c0_i32, %c0_i32_0 : i32, i32
  }
  func.func @transform_2(%arg0: i32) -> (i32, i32, i32) {
    %c0_i32 = arith.constant 0 : i32
    %c0_i32_0 = arith.constant 0 : i32
    %c0_i32_1 = arith.constant 0 : i32
    %c0_i32_2 = arith.constant 0 : i32
    return %c0_i32, %c0_i32_0, %c0_i32_1 : i32, i32, i32
  }
  func.func @transform_3(%arg0: i32) -> (i32, i32, i32) {
    %c0_i32 = arith.constant 0 : i32
    %c0_i32_0 = arith.constant 0 : i32
    %c0_i32_1 = arith.constant 0 : i32
    %c0_i32_2 = arith.constant 0 : i32
    return %c0_i32, %c0_i32_0, %c0_i32_1 : i32, i32, i32
  }
  func.func @transform_4(%arg0: i32) -> (i32, i32, i32) {
    %c0_i32 = arith.constant 0 : i32
    %c0_i32_0 = arith.constant 0 : i32
    %c0_i32_1 = arith.constant 0 : i32
    return %arg0, %c0_i32, %c0_i32_0 : i32, i32, i32
  }
  func.func @transform_5(%arg0: i32) -> (i32, i32, i32) {
    %c0_i32 = arith.constant 0 : i32
    %c0_i32_0 = arith.constant 0 : i32
    %c0_i32_1 = arith.constant 0 : i32
    return %arg0, %c0_i32, %c0_i32_0 : i32, i32, i32
  }
  func.func @transform_6(%arg0: i32) -> (i32, i32, i32) {
    %c0_i32 = arith.constant 0 : i32
    %c0_i32_0 = arith.constant 0 : i32
    %c0_i32_1 = arith.constant 0 : i32
    return %arg0, %c0_i32, %c0_i32_0 : i32, i32, i32
  }
  func.func @transform_7(%arg0: i32) -> (i32, i32, i32) {
    %c0_i32 = arith.constant 0 : i32
    %c0_i32_0 = arith.constant 0 : i32
    %c0_i32_1 = arith.constant 0 : i32
    return %arg0, %c0_i32, %c0_i32_0 : i32, i32, i32
  }
  func.func @transform_8(%arg0: i32) -> (i32, i32, i32) {
    %c0_i32 = arith.constant 0 : i32
    %c0_i32_0 = arith.constant 0 : i32
    %c0_i32_1 = arith.constant 0 : i32
    return %arg0, %c0_i32, %c0_i32_0 : i32, i32, i32
  }
  func.func @transform_9(%arg0: i32) -> (i32, i32, i32) {
    %c0_i32 = arith.constant 0 : i32
    %c0_i32_0 = arith.constant 0 : i32
    %c0_i32_1 = arith.constant 0 : i32
    return %arg0, %c0_i32, %c0_i32_0 : i32, i32, i32
  }
  func.func @transform_10(%arg0: i32) -> (i32, i32, i32) {
    %c0_i32 = arith.constant 0 : i32
    %c0_i32_0 = arith.constant 0 : i32
    %c0_i32_1 = arith.constant 0 : i32
    return %arg0, %c0_i32, %c0_i32_0 : i32, i32, i32
  }
  func.func @transform_11(%arg0: i32) -> (i32, i32, i32) {
    %c0_i32 = arith.constant 0 : i32
    %c0_i32_0 = arith.constant 0 : i32
    %c0_i32_1 = arith.constant 0 : i32
    return %arg0, %c0_i32, %c0_i32_0 : i32, i32, i32
  }
  func.func @transform_12(%arg0: i32) -> (i32, i32, i32) {
    %c0_i32 = arith.constant 0 : i32
    %c0_i32_0 = arith.constant 0 : i32
    %c0_i32_1 = arith.constant 0 : i32
    return %arg0, %c0_i32, %c0_i32_0 : i32, i32, i32
  }
  func.func @transform_13(%arg0: i32) -> (i32, i32, i32) {
    %c0_i32 = arith.constant 0 : i32
    %c0_i32_0 = arith.constant 0 : i32
    %c0_i32_1 = arith.constant 0 : i32
    return %arg0, %c0_i32, %c0_i32_0 : i32, i32, i32
  }
  func.func @transform_14(%arg0: i32) -> (i32, i32, i32) {
    %c0_i32 = arith.constant 0 : i32
    %c0_i32_0 = arith.constant 0 : i32
    %c0_i32_1 = arith.constant 0 : i32
    return %arg0, %c0_i32, %c0_i32_0 : i32, i32, i32
  }
  func.func @transform_15(%arg0: i32) -> (i32, i32, i32) {
    %c0_i32 = arith.constant 0 : i32
    %c0_i32_0 = arith.constant 0 : i32
    %c0_i32_1 = arith.constant 0 : i32
    return %arg0, %c0_i32, %c0_i32_0 : i32, i32, i32
  }
  func.func @transform_16(%arg0: i32) -> (i32, i32, i32) {
    %c0_i32 = arith.constant 0 : i32
    %c0_i32_0 = arith.constant 0 : i32
    %c0_i32_1 = arith.constant 0 : i32
    return %arg0, %c0_i32, %c0_i32_0 : i32, i32, i32
  }
  func.func @transform_17(%arg0: i32) -> (i32, i32, i32) {
    %c0_i32 = arith.constant 0 : i32
    %c0_i32_0 = arith.constant 0 : i32
    %c0_i32_1 = arith.constant 0 : i32
    return %arg0, %c0_i32, %c0_i32_0 : i32, i32, i32
  }
  func.func @transform_18(%arg0: i32) -> (i32, i32, i32) {
    %c0_i32 = arith.constant 0 : i32
    %c0_i32_0 = arith.constant 0 : i32
    %c0_i32_1 = arith.constant 0 : i32
    return %arg0, %c0_i32, %c0_i32_0 : i32, i32, i32
  }
  func.func @transform_19(%arg0: i32) -> (i32, i32, i32) {
    %c0_i32 = arith.constant 0 : i32
    %c0_i32_0 = arith.constant 0 : i32
    %c0_i32_1 = arith.constant 0 : i32
    return %arg0, %c0_i32, %c0_i32_0 : i32, i32, i32
  }
  func.func @transform_20(%arg0: i32) -> (i32, i32, i32) {
    %c0_i32 = arith.constant 0 : i32
    %c0_i32_0 = arith.constant 0 : i32
    %c0_i32_1 = arith.constant 0 : i32
    return %arg0, %c0_i32, %c0_i32_0 : i32, i32, i32
  }
  func.func @transform_21(%arg0: i32) -> (i32, i32, i32) {
    %c0_i32 = arith.constant 0 : i32
    %c0_i32_0 = arith.constant 0 : i32
    %c0_i32_1 = arith.constant 0 : i32
    return %arg0, %c0_i32, %c0_i32_0 : i32, i32, i32
  }
  func.func @transform_22(%arg0: i32) -> (i32, i32, i32) {
    %c0_i32 = arith.constant 0 : i32
    %c0_i32_0 = arith.constant 0 : i32
    %c0_i32_1 = arith.constant 0 : i32
    return %arg0, %c0_i32, %c0_i32_0 : i32, i32, i32
  }
  func.func @transform_23(%arg0: i32) -> (i32, i32, i32) {
    %c0_i32 = arith.constant 0 : i32
    %c0_i32_0 = arith.constant 0 : i32
    %c0_i32_1 = arith.constant 0 : i32
    return %arg0, %c0_i32, %c0_i32_0 : i32, i32, i32
  }
  func.func @transform_24(%arg0: i32) -> (i32, i32) {
    %c0_i32 = arith.constant 0 : i32
    %c0_i32_0 = arith.constant 0 : i32
    %c0_i32_1 = arith.constant 0 : i32
    return %c0_i32, %c0_i32_0 : i32, i32
  }
  func.func @transform_25(%arg0: i32) -> (i32, i32) {
    %c0_i32 = arith.constant 0 : i32
    %c0_i32_0 = arith.constant 0 : i32
    %c0_i32_1 = arith.constant 0 : i32
    return %c0_i32, %c0_i32_0 : i32, i32
  }
  func.func @transform_26(%arg0: i32) -> (i32, i32) {
    %c0_i32 = arith.constant 0 : i32
    %c0_i32_0 = arith.constant 0 : i32
    %c0_i32_1 = arith.constant 0 : i32
    return %c0_i32, %c0_i32_0 : i32, i32
  }
  func.func @transform_27(%arg0: i32) -> (i32, i32) {
    %c0_i32 = arith.constant 0 : i32
    %c0_i32_0 = arith.constant 0 : i32
    %c0_i32_1 = arith.constant 0 : i32
    return %c0_i32, %c0_i32_0 : i32, i32
  }
  func.func @transform_28(%arg0: i32) -> (i32, i32) {
    %c0_i32 = arith.constant 0 : i32
    %c0_i32_0 = arith.constant 0 : i32
    %c0_i32_1 = arith.constant 0 : i32
    return %c0_i32, %c0_i32_0 : i32, i32
  }
}

</mosaic_0001>

<llo_original>
// kernel: seq2seq_forward.2
$region0: #{seq2seq_forward.2}
  #allocation0 [shape = 'u32[]', space=smem, size = 0x4, offset = 0x4, fixed_abs, tag = 'smem constant byte address 0x4 - core index']
  #allocation1 [shape = 'u32[144,128]{1,0:T(1,128)}', space=vmem, size = 0x12000, scoped, tag = 'internal scratch']
  %s0 = inlined_call_operand.vmem [shape: f32[16,32], index: 0, kind: input, shape index: {}]
  %s1 = inlined_call_operand.vmem [shape: f32[2,8,8], index: 1, kind: input, shape index: {}]
  %s2 = inlined_call_operand.vmem [shape: bf16[2,32,96], index: 2, kind: input, shape index: {}]
  %s3 = inlined_call_operand.vmem [shape: f32[2,1,96], index: 3, kind: input, shape index: {}]
  %s4 = inlined_call_operand.vmem [shape: bf16[2,32,32], index: 4, kind: input, shape index: {}]
  %s5 = inlined_call_operand.vmem [shape: f32[2,1,32], index: 5, kind: input, shape index: {}]
  %s6 = inlined_call_operand.vmem [shape: f32[2,1,32], index: 6, kind: input, shape index: {}]
  %s7 = inlined_call_operand.vmem [shape: f32[2,1,32], index: 7, kind: input, shape index: {}]
  %s8 = inlined_call_operand.vmem [shape: bf16[2,32,64], index: 8, kind: input, shape index: {}]
  %s9 = inlined_call_operand.vmem [shape: f32[2,1,64], index: 9, kind: input, shape index: {}]
  %s10 = inlined_call_operand.vmem [shape: bf16[2,64,32], index: 10, kind: input, shape index: {}]
  %s11 = inlined_call_operand.vmem [shape: f32[2,1,32], index: 11, kind: input, shape index: {}]
  %s12 = inlined_call_operand.vmem [shape: f32[2,1,32], index: 12, kind: input, shape index: {}]
  %s13 = inlined_call_operand.vmem [shape: f32[2,1,32], index: 13, kind: input, shape index: {}]
  %s14 = inlined_call_operand.vmem [shape: f32[1,32], index: 14, kind: input, shape index: {}]
  %s15 = inlined_call_operand.vmem [shape: f32[1,32], index: 15, kind: input, shape index: {}]
  %s16 = inlined_call_operand.vmem [shape: f32[16,32], index: 16, kind: output, shape index: {}]
  %s17 = sld [smem:[#allocation0]]
  $region105: #{seq2seq_forward.2} parent=0
    _
  %s19 = ssub.s32 1, %s17
  %s20 = scalar_select 0, %s19, %s17
  loop: start=0, step=1, limit=4
  $region2: #{seq2seq_forward.2} parent=0 // loop_pre_header
    _
  $region3: #{seq2seq_forward.2} parent=0 // loop_header
    %s22 = sphi 0, %s26
    %p23 = scmp.ge.s32.totalorder %s22, 4
    %s30 = sphi 0, %s30
    %s32 = sphi 0, %s30
    %s33 = sphi 0, %s32
    %s47 = sphi 0, %s33
    %s51 = sphi 0, %s51
    %s53 = sphi 0, %s51
    %s54 = sphi 0, %s53
    %s68 = sphi 0, %s54
    %s74 = sphi 0, %s76
    %s77 = sphi 0, %s74
    %s78 = sphi 0, %s77
    %s94 = sphi 0, %s78
    %s100 = sphi 0, %s102
    %s103 = sphi 0, %s100
    %s104 = sphi 0, %s103
    %s120 = sphi 0, %s104
    %s126 = sphi 0, %s128
    %s129 = sphi 0, %s126
    %s130 = sphi 0, %s129
    %s146 = sphi 0, %s130
    %s152 = sphi 0, %s154
    %s155 = sphi 0, %s152
    %s156 = sphi 0, %s155
    %s172 = sphi 0, %s156
    %s178 = sphi 0, %s180
    %s181 = sphi 0, %s178
    %s182 = sphi 0, %s181
    %s198 = sphi 0, %s182
    %s204 = sphi 0, %s206
    %s207 = sphi 0, %s204
    %s208 = sphi 0, %s207
    %s224 = sphi 0, %s208
    %s230 = sphi 0, %s232
    %s233 = sphi 0, %s230
    %s234 = sphi 0, %s233
    %s250 = sphi 0, %s234
    %s256 = sphi 0, %s258
    %s259 = sphi 0, %s256
    %s260 = sphi 0, %s259
    %s276 = sphi 0, %s260
    %s282 = sphi 0, %s284
    %s285 = sphi 0, %s282
    %s286 = sphi 0, %s285
    %s302 = sphi 0, %s286
    %s308 = sphi 0, %s310
    %s311 = sphi 0, %s308
    %s312 = sphi 0, %s311
    %s328 = sphi 0, %s312
    %s334 = sphi 0, %s336
    %s337 = sphi 0, %s334
    %s338 = sphi 0, %s337
    %s354 = sphi 0, %s338
    %s360 = sphi 0, %s362
    %s363 = sphi 0, %s360
    %s364 = sphi 0, %s363
    %s380 = sphi 0, %s364
    %s384 = sphi 0, %s384
    %s386 = sphi 0, %s384
    %s387 = sphi 0, %s386
    %s401 = sphi 0, %s387
    %s405 = sphi 0, %s405
    %s407 = sphi 0, %s405
    %s408 = sphi 0, %s407
    %s422 = sphi 0, %s408
    %s426 = sphi 0, %s426
    %s428 = sphi 0, %s426
    %s429 = sphi 0, %s428
    %s443 = sphi 0, %s429
  $region4: #{seq2seq_forward.2} parent=0 // loop_header_branch
    %25 = sbr.rel (%p23) target = $region8
  $region5: #{seq2seq_forward.2} parent=0 // loop_body
    %s27 = ssub.s32 %s22, 1
    %s28 = ssub.s32 %s22, 2
    %s29 = sadd.s32 %s22, 1
    %s31 = sadd.s32 %s30, 1
    %p34 = scmp.eq.s32.totalorder %s22, 1
    %p35 = scmp.ne.s32.totalorder %s30, %s32
    %p36 = scmp.eq.s32.totalorder %s22, 0
    %p37 = por %p35, %p36
    %p38 = scmp.ne.s32.totalorder %s30, %s32
    %p39 = scmp.eq.s32.totalorder %s27, 1
    %p40 = por %p38, %p39
    %p41 = scmp.ne.s32.totalorder %s32, %s33
    %p42 = scmp.eq.s32.totalorder %s27, 0
    %p43 = por %p41, %p42
    %p44 = scmp.ne.s32.totalorder %s32, %s33
    %p45 = scmp.eq.s32.totalorder %s28, 1
    %p46 = por %p44, %p45
    %p48 = scmp.ne.s32.totalorder %s33, %s47
    %p49 = scmp.eq.s32.totalorder %s28, 0
    %p50 = por %p48, %p49
    %s52 = sadd.s32 %s51, 1
    %p55 = scmp.eq.s32.totalorder %s22, 1
    %p56 = scmp.ne.s32.totalorder %s51, %s53
    %p57 = scmp.eq.s32.totalorder %s22, 0
    %p58 = por %p56, %p57
    %p59 = scmp.ne.s32.totalorder %s51, %s53
    %p60 = scmp.eq.s32.totalorder %s27, 1
    %p61 = por %p59, %p60
    %p62 = scmp.ne.s32.totalorder %s53, %s54
    %p63 = scmp.eq.s32.totalorder %s27, 0
    %p64 = por %p62, %p63
    %p65 = scmp.ne.s32.totalorder %s53, %s54
    %p66 = scmp.eq.s32.totalorder %s28, 1
    %p67 = por %p65, %p66
    %p69 = scmp.ne.s32.totalorder %s54, %s68
    %p70 = scmp.eq.s32.totalorder %s28, 0
    %p71 = por %p69, %p70
    %s72 = ssub.s32 %s22, %s29
    %p73 = scmp.eq.s32.totalorder %s72, 0
    %s75 = sadd.s32 %s74, 1
    %s76 = scalar_select %p73, %s74, %s75
    %p79 = pneg %p73
    %p80 = scmp.eq.s32.totalorder %s22, 1
    %p81 = por %p79, %p80
    %p82 = scmp.ne.s32.totalorder %s74, %s77
    %p83 = scmp.eq.s32.totalorder %s22, 0
    %p84 = por %p82, %p83
    %p85 = scmp.ne.s32.totalorder %s74, %s77
    %p86 = scmp.eq.s32.totalorder %s27, 1
    %p87 = por %p85, %p86
    %p88 = scmp.ne.s32.totalorder %s77, %s78
    %p89 = scmp.eq.s32.totalorder %s27, 0
    %p90 = por %p88, %p89
    %p91 = scmp.ne.s32.totalorder %s77, %s78
    %p92 = scmp.eq.s32.totalorder %s28, 1
    %p93 = por %p91, %p92
    %p95 = scmp.ne.s32.totalorder %s78, %s94
    %p96 = scmp.eq.s32.totalorder %s28, 0
    %p97 = por %p95, %p96
    %s98 = ssub.s32 %s22, %s29
    %p99 = scmp.eq.s32.totalorder %s98, 0
    %s101 = sadd.s32 %s100, 1
    %s102 = scalar_select %p99, %s100, %s101
    %p105 = pneg %p99
    %p106 = scmp.eq.s32.totalorder %s22, 1
    %p107 = por %p105, %p106
    %p108 = scmp.ne.s32.totalorder %s100, %s103
    %p109 = scmp.eq.s32.totalorder %s22, 0
    %p110 = por %p108, %p109
    %p111 = scmp.ne.s32.totalorder %s100, %s103
    %p112 = scmp.eq.s32.totalorder %s27, 1
    %p113 = por %p111, %p112
    %p114 = scmp.ne.s32.totalorder %s103, %s104
    %p115 = scmp.eq.s32.totalorder %s27, 0
    %p116 = por %p114, %p115
    %p117 = scmp.ne.s32.totalorder %s103, %s104
    %p118 = scmp.eq.s32.totalorder %s28, 1
    %p119 = por %p117, %p118
    %p121 = scmp.ne.s32.totalorder %s104, %s120
    %p122 = scmp.eq.s32.totalorder %s28, 0
    %p123 = por %p121, %p122
    %s124 = ssub.s32 %s22, %s29
    %p125 = scmp.eq.s32.totalorder %s124, 0
    %s127 = sadd.s32 %s126, 1
    %s128 = scalar_select %p125, %s126, %s127
    %p131 = pneg %p125
    %p132 = scmp.eq.s32.totalorder %s22, 1
    %p133 = por %p131, %p132
    %p134 = scmp.ne.s32.totalorder %s126, %s129
    %p135 = scmp.eq.s32.totalorder %s22, 0
    %p136 = por %p134, %p135
    %p137 = scmp.ne.s32.totalorder %s126, %s129
    %p138 = scmp.eq.s32.totalorder %s27, 1
    %p139 = por %p137, %p138
    %p140 = scmp.ne.s32.totalorder %s129, %s130
    %p141 = scmp.eq.s32.totalorder %s27, 0
    %p142 = por %p140, %p141
    %p143 = scmp.ne.s32.totalorder %s129, %s130
    %p144 = scmp.eq.s32.totalorder %s28, 1
    %p145 = por %p143, %p144
    %p147 = scmp.ne.s32.totalorder %s130, %s146
    %p148 = scmp.eq.s32.totalorder %s28, 0
    %p149 = por %p147, %p148
    %s150 = ssub.s32 %s22, %s29
    %p151 = scmp.eq.s32.totalorder %s150, 0
    %s153 = sadd.s32 %s152, 1
    %s154 = scalar_select %p151, %s152, %s153
    %p157 = pneg %p151
    %p158 = scmp.eq.s32.totalorder %s22, 1
    %p159 = por %p157, %p158
    %p160 = scmp.ne.s32.totalorder %s152, %s155
    %p161 = scmp.eq.s32.totalorder %s22, 0
    %p162 = por %p160, %p161
    %p163 = scmp.ne.s32.totalorder %s152, %s155
    %p164 = scmp.eq.s32.totalorder %s27, 1
    %p165 = por %p163, %p164
    %p166 = scmp.ne.s32.totalorder %s155, %s156
    %p167 = scmp.eq.s32.totalorder %s27, 0
    %p168 = por %p166, %p167
    %p169 = scmp.ne.s32.totalorder %s155, %s156
    %p170 = scmp.eq.s32.totalorder %s28, 1
    %p171 = por %p169, %p170
    %p173 = scmp.ne.s32.totalorder %s156, %s172
    %p174 = scmp.eq.s32.totalorder %s28, 0
    %p175 = por %p173, %p174
    %s176 = ssub.s32 %s22, %s29
    %p177 = scmp.eq.s32.totalorder %s176, 0
    %s179 = sadd.s32 %s178, 1
    %s180 = scalar_select %p177, %s178, %s179
    %p183 = pneg %p177
    %p184 = scmp.eq.s32.totalorder %s22, 1
    %p185 = por %p183, %p184
    %p186 = scmp.ne.s32.totalorder %s178, %s181
    %p187 = scmp.eq.s32.totalorder %s22, 0
    %p188 = por %p186, %p187
    %p189 = scmp.ne.s32.totalorder %s178, %s181
    %p190 = scmp.eq.s32.totalorder %s27, 1
    %p191 = por %p189, %p190
    %p192 = scmp.ne.s32.totalorder %s181, %s182
    %p193 = scmp.eq.s32.totalorder %s27, 0
    %p194 = por %p192, %p193
    %p195 = scmp.ne.s32.totalorder %s181, %s182
    %p196 = scmp.eq.s32.totalorder %s28, 1
    %p197 = por %p195, %p196
    %p199 = scmp.ne.s32.totalorder %s182, %s198
    %p200 = scmp.eq.s32.totalorder %s28, 0
    %p201 = por %p199, %p200
    %s202 = ssub.s32 %s22, %s29
    %p203 = scmp.eq.s32.totalorder %s202, 0
    %s205 = sadd.s32 %s204, 1
    %s206 = scalar_select %p203, %s204, %s205
    %p209 = pneg %p203
    %p210 = scmp.eq.s32.totalorder %s22, 1
    %p211 = por %p209, %p210
    %p212 = scmp.ne.s32.totalorder %s204, %s207
    %p213 = scmp.eq.s32.totalorder %s22, 0
    %p214 = por %p212, %p213
    %p215 = scmp.ne.s32.totalorder %s204, %s207
    %p216 = scmp.eq.s32.totalorder %s27, 1
    %p217 = por %p215, %p216
    %p218 = scmp.ne.s32.totalorder %s207, %s208
    %p219 = scmp.eq.s32.totalorder %s27, 0
    %p220 = por %p218, %p219
    %p221 = scmp.ne.s32.totalorder %s207, %s208
    %p222 = scmp.eq.s32.totalorder %s28, 1
    %p223 = por %p221, %p222
    %p225 = scmp.ne.s32.totalorder %s208, %s224
    %p226 = scmp.eq.s32.totalorder %s28, 0
    %p227 = por %p225, %p226
    %s228 = ssub.s32 %s22, %s29
    %p229 = scmp.eq.s32.totalorder %s228, 0
    %s231 = sadd.s32 %s230, 1
    %s232 = scalar_select %p229, %s230, %s231
    %p235 = pneg %p229
    %p236 = scmp.eq.s32.totalorder %s22, 1
    %p237 = por %p235, %p236
    %p238 = scmp.ne.s32.totalorder %s230, %s233
    %p239 = scmp.eq.s32.totalorder %s22, 0
    %p240 = por %p238, %p239
    %p241 = scmp.ne.s32.totalorder %s230, %s233
    %p242 = scmp.eq.s32.totalorder %s27, 1
    %p243 = por %p241, %p242
    %p244 = scmp.ne.s32.totalorder %s233, %s234
    %p245 = scmp.eq.s32.totalorder %s27, 0
    %p246 = por %p244, %p245
    %p247 = scmp.ne.s32.totalorder %s233, %s234
    %p248 = scmp.eq.s32.totalorder %s28, 1
    %p249 = por %p247, %p248
    %p251 = scmp.ne.s32.totalorder %s234, %s250
    %p252 = scmp.eq.s32.totalorder %s28, 0
    %p253 = por %p251, %p252
    %s254 = ssub.s32 %s22, %s29
    %p255 = scmp.eq.s32.totalorder %s254, 0
    %s257 = sadd.s32 %s256, 1
    %s258 = scalar_select %p255, %s256, %s257
    %p261 = pneg %p255
    %p262 = scmp.eq.s32.totalorder %s22, 1
    %p263 = por %p261, %p262
    %p264 = scmp.ne.s32.totalorder %s256, %s259
    %p265 = scmp.eq.s32.totalorder %s22, 0
    %p266 = por %p264, %p265
    %p267 = scmp.ne.s32.totalorder %s256, %s259
    %p268 = scmp.eq.s32.totalorder %s27, 1
    %p269 = por %p267, %p268
    %p270 = scmp.ne.s32.totalorder %s259, %s260
    %p271 = scmp.eq.s32.totalorder %s27, 0
    %p272 = por %p270, %p271
    %p273 = scmp.ne.s32.totalorder %s259, %s260
    %p274 = scmp.eq.s32.totalorder %s28, 1
    %p275 = por %p273, %p274
    %p277 = scmp.ne.s32.totalorder %s260, %s276
    %p278 = scmp.eq.s32.totalorder %s28, 0
    %p279 = por %p277, %p278
    %s280 = ssub.s32 %s22, %s29
    %p281 = scmp.eq.s32.totalorder %s280, 0
    %s283 = sadd.s32 %s282, 1
    %s284 = scalar_select %p281, %s282, %s283
    %p287 = pneg %p281
    %p288 = scmp.eq.s32.totalorder %s22, 1
    %p289 = por %p287, %p288
    %p290 = scmp.ne.s32.totalorder %s282, %s285
    %p291 = scmp.eq.s32.totalorder %s22, 0
    %p292 = por %p290, %p291
    %p293 = scmp.ne.s32.totalorder %s282, %s285
    %p294 = scmp.eq.s32.totalorder %s27, 1
    %p295 = por %p293, %p294
    %p296 = scmp.ne.s32.totalorder %s285, %s286
    %p297 = scmp.eq.s32.totalorder %s27, 0
    %p298 = por %p296, %p297
    %p299 = scmp.ne.s32.totalorder %s285, %s286
    %p300 = scmp.eq.s32.totalorder %s28, 1
    %p301 = por %p299, %p300
    %p303 = scmp.ne.s32.totalorder %s286, %s302
    %p304 = scmp.eq.s32.totalorder %s28, 0
    %p305 = por %p303, %p304
    %s306 = ssub.s32 %s22, %s29
    %p307 = scmp.eq.s32.totalorder %s306, 0
    %s309 = sadd.s32 %s308, 1
    %s310 = scalar_select %p307, %s308, %s309
    %p313 = pneg %p307
    %p314 = scmp.eq.s32.totalorder %s22, 1
    %p315 = por %p313, %p314
    %p316 = scmp.ne.s32.totalorder %s308, %s311
    %p317 = scmp.eq.s32.totalorder %s22, 0
    %p318 = por %p316, %p317
    %p319 = scmp.ne.s32.totalorder %s308, %s311
    %p320 = scmp.eq.s32.totalorder %s27, 1
    %p321 = por %p319, %p320
    %p322 = scmp.ne.s32.totalorder %s311, %s312
    %p323 = scmp.eq.s32.totalorder %s27, 0
    %p324 = por %p322, %p323
    %p325 = scmp.ne.s32.totalorder %s311, %s312
    %p326 = scmp.eq.s32.totalorder %s28, 1
    %p327 = por %p325, %p326
    %p329 = scmp.ne.s32.totalorder %s312, %s328
    %p330 = scmp.eq.s32.totalorder %s28, 0
    %p331 = por %p329, %p330
    %s332 = ssub.s32 %s22, %s29
    %p333 = scmp.eq.s32.totalorder %s332, 0
    %s335 = sadd.s32 %s334, 1
    %s336 = scalar_select %p333, %s334, %s335
    %p339 = pneg %p333
    %p340 = scmp.eq.s32.totalorder %s22, 1
    %p341 = por %p339, %p340
    %p342 = scmp.ne.s32.totalorder %s334, %s337
    %p343 = scmp.eq.s32.totalorder %s22, 0
    %p344 = por %p342, %p343
    %p345 = scmp.ne.s32.totalorder %s334, %s337
    %p346 = scmp.eq.s32.totalorder %s27, 1
    %p347 = por %p345, %p346
    %p348 = scmp.ne.s32.totalorder %s337, %s338
    %p349 = scmp.eq.s32.totalorder %s27, 0
    %p350 = por %p348, %p349
    %p351 = scmp.ne.s32.totalorder %s337, %s338
    %p352 = scmp.eq.s32.totalorder %s28, 1
    %p353 = por %p351, %p352
    %p355 = scmp.ne.s32.totalorder %s338, %s354
    %p356 = scmp.eq.s32.totalorder %s28, 0
    %p357 = por %p355, %p356
    %s358 = ssub.s32 %s22, %s29
    %p359 = scmp.eq.s32.totalorder %s358, 0
    %s361 = sadd.s32 %s360, 1
    %s362 = scalar_select %p359, %s360, %s361
    %p365 = pneg %p359
    %p366 = scmp.eq.s32.totalorder %s22, 1
    %p367 = por %p365, %p366
    %p368 = scmp.ne.s32.totalorder %s360, %s363
    %p369 = scmp.eq.s32.totalorder %s22, 0
    %p370 = por %p368, %p369
    %p371 = scmp.ne.s32.totalorder %s360, %s363
    %p372 = scmp.eq.s32.totalorder %s27, 1
    %p373 = por %p371, %p372
    %p374 = scmp.ne.s32.totalorder %s363, %s364
    %p375 = scmp.eq.s32.totalorder %s27, 0
    %p376 = por %p374, %p375
    %p377 = scmp.ne.s32.totalorder %s363, %s364
    %p378 = scmp.eq.s32.totalorder %s28, 1
    %p379 = por %p377, %p378
    %p381 = scmp.ne.s32.totalorder %s364, %s380
    %p382 = scmp.eq.s32.totalorder %s28, 0
    %p383 = por %p381, %p382
    %s385 = sadd.s32 %s384, 1
    %p388 = scmp.eq.s32.totalorder %s22, 1
    %p389 = scmp.ne.s32.totalorder %s384, %s386
    %p390 = scmp.eq.s32.totalorder %s22, 0
    %p391 = por %p389, %p390
    %p392 = scmp.ne.s32.totalorder %s384, %s386
    %p393 = scmp.eq.s32.totalorder %s27, 1
    %p394 = por %p392, %p393
    %p395 = scmp.ne.s32.totalorder %s386, %s387
    %p396 = scmp.eq.s32.totalorder %s27, 0
    %p397 = por %p395, %p396
    %p398 = scmp.ne.s32.totalorder %s386, %s387
    %p399 = scmp.eq.s32.totalorder %s28, 1
    %p400 = por %p398, %p399
    %p402 = scmp.ne.s32.totalorder %s387, %s401
    %p403 = scmp.eq.s32.totalorder %s28, 0
    %p404 = por %p402, %p403
    %s406 = sadd.s32 %s405, 1
    %p409 = scmp.eq.s32.totalorder %s22, 1
    %p410 = scmp.ne.s32.totalorder %s405, %s407
    %p411 = scmp.eq.s32.totalorder %s22, 0
    %p412 = por %p410, %p411
    %p413 = scmp.ne.s32.totalorder %s405, %s407
    %p414 = scmp.eq.s32.totalorder %s27, 1
    %p415 = por %p413, %p414
    %p416 = scmp.ne.s32.totalorder %s407, %s408
    %p417 = scmp.eq.s32.totalorder %s27, 0
    %p418 = por %p416, %p417
    %p419 = scmp.ne.s32.totalorder %s407, %s408
    %p420 = scmp.eq.s32.totalorder %s28, 1
    %p421 = por %p419, %p420
    %p423 = scmp.ne.s32.totalorder %s408, %s422
    %p424 = scmp.eq.s32.totalorder %s28, 0
    %p425 = por %p423, %p424
    %s427 = sadd.s32 %s426, 1
    %p430 = scmp.eq.s32.totalorder %s22, 1
    %p431 = scmp.ne.s32.totalorder %s426, %s428
    %p432 = scmp.eq.s32.totalorder %s22, 0
    %p433 = por %p431, %p432
    %p434 = scmp.ne.s32.totalorder %s426, %s428
    %p435 = scmp.eq.s32.totalorder %s27, 1
    %p436 = por %p434, %p435
    %p437 = scmp.ne.s32.totalorder %s428, %s429
    %p438 = scmp.eq.s32.totalorder %s27, 0
    %p439 = por %p437, %p438
    %p440 = scmp.ne.s32.totalorder %s428, %s429
    %p441 = scmp.eq.s32.totalorder %s28, 1
    %p442 = por %p440, %p441
    %p444 = scmp.ne.s32.totalorder %s429, %s443
    %p445 = scmp.eq.s32.totalorder %s28, 0
    %p446 = por %p444, %p445
    %p447 = scmp.le.s32.totalorder 1, %s22
    %p448 = scmp.lt.s32.totalorder %s22, 3
    %p449 = pnand %p447, %p448
    %p450 = pneg %p449
    // Predicated region
    $region9: #{seq2seq_forward.2} parent=5 // pred_check
      _
    $region10: #{seq2seq_forward.2} parent=5 // pred_check_branch
      %452 = sbr.rel (%p449) target = $region12
    $region11: #{seq2seq_forward.2} parent=5 // pred_region
      %s453 = ssub.s32 %s22, 1
      // Predicated region
      $region13: #{seq2seq_forward.2} parent=11 // pred_check
        %p454 = pneg %p43
      $region14: #{seq2seq_forward.2} parent=11 // pred_check_branch
        %456 = sbr.rel (%p454) target = $region16
      $region15: #{seq2seq_forward.2} parent=11 // pred_region
        _
      $region16: #{seq2seq_forward.2} parent=11 // pred_fallthru
        _
      // Predicated region
      $region17: #{seq2seq_forward.2} parent=11 // pred_check
        %p457 = pneg %p64
      $region18: #{seq2seq_forward.2} parent=11 // pred_check_branch
        %459 = sbr.rel (%p457) target = $region20
      $region19: #{seq2seq_forward.2} parent=11 // pred_region
        _
      $region20: #{seq2seq_forward.2} parent=11 // pred_fallthru
        _
      // Predicated region
      $region21: #{seq2seq_forward.2} parent=11 // pred_check
        %p460 = pneg %p397
      $region22: #{seq2seq_forward.2} parent=11 // pred_check_branch
        %462 = sbr.rel (%p460) target = $region24
      $region23: #{seq2seq_forward.2} parent=11 // pred_region
        _
      $region24: #{seq2seq_forward.2} parent=11 // pred_fallthru
        _
      // Predicated region
      $region25: #{seq2seq_forward.2} parent=11 // pred_check
        %p463 = pneg %p418
      $region26: #{seq2seq_forward.2} parent=11 // pred_check_branch
        %465 = sbr.rel (%p463) target = $region28
      $region27: #{seq2seq_forward.2} parent=11 // pred_region
        _
      $region28: #{seq2seq_forward.2} parent=11 // pred_fallthru
        _
    $region12: #{seq2seq_forward.2} parent=5 // pred_fallthru
      _
    %p466 = scmp.lt.s32.totalorder %s22, 2
    // Predicated region
    $region29: #{seq2seq_forward.2} parent=5 // pred_check
      %p467 = pneg %p466
    $region30: #{seq2seq_forward.2} parent=5 // pred_check_branch
      %469 = sbr.rel (%p467) target = $region32
    $region31: #{seq2seq_forward.2} parent=5 // pred_region
      // Predicated region
      $region33: #{seq2seq_forward.2} parent=31 // pred_check
        %p470 = pneg %p84
      $region34: #{seq2seq_forward.2} parent=31 // pred_check_branch
        %472 = sbr.rel (%p470) target = $region36
      $region35: #{seq2seq_forward.2} parent=31 // pred_region
        %p473 = scmp.lt.s32.totalorder %s22, 1
        %s474 = scalar_select %p473, %s22, 1
        %s475 = smul.addr %s474, 4
        %s476 = smul.addr %s475, 4
        %s477 = scalar_lea.vmem %s2, %s476
      $region36: #{seq2seq_forward.2} parent=31 // pred_fallthru
        _
      // Predicated region
      $region37: #{seq2seq_forward.2} parent=31 // pred_check
        %p478 = pneg %p110
      $region38: #{seq2seq_forward.2} parent=31 // pred_check_branch
        %480 = sbr.rel (%p478) target = $region40
      $region39: #{seq2seq_forward.2} parent=31 // pred_region
        %p481 = scmp.lt.s32.totalorder %s22, 1
        %s482 = scalar_select %p481, %s22, 1
        %s483 = scalar_lea.vmem %s3, %s482
      $region40: #{seq2seq_forward.2} parent=31 // pred_fallthru
        _
      // Predicated region
      $region41: #{seq2seq_forward.2} parent=31 // pred_check
        %p484 = pneg %p136
      $region42: #{seq2seq_forward.2} parent=31 // pred_check_branch
        %486 = sbr.rel (%p484) target = $region44
      $region43: #{seq2seq_forward.2} parent=31 // pred_region
        %p487 = scmp.lt.s32.totalorder %s22, 1
        %s488 = scalar_select %p487, %s22, 1
        %s489 = smul.addr %s488, 4
        %s490 = smul.addr %s489, 4
        %s491 = scalar_lea.vmem %s4, %s490
      $region44: #{seq2seq_forward.2} parent=31 // pred_fallthru
        _
      // Predicated region
      $region45: #{seq2seq_forward.2} parent=31 // pred_check
        %p492 = pneg %p162
      $region46: #{seq2seq_forward.2} parent=31 // pred_check_branch
        %494 = sbr.rel (%p492) target = $region48
      $region47: #{seq2seq_forward.2} parent=31 // pred_region
        %p495 = scmp.lt.s32.totalorder %s22, 1
        %s496 = scalar_select %p495, %s22, 1
        %s497 = scalar_lea.vmem %s5, %s496
      $region48: #{seq2seq_forward.2} parent=31 // pred_fallthru
        _
      // Predicated region
      $region49: #{seq2seq_forward.2} parent=31 // pred_check
        %p498 = pneg %p188
      $region50: #{seq2seq_forward.2} parent=31 // pred_check_branch
        %500 = sbr.rel (%p498) target = $region52
      $region51: #{seq2seq_forward.2} parent=31 // pred_region
        %p501 = scmp.lt.s32.totalorder %s22, 1
        %s502 = scalar_select %p501, %s22, 1
        %s503 = scalar_lea.vmem %s6, %s502
      $region52: #{seq2seq_forward.2} parent=31 // pred_fallthru
        _
      // Predicated region
      $region53: #{seq2seq_forward.2} parent=31 // pred_check
        %p504 = pneg %p214
      $region54: #{seq2seq_forward.2} parent=31 // pred_check_branch
        %506 = sbr.rel (%p504) target = $region56
      $region55: #{seq2seq_forward.2} parent=31 // pred_region
        %p507 = scmp.lt.s32.totalorder %s22, 1
        %s508 = scalar_select %p507, %s22, 1
        %s509 = scalar_lea.vmem %s7, %s508
      $region56: #{seq2seq_forward.2} parent=31 // pred_fallthru
        _
      // Predicated region
      $region57: #{seq2seq_forward.2} parent=31 // pred_check
        %p510 = pneg %p240
      $region58: #{seq2seq_forward.2} parent=31 // pred_check_branch
        %512 = sbr.rel (%p510) target = $region60
      $region59: #{seq2seq_forward.2} parent=31 // pred_region
        %p513 = scmp.lt.s32.totalorder %s22, 1
        %s514 = scalar_select %p513, %s22, 1
        %s515 = smul.addr %s514, 4
        %s516 = smul.addr %s515, 4
        %s517 = scalar_lea.vmem %s8, %s516
      $region60: #{seq2seq_forward.2} parent=31 // pred_fallthru
        _
      // Predicated region
      $region61: #{seq2seq_forward.2} parent=31 // pred_check
        %p518 = pneg %p266
      $region62: #{seq2seq_forward.2} parent=31 // pred_check_branch
        %520 = sbr.rel (%p518) target = $region64
      $region63: #{seq2seq_forward.2} parent=31 // pred_region
        %p521 = scmp.lt.s32.totalorder %s22, 1
        %s522 = scalar_select %p521, %s22, 1
        %s523 = scalar_lea.vmem %s9, %s522
      $region64: #{seq2seq_forward.2} parent=31 // pred_fallthru
        _
      // Predicated region
      $region65: #{seq2seq_forward.2} parent=31 // pred_check
        %p524 = pneg %p292
      $region66: #{seq2seq_forward.2} parent=31 // pred_check_branch
        %526 = sbr.rel (%p524) target = $region68
      $region67: #{seq2seq_forward.2} parent=31 // pred_region
        %p527 = scmp.lt.s32.totalorder %s22, 1
        %s528 = scalar_select %p527, %s22, 1
        %s529 = smul.addr %s528, 8
        %s530 = smul.addr %s529, 4
        %s531 = scalar_lea.vmem %s10, %s530
      $region68: #{seq2seq_forward.2} parent=31 // pred_fallthru
        _
      // Predicated region
      $region69: #{seq2seq_forward.2} parent=31 // pred_check
        %p532 = pneg %p318
      $region70: #{seq2seq_forward.2} parent=31 // pred_check_branch
        %534 = sbr.rel (%p532) target = $region72
      $region71: #{seq2seq_forward.2} parent=31 // pred_region
        %p535 = scmp.lt.s32.totalorder %s22, 1
        %s536 = scalar_select %p535, %s22, 1
        %s537 = scalar_lea.vmem %s11, %s536
      $region72: #{seq2seq_forward.2} parent=31 // pred_fallthru
        _
      // Predicated region
      $region73: #{seq2seq_forward.2} parent=31 // pred_check
        %p538 = pneg %p344
      $region74: #{seq2seq_forward.2} parent=31 // pred_check_branch
        %540 = sbr.rel (%p538) target = $region76
      $region75: #{seq2seq_forward.2} parent=31 // pred_region
        %p541 = scmp.lt.s32.totalorder %s22, 1
        %s542 = scalar_select %p541, %s22, 1
        %s543 = scalar_lea.vmem %s12, %s542
      $region76: #{seq2seq_forward.2} parent=31 // pred_fallthru
        _
      // Predicated region
      $region77: #{seq2seq_forward.2} parent=31 // pred_check
        %p544 = pneg %p370
      $region78: #{seq2seq_forward.2} parent=31 // pred_check_branch
        %546 = sbr.rel (%p544) target = $region80
      $region79: #{seq2seq_forward.2} parent=31 // pred_region
        %p547 = scmp.lt.s32.totalorder %s22, 1
        %s548 = scalar_select %p547, %s22, 1
        %s549 = scalar_lea.vmem %s13, %s548
      $region80: #{seq2seq_forward.2} parent=31 // pred_fallthru
        _
    $region32: #{seq2seq_forward.2} parent=5 // pred_fallthru
      _
    %p550 = scmp.le.s32.totalorder 1, %s22
    %p551 = scmp.lt.s32.totalorder %s22, 3
    %p552 = pnand %p550, %p551
    %p553 = pneg %p552
    // Predicated region
    $region81: #{seq2seq_forward.2} parent=5 // pred_check
      _
    $region82: #{seq2seq_forward.2} parent=5 // pred_check_branch
      %555 = sbr.rel (%p552) target = $region84
    $region83: #{seq2seq_forward.2} parent=5 // pred_region
      %s556 = ssub.s32 %s22, 1
      %p557 = pneg %p43
      %p558 = pneg %p40
      %p559 = pneg %p64
      %p560 = pneg %p61
      %p561 = scmp.lt.s32.totalorder %s27, 1
      %s562 = scalar_select %p561, %s27, 1
      %s563 = smul.addr %s562, 4
      %s564 = smul.addr %s563, 4
      %s565 = scalar_lea.vmem %s2, %s564
      %p566 = pneg %p90
      %p567 = pneg %p87
      %p568 = scmp.lt.s32.totalorder %s27, 1
      %s569 = scalar_select %p568, %s27, 1
      %s570 = scalar_lea.vmem %s3, %s569
      %p571 = pneg %p116
      %p572 = pneg %p113
      %p573 = scmp.lt.s32.totalorder %s27, 1
      %s574 = scalar_select %p573, %s27, 1
      %s575 = smul.addr %s574, 4
      %s576 = smul.addr %s575, 4
      %s577 = scalar_lea.vmem %s4, %s576
      %p578 = pneg %p142
      %p579 = pneg %p139
      %p580 = scmp.lt.s32.totalorder %s27, 1
      %s581 = scalar_select %p580, %s27, 1
      %s582 = scalar_lea.vmem %s5, %s581
      %p583 = pneg %p168
      %p584 = pneg %p165
      %p585 = scmp.lt.s32.totalorder %s27, 1
      %s586 = scalar_select %p585, %s27, 1
      %s587 = scalar_lea.vmem %s6, %s586
      %p588 = pneg %p194
      %p589 = pneg %p191
      %p590 = scmp.lt.s32.totalorder %s27, 1
      %s591 = scalar_select %p590, %s27, 1
      %s592 = scalar_lea.vmem %s7, %s591
      %p593 = pneg %p220
      %p594 = pneg %p217
      %p595 = scmp.lt.s32.totalorder %s27, 1
      %s596 = scalar_select %p595, %s27, 1
      %s597 = smul.addr %s596, 4
      %s598 = smul.addr %s597, 4
      %s599 = scalar_lea.vmem %s8, %s598
      %p600 = pneg %p246
      %p601 = pneg %p243
      %p602 = scmp.lt.s32.totalorder %s27, 1
      %s603 = scalar_select %p602, %s27, 1
      %s604 = scalar_lea.vmem %s9, %s603
      %p605 = pneg %p272
      %p606 = pneg %p269
      %p607 = scmp.lt.s32.totalorder %s27, 1
      %s608 = scalar_select %p607, %s27, 1
      %s609 = smul.addr %s608, 8
      %s610 = smul.addr %s609, 4
      %s611 = scalar_lea.vmem %s10, %s610
      %p612 = pneg %p298
      %p613 = pneg %p295
      %p614 = scmp.lt.s32.totalorder %s27, 1
      %s615 = scalar_select %p614, %s27, 1
      %s616 = scalar_lea.vmem %s11, %s615
      %p617 = pneg %p324
      %p618 = pneg %p321
      %p619 = scmp.lt.s32.totalorder %s27, 1
      %s620 = scalar_select %p619, %s27, 1
      %s621 = scalar_lea.vmem %s12, %s620
      %p622 = pneg %p350
      %p623 = pneg %p347
      %p624 = scmp.lt.s32.totalorder %s27, 1
      %s625 = scalar_select %p624, %s27, 1
      %s626 = scalar_lea.vmem %s13, %s625
      %p627 = pneg %p376
      %p628 = pneg %p373
      %p629 = pneg %p397
      %p630 = pneg %p394
      %p631 = pneg %p418
      %p632 = pneg %p415
      %p633 = pneg %p439
      %p634 = pneg %p436
      %p635 = scmp.lt.s32.totalorder %s27, 1
      %s636 = scalar_select %p635, %s27, 1
      %s637 = smul.addr %s636, 4
      %s638 = smul.addr %s637, 4
      %s639 = scalar_lea.vmem %s2, %s638
      %p640 = scmp.lt.s32.totalorder %s27, 1
      %s641 = scalar_select %p640, %s27, 1
      %s642 = scalar_lea.vmem %s3, %s641
      %p643 = scmp.lt.s32.totalorder %s27, 1
      %s644 = scalar_select %p643, %s27, 1
      %s645 = smul.addr %s644, 4
      %s646 = smul.addr %s645, 4
      %s647 = scalar_lea.vmem %s4, %s646
      %p648 = scmp.lt.s32.totalorder %s27, 1
      %s649 = scalar_select %p648, %s27, 1
      %s650 = scalar_lea.vmem %s5, %s649
      %p651 = scmp.lt.s32.totalorder %s27, 1
      %s652 = scalar_select %p651, %s27, 1
      %s653 = scalar_lea.vmem %s6, %s652
      %p654 = scmp.lt.s32.totalorder %s27, 1
      %s655 = scalar_select %p654, %s27, 1
      %s656 = scalar_lea.vmem %s7, %s655
      %p657 = scmp.lt.s32.totalorder %s27, 1
      %s658 = scalar_select %p657, %s27, 1
      %s659 = smul.addr %s658, 4
      %s660 = smul.addr %s659, 4
      %s661 = scalar_lea.vmem %s8, %s660
      %p662 = scmp.lt.s32.totalorder %s27, 1
      %s663 = scalar_select %p662, %s27, 1
      %s664 = scalar_lea.vmem %s9, %s663
      %p665 = scmp.lt.s32.totalorder %s27, 1
      %s666 = scalar_select %p665, %s27, 1
      %s667 = smul.addr %s666, 8
      %s668 = smul.addr %s667, 4
      %s669 = scalar_lea.vmem %s10, %s668
      %p670 = scmp.lt.s32.totalorder %s27, 1
      %s671 = scalar_select %p670, %s27, 1
      %s672 = scalar_lea.vmem %s11, %s671
      %p673 = scmp.lt.s32.totalorder %s27, 1
      %s674 = scalar_select %p673, %s27, 1
      %s675 = scalar_lea.vmem %s12, %s674
      %p676 = scmp.lt.s32.totalorder %s27, 1
      %s677 = scalar_select %p676, %s27, 1
      %s678 = scalar_lea.vmem %s13, %s677
      %p680 = scmp.eq.s32.totalorder %s27, 0
      // Predicated region
      $region85: #{seq2seq_forward.2} parent=83 // pred_check
        %p681 = pneg %p680
      $region86: #{seq2seq_forward.2} parent=83 // pred_check_branch
        %683 = sbr.rel (%p681) target = $region88
      $region87: #{seq2seq_forward.2} parent=83 // pred_region
        %v684 = vld [vmem:[%s0] sm:$0xff]
        %v685 = vld [vmem:[%s0 + $0x8] sm:$0xff]
        %vm686 = vcmask 261120
        %687 = vst.msk [vmem:[%s16] sm:$0xff] %vm686, %v684
        %688 = vst.msk [vmem:[%s16 + $0x8] sm:$0xff] %vm686, %v685
      $region88: #{seq2seq_forward.2} parent=83 // pred_fallthru
        _
      %v689 = vld [vmem:[%s16] sm:$0xff]
      %v690 = vld [vmem:[%s16 + $0x8] sm:$0xff]
      %v691 = vld [vmem:[%s1] sm:$0xff]
      %v692 = vld [vmem:[%s1 + $0x8] sm:$0xff]
      %v693 = vld [vmem:[%s639] sm:$0xf]
      %v694 = vld [vmem:[%s639 + $0x4] sm:$0xf]
      %v695 = vld [vmem:[%s639 + $0x8] sm:$0xf]
      %v696 = vld [vmem:[%s639 + $0xc] sm:$0xf]
      %v697 = vld [vmem:[%s642] sm:$0x1]
      %v698 = vpack.c.bf16 %v690, %v689
      %v700 = vlaneseq
      %v701 = vshrl.u32 %v700, 7
      %v702 = vsub.s32 0, %v701
      %v703 = vrot.slane %v697, %v702
      %v709 = vunpack.c.l.b16 %v693
      %v710 = vunpack.c.l.b16 %v694
      %v711 = vunpack.c.l.b16 %v695
      %v712 = vunpack.c.l.b16 %v696
      %v713 = vpack.c.b16 %v710, %v709
      %v714 = vpack.c.b16 %v712, %v711
      %vm717 = vcmask 261120
      %v719 = vsel %vm717, %v698, 0
      %721 = vmatprep.subr.bf16.mxu0 0
      %722 = vmatpush1.bf16.msra.mxu0 %v713
      %723 = vmatprep.subr.bf16.mxu0 0
      %724 = vmatpush1.bf16.msra.mxu0 %v714
      %725 = vmatprep.subr.bf16.mxu0 0
      %726 = vmatpush1.bf16.msra.mxu0 0
      %727 = vmatprep.subr.bf16.mxu0 0
      %728 = vmatpush1.bf16.msra.mxu0 0
      %729 = vmatprep.subr.bf16.mxu0 0
      %730 = vmatpush1.bf16.msra.mxu0 0
      %731 = vmatprep.subr.bf16.mxu0 0
      %732 = vmatpush1.bf16.msra.mxu0 0
      %733 = vmatprep.subr.bf16.mxu0 0
      %734 = vmatpush1.bf16.msra.mxu0 0
      %735 = vmatprep.subr.bf16.mxu0 0
      %736 = vmatpush1.bf16.msra.mxu0 0
      %737 = vmatprep.subr.bf16.mxu0 0
      %738 = vmatpush1.bf16.msra.mxu0 0
      %739 = vmatprep.subr.bf16.mxu0 0
      %740 = vmatpush1.bf16.msra.mxu0 0
      %741 = vmatprep.subr.bf16.mxu0 0
      %742 = vmatpush1.bf16.msra.mxu0 0
      %743 = vmatprep.subr.bf16.mxu0 0
      %744 = vmatpush1.bf16.msra.mxu0 0
      %745 = vmatprep.subr.bf16.mxu0 0
      %746 = vmatpush1.bf16.msra.mxu0 0
      %747 = vmatprep.subr.bf16.mxu0 0
      %748 = vmatpush1.bf16.msra.mxu0 0
      %749 = vmatprep.subr.bf16.mxu0 0
      %750 = vmatpush1.bf16.msra.mxu0 0
      %751 = vmatprep.subr.bf16.mxu0 0
      %752 = vmatpush1.bf16.msra.mxu0 0
      %753 = vmatprep.mubr.bf16.mxu0 0
      %754 = vmatmul.mubr.bf16.gmra.mrb[0].mxu0 %v719
      %v755 = vpop.f32.mrb[0].mxu0
      %v756 = vadd.f32 %v703, %v755
      %v757 = vpop.f32.mrb[0].mxu0
      %v758 = vpop.f32.mrb[0].mxu0
      %v759 = vadd.f32 %v703, %v758
      %v760 = vpop.f32.mrb[0].mxu0
      %761 = vdwg.mxu0
      %v762 = vpack.c.bf16 %v759, %v756
      %v764 = vunpack.c.l.b16 %v762
      %v765 = vunpack.c.h.b16 %v762
      %v766 = vpack.c.b16 %v764, %v764
      %v767 = vpack.c.b16 %v765, %v765
      %768 = vrot.lane.b32.xlu0 %v766, 96
      %v769 = vpop.permute.xlu0 %768
      %vm770 = vcmask 64512
      %v772 = vsel %vm770, %v766, 0
      %v775 = vsel %vm770, %v769, 0
      %777 = vmatprep.subr.bf16.mxu0 0
      %778 = vmatpush1.bf16.xpose.msra.mxu0 %v775
      %779 = vmatprep.subr.bf16.mxu0 0
      %780 = vmatpush1.bf16.xpose.msra.mxu0 0
      %781 = vmatprep.subr.bf16.mxu0 0
      %782 = vmatpush1.bf16.xpose.msra.mxu0 0
      %783 = vmatprep.subr.bf16.mxu0 0
      %784 = vmatpush1.bf16.xpose.msra.mxu0 0
      %785 = vmatprep.subr.bf16.mxu0 0
      %786 = vmatpush1.bf16.xpose.msra.mxu0 0
      %787 = vmatprep.subr.bf16.mxu0 0
      %788 = vmatpush1.bf16.xpose.msra.mxu0 0
      %789 = vmatprep.subr.bf16.mxu0 0
      %790 = vmatpush1.bf16.xpose.msra.mxu0 0
      %791 = vmatprep.subr.bf16.mxu0 0
      %792 = vmatpush1.bf16.xpose.msra.mxu0 0
      %793 = vmatprep.subr.bf16.mxu0 0
      %794 = vmatpush1.bf16.xpose.msra.mxu0 0
      %795 = vmatprep.subr.bf16.mxu0 0
      %796 = vmatpush1.bf16.xpose.msra.mxu0 0
      %797 = vmatprep.subr.bf16.mxu0 0
      %798 = vmatpush1.bf16.xpose.msra.mxu0 0
      %799 = vmatprep.subr.bf16.mxu0 0
      %800 = vmatpush1.bf16.xpose.msra.mxu0 0
      %801 = vmatprep.subr.bf16.mxu0 0
      %802 = vmatpush1.bf16.xpose.msra.mxu0 0
      %803 = vmatprep.subr.bf16.mxu0 0
      %804 = vmatpush1.bf16.xpose.msra.mxu0 0
      %805 = vmatprep.subr.bf16.mxu0 0
      %806 = vmatpush1.bf16.xpose.msra.mxu0 0
      %807 = vmatprep.subr.bf16.mxu0 0
      %808 = vmatpush1.bf16.xpose.msra.mxu0 0
      %809 = vmatprep.mubr.bf16.mxu0 0
      %810 = vmatmul.mubr.bf16.gmra.mrb[0].mxu0 %v772
      %v811 = vpop.f32.mrb[0].mxu0
      %v812 = vadd.f32 %v691, %v811
      %v813 = vpop.f32.mrb[0].mxu0
      %v814 = vpop.f32.mrb[0].mxu0
      %v815 = vpop.f32.mrb[0].mxu0
      %816 = vdwg.mxu0
      %817 = vrot.lane.b32.xlu0 %v767, 96
      %v818 = vpop.permute.xlu0 %817
      %v820 = vsel %vm770, %v767, 0
      %v823 = vsel %vm770, %v818, 0
      %825 = vmatprep.subr.bf16.mxu0 0
      %826 = vmatpush1.bf16.xpose.msra.mxu0 %v823
      %827 = vmatprep.subr.bf16.mxu0 0
      %828 = vmatpush1.bf16.xpose.msra.mxu0 0
      %829 = vmatprep.subr.bf16.mxu0 0
      %830 = vmatpush1.bf16.xpose.msra.mxu0 0
      %831 = vmatprep.subr.bf16.mxu0 0
      %832 = vmatpush1.bf16.xpose.msra.mxu0 0
      %833 = vmatprep.subr.bf16.mxu0 0
      %834 = vmatpush1.bf16.xpose.msra.mxu0 0
      %835 = vmatprep.subr.bf16.mxu0 0
      %836 = vmatpush1.bf16.xpose.msra.mxu0 0
      %837 = vmatprep.subr.bf16.mxu0 0
      %838 = vmatpush1.bf16.xpose.msra.mxu0 0
      %839 = vmatprep.subr.bf16.mxu0 0
      %840 = vmatpush1.bf16.xpose.msra.mxu0 0
      %841 = vmatprep.subr.bf16.mxu0 0
      %842 = vmatpush1.bf16.xpose.msra.mxu0 0
      %843 = vmatprep.subr.bf16.mxu0 0
      %844 = vmatpush1.bf16.xpose.msra.mxu0 0
      %845 = vmatprep.subr.bf16.mxu0 0
      %846 = vmatpush1.bf16.xpose.msra.mxu0 0
      %847 = vmatprep.subr.bf16.mxu0 0
      %848 = vmatpush1.bf16.xpose.msra.mxu0 0
      %849 = vmatprep.subr.bf16.mxu0 0
      %850 = vmatpush1.bf16.xpose.msra.mxu0 0
      %851 = vmatprep.subr.bf16.mxu0 0
      %852 = vmatpush1.bf16.xpose.msra.mxu0 0
      %853 = vmatprep.subr.bf16.mxu0 0
      %854 = vmatpush1.bf16.xpose.msra.mxu0 0
      %855 = vmatprep.subr.bf16.mxu0 0
      %856 = vmatpush1.bf16.xpose.msra.mxu0 0
      %857 = vmatprep.mubr.bf16.mxu0 0
      %858 = vmatmul.mubr.bf16.gmra.mrb[0].mxu0 %v820
      %v859 = vpop.f32.mrb[0].mxu0
      %v860 = vadd.f32 %v692, %v859
      %v861 = vpop.f32.mrb[0].mxu0
      %v862 = vpop.f32.mrb[0].mxu0
      %v863 = vpop.f32.mrb[0].mxu0
      %864 = vdwg.mxu0
      %v865 = vsel %vm770, %v812, -inf
      %866 = vmax.xlane.f32.xlu0 %v865
      %v867 = vpop.xlane.xlu0 %866
      %v868 = vsel %vm770, %v860, -inf
      %869 = vmax.xlane.f32.xlu0 %v868
      %v870 = vpop.xlane.xlu0 %869
      %v871 = vsub.f32 %v812, %v867
      %v872 = vsub.f32 %v860, %v870
      %v873 = vmul.f32 %v871, 1.442695
      %v874 = vpow.pop %v873
      %v875 = vmul.f32 %v872, 1.442695
      %v876 = vpow.pop %v875
      %v877 = vsel %vm770, %v874, 0.0
      %878 = vadd.xlane.f32.xlu0 %v877
      %v879 = vpop.xlane.xlu0 %878
      %v880 = vsel %vm770, %v876, 0.0
      %881 = vadd.xlane.f32.xlu0 %v880
      %v882 = vpop.xlane.xlu0 %881
      %v883 = vrcp.pop %v879
      %v884 = vrcp.pop %v882
      %v885 = vmul.f32 %v874, %v883
      %v886 = vmul.f32 %v876, %v884
      %v887 = vpack.c.bf16 %v885, %v885
      %v888 = vpack.c.bf16 %v886, %v886
      %889 = vrot.lane.b32.xlu0 %v766, 64
      %v890 = vpop.permute.xlu0 %889
      %v892 = vsel %vm770, %v887, 0
      %vm894 = vcmask 1043456
      %v896 = vsel %vm894, %v890, 0
      %898 = vmatprep.subr.bf16.mxu0 0
      %899 = vmatpush1.bf16.msra.mxu0 %v896
      %900 = vmatprep.subr.bf16.mxu0 0
      %901 = vmatpush1.bf16.msra.mxu0 0
      %902 = vmatprep.subr.bf16.mxu0 0
      %903 = vmatpush1.bf16.msra.mxu0 0
      %904 = vmatprep.subr.bf16.mxu0 0
      %905 = vmatpush1.bf16.msra.mxu0 0
      %906 = vmatprep.subr.bf16.mxu0 0
      %907 = vmatpush1.bf16.msra.mxu0 0
      %908 = vmatprep.subr.bf16.mxu0 0
      %909 = vmatpush1.bf16.msra.mxu0 0
      %910 = vmatprep.subr.bf16.mxu0 0
      %911 = vmatpush1.bf16.msra.mxu0 0
      %912 = vmatprep.subr.bf16.mxu0 0
      %913 = vmatpush1.bf16.msra.mxu0 0
      %914 = vmatprep.subr.bf16.mxu0 0
      %915 = vmatpush1.bf16.msra.mxu0 0
      %916 = vmatprep.subr.bf16.mxu0 0
      %917 = vmatpush1.bf16.msra.mxu0 0
      %918 = vmatprep.subr.bf16.mxu0 0
      %919 = vmatpush1.bf16.msra.mxu0 0
      %920 = vmatprep.subr.bf16.mxu0 0
      %921 = vmatpush1.bf16.msra.mxu0 0
      %922 = vmatprep.subr.bf16.mxu0 0
      %923 = vmatpush1.bf16.msra.mxu0 0
      %924 = vmatprep.subr.bf16.mxu0 0
      %925 = vmatpush1.bf16.msra.mxu0 0
      %926 = vmatprep.subr.bf16.mxu0 0
      %927 = vmatpush1.bf16.msra.mxu0 0
      %928 = vmatprep.subr.bf16.mxu0 0
      %929 = vmatpush1.bf16.msra.mxu0 0
      %930 = vmatprep.mubr.bf16.mxu0 0
      %931 = vmatmul.mubr.bf16.gmra.mrb[0].mxu0 %v892
      %v932 = vpop.f32.mrb[0].mxu0
      %v933 = vadd.f32 0.0, %v932
      %v934 = vpop.f32.mrb[0].mxu0
      %v935 = vpop.f32.mrb[0].mxu0
      %v936 = vpop.f32.mrb[0].mxu0
      %937 = vdwg.mxu0
      %938 = vrot.lane.b32.xlu0 %v767, 64
      %v939 = vpop.permute.xlu0 %938
      %v941 = vsel %vm770, %v888, 0
      %v944 = vsel %vm894, %v939, 0
      %946 = vmatprep.subr.bf16.mxu0 0
      %947 = vmatpush1.bf16.msra.mxu0 %v944
      %948 = vmatprep.subr.bf16.mxu0 0
      %949 = vmatpush1.bf16.msra.mxu0 0
      %950 = vmatprep.subr.bf16.mxu0 0
      %951 = vmatpush1.bf16.msra.mxu0 0
      %952 = vmatprep.subr.bf16.mxu0 0
      %953 = vmatpush1.bf16.msra.mxu0 0
      %954 = vmatprep.subr.bf16.mxu0 0
      %955 = vmatpush1.bf16.msra.mxu0 0
      %956 = vmatprep.subr.bf16.mxu0 0
      %957 = vmatpush1.bf16.msra.mxu0 0
      %958 = vmatprep.subr.bf16.mxu0 0
      %959 = vmatpush1.bf16.msra.mxu0 0
      %960 = vmatprep.subr.bf16.mxu0 0
      %961 = vmatpush1.bf16.msra.mxu0 0
      %962 = vmatprep.subr.bf16.mxu0 0
      %963 = vmatpush1.bf16.msra.mxu0 0
      %964 = vmatprep.subr.bf16.mxu0 0
      %965 = vmatpush1.bf16.msra.mxu0 0
      %966 = vmatprep.subr.bf16.mxu0 0
      %967 = vmatpush1.bf16.msra.mxu0 0
      %968 = vmatprep.subr.bf16.mxu0 0
      %969 = vmatpush1.bf16.msra.mxu0 0
      %970 = vmatprep.subr.bf16.mxu0 0
      %971 = vmatpush1.bf16.msra.mxu0 0
      %972 = vmatprep.subr.bf16.mxu0 0
      %973 = vmatpush1.bf16.msra.mxu0 0
      %974 = vmatprep.subr.bf16.mxu0 0
      %975 = vmatpush1.bf16.msra.mxu0 0
      %976 = vmatprep.subr.bf16.mxu0 0
      %977 = vmatpush1.bf16.msra.mxu0 0
      %978 = vmatprep.mubr.bf16.mxu0 0
      %979 = vmatmul.mubr.bf16.gmra.mrb[0].mxu0 %v941
      %v980 = vpop.f32.mrb[0].mxu0
      %v981 = vadd.f32 0.0, %v980
      %v982 = vpop.f32.mrb[0].mxu0
      %v983 = vpop.f32.mrb[0].mxu0
      %v984 = vpop.f32.mrb[0].mxu0
      %985 = vdwg.mxu0
      %986 = vrot.lane.b32.xlu0 %v766, 120
      %v987 = vpop.permute.xlu0 %986
      %988 = vrot.lane.b32.xlu0 %v766, 88
      %v989 = vpop.permute.xlu0 %988
      %v991 = vsel %vm770, %v987, 0
      %v994 = vsel %vm770, %v989, 0
      %996 = vmatprep.subr.bf16.mxu0 0
      %997 = vmatpush1.bf16.xpose.msra.mxu0 %v994
      %998 = vmatprep.subr.bf16.mxu0 0
      %999 = vmatpush1.bf16.xpose.msra.mxu0 0
      %1000 = vmatprep.subr.bf16.mxu0 0
      %1001 = vmatpush1.bf16.xpose.msra.mxu0 0
      %1002 = vmatprep.subr.bf16.mxu0 0
      %1003 = vmatpush1.bf16.xpose.msra.mxu0 0
      %1004 = vmatprep.subr.bf16.mxu0 0
      %1005 = vmatpush1.bf16.xpose.msra.mxu0 0
      %1006 = vmatprep.subr.bf16.mxu0 0
      %1007 = vmatpush1.bf16.xpose.msra.mxu0 0
      %1008 = vmatprep.subr.bf16.mxu0 0
      %1009 = vmatpush1.bf16.xpose.msra.mxu0 0
      %1010 = vmatprep.subr.bf16.mxu0 0
      %1011 = vmatpush1.bf16.xpose.msra.mxu0 0
      %1012 = vmatprep.subr.bf16.mxu0 0
      %1013 = vmatpush1.bf16.xpose.msra.mxu0 0
      %1014 = vmatprep.subr.bf16.mxu0 0
      %1015 = vmatpush1.bf16.xpose.msra.mxu0 0
      %1016 = vmatprep.subr.bf16.mxu0 0
      %1017 = vmatpush1.bf16.xpose.msra.mxu0 0
      %1018 = vmatprep.subr.bf16.mxu0 0
      %1019 = vmatpush1.bf16.xpose.msra.mxu0 0
      %1020 = vmatprep.subr.bf16.mxu0 0
      %1021 = vmatpush1.bf16.xpose.msra.mxu0 0
      %1022 = vmatprep.subr.bf16.mxu0 0
      %1023 = vmatpush1.bf16.xpose.msra.mxu0 0
      %1024 = vmatprep.subr.bf16.mxu0 0
      %1025 = vmatpush1.bf16.xpose.msra.mxu0 0
      %1026 = vmatprep.subr.bf16.mxu0 0
      %1027 = vmatpush1.bf16.xpose.msra.mxu0 0
      %1028 = vmatprep.mubr.bf16.mxu0 0
      %1029 = vmatmul.mubr.bf16.gmra.mrb[0].mxu0 %v991
      %v1030 = vpop.f32.mrb[0].mxu0
      %v1031 = vadd.f32 %v691, %v1030
      %v1032 = vpop.f32.mrb[0].mxu0
      %v1033 = vpop.f32.mrb[0].mxu0
      %v1034 = vpop.f32.mrb[0].mxu0
      %1035 = vdwg.mxu0
      %1036 = vrot.lane.b32.xlu0 %v767, 120
      %v1037 = vpop.permute.xlu0 %1036
      %1038 = vrot.lane.b32.xlu0 %v767, 88
      %v1039 = vpop.permute.xlu0 %1038
      %v1041 = vsel %vm770, %v1037, 0
      %v1044 = vsel %vm770, %v1039, 0
      %1046 = vmatprep.subr.bf16.mxu0 0
      %1047 = vmatpush1.bf16.xpose.msra.mxu0 %v1044
      %1048 = vmatprep.subr.bf16.mxu0 0
      %1049 = vmatpush1.bf16.xpose.msra.mxu0 0
      %1050 = vmatprep.subr.bf16.mxu0 0
      %1051 = vmatpush1.bf16.xpose.msra.mxu0 0
      %1052 = vmatprep.subr.bf16.mxu0 0
      %1053 = vmatpush1.bf16.xpose.msra.mxu0 0
      %1054 = vmatprep.subr.bf16.mxu0 0
      %1055 = vmatpush1.bf16.xpose.msra.mxu0 0
      %1056 = vmatprep.subr.bf16.mxu0 0
      %1057 = vmatpush1.bf16.xpose.msra.mxu0 0
      %1058 = vmatprep.subr.bf16.mxu0 0
      %1059 = vmatpush1.bf16.xpose.msra.mxu0 0
      %1060 = vmatprep.subr.bf16.mxu0 0
      %1061 = vmatpush1.bf16.xpose.msra.mxu0 0
      %1062 = vmatprep.subr.bf16.mxu0 0
      %1063 = vmatpush1.bf16.xpose.msra.mxu0 0
      %1064 = vmatprep.subr.bf16.mxu0 0
      %1065 = vmatpush1.bf16.xpose.msra.mxu0 0
      %1066 = vmatprep.subr.bf16.mxu0 0
      %1067 = vmatpush1.bf16.xpose.msra.mxu0 0
      %1068 = vmatprep.subr.bf16.mxu0 0
      %1069 = vmatpush1.bf16.xpose.msra.mxu0 0
      %1070 = vmatprep.subr.bf16.mxu0 0
      %1071 = vmatpush1.bf16.xpose.msra.mxu0 0
      %1072 = vmatprep.subr.bf16.mxu0 0
      %1073 = vmatpush1.bf16.xpose.msra.mxu0 0
      %1074 = vmatprep.subr.bf16.mxu0 0
      %1075 = vmatpush1.bf16.xpose.msra.mxu0 0
      %1076 = vmatprep.subr.bf16.mxu0 0
      %1077 = vmatpush1.bf16.xpose.msra.mxu0 0
      %1078 = vmatprep.mubr.bf16.mxu0 0
      %1079 = vmatmul.mubr.bf16.gmra.mrb[0].mxu0 %v1041
      %v1080 = vpop.f32.mrb[0].mxu0
      %v1081 = vadd.f32 %v692, %v1080
      %v1082 = vpop.f32.mrb[0].mxu0
      %v1083 = vpop.f32.mrb[0].mxu0
      %v1084 = vpop.f32.mrb[0].mxu0
      %1085 = vdwg.mxu0
      %v1086 = vsel %vm770, %v1031, -inf
      %1087 = vmax.xlane.f32.xlu0 %v1086
      %v1088 = vpop.xlane.xlu0 %1087
      %v1089 = vsel %vm770, %v1081, -inf
      %1090 = vmax.xlane.f32.xlu0 %v1089
      %v1091 = vpop.xlane.xlu0 %1090
      %v1092 = vsub.f32 %v1031, %v1088
      %v1093 = vsub.f32 %v1081, %v1091
      %v1094 = vmul.f32 %v1092, 1.442695
      %v1095 = vpow.pop %v1094
      %v1096 = vmul.f32 %v1093, 1.442695
      %v1097 = vpow.pop %v1096
      %v1098 = vsel %vm770, %v1095, 0.0
      %1099 = vadd.xlane.f32.xlu0 %v1098
      %v1100 = vpop.xlane.xlu0 %1099
      %v1101 = vsel %vm770, %v1097, 0.0
      %1102 = vadd.xlane.f32.xlu0 %v1101
      %v1103 = vpop.xlane.xlu0 %1102
      %v1104 = vrcp.pop %v1100
      %v1105 = vrcp.pop %v1103
      %v1106 = vmul.f32 %v1095, %v1104
      %v1107 = vmul.f32 %v1097, %v1105
      %v1108 = vpack.c.bf16 %v1106, %v1106
      %v1109 = vpack.c.bf16 %v1107, %v1107
      %1110 = vrot.lane.b32.xlu0 %v766, 56
      %v1111 = vpop.permute.xlu0 %1110
      %v1113 = vsel %vm770, %v1108, 0
      %v1116 = vsel %vm894, %v1111, 0
      %1118 = vmatprep.subr.bf16.mxu0 0
      %1119 = vmatpush1.bf16.msra.mxu0 %v1116
      %1120 = vmatprep.subr.bf16.mxu0 0
      %1121 = vmatpush1.bf16.msra.mxu0 0
      %1122 = vmatprep.subr.bf16.mxu0 0
      %1123 = vmatpush1.bf16.msra.mxu0 0
      %1124 = vmatprep.subr.bf16.mxu0 0
      %1125 = vmatpush1.bf16.msra.mxu0 0
      %1126 = vmatprep.subr.bf16.mxu0 0
      %1127 = vmatpush1.bf16.msra.mxu0 0
      %1128 = vmatprep.subr.bf16.mxu0 0
      %1129 = vmatpush1.bf16.msra.mxu0 0
      %1130 = vmatprep.subr.bf16.mxu0 0
      %1131 = vmatpush1.bf16.msra.mxu0 0
      %1132 = vmatprep.subr.bf16.mxu0 0
      %1133 = vmatpush1.bf16.msra.mxu0 0
      %1134 = vmatprep.subr.bf16.mxu0 0
      %1135 = vmatpush1.bf16.msra.mxu0 0
      %1136 = vmatprep.subr.bf16.mxu0 0
      %1137 = vmatpush1.bf16.msra.mxu0 0
      %1138 = vmatprep.subr.bf16.mxu0 0
      %1139 = vmatpush1.bf16.msra.mxu0 0
      %1140 = vmatprep.subr.bf16.mxu0 0
      %1141 = vmatpush1.bf16.msra.mxu0 0
      %1142 = vmatprep.subr.bf16.mxu0 0
      %1143 = vmatpush1.bf16.msra.mxu0 0
      %1144 = vmatprep.subr.bf16.mxu0 0
      %1145 = vmatpush1.bf16.msra.mxu0 0
      %1146 = vmatprep.subr.bf16.mxu0 0
      %1147 = vmatpush1.bf16.msra.mxu0 0
      %1148 = vmatprep.subr.bf16.mxu0 0
      %1149 = vmatpush1.bf16.msra.mxu0 0
      %1150 = vmatprep.mubr.bf16.mxu0 0
      %1151 = vmatmul.mubr.bf16.gmra.mrb[0].mxu0 %v1113
      %v1152 = vpop.f32.mrb[0].mxu0
      %v1153 = vadd.f32 0.0, %v1152
      %v1154 = vpop.f32.mrb[0].mxu0
      %v1155 = vpop.f32.mrb[0].mxu0
      %v1156 = vpop.f32.mrb[0].mxu0
      %1157 = vdwg.mxu0
      %1158 = vrot.lane.b32.xlu0 %v767, 56
      %v1159 = vpop.permute.xlu0 %1158
      %v1161 = vsel %vm770, %v1109, 0
      %v1164 = vsel %vm894, %v1159, 0
      %1166 = vmatprep.subr.bf16.mxu0 0
      %1167 = vmatpush1.bf16.msra.mxu0 %v1164
      %1168 = vmatprep.subr.bf16.mxu0 0
      %1169 = vmatpush1.bf16.msra.mxu0 0
      %1170 = vmatprep.subr.bf16.mxu0 0
      %1171 = vmatpush1.bf16.msra.mxu0 0
      %1172 = vmatprep.subr.bf16.mxu0 0
      %1173 = vmatpush1.bf16.msra.mxu0 0
      %1174 = vmatprep.subr.bf16.mxu0 0
      %1175 = vmatpush1.bf16.msra.mxu0 0
      %1176 = vmatprep.subr.bf16.mxu0 0
      %1177 = vmatpush1.bf16.msra.mxu0 0
      %1178 = vmatprep.subr.bf16.mxu0 0
      %1179 = vmatpush1.bf16.msra.mxu0 0
      %1180 = vmatprep.subr.bf16.mxu0 0
      %1181 = vmatpush1.bf16.msra.mxu0 0
      %1182 = vmatprep.subr.bf16.mxu0 0
      %1183 = vmatpush1.bf16.msra.mxu0 0
      %1184 = vmatprep.subr.bf16.mxu0 0
      %1185 = vmatpush1.bf16.msra.mxu0 0
      %1186 = vmatprep.subr.bf16.mxu0 0
      %1187 = vmatpush1.bf16.msra.mxu0 0
      %1188 = vmatprep.subr.bf16.mxu0 0
      %1189 = vmatpush1.bf16.msra.mxu0 0
      %1190 = vmatprep.subr.bf16.mxu0 0
      %1191 = vmatpush1.bf16.msra.mxu0 0
      %1192 = vmatprep.subr.bf16.mxu0 0
      %1193 = vmatpush1.bf16.msra.mxu0 0
      %1194 = vmatprep.subr.bf16.mxu0 0
      %1195 = vmatpush1.bf16.msra.mxu0 0
      %1196 = vmatprep.subr.bf16.mxu0 0
      %1197 = vmatpush1.bf16.msra.mxu0 0
      %1198 = vmatprep.mubr.bf16.mxu0 0
      %1199 = vmatmul.mubr.bf16.gmra.mrb[0].mxu0 %v1161
      %v1200 = vpop.f32.mrb[0].mxu0
      %v1201 = vadd.f32 0.0, %v1200
      %v1202 = vpop.f32.mrb[0].mxu0
      %v1203 = vpop.f32.mrb[0].mxu0
      %v1204 = vpop.f32.mrb[0].mxu0
      %1205 = vdwg.mxu0
      %1206 = vrot.lane.b32.xlu0 %v766, 112
      %v1207 = vpop.permute.xlu0 %1206
      %1208 = vrot.lane.b32.xlu0 %v766, 80
      %v1209 = vpop.permute.xlu0 %1208
      %v1211 = vsel %vm770, %v1207, 0
      %v1214 = vsel %vm770, %v1209, 0
      %1216 = vmatprep.subr.bf16.mxu0 0
      %1217 = vmatpush1.bf16.xpose.msra.mxu0 %v1214
      %1218 = vmatprep.subr.bf16.mxu0 0
      %1219 = vmatpush1.bf16.xpose.msra.mxu0 0
      %1220 = vmatprep.subr.bf16.mxu0 0
      %1221 = vmatpush1.bf16.xpose.msra.mxu0 0
      %1222 = vmatprep.subr.bf16.mxu0 0
      %1223 = vmatpush1.bf16.xpose.msra.mxu0 0
      %1224 = vmatprep.subr.bf16.mxu0 0
      %1225 = vmatpush1.bf16.xpose.msra.mxu0 0
      %1226 = vmatprep.subr.bf16.mxu0 0
      %1227 = vmatpush1.bf16.xpose.msra.mxu0 0
      %1228 = vmatprep.subr.bf16.mxu0 0
      %1229 = vmatpush1.bf16.xpose.msra.mxu0 0
      %1230 = vmatprep.subr.bf16.mxu0 0
      %1231 = vmatpush1.bf16.xpose.msra.mxu0 0
      %1232 = vmatprep.subr.bf16.mxu0 0
      %1233 = vmatpush1.bf16.xpose.msra.mxu0 0
      %1234 = vmatprep.subr.bf16.mxu0 0
      %1235 = vmatpush1.bf16.xpose.msra.mxu0 0
      %1236 = vmatprep.subr.bf16.mxu0 0
      %1237 = vmatpush1.bf16.xpose.msra.mxu0 0
      %1238 = vmatprep.subr.bf16.mxu0 0
      %1239 = vmatpush1.bf16.xpose.msra.mxu0 0
      %1240 = vmatprep.subr.bf16.mxu0 0
      %1241 = vmatpush1.bf16.xpose.msra.mxu0 0
      %1242 = vmatprep.subr.bf16.mxu0 0
      %1243 = vmatpush1.bf16.xpose.msra.mxu0 0
      %1244 = vmatprep.subr.bf16.mxu0 0
      %1245 = vmatpush1.bf16.xpose.msra.mxu0 0
      %1246 = vmatprep.subr.bf16.mxu0 0
      %1247 = vmatpush1.bf16.xpose.msra.mxu0 0
      %1248 = vmatprep.mubr.bf16.mxu0 0
      %1249 = vmatmul.mubr.bf16.gmra.mrb[0].mxu0 %v1211
      %v1250 = vpop.f32.mrb[0].mxu0
      %v1251 = vadd.f32 %v691, %v1250
      %v1252 = vpop.f32.mrb[0].mxu0
      %v1253 = vpop.f32.mrb[0].mxu0
      %v1254 = vpop.f32.mrb[0].mxu0
      %1255 = vdwg.mxu0
      %1256 = vrot.lane.b32.xlu0 %v767, 112
      %v1257 = vpop.permute.xlu0 %1256
      %1258 = vrot.lane.b32.xlu0 %v767, 80
      %v1259 = vpop.permute.xlu0 %1258
      %v1261 = vsel %vm770, %v1257, 0
      %v1264 = vsel %vm770, %v1259, 0
      %1266 = vmatprep.subr.bf16.mxu0 0
      %1267 = vmatpush1.bf16.xpose.msra.mxu0 %v1264
      %1268 = vmatprep.subr.bf16.mxu0 0
      %1269 = vmatpush1.bf16.xpose.msra.mxu0 0
      %1270 = vmatprep.subr.bf16.mxu0 0
      %1271 = vmatpush1.bf16.xpose.msra.mxu0 0
      %1272 = vmatprep.subr.bf16.mxu0 0
      %1273 = vmatpush1.bf16.xpose.msra.mxu0 0
      %1274 = vmatprep.subr.bf16.mxu0 0
      %1275 = vmatpush1.bf16.xpose.msra.mxu0 0
      %1276 = vmatprep.subr.bf16.mxu0 0
      %1277 = vmatpush1.bf16.xpose.msra.mxu0 0
      %1278 = vmatprep.subr.bf16.mxu0 0
      %1279 = vmatpush1.bf16.xpose.msra.mxu0 0
      %1280 = vmatprep.subr.bf16.mxu0 0
      %1281 = vmatpush1.bf16.xpose.msra.mxu0 0
      %1282 = vmatprep.subr.bf16.mxu0 0
      %1283 = vmatpush1.bf16.xpose.msra.mxu0 0
      %1284 = vmatprep.subr.bf16.mxu0 0
      %1285 = vmatpush1.bf16.xpose.msra.mxu0 0
      %1286 = vmatprep.subr.bf16.mxu0 0
      %1287 = vmatpush1.bf16.xpose.msra.mxu0 0
      %1288 = vmatprep.subr.bf16.mxu0 0
      %1289 = vmatpush1.bf16.xpose.msra.mxu0 0
      %1290 = vmatprep.subr.bf16.mxu0 0
      %1291 = vmatpush1.bf16.xpose.msra.mxu0 0
      %1292 = vmatprep.subr.bf16.mxu0 0
      %1293 = vmatpush1.bf16.xpose.msra.mxu0 0
      %1294 = vmatprep.subr.bf16.mxu0 0
      %1295 = vmatpush1.bf16.xpose.msra.mxu0 0
      %1296 = vmatprep.subr.bf16.mxu0 0
      %1297 = vmatpush1.bf16.xpose.msra.mxu0 0
      %1298 = vmatprep.mubr.bf16.mxu0 0
      %1299 = vmatmul.mubr.bf16.gmra.mrb[0].mxu0 %v1261
      %v1300 = vpop.f32.mrb[0].mxu0
      %v1301 = vadd.f32 %v692, %v1300
      %v1302 = vpop.f32.mrb[0].mxu0
      %v1303 = vpop.f32.mrb[0].mxu0
      %v1304 = vpop.f32.mrb[0].mxu0
      %1305 = vdwg.mxu0
      %v1306 = vsel %vm770, %v1251, -inf
      %1307 = vmax.xlane.f32.xlu0 %v1306
      %v1308 = vpop.xlane.xlu0 %1307
      %v1309 = vsel %vm770, %v1301, -inf
      %1310 = vmax.xlane.f32.xlu0 %v1309
      %v1311 = vpop.xlane.xlu0 %1310
      %v1312 = vsub.f32 %v1251, %v1308
      %v1313 = vsub.f32 %v1301, %v1311
      %v1314 = vmul.f32 %v1312, 1.442695
      %v1315 = vpow.pop %v1314
      %v1316 = vmul.f32 %v1313, 1.442695
      %v1317 = vpow.pop %v1316
      %v1318 = vsel %vm770, %v1315, 0.0
      %1319 = vadd.xlane.f32.xlu0 %v1318
      %v1320 = vpop.xlane.xlu0 %1319
      %v1321 = vsel %vm770, %v1317, 0.0
      %1322 = vadd.xlane.f32.xlu0 %v1321
      %v1323 = vpop.xlane.xlu0 %1322
      %v1324 = vrcp.pop %v1320
      %v1325 = vrcp.pop %v1323
      %v1326 = vmul.f32 %v1315, %v1324
      %v1327 = vmul.f32 %v1317, %v1325
      %v1328 = vpack.c.bf16 %v1326, %v1326
      %v1329 = vpack.c.bf16 %v1327, %v1327
      %1330 = vrot.lane.b32.xlu0 %v766, 48
      %v1331 = vpop.permute.xlu0 %1330
      %v1333 = vsel %vm770, %v1328, 0
      %v1336 = vsel %vm894, %v1331, 0
      %1338 = vmatprep.subr.bf16.mxu0 0
      %1339 = vmatpush1.bf16.msra.mxu0 %v1336
      %1340 = vmatprep.subr.bf16.mxu0 0
      %1341 = vmatpush1.bf16.msra.mxu0 0
      %1342 = vmatprep.subr.bf16.mxu0 0
      %1343 = vmatpush1.bf16.msra.mxu0 0
      %1344 = vmatprep.subr.bf16.mxu0 0
      %1345 = vmatpush1.bf16.msra.mxu0 0
      %1346 = vmatprep.subr.bf16.mxu0 0
      %1347 = vmatpush1.bf16.msra.mxu0 0
      %1348 = vmatprep.subr.bf16.mxu0 0
      %1349 = vmatpush1.bf16.msra.mxu0 0
      %1350 = vmatprep.subr.bf16.mxu0 0
      %1351 = vmatpush1.bf16.msra.mxu0 0
      %1352 = vmatprep.subr.bf16.mxu0 0
      %1353 = vmatpush1.bf16.msra.mxu0 0
      %1354 = vmatprep.subr.bf16.mxu0 0
      %1355 = vmatpush1.bf16.msra.mxu0 0
      %1356 = vmatprep.subr.bf16.mxu0 0
      %1357 = vmatpush1.bf16.msra.mxu0 0
      %1358 = vmatprep.subr.bf16.mxu0 0
      %1359 = vmatpush1.bf16.msra.mxu0 0
      %1360 = vmatprep.subr.bf16.mxu0 0
      %1361 = vmatpush1.bf16.msra.mxu0 0
      %1362 = vmatprep.subr.bf16.mxu0 0
      %1363 = vmatpush1.bf16.msra.mxu0 0
      %1364 = vmatprep.subr.bf16.mxu0 0
      %1365 = vmatpush1.bf16.msra.mxu0 0
      %1366 = vmatprep.subr.bf16.mxu0 0
      %1367 = vmatpush1.bf16.msra.mxu0 0
      %1368 = vmatprep.subr.bf16.mxu0 0
      %1369 = vmatpush1.bf16.msra.mxu0 0
      %1370 = vmatprep.mubr.bf16.mxu0 0
      %1371 = vmatmul.mubr.bf16.gmra.mrb[0].mxu0 %v1333
      %v1372 = vpop.f32.mrb[0].mxu0
      %v1373 = vadd.f32 0.0, %v1372
      %v1374 = vpop.f32.mrb[0].mxu0
      %v1375 = vpop.f32.mrb[0].mxu0
      %v1376 = vpop.f32.mrb[0].mxu0
      %1377 = vdwg.mxu0
      %1378 = vrot.lane.b32.xlu0 %v767, 48
      %v1379 = vpop.permute.xlu0 %1378
      %v1381 = vsel %vm770, %v1329, 0
      %v1384 = vsel %vm894, %v1379, 0
      %1386 = vmatprep.subr.bf16.mxu0 0
      %1387 = vmatpush1.bf16.msra.mxu0 %v1384
      %1388 = vmatprep.subr.bf16.mxu0 0
      %1389 = vmatpush1.bf16.msra.mxu0 0
      %1390 = vmatprep.subr.bf16.mxu0 0
      %1391 = vmatpush1.bf16.msra.mxu0 0
      %1392 = vmatprep.subr.bf16.mxu0 0
      %1393 = vmatpush1.bf16.msra.mxu0 0
      %1394 = vmatprep.subr.bf16.mxu0 0
      %1395 = vmatpush1.bf16.msra.mxu0 0
      %1396 = vmatprep.subr.bf16.mxu0 0
      %1397 = vmatpush1.bf16.msra.mxu0 0
      %1398 = vmatprep.subr.bf16.mxu0 0
      %1399 = vmatpush1.bf16.msra.mxu0 0
      %1400 = vmatprep.subr.bf16.mxu0 0
      %1401 = vmatpush1.bf16.msra.mxu0 0
      %1402 = vmatprep.subr.bf16.mxu0 0
      %1403 = vmatpush1.bf16.msra.mxu0 0
      %1404 = vmatprep.subr.bf16.mxu0 0
      %1405 = vmatpush1.bf16.msra.mxu0 0
      %1406 = vmatprep.subr.bf16.mxu0 0
      %1407 = vmatpush1.bf16.msra.mxu0 0
      %1408 = vmatprep.subr.bf16.mxu0 0
      %1409 = vmatpush1.bf16.msra.mxu0 0
      %1410 = vmatprep.subr.bf16.mxu0 0
      %1411 = vmatpush1.bf16.msra.mxu0 0
      %1412 = vmatprep.subr.bf16.mxu0 0
      %1413 = vmatpush1.bf16.msra.mxu0 0
      %1414 = vmatprep.subr.bf16.mxu0 0
      %1415 = vmatpush1.bf16.msra.mxu0 0
      %1416 = vmatprep.subr.bf16.mxu0 0
      %1417 = vmatpush1.bf16.msra.mxu0 0
      %1418 = vmatprep.mubr.bf16.mxu0 0
      %1419 = vmatmul.mubr.bf16.gmra.mrb[0].mxu0 %v1381
      %v1420 = vpop.f32.mrb[0].mxu0
      %v1421 = vadd.f32 0.0, %v1420
      %v1422 = vpop.f32.mrb[0].mxu0
      %v1423 = vpop.f32.mrb[0].mxu0
      %v1424 = vpop.f32.mrb[0].mxu0
      %1425 = vdwg.mxu0
      %1426 = vrot.lane.b32.xlu0 %v766, 104
      %v1427 = vpop.permute.xlu0 %1426
      %1428 = vrot.lane.b32.xlu0 %v766, 72
      %v1429 = vpop.permute.xlu0 %1428
      %v1431 = vsel %vm770, %v1427, 0
      %v1434 = vsel %vm770, %v1429, 0
      %1436 = vmatprep.subr.bf16.mxu0 0
      %1437 = vmatpush1.bf16.xpose.msra.mxu0 %v1434
      %1438 = vmatprep.subr.bf16.mxu0 0
      %1439 = vmatpush1.bf16.xpose.msra.mxu0 0
      %1440 = vmatprep.subr.bf16.mxu0 0
      %1441 = vmatpush1.bf16.xpose.msra.mxu0 0
      %1442 = vmatprep.subr.bf16.mxu0 0
      %1443 = vmatpush1.bf16.xpose.msra.mxu0 0
      %1444 = vmatprep.subr.bf16.mxu0 0
      %1445 = vmatpush1.bf16.xpose.msra.mxu0 0
      %1446 = vmatprep.subr.bf16.mxu0 0
      %1447 = vmatpush1.bf16.xpose.msra.mxu0 0
      %1448 = vmatprep.subr.bf16.mxu0 0
      %1449 = vmatpush1.bf16.xpose.msra.mxu0 0
      %1450 = vmatprep.subr.bf16.mxu0 0
      %1451 = vmatpush1.bf16.xpose.msra.mxu0 0
      %1452 = vmatprep.subr.bf16.mxu0 0
      %1453 = vmatpush1.bf16.xpose.msra.mxu0 0
      %1454 = vmatprep.subr.bf16.mxu0 0
      %1455 = vmatpush1.bf16.xpose.msra.mxu0 0
      %1456 = vmatprep.subr.bf16.mxu0 0
      %1457 = vmatpush1.bf16.xpose.msra.mxu0 0
      %1458 = vmatprep.subr.bf16.mxu0 0
      %1459 = vmatpush1.bf16.xpose.msra.mxu0 0
      %1460 = vmatprep.subr.bf16.mxu0 0
      %1461 = vmatpush1.bf16.xpose.msra.mxu0 0
      %1462 = vmatprep.subr.bf16.mxu0 0
      %1463 = vmatpush1.bf16.xpose.msra.mxu0 0
      %1464 = vmatprep.subr.bf16.mxu0 0
      %1465 = vmatpush1.bf16.xpose.msra.mxu0 0
      %1466 = vmatprep.subr.bf16.mxu0 0
      %1467 = vmatpush1.bf16.xpose.msra.mxu0 0
      %1468 = vmatprep.mubr.bf16.mxu0 0
      %1469 = vmatmul.mubr.bf16.gmra.mrb[0].mxu0 %v1431
      %v1470 = vpop.f32.mrb[0].mxu0
      %v1471 = vadd.f32 %v691, %v1470
      %v1472 = vpop.f32.mrb[0].mxu0
      %v1473 = vpop.f32.mrb[0].mxu0
      %v1474 = vpop.f32.mrb[0].mxu0
      %1475 = vdwg.mxu0
      %1476 = vrot.lane.b32.xlu0 %v767, 104
      %v1477 = vpop.permute.xlu0 %1476
      %1478 = vrot.lane.b32.xlu0 %v767, 72
      %v1479 = vpop.permute.xlu0 %1478
      %v1481 = vsel %vm770, %v1477, 0
      %v1484 = vsel %vm770, %v1479, 0
      %1486 = vmatprep.subr.bf16.mxu0 0
      %1487 = vmatpush1.bf16.xpose.msra.mxu0 %v1484
      %1488 = vmatprep.subr.bf16.mxu0 0
      %1489 = vmatpush1.bf16.xpose.msra.mxu0 0
      %1490 = vmatprep.subr.bf16.mxu0 0
      %1491 = vmatpush1.bf16.xpose.msra.mxu0 0
      %1492 = vmatprep.subr.bf16.mxu0 0
      %1493 = vmatpush1.bf16.xpose.msra.mxu0 0
      %1494 = vmatprep.subr.bf16.mxu0 0
      %1495 = vmatpush1.bf16.xpose.msra.mxu0 0
      %1496 = vmatprep.subr.bf16.mxu0 0
      %1497 = vmatpush1.bf16.xpose.msra.mxu0 0
      %1498 = vmatprep.subr.bf16.mxu0 0
      %1499 = vmatpush1.bf16.xpose.msra.mxu0 0
      %1500 = vmatprep.subr.bf16.mxu0 0
      %1501 = vmatpush1.bf16.xpose.msra.mxu0 0
      %1502 = vmatprep.subr.bf16.mxu0 0
      %1503 = vmatpush1.bf16.xpose.msra.mxu0 0
      %1504 = vmatprep.subr.bf16.mxu0 0
      %1505 = vmatpush1.bf16.xpose.msra.mxu0 0
      %1506 = vmatprep.subr.bf16.mxu0 0
      %1507 = vmatpush1.bf16.xpose.msra.mxu0 0
      %1508 = vmatprep.subr.bf16.mxu0 0
      %1509 = vmatpush1.bf16.xpose.msra.mxu0 0
      %1510 = vmatprep.subr.bf16.mxu0 0
      %1511 = vmatpush1.bf16.xpose.msra.mxu0 0
      %1512 = vmatprep.subr.bf16.mxu0 0
      %1513 = vmatpush1.bf16.xpose.msra.mxu0 0
      %1514 = vmatprep.subr.bf16.mxu0 0
      %1515 = vmatpush1.bf16.xpose.msra.mxu0 0
      %1516 = vmatprep.subr.bf16.mxu0 0
      %1517 = vmatpush1.bf16.xpose.msra.mxu0 0
      %1518 = vmatprep.mubr.bf16.mxu0 0
      %1519 = vmatmul.mubr.bf16.gmra.mrb[0].mxu0 %v1481
      %v1520 = vpop.f32.mrb[0].mxu0
      %v1521 = vadd.f32 %v692, %v1520
      %v1522 = vpop.f32.mrb[0].mxu0
      %v1523 = vpop.f32.mrb[0].mxu0
      %v1524 = vpop.f32.mrb[0].mxu0
      %1525 = vdwg.mxu0
      %v1526 = vsel %vm770, %v1471, -inf
      %1527 = vmax.xlane.f32.xlu0 %v1526
      %v1528 = vpop.xlane.xlu0 %1527
      %v1529 = vsel %vm770, %v1521, -inf
      %1530 = vmax.xlane.f32.xlu0 %v1529
      %v1531 = vpop.xlane.xlu0 %1530
      %v1532 = vsub.f32 %v1471, %v1528
      %v1533 = vsub.f32 %v1521, %v1531
      %v1534 = vmul.f32 %v1532, 1.442695
      %v1535 = vpow.pop %v1534
      %v1536 = vmul.f32 %v1533, 1.442695
      %v1537 = vpow.pop %v1536
      %v1538 = vsel %vm770, %v1535, 0.0
      %1539 = vadd.xlane.f32.xlu0 %v1538
      %v1540 = vpop.xlane.xlu0 %1539
      %v1541 = vsel %vm770, %v1537, 0.0
      %1542 = vadd.xlane.f32.xlu0 %v1541
      %v1543 = vpop.xlane.xlu0 %1542
      %v1544 = vrcp.pop %v1540
      %v1545 = vrcp.pop %v1543
      %v1546 = vmul.f32 %v1535, %v1544
      %v1547 = vmul.f32 %v1537, %v1545
      %v1548 = vpack.c.bf16 %v1546, %v1546
      %v1549 = vpack.c.bf16 %v1547, %v1547
      %1550 = vrot.lane.b32.xlu0 %v766, 40
      %v1551 = vpop.permute.xlu0 %1550
      %v1553 = vsel %vm770, %v1548, 0
      %v1556 = vsel %vm894, %v1551, 0
      %1558 = vmatprep.subr.bf16.mxu0 0
      %1559 = vmatpush1.bf16.msra.mxu0 %v1556
      %1560 = vmatprep.subr.bf16.mxu0 0
      %1561 = vmatpush1.bf16.msra.mxu0 0
      %1562 = vmatprep.subr.bf16.mxu0 0
      %1563 = vmatpush1.bf16.msra.mxu0 0
      %1564 = vmatprep.subr.bf16.mxu0 0
      %1565 = vmatpush1.bf16.msra.mxu0 0
      %1566 = vmatprep.subr.bf16.mxu0 0
      %1567 = vmatpush1.bf16.msra.mxu0 0
      %1568 = vmatprep.subr.bf16.mxu0 0
      %1569 = vmatpush1.bf16.msra.mxu0 0
      %1570 = vmatprep.subr.bf16.mxu0 0
      %1571 = vmatpush1.bf16.msra.mxu0 0
      %1572 = vmatprep.subr.bf16.mxu0 0
      %1573 = vmatpush1.bf16.msra.mxu0 0
      %1574 = vmatprep.subr.bf16.mxu0 0
      %1575 = vmatpush1.bf16.msra.mxu0 0
      %1576 = vmatprep.subr.bf16.mxu0 0
      %1577 = vmatpush1.bf16.msra.mxu0 0
      %1578 = vmatprep.subr.bf16.mxu0 0
      %1579 = vmatpush1.bf16.msra.mxu0 0
      %1580 = vmatprep.subr.bf16.mxu0 0
      %1581 = vmatpush1.bf16.msra.mxu0 0
      %1582 = vmatprep.subr.bf16.mxu0 0
      %1583 = vmatpush1.bf16.msra.mxu0 0
      %1584 = vmatprep.subr.bf16.mxu0 0
      %1585 = vmatpush1.bf16.msra.mxu0 0
      %1586 = vmatprep.subr.bf16.mxu0 0
      %1587 = vmatpush1.bf16.msra.mxu0 0
      %1588 = vmatprep.subr.bf16.mxu0 0
      %1589 = vmatpush1.bf16.msra.mxu0 0
      %1590 = vmatprep.mubr.bf16.mxu0 0
      %1591 = vmatmul.mubr.bf16.gmra.mrb[0].mxu0 %v1553
      %v1592 = vpop.f32.mrb[0].mxu0
      %v1593 = vadd.f32 0.0, %v1592
      %v1594 = vpop.f32.mrb[0].mxu0
      %v1595 = vpop.f32.mrb[0].mxu0
      %v1596 = vpop.f32.mrb[0].mxu0
      %1597 = vdwg.mxu0
      %1598 = vrot.lane.b32.xlu0 %v767, 40
      %v1599 = vpop.permute.xlu0 %1598
      %v1601 = vsel %vm770, %v1549, 0
      %v1604 = vsel %vm894, %v1599, 0
      %1606 = vmatprep.subr.bf16.mxu0 0
      %1607 = vmatpush1.bf16.msra.mxu0 %v1604
      %1608 = vmatprep.subr.bf16.mxu0 0
      %1609 = vmatpush1.bf16.msra.mxu0 0
      %1610 = vmatprep.subr.bf16.mxu0 0
      %1611 = vmatpush1.bf16.msra.mxu0 0
      %1612 = vmatprep.subr.bf16.mxu0 0
      %1613 = vmatpush1.bf16.msra.mxu0 0
      %1614 = vmatprep.subr.bf16.mxu0 0
      %1615 = vmatpush1.bf16.msra.mxu0 0
      %1616 = vmatprep.subr.bf16.mxu0 0
      %1617 = vmatpush1.bf16.msra.mxu0 0
      %1618 = vmatprep.subr.bf16.mxu0 0
      %1619 = vmatpush1.bf16.msra.mxu0 0
      %1620 = vmatprep.subr.bf16.mxu0 0
      %1621 = vmatpush1.bf16.msra.mxu0 0
      %1622 = vmatprep.subr.bf16.mxu0 0
      %1623 = vmatpush1.bf16.msra.mxu0 0
      %1624 = vmatprep.subr.bf16.mxu0 0
      %1625 = vmatpush1.bf16.msra.mxu0 0
      %1626 = vmatprep.subr.bf16.mxu0 0
      %1627 = vmatpush1.bf16.msra.mxu0 0
      %1628 = vmatprep.subr.bf16.mxu0 0
      %1629 = vmatpush1.bf16.msra.mxu0 0
      %1630 = vmatprep.subr.bf16.mxu0 0
      %1631 = vmatpush1.bf16.msra.mxu0 0
      %1632 = vmatprep.subr.bf16.mxu0 0
      %1633 = vmatpush1.bf16.msra.mxu0 0
      %1634 = vmatprep.subr.bf16.mxu0 0
      %1635 = vmatpush1.bf16.msra.mxu0 0
      %1636 = vmatprep.subr.bf16.mxu0 0
      %1637 = vmatpush1.bf16.msra.mxu0 0
      %1638 = vmatprep.mubr.bf16.mxu0 0
      %1639 = vmatmul.mubr.bf16.gmra.mrb[0].mxu0 %v1601
      %v1640 = vpop.f32.mrb[0].mxu0
      %v1641 = vadd.f32 0.0, %v1640
      %v1642 = vpop.f32.mrb[0].mxu0
      %v1643 = vpop.f32.mrb[0].mxu0
      %v1644 = vpop.f32.mrb[0].mxu0
      %1645 = vdwg.mxu0
      %1648 = vrot.lane.b32.xlu0 %v1153, 8
      %v1649 = vpop.permute.xlu0 %1648
      %1650 = vrot.lane.b32.xlu0 %v1201, 8
      %v1651 = vpop.permute.xlu0 %1650
      %1656 = vrot.lane.b32.xlu0 %v1373, 16
      %v1657 = vpop.permute.xlu0 %1656
      %1658 = vrot.lane.b32.xlu0 %v1421, 16
      %v1659 = vpop.permute.xlu0 %1658
      %1664 = vrot.lane.b32.xlu0 %v1593, 24
      %v1665 = vpop.permute.xlu0 %1664
      %1666 = vrot.lane.b32.xlu0 %v1641, 24
      %v1667 = vpop.permute.xlu0 %1666
      %v1670 = vsel %vm770, %v933, %v1649
      %v1671 = vsel %vm770, %v981, %v1651
      %vm1672 = vcmask 130048
      %v1673 = vsel %vm1672, %v1670, %v1657
      %v1674 = vsel %vm1672, %v1671, %v1659
      %vm1675 = vcmask 195584
      %v1676 = vsel %vm1675, %v1673, %v1665
      %v1677 = vsel %vm1675, %v1674, %v1667
      %v1678 = vld [vmem:[%s647] sm:$0xf]
      %v1679 = vld [vmem:[%s647 + $0x4] sm:$0xf]
      %v1680 = vld [vmem:[%s647 + $0x8] sm:$0xf]
      %v1681 = vld [vmem:[%s647 + $0xc] sm:$0xf]
      %v1682 = vld [vmem:[%s650] sm:$0x1]
      %v1683 = vpack.c.bf16 %v1677, %v1676
      %v1685 = vlaneseq
      %v1686 = vshrl.u32 %v1685, 7
      %v1687 = vsub.s32 0, %v1686
      %v1688 = vrot.slane %v1682, %v1687
      %v1694 = vunpack.c.l.b16 %v1678
      %v1695 = vunpack.c.l.b16 %v1679
      %v1696 = vunpack.c.l.b16 %v1680
      %v1697 = vunpack.c.l.b16 %v1681
      %v1698 = vpack.c.b16 %v1695, %v1694
      %v1699 = vpack.c.b16 %v1697, %v1696
      %v1703 = vsel %vm717, %v1683, 0
      %1705 = vmatprep.subr.bf16.mxu0 0
      %1706 = vmatpush1.bf16.msra.mxu0 %v1698
      %1707 = vmatprep.subr.bf16.mxu0 0
      %1708 = vmatpush1.bf16.msra.mxu0 %v1699
      %1709 = vmatprep.subr.bf16.mxu0 0
      %1710 = vmatpush1.bf16.msra.mxu0 0
      %1711 = vmatprep.subr.bf16.mxu0 0
      %1712 = vmatpush1.bf16.msra.mxu0 0
      %1713 = vmatprep.subr.bf16.mxu0 0
      %1714 = vmatpush1.bf16.msra.mxu0 0
      %1715 = vmatprep.subr.bf16.mxu0 0
      %1716 = vmatpush1.bf16.msra.mxu0 0
      %1717 = vmatprep.subr.bf16.mxu0 0
      %1718 = vmatpush1.bf16.msra.mxu0 0
      %1719 = vmatprep.subr.bf16.mxu0 0
      %1720 = vmatpush1.bf16.msra.mxu0 0
      %1721 = vmatprep.subr.bf16.mxu0 0
      %1722 = vmatpush1.bf16.msra.mxu0 0
      %1723 = vmatprep.subr.bf16.mxu0 0
      %1724 = vmatpush1.bf16.msra.mxu0 0
      %1725 = vmatprep.subr.bf16.mxu0 0
      %1726 = vmatpush1.bf16.msra.mxu0 0
      %1727 = vmatprep.subr.bf16.mxu0 0
      %1728 = vmatpush1.bf16.msra.mxu0 0
      %1729 = vmatprep.subr.bf16.mxu0 0
      %1730 = vmatpush1.bf16.msra.mxu0 0
      %1731 = vmatprep.subr.bf16.mxu0 0
      %1732 = vmatpush1.bf16.msra.mxu0 0
      %1733 = vmatprep.subr.bf16.mxu0 0
      %1734 = vmatpush1.bf16.msra.mxu0 0
      %1735 = vmatprep.subr.bf16.mxu0 0
      %1736 = vmatpush1.bf16.msra.mxu0 0
      %1737 = vmatprep.mubr.bf16.mxu0 0
      %1738 = vmatmul.mubr.bf16.gmra.mrb[0].mxu0 %v1703
      %v1739 = vpop.f32.mrb[0].mxu0
      %v1740 = vadd.f32 %v1688, %v1739
      %v1741 = vpop.f32.mrb[0].mxu0
      %v1742 = vpop.f32.mrb[0].mxu0
      %v1743 = vadd.f32 %v1688, %v1742
      %v1744 = vpop.f32.mrb[0].mxu0
      %1745 = vdwg.mxu0
      %v1746 = vadd.f32 %v689, %v1740
      %v1747 = vadd.f32 %v690, %v1743
      %v1748 = vld [vmem:[%s653] sm:$0x1]
      %v1749 = vld [vmem:[%s656] sm:$0x1]
      %v1750 = vsel %vm717, %v1746, 0.0
      %1751 = vadd.xlane.f32.xlu0 %v1750
      %v1752 = vpop.xlane.xlu0 %1751
      %v1753 = vsel %vm717, %v1747, 0.0
      %1754 = vadd.xlane.f32.xlu0 %v1753
      %v1755 = vpop.xlane.xlu0 %1754
      %v1756 = vrcp.pop 32.0
      %v1757 = vmul.f32 %v1752, %v1756
      %v1758 = vmul.f32 %v1755, %v1756
      %v1759 = vsub.f32 %v1746, %v1757
      %v1760 = vsub.f32 %v1747, %v1758
      %v1761 = vmul.f32 %v1759, %v1759
      %v1762 = vmul.f32 %v1760, %v1760
      %v1763 = vsel %vm717, %v1761, 0.0
      %1764 = vadd.xlane.f32.xlu0 %v1763
      %v1765 = vpop.xlane.xlu0 %1764
      %v1766 = vsel %vm717, %v1762, 0.0
      %1767 = vadd.xlane.f32.xlu0 %v1766
      %v1768 = vpop.xlane.xlu0 %1767
      %v1769 = vmul.f32 %v1765, %v1756
      %v1770 = vmul.f32 %v1768, %v1756
      %v1771 = vadd.f32 %v1769, 1e-05
      %v1772 = vadd.f32 %v1770, 1e-05
      %v1773 = vrsqrt.pop %v1771
      %v1774 = vrsqrt.pop %v1772
      %v1775 = vmul.f32 %v1759, %v1773
      %v1776 = vmul.f32 %v1760, %v1774
      %v1778 = vlaneseq
      %v1779 = vshrl.u32 %v1778, 7
      %v1780 = vsub.s32 0, %v1779
      %v1781 = vrot.slane %v1748, %v1780
      %v1783 = vmul.f32 %v1775, %v1781
      %v1784 = vmul.f32 %v1776, %v1781
      %v1786 = vlaneseq
      %v1787 = vshrl.u32 %v1786, 7
      %v1788 = vsub.s32 0, %v1787
      %v1789 = vrot.slane %v1749, %v1788
      %v1791 = vadd.f32 %v1783, %v1789
      %v1792 = vadd.f32 %v1784, %v1789
      %v1793 = vld [vmem:[%s661] sm:$0xf]
      %v1794 = vld [vmem:[%s661 + $0x4] sm:$0xf]
      %v1795 = vld [vmem:[%s661 + $0x8] sm:$0xf]
      %v1796 = vld [vmem:[%s661 + $0xc] sm:$0xf]
      %v1797 = vld [vmem:[%s664] sm:$0x1]
      %v1798 = vpack.c.bf16 %v1792, %v1791
      %v1800 = vlaneseq
      %v1801 = vshrl.u32 %v1800, 7
      %v1802 = vsub.s32 0, %v1801
      %v1803 = vrot.slane %v1797, %v1802
      %v1809 = vunpack.c.l.b16 %v1793
      %v1810 = vunpack.c.l.b16 %v1794
      %v1811 = vunpack.c.l.b16 %v1795
      %v1812 = vunpack.c.l.b16 %v1796
      %v1813 = vpack.c.b16 %v1810, %v1809
      %v1814 = vpack.c.b16 %v1812, %v1811
      %v1818 = vsel %vm717, %v1798, 0
      %1820 = vmatprep.subr.bf16.mxu0 0
      %1821 = vmatpush1.bf16.msra.mxu0 %v1813
      %1822 = vmatprep.subr.bf16.mxu0 0
      %1823 = vmatpush1.bf16.msra.mxu0 %v1814
      %1824 = vmatprep.subr.bf16.mxu0 0
      %1825 = vmatpush1.bf16.msra.mxu0 0
      %1826 = vmatprep.subr.bf16.mxu0 0
      %1827 = vmatpush1.bf16.msra.mxu0 0
      %1828 = vmatprep.subr.bf16.mxu0 0
      %1829 = vmatpush1.bf16.msra.mxu0 0
      %1830 = vmatprep.subr.bf16.mxu0 0
      %1831 = vmatpush1.bf16.msra.mxu0 0
      %1832 = vmatprep.subr.bf16.mxu0 0
      %1833 = vmatpush1.bf16.msra.mxu0 0
      %1834 = vmatprep.subr.bf16.mxu0 0
      %1835 = vmatpush1.bf16.msra.mxu0 0
      %1836 = vmatprep.subr.bf16.mxu0 0
      %1837 = vmatpush1.bf16.msra.mxu0 0
      %1838 = vmatprep.subr.bf16.mxu0 0
      %1839 = vmatpush1.bf16.msra.mxu0 0
      %1840 = vmatprep.subr.bf16.mxu0 0
      %1841 = vmatpush1.bf16.msra.mxu0 0
      %1842 = vmatprep.subr.bf16.mxu0 0
      %1843 = vmatpush1.bf16.msra.mxu0 0
      %1844 = vmatprep.subr.bf16.mxu0 0
      %1845 = vmatpush1.bf16.msra.mxu0 0
      %1846 = vmatprep.subr.bf16.mxu0 0
      %1847 = vmatpush1.bf16.msra.mxu0 0
      %1848 = vmatprep.subr.bf16.mxu0 0
      %1849 = vmatpush1.bf16.msra.mxu0 0
      %1850 = vmatprep.subr.bf16.mxu0 0
      %1851 = vmatpush1.bf16.msra.mxu0 0
      %1852 = vmatprep.mubr.bf16.mxu0 0
      %1853 = vmatmul.mubr.bf16.gmra.mrb[0].mxu0 %v1818
      %v1854 = vpop.f32.mrb[0].mxu0
      %v1855 = vadd.f32 %v1803, %v1854
      %v1856 = vpop.f32.mrb[0].mxu0
      %v1857 = vpop.f32.mrb[0].mxu0
      %v1858 = vadd.f32 %v1803, %v1857
      %v1859 = vpop.f32.mrb[0].mxu0
      %1860 = vdwg.mxu0
      %v1861 = vmax.f32 %v1855, 0.0
      %v1862 = vmax.f32 %v1858, 0.0
      %v1863 = vld [vmem:[%s669] sm:$0xf]
      %v1864 = vld [vmem:[%s669 + $0x4] sm:$0xf]
      %v1865 = vld [vmem:[%s669 + $0x8] sm:$0xf]
      %v1866 = vld [vmem:[%s669 + $0xc] sm:$0xf]
      %v1867 = vld [vmem:[%s669 + $0x10] sm:$0xf]
      %v1868 = vld [vmem:[%s669 + $0x14] sm:$0xf]
      %v1869 = vld [vmem:[%s669 + $0x18] sm:$0xf]
      %v1870 = vld [vmem:[%s669 + $0x1c] sm:$0xf]
      %v1871 = vld [vmem:[%s672] sm:$0x1]
      %v1872 = vpack.c.bf16 %v1862, %v1861
      %v1874 = vlaneseq
      %v1875 = vshrl.u32 %v1874, 7
      %v1876 = vsub.s32 0, %v1875
      %v1877 = vrot.slane %v1871, %v1876
      %v1887 = vunpack.c.l.b16 %v1863
      %v1888 = vunpack.c.l.b16 %v1864
      %v1889 = vunpack.c.l.b16 %v1865
      %v1890 = vunpack.c.l.b16 %v1866
      %v1891 = vunpack.c.l.b16 %v1867
      %v1892 = vunpack.c.l.b16 %v1868
      %v1893 = vunpack.c.l.b16 %v1869
      %v1894 = vunpack.c.l.b16 %v1870
      %v1895 = vpack.c.b16 %v1888, %v1887
      %v1896 = vpack.c.b16 %v1890, %v1889
      %v1897 = vpack.c.b16 %v1892, %v1891
      %v1898 = vpack.c.b16 %v1894, %v1893
      %vm1903 = vcmask 523264
      %v1905 = vsel %vm1903, %v1872, 0
      %1907 = vmatprep.subr.bf16.mxu0 0
      %1908 = vmatpush1.bf16.msra.mxu0 %v1895
      %1909 = vmatprep.subr.bf16.mxu0 0
      %1910 = vmatpush1.bf16.msra.mxu0 %v1896
      %1911 = vmatprep.subr.bf16.mxu0 0
      %1912 = vmatpush1.bf16.msra.mxu0 %v1897
      %1913 = vmatprep.subr.bf16.mxu0 0
      %1914 = vmatpush1.bf16.msra.mxu0 %v1898
      %1915 = vmatprep.subr.bf16.mxu0 0
      %1916 = vmatpush1.bf16.msra.mxu0 0
      %1917 = vmatprep.subr.bf16.mxu0 0
      %1918 = vmatpush1.bf16.msra.mxu0 0
      %1919 = vmatprep.subr.bf16.mxu0 0
      %1920 = vmatpush1.bf16.msra.mxu0 0
      %1921 = vmatprep.subr.bf16.mxu0 0
      %1922 = vmatpush1.bf16.msra.mxu0 0
      %1923 = vmatprep.subr.bf16.mxu0 0
      %1924 = vmatpush1.bf16.msra.mxu0 0
      %1925 = vmatprep.subr.bf16.mxu0 0
      %1926 = vmatpush1.bf16.msra.mxu0 0
      %1927 = vmatprep.subr.bf16.mxu0 0
      %1928 = vmatpush1.bf16.msra.mxu0 0
      %1929 = vmatprep.subr.bf16.mxu0 0
      %1930 = vmatpush1.bf16.msra.mxu0 0
      %1931 = vmatprep.subr.bf16.mxu0 0
      %1932 = vmatpush1.bf16.msra.mxu0 0
      %1933 = vmatprep.subr.bf16.mxu0 0
      %1934 = vmatpush1.bf16.msra.mxu0 0
      %1935 = vmatprep.subr.bf16.mxu0 0
      %1936 = vmatpush1.bf16.msra.mxu0 0
      %1937 = vmatprep.subr.bf16.mxu0 0
      %1938 = vmatpush1.bf16.msra.mxu0 0
      %1939 = vmatprep.mubr.bf16.mxu0 0
      %1940 = vmatmul.mubr.bf16.gmra.mrb[0].mxu0 %v1905
      %v1941 = vpop.f32.mrb[0].mxu0
      %v1942 = vadd.f32 %v1877, %v1941
      %v1943 = vpop.f32.mrb[0].mxu0
      %v1944 = vpop.f32.mrb[0].mxu0
      %v1945 = vadd.f32 %v1877, %v1944
      %v1946 = vpop.f32.mrb[0].mxu0
      %1947 = vdwg.mxu0
      %v1948 = vadd.f32 %v1791, %v1942
      %v1949 = vadd.f32 %v1792, %v1945
      %v1950 = vld [vmem:[%s675] sm:$0x1]
      %v1951 = vld [vmem:[%s678] sm:$0x1]
      %v1952 = vsel %vm717, %v1948, 0.0
      %1953 = vadd.xlane.f32.xlu0 %v1952
      %v1954 = vpop.xlane.xlu0 %1953
      %v1955 = vsel %vm717, %v1949, 0.0
      %1956 = vadd.xlane.f32.xlu0 %v1955
      %v1957 = vpop.xlane.xlu0 %1956
      %v1958 = vmul.f32 %v1954, %v1756
      %v1959 = vmul.f32 %v1957, %v1756
      %v1960 = vsub.f32 %v1948, %v1958
      %v1961 = vsub.f32 %v1949, %v1959
      %v1962 = vmul.f32 %v1960, %v1960
      %v1963 = vmul.f32 %v1961, %v1961
      %v1964 = vsel %vm717, %v1962, 0.0
      %1965 = vadd.xlane.f32.xlu0 %v1964
      %v1966 = vpop.xlane.xlu0 %1965
      %v1967 = vsel %vm717, %v1963, 0.0
      %1968 = vadd.xlane.f32.xlu0 %v1967
      %v1969 = vpop.xlane.xlu0 %1968
      %v1970 = vmul.f32 %v1966, %v1756
      %v1971 = vmul.f32 %v1969, %v1756
      %v1972 = vadd.f32 %v1970, 1e-05
      %v1973 = vadd.f32 %v1971, 1e-05
      %v1974 = vrsqrt.pop %v1972
      %v1975 = vrsqrt.pop %v1973
      %v1976 = vmul.f32 %v1960, %v1974
      %v1977 = vmul.f32 %v1961, %v1975
      %v1979 = vlaneseq
      %v1980 = vshrl.u32 %v1979, 7
      %v1981 = vsub.s32 0, %v1980
      %v1982 = vrot.slane %v1950, %v1981
      %v1984 = vmul.f32 %v1976, %v1982
      %v1985 = vmul.f32 %v1977, %v1982
      %v1987 = vlaneseq
      %v1988 = vshrl.u32 %v1987, 7
      %v1989 = vsub.s32 0, %v1988
      %v1990 = vrot.slane %v1951, %v1989
      %v1992 = vadd.f32 %v1984, %v1990
      %v1993 = vadd.f32 %v1985, %v1990
      %1994 = vst.msk [vmem:[%s16] sm:$0xff] %vm717, %v1992
      %1995 = vst.msk [vmem:[%s16 + $0x8] sm:$0xff] %vm717, %v1993
      %p1996 = scmp.eq.s32.totalorder %s27, 1
      // Predicated region
      $region89: #{seq2seq_forward.2} parent=83 // pred_check
        %p1997 = pneg %p1996
      $region90: #{seq2seq_forward.2} parent=83 // pred_check_branch
        %1999 = sbr.rel (%p1997) target = $region92
      $region91: #{seq2seq_forward.2} parent=83 // pred_region
        %v2000 = vld [vmem:[%s14] sm:$0x1]
        %v2001 = vld [vmem:[%s15] sm:$0x1]
        %v2002 = vsel %vm717, %v1992, 0.0
        %2003 = vadd.xlane.f32.xlu0 %v2002
        %v2004 = vpop.xlane.xlu0 %2003
        %v2005 = vsel %vm717, %v1993, 0.0
        %2006 = vadd.xlane.f32.xlu0 %v2005
        %v2007 = vpop.xlane.xlu0 %2006
        %v2008 = vmul.f32 %v2004, %v1756
        %v2009 = vmul.f32 %v2007, %v1756
        %v2010 = vsub.f32 %v1992, %v2008
        %v2011 = vsub.f32 %v1993, %v2009
        %v2012 = vmul.f32 %v2010, %v2010
        %v2013 = vmul.f32 %v2011, %v2011
        %v2014 = vsel %vm717, %v2012, 0.0
        %2015 = vadd.xlane.f32.xlu0 %v2014
        %v2016 = vpop.xlane.xlu0 %2015
        %v2017 = vsel %vm717, %v2013, 0.0
        %2018 = vadd.xlane.f32.xlu0 %v2017
        %v2019 = vpop.xlane.xlu0 %2018
        %v2020 = vmul.f32 %v2016, %v1756
        %v2021 = vmul.f32 %v2019, %v1756
        %v2022 = vadd.f32 %v2020, 1e-05
        %v2023 = vadd.f32 %v2021, 1e-05
        %v2024 = vrsqrt.pop %v2022
        %v2025 = vrsqrt.pop %v2023
        %v2026 = vmul.f32 %v2010, %v2024
        %v2027 = vmul.f32 %v2011, %v2025
        %v2029 = vlaneseq
        %v2030 = vshrl.u32 %v2029, 7
        %v2031 = vsub.s32 0, %v2030
        %v2032 = vrot.slane %v2000, %v2031
        %v2034 = vmul.f32 %v2026, %v2032
        %v2035 = vmul.f32 %v2027, %v2032
        %v2037 = vlaneseq
        %v2038 = vshrl.u32 %v2037, 7
        %v2039 = vsub.s32 0, %v2038
        %v2040 = vrot.slane %v2001, %v2039
        %v2042 = vadd.f32 %v2034, %v2040
        %v2043 = vadd.f32 %v2035, %v2040
        %2044 = vst.msk [vmem:[%s16] sm:$0xff] %vm717, %v2042
        %2045 = vst.msk [vmem:[%s16 + $0x8] sm:$0xff] %vm717, %v2043
      $region92: #{seq2seq_forward.2} parent=83 // pred_fallthru
        _
      // Predicated region
      $region93: #{seq2seq_forward.2} parent=83 // pred_check
        %p2046 = pneg %p436
      $region94: #{seq2seq_forward.2} parent=83 // pred_check_branch
        %2048 = sbr.rel (%p2046) target = $region96
      $region95: #{seq2seq_forward.2} parent=83 // pred_region
        _
      $region96: #{seq2seq_forward.2} parent=83 // pred_fallthru
        _
      // Predicated region
      $region97: #{seq2seq_forward.2} parent=83 // pred_check
        %p2049 = pneg %p436
      $region98: #{seq2seq_forward.2} parent=83 // pred_check_branch
        %2051 = sbr.rel (%p2049) target = $region100
      $region99: #{seq2seq_forward.2} parent=83 // pred_region
        _
      $region100: #{seq2seq_forward.2} parent=83 // pred_fallthru
        _
    $region84: #{seq2seq_forward.2} parent=5 // pred_fallthru
      _
    %p2052 = scmp.le.s32.totalorder 2, %s22
    // Predicated region
    $region101: #{seq2seq_forward.2} parent=5 // pred_check
      %p2053 = pneg %p2052
    $region102: #{seq2seq_forward.2} parent=5 // pred_check_branch
      %2055 = sbr.rel (%p2053) target = $region104
    $region103: #{seq2seq_forward.2} parent=5 // pred_region
      %s2056 = ssub.s32 %s22, 2
    $region104: #{seq2seq_forward.2} parent=5 // pred_fallthru
      _
  $region6: #{seq2seq_forward.2} parent=0 // loop_footer
    %s26 = sadd.s32 1, %s22
  $region7: #{seq2seq_forward.2} parent=0 // loop_footer_branch
    %21 = sbr.rel target = $region3
  $region8: #{seq2seq_forward.2} parent=0 // loop_exit
    _

// kernel: seq2seq_forward.3
$region0: #{seq2seq_forward.3}
  #allocation0 [shape = 'u32[]', space=smem, size = 0x4, offset = 0x4, fixed_abs, tag = 'smem constant byte address 0x4 - core index']
  #allocation1 [shape = 'u32[144,128]{1,0:T(1,128)}', space=vmem, size = 0x12000, scoped, tag = 'internal scratch']
  #allocation2 [shape = 'f32[16,32]{1,0:T(8,128)}', space=vmem, size = 0x2000, scoped, tag = 'scratch operand']
  %s0 = inlined_call_operand.vmem [shape: f32[16,32], index: 0, kind: input, shape index: {}]
  %s1 = inlined_call_operand.vmem [shape: f32[16,32], index: 1, kind: input, shape index: {}]
  %s2 = inlined_call_operand.vmem [shape: f32[2,8,8], index: 2, kind: input, shape index: {}]
  %s3 = inlined_call_operand.vmem [shape: f32[2,1,8], index: 3, kind: input, shape index: {}]
  %s4 = inlined_call_operand.vmem [shape: bf16[2,32,96], index: 4, kind: input, shape index: {}]
  %s5 = inlined_call_operand.vmem [shape: f32[2,1,96], index: 5, kind: input, shape index: {}]
  %s6 = inlined_call_operand.vmem [shape: bf16[2,32,32], index: 6, kind: input, shape index: {}]
  %s7 = inlined_call_operand.vmem [shape: f32[2,1,32], index: 7, kind: input, shape index: {}]
  %s8 = inlined_call_operand.vmem [shape: f32[2,1,32], index: 8, kind: input, shape index: {}]
  %s9 = inlined_call_operand.vmem [shape: f32[2,1,32], index: 9, kind: input, shape index: {}]
  %s10 = inlined_call_operand.vmem [shape: bf16[2,32,32], index: 10, kind: input, shape index: {}]
  %s11 = inlined_call_operand.vmem [shape: f32[2,1,32], index: 11, kind: input, shape index: {}]
  %s12 = inlined_call_operand.vmem [shape: bf16[2,32,64], index: 12, kind: input, shape index: {}]
  %s13 = inlined_call_operand.vmem [shape: f32[2,1,64], index: 13, kind: input, shape index: {}]
  %s14 = inlined_call_operand.vmem [shape: bf16[2,32,32], index: 14, kind: input, shape index: {}]
  %s15 = inlined_call_operand.vmem [shape: f32[2,1,32], index: 15, kind: input, shape index: {}]
  %s16 = inlined_call_operand.vmem [shape: f32[2,1,32], index: 16, kind: input, shape index: {}]
  %s17 = inlined_call_operand.vmem [shape: f32[2,1,32], index: 17, kind: input, shape index: {}]
  %s18 = inlined_call_operand.vmem [shape: bf16[2,32,64], index: 18, kind: input, shape index: {}]
  %s19 = inlined_call_operand.vmem [shape: f32[2,1,64], index: 19, kind: input, shape index: {}]
  %s20 = inlined_call_operand.vmem [shape: bf16[2,64,32], index: 20, kind: input, shape index: {}]
  %s21 = inlined_call_operand.vmem [shape: f32[2,1,32], index: 21, kind: input, shape index: {}]
  %s22 = inlined_call_operand.vmem [shape: f32[2,1,32], index: 22, kind: input, shape index: {}]
  %s23 = inlined_call_operand.vmem [shape: f32[2,1,32], index: 23, kind: input, shape index: {}]
  %s24 = inlined_call_operand.vmem [shape: f32[1,32], index: 24, kind: input, shape index: {}]
  %s25 = inlined_call_operand.vmem [shape: f32[1,32], index: 25, kind: input, shape index: {}]
  %s26 = inlined_call_operand.vmem [shape: bf16[32,128], index: 26, kind: input, shape index: {}]
  %s27 = inlined_call_operand.vmem [shape: f32[1,128], index: 27, kind: input, shape index: {}]
  %s28 = inlined_call_operand.vmem [shape: f32[16,128], index: 28, kind: output, shape index: {}]
  %s29 = sld [smem:[#allocation0]]
  $region153: #{seq2seq_forward.3} parent=0
    _
  %s31 = ssub.s32 1, %s29
  %s32 = scalar_select 0, %s31, %s29
  loop: start=0, step=1, limit=4
  $region2: #{seq2seq_forward.3} parent=0 // loop_pre_header
    _
  $region3: #{seq2seq_forward.3} parent=0 // loop_header
    %s34 = sphi 0, %s38
    %p35 = scmp.ge.s32.totalorder %s34, 4
    %s42 = sphi 0, %s42
    %s44 = sphi 0, %s42
    %s45 = sphi 0, %s44
    %s59 = sphi 0, %s45
    %s63 = sphi 0, %s63
    %s65 = sphi 0, %s63
    %s66 = sphi 0, %s65
    %s80 = sphi 0, %s66
    %s84 = sphi 0, %s84
    %s86 = sphi 0, %s84
    %s87 = sphi 0, %s86
    %s101 = sphi 0, %s87
    %s105 = sphi 0, %s105
    %s107 = sphi 0, %s105
    %s108 = sphi 0, %s107
    %s122 = sphi 0, %s108
    %s128 = sphi 0, %s130
    %s131 = sphi 0, %s128
    %s132 = sphi 0, %s131
    %s148 = sphi 0, %s132
    %s154 = sphi 0, %s156
    %s157 = sphi 0, %s154
    %s158 = sphi 0, %s157
    %s174 = sphi 0, %s158
    %s180 = sphi 0, %s182
    %s183 = sphi 0, %s180
    %s184 = sphi 0, %s183
    %s200 = sphi 0, %s184
    %s206 = sphi 0, %s208
    %s209 = sphi 0, %s206
    %s210 = sphi 0, %s209
    %s226 = sphi 0, %s210
    %s232 = sphi 0, %s234
    %s235 = sphi 0, %s232
    %s236 = sphi 0, %s235
    %s252 = sphi 0, %s236
    %s258 = sphi 0, %s260
    %s261 = sphi 0, %s258
    %s262 = sphi 0, %s261
    %s278 = sphi 0, %s262
    %s284 = sphi 0, %s286
    %s287 = sphi 0, %s284
    %s288 = sphi 0, %s287
    %s304 = sphi 0, %s288
    %s310 = sphi 0, %s312
    %s313 = sphi 0, %s310
    %s314 = sphi 0, %s313
    %s330 = sphi 0, %s314
    %s336 = sphi 0, %s338
    %s339 = sphi 0, %s336
    %s340 = sphi 0, %s339
    %s356 = sphi 0, %s340
    %s362 = sphi 0, %s364
    %s365 = sphi 0, %s362
    %s366 = sphi 0, %s365
    %s382 = sphi 0, %s366
    %s388 = sphi 0, %s390
    %s391 = sphi 0, %s388
    %s392 = sphi 0, %s391
    %s408 = sphi 0, %s392
    %s414 = sphi 0, %s416
    %s417 = sphi 0, %s414
    %s418 = sphi 0, %s417
    %s434 = sphi 0, %s418
    %s440 = sphi 0, %s442
    %s443 = sphi 0, %s440
    %s444 = sphi 0, %s443
    %s460 = sphi 0, %s444
    %s466 = sphi 0, %s468
    %s469 = sphi 0, %s466
    %s470 = sphi 0, %s469
    %s486 = sphi 0, %s470
    %s492 = sphi 0, %s494
    %s495 = sphi 0, %s492
    %s496 = sphi 0, %s495
    %s512 = sphi 0, %s496
    %s518 = sphi 0, %s520
    %s521 = sphi 0, %s518
    %s522 = sphi 0, %s521
    %s538 = sphi 0, %s522
    %s544 = sphi 0, %s546
    %s547 = sphi 0, %s544
    %s548 = sphi 0, %s547
    %s564 = sphi 0, %s548
    %s570 = sphi 0, %s572
    %s573 = sphi 0, %s570
    %s574 = sphi 0, %s573
    %s590 = sphi 0, %s574
    %s596 = sphi 0, %s598
    %s599 = sphi 0, %s596
    %s600 = sphi 0, %s599
    %s616 = sphi 0, %s600
    %s622 = sphi 0, %s624
    %s625 = sphi 0, %s622
    %s626 = sphi 0, %s625
    %s642 = sphi 0, %s626
    %s646 = sphi 0, %s646
    %s648 = sphi 0, %s646
    %s649 = sphi 0, %s648
    %s663 = sphi 0, %s649
    %s667 = sphi 0, %s667
    %s669 = sphi 0, %s667
    %s670 = sphi 0, %s669
    %s684 = sphi 0, %s670
    %s688 = sphi 0, %s688
    %s690 = sphi 0, %s688
    %s691 = sphi 0, %s690
    %s705 = sphi 0, %s691
    %s709 = sphi 0, %s709
    %s711 = sphi 0, %s709
    %s712 = sphi 0, %s711
    %s726 = sphi 0, %s712
    %s730 = sphi 0, %s730
    %s732 = sphi 0, %s730
    %s733 = sphi 0, %s732
    %s747 = sphi 0, %s733
  $region4: #{seq2seq_forward.3} parent=0 // loop_header_branch
    %37 = sbr.rel (%p35) target = $region8
  $region5: #{seq2seq_forward.3} parent=0 // loop_body
    %s39 = ssub.s32 %s34, 1
    %s40 = ssub.s32 %s34, 2
    %s41 = sadd.s32 %s34, 1
    %s43 = sadd.s32 %s42, 1
    %p46 = scmp.eq.s32.totalorder %s34, 1
    %p47 = scmp.ne.s32.totalorder %s42, %s44
    %p48 = scmp.eq.s32.totalorder %s34, 0
    %p49 = por %p47, %p48
    %p50 = scmp.ne.s32.totalorder %s42, %s44
    %p51 = scmp.eq.s32.totalorder %s39, 1
    %p52 = por %p50, %p51
    %p53 = scmp.ne.s32.totalorder %s44, %s45
    %p54 = scmp.eq.s32.totalorder %s39, 0
    %p55 = por %p53, %p54
    %p56 = scmp.ne.s32.totalorder %s44, %s45
    %p57 = scmp.eq.s32.totalorder %s40, 1
    %p58 = por %p56, %p57
    %p60 = scmp.ne.s32.totalorder %s45, %s59
    %p61 = scmp.eq.s32.totalorder %s40, 0
    %p62 = por %p60, %p61
    %s64 = sadd.s32 %s63, 1
    %p67 = scmp.eq.s32.totalorder %s34, 1
    %p68 = scmp.ne.s32.totalorder %s63, %s65
    %p69 = scmp.eq.s32.totalorder %s34, 0
    %p70 = por %p68, %p69
    %p71 = scmp.ne.s32.totalorder %s63, %s65
    %p72 = scmp.eq.s32.totalorder %s39, 1
    %p73 = por %p71, %p72
    %p74 = scmp.ne.s32.totalorder %s65, %s66
    %p75 = scmp.eq.s32.totalorder %s39, 0
    %p76 = por %p74, %p75
    %p77 = scmp.ne.s32.totalorder %s65, %s66
    %p78 = scmp.eq.s32.totalorder %s40, 1
    %p79 = por %p77, %p78
    %p81 = scmp.ne.s32.totalorder %s66, %s80
    %p82 = scmp.eq.s32.totalorder %s40, 0
    %p83 = por %p81, %p82
    %s85 = sadd.s32 %s84, 1
    %p88 = scmp.eq.s32.totalorder %s34, 1
    %p89 = scmp.ne.s32.totalorder %s84, %s86
    %p90 = scmp.eq.s32.totalorder %s34, 0
    %p91 = por %p89, %p90
    %p92 = scmp.ne.s32.totalorder %s84, %s86
    %p93 = scmp.eq.s32.totalorder %s39, 1
    %p94 = por %p92, %p93
    %p95 = scmp.ne.s32.totalorder %s86, %s87
    %p96 = scmp.eq.s32.totalorder %s39, 0
    %p97 = por %p95, %p96
    %p98 = scmp.ne.s32.totalorder %s86, %s87
    %p99 = scmp.eq.s32.totalorder %s40, 1
    %p100 = por %p98, %p99
    %p102 = scmp.ne.s32.totalorder %s87, %s101
    %p103 = scmp.eq.s32.totalorder %s40, 0
    %p104 = por %p102, %p103
    %s106 = sadd.s32 %s105, 1
    %p109 = scmp.eq.s32.totalorder %s34, 1
    %p110 = scmp.ne.s32.totalorder %s105, %s107
    %p111 = scmp.eq.s32.totalorder %s34, 0
    %p112 = por %p110, %p111
    %p113 = scmp.ne.s32.totalorder %s105, %s107
    %p114 = scmp.eq.s32.totalorder %s39, 1
    %p115 = por %p113, %p114
    %p116 = scmp.ne.s32.totalorder %s107, %s108
    %p117 = scmp.eq.s32.totalorder %s39, 0
    %p118 = por %p116, %p117
    %p119 = scmp.ne.s32.totalorder %s107, %s108
    %p120 = scmp.eq.s32.totalorder %s40, 1
    %p121 = por %p119, %p120
    %p123 = scmp.ne.s32.totalorder %s108, %s122
    %p124 = scmp.eq.s32.totalorder %s40, 0
    %p125 = por %p123, %p124
    %s126 = ssub.s32 %s34, %s41
    %p127 = scmp.eq.s32.totalorder %s126, 0
    %s129 = sadd.s32 %s128, 1
    %s130 = scalar_select %p127, %s128, %s129
    %p133 = pneg %p127
    %p134 = scmp.eq.s32.totalorder %s34, 1
    %p135 = por %p133, %p134
    %p136 = scmp.ne.s32.totalorder %s128, %s131
    %p137 = scmp.eq.s32.totalorder %s34, 0
    %p138 = por %p136, %p137
    %p139 = scmp.ne.s32.totalorder %s128, %s131
    %p140 = scmp.eq.s32.totalorder %s39, 1
    %p141 = por %p139, %p140
    %p142 = scmp.ne.s32.totalorder %s131, %s132
    %p143 = scmp.eq.s32.totalorder %s39, 0
    %p144 = por %p142, %p143
    %p145 = scmp.ne.s32.totalorder %s131, %s132
    %p146 = scmp.eq.s32.totalorder %s40, 1
    %p147 = por %p145, %p146
    %p149 = scmp.ne.s32.totalorder %s132, %s148
    %p150 = scmp.eq.s32.totalorder %s40, 0
    %p151 = por %p149, %p150
    %s152 = ssub.s32 %s34, %s41
    %p153 = scmp.eq.s32.totalorder %s152, 0
    %s155 = sadd.s32 %s154, 1
    %s156 = scalar_select %p153, %s154, %s155
    %p159 = pneg %p153
    %p160 = scmp.eq.s32.totalorder %s34, 1
    %p161 = por %p159, %p160
    %p162 = scmp.ne.s32.totalorder %s154, %s157
    %p163 = scmp.eq.s32.totalorder %s34, 0
    %p164 = por %p162, %p163
    %p165 = scmp.ne.s32.totalorder %s154, %s157
    %p166 = scmp.eq.s32.totalorder %s39, 1
    %p167 = por %p165, %p166
    %p168 = scmp.ne.s32.totalorder %s157, %s158
    %p169 = scmp.eq.s32.totalorder %s39, 0
    %p170 = por %p168, %p169
    %p171 = scmp.ne.s32.totalorder %s157, %s158
    %p172 = scmp.eq.s32.totalorder %s40, 1
    %p173 = por %p171, %p172
    %p175 = scmp.ne.s32.totalorder %s158, %s174
    %p176 = scmp.eq.s32.totalorder %s40, 0
    %p177 = por %p175, %p176
    %s178 = ssub.s32 %s34, %s41
    %p179 = scmp.eq.s32.totalorder %s178, 0
    %s181 = sadd.s32 %s180, 1
    %s182 = scalar_select %p179, %s180, %s181
    %p185 = pneg %p179
    %p186 = scmp.eq.s32.totalorder %s34, 1
    %p187 = por %p185, %p186
    %p188 = scmp.ne.s32.totalorder %s180, %s183
    %p189 = scmp.eq.s32.totalorder %s34, 0
    %p190 = por %p188, %p189
    %p191 = scmp.ne.s32.totalorder %s180, %s183
    %p192 = scmp.eq.s32.totalorder %s39, 1
    %p193 = por %p191, %p192
    %p194 = scmp.ne.s32.totalorder %s183, %s184
    %p195 = scmp.eq.s32.totalorder %s39, 0
    %p196 = por %p194, %p195
    %p197 = scmp.ne.s32.totalorder %s183, %s184
    %p198 = scmp.eq.s32.totalorder %s40, 1
    %p199 = por %p197, %p198
    %p201 = scmp.ne.s32.totalorder %s184, %s200
    %p202 = scmp.eq.s32.totalorder %s40, 0
    %p203 = por %p201, %p202
    %s204 = ssub.s32 %s34, %s41
    %p205 = scmp.eq.s32.totalorder %s204, 0
    %s207 = sadd.s32 %s206, 1
    %s208 = scalar_select %p205, %s206, %s207
    %p211 = pneg %p205
    %p212 = scmp.eq.s32.totalorder %s34, 1
    %p213 = por %p211, %p212
    %p214 = scmp.ne.s32.totalorder %s206, %s209
    %p215 = scmp.eq.s32.totalorder %s34, 0
    %p216 = por %p214, %p215
    %p217 = scmp.ne.s32.totalorder %s206, %s209
    %p218 = scmp.eq.s32.totalorder %s39, 1
    %p219 = por %p217, %p218
    %p220 = scmp.ne.s32.totalorder %s209, %s210
    %p221 = scmp.eq.s32.totalorder %s39, 0
    %p222 = por %p220, %p221
    %p223 = scmp.ne.s32.totalorder %s209, %s210
    %p224 = scmp.eq.s32.totalorder %s40, 1
    %p225 = por %p223, %p224
    %p227 = scmp.ne.s32.totalorder %s210, %s226
    %p228 = scmp.eq.s32.totalorder %s40, 0
    %p229 = por %p227, %p228
    %s230 = ssub.s32 %s34, %s41
    %p231 = scmp.eq.s32.totalorder %s230, 0
    %s233 = sadd.s32 %s232, 1
    %s234 = scalar_select %p231, %s232, %s233
    %p237 = pneg %p231
    %p238 = scmp.eq.s32.totalorder %s34, 1
    %p239 = por %p237, %p238
    %p240 = scmp.ne.s32.totalorder %s232, %s235
    %p241 = scmp.eq.s32.totalorder %s34, 0
    %p242 = por %p240, %p241
    %p243 = scmp.ne.s32.totalorder %s232, %s235
    %p244 = scmp.eq.s32.totalorder %s39, 1
    %p245 = por %p243, %p244
    %p246 = scmp.ne.s32.totalorder %s235, %s236
    %p247 = scmp.eq.s32.totalorder %s39, 0
    %p248 = por %p246, %p247
    %p249 = scmp.ne.s32.totalorder %s235, %s236
    %p250 = scmp.eq.s32.totalorder %s40, 1
    %p251 = por %p249, %p250
    %p253 = scmp.ne.s32.totalorder %s236, %s252
    %p254 = scmp.eq.s32.totalorder %s40, 0
    %p255 = por %p253, %p254
    %s256 = ssub.s32 %s34, %s41
    %p257 = scmp.eq.s32.totalorder %s256, 0
    %s259 = sadd.s32 %s258, 1
    %s260 = scalar_select %p257, %s258, %s259
    %p263 = pneg %p257
    %p264 = scmp.eq.s32.totalorder %s34, 1
    %p265 = por %p263, %p264
    %p266 = scmp.ne.s32.totalorder %s258, %s261
    %p267 = scmp.eq.s32.totalorder %s34, 0
    %p268 = por %p266, %p267
    %p269 = scmp.ne.s32.totalorder %s258, %s261
    %p270 = scmp.eq.s32.totalorder %s39, 1
    %p271 = por %p269, %p270
    %p272 = scmp.ne.s32.totalorder %s261, %s262
    %p273 = scmp.eq.s32.totalorder %s39, 0
    %p274 = por %p272, %p273
    %p275 = scmp.ne.s32.totalorder %s261, %s262
    %p276 = scmp.eq.s32.totalorder %s40, 1
    %p277 = por %p275, %p276
    %p279 = scmp.ne.s32.totalorder %s262, %s278
    %p280 = scmp.eq.s32.totalorder %s40, 0
    %p281 = por %p279, %p280
    %s282 = ssub.s32 %s34, %s41
    %p283 = scmp.eq.s32.totalorder %s282, 0
    %s285 = sadd.s32 %s284, 1
    %s286 = scalar_select %p283, %s284, %s285
    %p289 = pneg %p283
    %p290 = scmp.eq.s32.totalorder %s34, 1
    %p291 = por %p289, %p290
    %p292 = scmp.ne.s32.totalorder %s284, %s287
    %p293 = scmp.eq.s32.totalorder %s34, 0
    %p294 = por %p292, %p293
    %p295 = scmp.ne.s32.totalorder %s284, %s287
    %p296 = scmp.eq.s32.totalorder %s39, 1
    %p297 = por %p295, %p296
    %p298 = scmp.ne.s32.totalorder %s287, %s288
    %p299 = scmp.eq.s32.totalorder %s39, 0
    %p300 = por %p298, %p299
    %p301 = scmp.ne.s32.totalorder %s287, %s288
    %p302 = scmp.eq.s32.totalorder %s40, 1
    %p303 = por %p301, %p302
    %p305 = scmp.ne.s32.totalorder %s288, %s304
    %p306 = scmp.eq.s32.totalorder %s40, 0
    %p307 = por %p305, %p306
    %s308 = ssub.s32 %s34, %s41
    %p309 = scmp.eq.s32.totalorder %s308, 0
    %s311 = sadd.s32 %s310, 1
    %s312 = scalar_select %p309, %s310, %s311
    %p315 = pneg %p309
    %p316 = scmp.eq.s32.totalorder %s34, 1
    %p317 = por %p315, %p316
    %p318 = scmp.ne.s32.totalorder %s310, %s313
    %p319 = scmp.eq.s32.totalorder %s34, 0
    %p320 = por %p318, %p319
    %p321 = scmp.ne.s32.totalorder %s310, %s313
    %p322 = scmp.eq.s32.totalorder %s39, 1
    %p323 = por %p321, %p322
    %p324 = scmp.ne.s32.totalorder %s313, %s314
    %p325 = scmp.eq.s32.totalorder %s39, 0
    %p326 = por %p324, %p325
    %p327 = scmp.ne.s32.totalorder %s313, %s314
    %p328 = scmp.eq.s32.totalorder %s40, 1
    %p329 = por %p327, %p328
    %p331 = scmp.ne.s32.totalorder %s314, %s330
    %p332 = scmp.eq.s32.totalorder %s40, 0
    %p333 = por %p331, %p332
    %s334 = ssub.s32 %s34, %s41
    %p335 = scmp.eq.s32.totalorder %s334, 0
    %s337 = sadd.s32 %s336, 1
    %s338 = scalar_select %p335, %s336, %s337
    %p341 = pneg %p335
    %p342 = scmp.eq.s32.totalorder %s34, 1
    %p343 = por %p341, %p342
    %p344 = scmp.ne.s32.totalorder %s336, %s339
    %p345 = scmp.eq.s32.totalorder %s34, 0
    %p346 = por %p344, %p345
    %p347 = scmp.ne.s32.totalorder %s336, %s339
    %p348 = scmp.eq.s32.totalorder %s39, 1
    %p349 = por %p347, %p348
    %p350 = scmp.ne.s32.totalorder %s339, %s340
    %p351 = scmp.eq.s32.totalorder %s39, 0
    %p352 = por %p350, %p351
    %p353 = scmp.ne.s32.totalorder %s339, %s340
    %p354 = scmp.eq.s32.totalorder %s40, 1
    %p355 = por %p353, %p354
    %p357 = scmp.ne.s32.totalorder %s340, %s356
    %p358 = scmp.eq.s32.totalorder %s40, 0
    %p359 = por %p357, %p358
    %s360 = ssub.s32 %s34, %s41
    %p361 = scmp.eq.s32.totalorder %s360, 0
    %s363 = sadd.s32 %s362, 1
    %s364 = scalar_select %p361, %s362, %s363
    %p367 = pneg %p361
    %p368 = scmp.eq.s32.totalorder %s34, 1
    %p369 = por %p367, %p368
    %p370 = scmp.ne.s32.totalorder %s362, %s365
    %p371 = scmp.eq.s32.totalorder %s34, 0
    %p372 = por %p370, %p371
    %p373 = scmp.ne.s32.totalorder %s362, %s365
    %p374 = scmp.eq.s32.totalorder %s39, 1
    %p375 = por %p373, %p374
    %p376 = scmp.ne.s32.totalorder %s365, %s366
    %p377 = scmp.eq.s32.totalorder %s39, 0
    %p378 = por %p376, %p377
    %p379 = scmp.ne.s32.totalorder %s365, %s366
    %p380 = scmp.eq.s32.totalorder %s40, 1
    %p381 = por %p379, %p380
    %p383 = scmp.ne.s32.totalorder %s366, %s382
    %p384 = scmp.eq.s32.totalorder %s40, 0
    %p385 = por %p383, %p384
    %s386 = ssub.s32 %s34, %s41
    %p387 = scmp.eq.s32.totalorder %s386, 0
    %s389 = sadd.s32 %s388, 1
    %s390 = scalar_select %p387, %s388, %s389
    %p393 = pneg %p387
    %p394 = scmp.eq.s32.totalorder %s34, 1
    %p395 = por %p393, %p394
    %p396 = scmp.ne.s32.totalorder %s388, %s391
    %p397 = scmp.eq.s32.totalorder %s34, 0
    %p398 = por %p396, %p397
    %p399 = scmp.ne.s32.totalorder %s388, %s391
    %p400 = scmp.eq.s32.totalorder %s39, 1
    %p401 = por %p399, %p400
    %p402 = scmp.ne.s32.totalorder %s391, %s392
    %p403 = scmp.eq.s32.totalorder %s39, 0
    %p404 = por %p402, %p403
    %p405 = scmp.ne.s32.totalorder %s391, %s392
    %p406 = scmp.eq.s32.totalorder %s40, 1
    %p407 = por %p405, %p406
    %p409 = scmp.ne.s32.totalorder %s392, %s408
    %p410 = scmp.eq.s32.totalorder %s40, 0
    %p411 = por %p409, %p410
    %s412 = ssub.s32 %s34, %s41
    %p413 = scmp.eq.s32.totalorder %s412, 0
    %s415 = sadd.s32 %s414, 1
    %s416 = scalar_select %p413, %s414, %s415
    %p419 = pneg %p413
    %p420 = scmp.eq.s32.totalorder %s34, 1
    %p421 = por %p419, %p420
    %p422 = scmp.ne.s32.totalorder %s414, %s417
    %p423 = scmp.eq.s32.totalorder %s34, 0
    %p424 = por %p422, %p423
    %p425 = scmp.ne.s32.totalorder %s414, %s417
    %p426 = scmp.eq.s32.totalorder %s39, 1
    %p427 = por %p425, %p426
    %p428 = scmp.ne.s32.totalorder %s417, %s418
    %p429 = scmp.eq.s32.totalorder %s39, 0
    %p430 = por %p428, %p429
    %p431 = scmp.ne.s32.totalorder %s417, %s418
    %p432 = scmp.eq.s32.totalorder %s40, 1
    %p433 = por %p431, %p432
    %p435 = scmp.ne.s32.totalorder %s418, %s434
    %p436 = scmp.eq.s32.totalorder %s40, 0
    %p437 = por %p435, %p436
    %s438 = ssub.s32 %s34, %s41
    %p439 = scmp.eq.s32.totalorder %s438, 0
    %s441 = sadd.s32 %s440, 1
    %s442 = scalar_select %p439, %s440, %s441
    %p445 = pneg %p439
    %p446 = scmp.eq.s32.totalorder %s34, 1
    %p447 = por %p445, %p446
    %p448 = scmp.ne.s32.totalorder %s440, %s443
    %p449 = scmp.eq.s32.totalorder %s34, 0
    %p450 = por %p448, %p449
    %p451 = scmp.ne.s32.totalorder %s440, %s443
    %p452 = scmp.eq.s32.totalorder %s39, 1
    %p453 = por %p451, %p452
    %p454 = scmp.ne.s32.totalorder %s443, %s444
    %p455 = scmp.eq.s32.totalorder %s39, 0
    %p456 = por %p454, %p455
    %p457 = scmp.ne.s32.totalorder %s443, %s444
    %p458 = scmp.eq.s32.totalorder %s40, 1
    %p459 = por %p457, %p458
    %p461 = scmp.ne.s32.totalorder %s444, %s460
    %p462 = scmp.eq.s32.totalorder %s40, 0
    %p463 = por %p461, %p462
    %s464 = ssub.s32 %s34, %s41
    %p465 = scmp.eq.s32.totalorder %s464, 0
    %s467 = sadd.s32 %s466, 1
    %s468 = scalar_select %p465, %s466, %s467
    %p471 = pneg %p465
    %p472 = scmp.eq.s32.totalorder %s34, 1
    %p473 = por %p471, %p472
    %p474 = scmp.ne.s32.totalorder %s466, %s469
    %p475 = scmp.eq.s32.totalorder %s34, 0
    %p476 = por %p474, %p475
    %p477 = scmp.ne.s32.totalorder %s466, %s469
    %p478 = scmp.eq.s32.totalorder %s39, 1
    %p479 = por %p477, %p478
    %p480 = scmp.ne.s32.totalorder %s469, %s470
    %p481 = scmp.eq.s32.totalorder %s39, 0
    %p482 = por %p480, %p481
    %p483 = scmp.ne.s32.totalorder %s469, %s470
    %p484 = scmp.eq.s32.totalorder %s40, 1
    %p485 = por %p483, %p484
    %p487 = scmp.ne.s32.totalorder %s470, %s486
    %p488 = scmp.eq.s32.totalorder %s40, 0
    %p489 = por %p487, %p488
    %s490 = ssub.s32 %s34, %s41
    %p491 = scmp.eq.s32.totalorder %s490, 0
    %s493 = sadd.s32 %s492, 1
    %s494 = scalar_select %p491, %s492, %s493
    %p497 = pneg %p491
    %p498 = scmp.eq.s32.totalorder %s34, 1
    %p499 = por %p497, %p498
    %p500 = scmp.ne.s32.totalorder %s492, %s495
    %p501 = scmp.eq.s32.totalorder %s34, 0
    %p502 = por %p500, %p501
    %p503 = scmp.ne.s32.totalorder %s492, %s495
    %p504 = scmp.eq.s32.totalorder %s39, 1
    %p505 = por %p503, %p504
    %p506 = scmp.ne.s32.totalorder %s495, %s496
    %p507 = scmp.eq.s32.totalorder %s39, 0
    %p508 = por %p506, %p507
    %p509 = scmp.ne.s32.totalorder %s495, %s496
    %p510 = scmp.eq.s32.totalorder %s40, 1
    %p511 = por %p509, %p510
    %p513 = scmp.ne.s32.totalorder %s496, %s512
    %p514 = scmp.eq.s32.totalorder %s40, 0
    %p515 = por %p513, %p514
    %s516 = ssub.s32 %s34, %s41
    %p517 = scmp.eq.s32.totalorder %s516, 0
    %s519 = sadd.s32 %s518, 1
    %s520 = scalar_select %p517, %s518, %s519
    %p523 = pneg %p517
    %p524 = scmp.eq.s32.totalorder %s34, 1
    %p525 = por %p523, %p524
    %p526 = scmp.ne.s32.totalorder %s518, %s521
    %p527 = scmp.eq.s32.totalorder %s34, 0
    %p528 = por %p526, %p527
    %p529 = scmp.ne.s32.totalorder %s518, %s521
    %p530 = scmp.eq.s32.totalorder %s39, 1
    %p531 = por %p529, %p530
    %p532 = scmp.ne.s32.totalorder %s521, %s522
    %p533 = scmp.eq.s32.totalorder %s39, 0
    %p534 = por %p532, %p533
    %p535 = scmp.ne.s32.totalorder %s521, %s522
    %p536 = scmp.eq.s32.totalorder %s40, 1
    %p537 = por %p535, %p536
    %p539 = scmp.ne.s32.totalorder %s522, %s538
    %p540 = scmp.eq.s32.totalorder %s40, 0
    %p541 = por %p539, %p540
    %s542 = ssub.s32 %s34, %s41
    %p543 = scmp.eq.s32.totalorder %s542, 0
    %s545 = sadd.s32 %s544, 1
    %s546 = scalar_select %p543, %s544, %s545
    %p549 = pneg %p543
    %p550 = scmp.eq.s32.totalorder %s34, 1
    %p551 = por %p549, %p550
    %p552 = scmp.ne.s32.totalorder %s544, %s547
    %p553 = scmp.eq.s32.totalorder %s34, 0
    %p554 = por %p552, %p553
    %p555 = scmp.ne.s32.totalorder %s544, %s547
    %p556 = scmp.eq.s32.totalorder %s39, 1
    %p557 = por %p555, %p556
    %p558 = scmp.ne.s32.totalorder %s547, %s548
    %p559 = scmp.eq.s32.totalorder %s39, 0
    %p560 = por %p558, %p559
    %p561 = scmp.ne.s32.totalorder %s547, %s548
    %p562 = scmp.eq.s32.totalorder %s40, 1
    %p563 = por %p561, %p562
    %p565 = scmp.ne.s32.totalorder %s548, %s564
    %p566 = scmp.eq.s32.totalorder %s40, 0
    %p567 = por %p565, %p566
    %s568 = ssub.s32 %s34, %s41
    %p569 = scmp.eq.s32.totalorder %s568, 0
    %s571 = sadd.s32 %s570, 1
    %s572 = scalar_select %p569, %s570, %s571
    %p575 = pneg %p569
    %p576 = scmp.eq.s32.totalorder %s34, 1
    %p577 = por %p575, %p576
    %p578 = scmp.ne.s32.totalorder %s570, %s573
    %p579 = scmp.eq.s32.totalorder %s34, 0
    %p580 = por %p578, %p579
    %p581 = scmp.ne.s32.totalorder %s570, %s573
    %p582 = scmp.eq.s32.totalorder %s39, 1
    %p583 = por %p581, %p582
    %p584 = scmp.ne.s32.totalorder %s573, %s574
    %p585 = scmp.eq.s32.totalorder %s39, 0
    %p586 = por %p584, %p585
    %p587 = scmp.ne.s32.totalorder %s573, %s574
    %p588 = scmp.eq.s32.totalorder %s40, 1
    %p589 = por %p587, %p588
    %p591 = scmp.ne.s32.totalorder %s574, %s590
    %p592 = scmp.eq.s32.totalorder %s40, 0
    %p593 = por %p591, %p592
    %s594 = ssub.s32 %s34, %s41
    %p595 = scmp.eq.s32.totalorder %s594, 0
    %s597 = sadd.s32 %s596, 1
    %s598 = scalar_select %p595, %s596, %s597
    %p601 = pneg %p595
    %p602 = scmp.eq.s32.totalorder %s34, 1
    %p603 = por %p601, %p602
    %p604 = scmp.ne.s32.totalorder %s596, %s599
    %p605 = scmp.eq.s32.totalorder %s34, 0
    %p606 = por %p604, %p605
    %p607 = scmp.ne.s32.totalorder %s596, %s599
    %p608 = scmp.eq.s32.totalorder %s39, 1
    %p609 = por %p607, %p608
    %p610 = scmp.ne.s32.totalorder %s599, %s600
    %p611 = scmp.eq.s32.totalorder %s39, 0
    %p612 = por %p610, %p611
    %p613 = scmp.ne.s32.totalorder %s599, %s600
    %p614 = scmp.eq.s32.totalorder %s40, 1
    %p615 = por %p613, %p614
    %p617 = scmp.ne.s32.totalorder %s600, %s616
    %p618 = scmp.eq.s32.totalorder %s40, 0
    %p619 = por %p617, %p618
    %s620 = ssub.s32 %s34, %s41
    %p621 = scmp.eq.s32.totalorder %s620, 0
    %s623 = sadd.s32 %s622, 1
    %s624 = scalar_select %p621, %s622, %s623
    %p627 = pneg %p621
    %p628 = scmp.eq.s32.totalorder %s34, 1
    %p629 = por %p627, %p628
    %p630 = scmp.ne.s32.totalorder %s622, %s625
    %p631 = scmp.eq.s32.totalorder %s34, 0
    %p632 = por %p630, %p631
    %p633 = scmp.ne.s32.totalorder %s622, %s625
    %p634 = scmp.eq.s32.totalorder %s39, 1
    %p635 = por %p633, %p634
    %p636 = scmp.ne.s32.totalorder %s625, %s626
    %p637 = scmp.eq.s32.totalorder %s39, 0
    %p638 = por %p636, %p637
    %p639 = scmp.ne.s32.totalorder %s625, %s626
    %p640 = scmp.eq.s32.totalorder %s40, 1
    %p641 = por %p639, %p640
    %p643 = scmp.ne.s32.totalorder %s626, %s642
    %p644 = scmp.eq.s32.totalorder %s40, 0
    %p645 = por %p643, %p644
    %s647 = sadd.s32 %s646, 1
    %p650 = scmp.eq.s32.totalorder %s34, 1
    %p651 = scmp.ne.s32.totalorder %s646, %s648
    %p652 = scmp.eq.s32.totalorder %s34, 0
    %p653 = por %p651, %p652
    %p654 = scmp.ne.s32.totalorder %s646, %s648
    %p655 = scmp.eq.s32.totalorder %s39, 1
    %p656 = por %p654, %p655
    %p657 = scmp.ne.s32.totalorder %s648, %s649
    %p658 = scmp.eq.s32.totalorder %s39, 0
    %p659 = por %p657, %p658
    %p660 = scmp.ne.s32.totalorder %s648, %s649
    %p661 = scmp.eq.s32.totalorder %s40, 1
    %p662 = por %p660, %p661
    %p664 = scmp.ne.s32.totalorder %s649, %s663
    %p665 = scmp.eq.s32.totalorder %s40, 0
    %p666 = por %p664, %p665
    %s668 = sadd.s32 %s667, 1
    %p671 = scmp.eq.s32.totalorder %s34, 1
    %p672 = scmp.ne.s32.totalorder %s667, %s669
    %p673 = scmp.eq.s32.totalorder %s34, 0
    %p674 = por %p672, %p673
    %p675 = scmp.ne.s32.totalorder %s667, %s669
    %p676 = scmp.eq.s32.totalorder %s39, 1
    %p677 = por %p675, %p676
    %p678 = scmp.ne.s32.totalorder %s669, %s670
    %p679 = scmp.eq.s32.totalorder %s39, 0
    %p680 = por %p678, %p679
    %p681 = scmp.ne.s32.totalorder %s669, %s670
    %p682 = scmp.eq.s32.totalorder %s40, 1
    %p683 = por %p681, %p682
    %p685 = scmp.ne.s32.totalorder %s670, %s684
    %p686 = scmp.eq.s32.totalorder %s40, 0
    %p687 = por %p685, %p686
    %s689 = sadd.s32 %s688, 1
    %p692 = scmp.eq.s32.totalorder %s34, 1
    %p693 = scmp.ne.s32.totalorder %s688, %s690
    %p694 = scmp.eq.s32.totalorder %s34, 0
    %p695 = por %p693, %p694
    %p696 = scmp.ne.s32.totalorder %s688, %s690
    %p697 = scmp.eq.s32.totalorder %s39, 1
    %p698 = por %p696, %p697
    %p699 = scmp.ne.s32.totalorder %s690, %s691
    %p700 = scmp.eq.s32.totalorder %s39, 0
    %p701 = por %p699, %p700
    %p702 = scmp.ne.s32.totalorder %s690, %s691
    %p703 = scmp.eq.s32.totalorder %s40, 1
    %p704 = por %p702, %p703
    %p706 = scmp.ne.s32.totalorder %s691, %s705
    %p707 = scmp.eq.s32.totalorder %s40, 0
    %p708 = por %p706, %p707
    %s710 = sadd.s32 %s709, 1
    %p713 = scmp.eq.s32.totalorder %s34, 1
    %p714 = scmp.ne.s32.totalorder %s709, %s711
    %p715 = scmp.eq.s32.totalorder %s34, 0
    %p716 = por %p714, %p715
    %p717 = scmp.ne.s32.totalorder %s709, %s711
    %p718 = scmp.eq.s32.totalorder %s39, 1
    %p719 = por %p717, %p718
    %p720 = scmp.ne.s32.totalorder %s711, %s712
    %p721 = scmp.eq.s32.totalorder %s39, 0
    %p722 = por %p720, %p721
    %p723 = scmp.ne.s32.totalorder %s711, %s712
    %p724 = scmp.eq.s32.totalorder %s40, 1
    %p725 = por %p723, %p724
    %p727 = scmp.ne.s32.totalorder %s712, %s726
    %p728 = scmp.eq.s32.totalorder %s40, 0
    %p729 = por %p727, %p728
    %s731 = sadd.s32 %s730, 1
    %p734 = scmp.eq.s32.totalorder %s34, 1
    %p735 = scmp.ne.s32.totalorder %s730, %s732
    %p736 = scmp.eq.s32.totalorder %s34, 0
    %p737 = por %p735, %p736
    %p738 = scmp.ne.s32.totalorder %s730, %s732
    %p739 = scmp.eq.s32.totalorder %s39, 1
    %p740 = por %p738, %p739
    %p741 = scmp.ne.s32.totalorder %s732, %s733
    %p742 = scmp.eq.s32.totalorder %s39, 0
    %p743 = por %p741, %p742
    %p744 = scmp.ne.s32.totalorder %s732, %s733
    %p745 = scmp.eq.s32.totalorder %s40, 1
    %p746 = por %p744, %p745
    %p748 = scmp.ne.s32.totalorder %s733, %s747
    %p749 = scmp.eq.s32.totalorder %s40, 0
    %p750 = por %p748, %p749
    %p751 = scmp.le.s32.totalorder 1, %s34
    %p752 = scmp.lt.s32.totalorder %s34, 3
    %p753 = pnand %p751, %p752
    %p754 = pneg %p753
    // Predicated region
    $region9: #{seq2seq_forward.3} parent=5 // pred_check
      _
    $region10: #{seq2seq_forward.3} parent=5 // pred_check_branch
      %756 = sbr.rel (%p753) target = $region12
    $region11: #{seq2seq_forward.3} parent=5 // pred_region
      %s757 = ssub.s32 %s34, 1
      // Predicated region
      $region13: #{seq2seq_forward.3} parent=11 // pred_check
        %p758 = pneg %p55
      $region14: #{seq2seq_forward.3} parent=11 // pred_check_branch
        %760 = sbr.rel (%p758) target = $region16
      $region15: #{seq2seq_forward.3} parent=11 // pred_region
        _
      $region16: #{seq2seq_forward.3} parent=11 // pred_fallthru
        _
      // Predicated region
      $region17: #{seq2seq_forward.3} parent=11 // pred_check
        %p761 = pneg %p76
      $region18: #{seq2seq_forward.3} parent=11 // pred_check_branch
        %763 = sbr.rel (%p761) target = $region20
      $region19: #{seq2seq_forward.3} parent=11 // pred_region
        _
      $region20: #{seq2seq_forward.3} parent=11 // pred_fallthru
        _
      // Predicated region
      $region21: #{seq2seq_forward.3} parent=11 // pred_check
        %p764 = pneg %p97
      $region22: #{seq2seq_forward.3} parent=11 // pred_check_branch
        %766 = sbr.rel (%p764) target = $region24
      $region23: #{seq2seq_forward.3} parent=11 // pred_region
        _
      $region24: #{seq2seq_forward.3} parent=11 // pred_fallthru
        _
      // Predicated region
      $region25: #{seq2seq_forward.3} parent=11 // pred_check
        %p767 = pneg %p118
      $region26: #{seq2seq_forward.3} parent=11 // pred_check_branch
        %769 = sbr.rel (%p767) target = $region28
      $region27: #{seq2seq_forward.3} parent=11 // pred_region
        _
      $region28: #{seq2seq_forward.3} parent=11 // pred_fallthru
        _
      // Predicated region
      $region29: #{seq2seq_forward.3} parent=11 // pred_check
        %p770 = pneg %p659
      $region30: #{seq2seq_forward.3} parent=11 // pred_check_branch
        %772 = sbr.rel (%p770) target = $region32
      $region31: #{seq2seq_forward.3} parent=11 // pred_region
        _
      $region32: #{seq2seq_forward.3} parent=11 // pred_fallthru
        _
      // Predicated region
      $region33: #{seq2seq_forward.3} parent=11 // pred_check
        %p773 = pneg %p680
      $region34: #{seq2seq_forward.3} parent=11 // pred_check_branch
        %775 = sbr.rel (%p773) target = $region36
      $region35: #{seq2seq_forward.3} parent=11 // pred_region
        _
      $region36: #{seq2seq_forward.3} parent=11 // pred_fallthru
        _
      // Predicated region
      $region37: #{seq2seq_forward.3} parent=11 // pred_check
        %p776 = pneg %p701
      $region38: #{seq2seq_forward.3} parent=11 // pred_check_branch
        %778 = sbr.rel (%p776) target = $region40
      $region39: #{seq2seq_forward.3} parent=11 // pred_region
        _
      $region40: #{seq2seq_forward.3} parent=11 // pred_fallthru
        _
      // Predicated region
      $region41: #{seq2seq_forward.3} parent=11 // pred_check
        %p779 = pneg %p722
      $region42: #{seq2seq_forward.3} parent=11 // pred_check_branch
        %781 = sbr.rel (%p779) target = $region44
      $region43: #{seq2seq_forward.3} parent=11 // pred_region
        _
      $region44: #{seq2seq_forward.3} parent=11 // pred_fallthru
        _
    $region12: #{seq2seq_forward.3} parent=5 // pred_fallthru
      _
    %p782 = scmp.lt.s32.totalorder %s34, 2
    // Predicated region
    $region45: #{seq2seq_forward.3} parent=5 // pred_check
      %p783 = pneg %p782
    $region46: #{seq2seq_forward.3} parent=5 // pred_check_branch
      %785 = sbr.rel (%p783) target = $region48
    $region47: #{seq2seq_forward.3} parent=5 // pred_region
      // Predicated region
      $region49: #{seq2seq_forward.3} parent=47 // pred_check
        %p786 = pneg %p138
      $region50: #{seq2seq_forward.3} parent=47 // pred_check_branch
        %788 = sbr.rel (%p786) target = $region52
      $region51: #{seq2seq_forward.3} parent=47 // pred_region
        %p789 = scmp.lt.s32.totalorder %s34, 1
        %s790 = scalar_select %p789, %s34, 1
        %s791 = smul.addr %s790, 4
        %s792 = smul.addr %s791, 4
        %s793 = scalar_lea.vmem %s4, %s792
      $region52: #{seq2seq_forward.3} parent=47 // pred_fallthru
        _
      // Predicated region
      $region53: #{seq2seq_forward.3} parent=47 // pred_check
        %p794 = pneg %p164
      $region54: #{seq2seq_forward.3} parent=47 // pred_check_branch
        %796 = sbr.rel (%p794) target = $region56
      $region55: #{seq2seq_forward.3} parent=47 // pred_region
        %p797 = scmp.lt.s32.totalorder %s34, 1
        %s798 = scalar_select %p797, %s34, 1
        %s799 = scalar_lea.vmem %s5, %s798
      $region56: #{seq2seq_forward.3} parent=47 // pred_fallthru
        _
      // Predicated region
      $region57: #{seq2seq_forward.3} parent=47 // pred_check
        %p800 = pneg %p190
      $region58: #{seq2seq_forward.3} parent=47 // pred_check_branch
        %802 = sbr.rel (%p800) target = $region60
      $region59: #{seq2seq_forward.3} parent=47 // pred_region
        %p803 = scmp.lt.s32.totalorder %s34, 1
        %s804 = scalar_select %p803, %s34, 1
        %s805 = smul.addr %s804, 4
        %s806 = smul.addr %s805, 4
        %s807 = scalar_lea.vmem %s6, %s806
      $region60: #{seq2seq_forward.3} parent=47 // pred_fallthru
        _
      // Predicated region
      $region61: #{seq2seq_forward.3} parent=47 // pred_check
        %p808 = pneg %p216
      $region62: #{seq2seq_forward.3} parent=47 // pred_check_branch
        %810 = sbr.rel (%p808) target = $region64
      $region63: #{seq2seq_forward.3} parent=47 // pred_region
        %p811 = scmp.lt.s32.totalorder %s34, 1
        %s812 = scalar_select %p811, %s34, 1
        %s813 = scalar_lea.vmem %s7, %s812
      $region64: #{seq2seq_forward.3} parent=47 // pred_fallthru
        _
      // Predicated region
      $region65: #{seq2seq_forward.3} parent=47 // pred_check
        %p814 = pneg %p242
      $region66: #{seq2seq_forward.3} parent=47 // pred_check_branch
        %816 = sbr.rel (%p814) target = $region68
      $region67: #{seq2seq_forward.3} parent=47 // pred_region
        %p817 = scmp.lt.s32.totalorder %s34, 1
        %s818 = scalar_select %p817, %s34, 1
        %s819 = scalar_lea.vmem %s8, %s818
      $region68: #{seq2seq_forward.3} parent=47 // pred_fallthru
        _
      // Predicated region
      $region69: #{seq2seq_forward.3} parent=47 // pred_check
        %p820 = pneg %p268
      $region70: #{seq2seq_forward.3} parent=47 // pred_check_branch
        %822 = sbr.rel (%p820) target = $region72
      $region71: #{seq2seq_forward.3} parent=47 // pred_region
        %p823 = scmp.lt.s32.totalorder %s34, 1
        %s824 = scalar_select %p823, %s34, 1
        %s825 = scalar_lea.vmem %s9, %s824
      $region72: #{seq2seq_forward.3} parent=47 // pred_fallthru
        _
      // Predicated region
      $region73: #{seq2seq_forward.3} parent=47 // pred_check
        %p826 = pneg %p294
      $region74: #{seq2seq_forward.3} parent=47 // pred_check_branch
        %828 = sbr.rel (%p826) target = $region76
      $region75: #{seq2seq_forward.3} parent=47 // pred_region
        %p829 = scmp.lt.s32.totalorder %s34, 1
        %s830 = scalar_select %p829, %s34, 1
        %s831 = smul.addr %s830, 4
        %s832 = smul.addr %s831, 4
        %s833 = scalar_lea.vmem %s10, %s832
      $region76: #{seq2seq_forward.3} parent=47 // pred_fallthru
        _
      // Predicated region
      $region77: #{seq2seq_forward.3} parent=47 // pred_check
        %p834 = pneg %p320
      $region78: #{seq2seq_forward.3} parent=47 // pred_check_branch
        %836 = sbr.rel (%p834) target = $region80
      $region79: #{seq2seq_forward.3} parent=47 // pred_region
        %p837 = scmp.lt.s32.totalorder %s34, 1
        %s838 = scalar_select %p837, %s34, 1
        %s839 = scalar_lea.vmem %s11, %s838
      $region80: #{seq2seq_forward.3} parent=47 // pred_fallthru
        _
      // Predicated region
      $region81: #{seq2seq_forward.3} parent=47 // pred_check
        %p840 = pneg %p346
      $region82: #{seq2seq_forward.3} parent=47 // pred_check_branch
        %842 = sbr.rel (%p840) target = $region84
      $region83: #{seq2seq_forward.3} parent=47 // pred_region
        %p843 = scmp.lt.s32.totalorder %s34, 1
        %s844 = scalar_select %p843, %s34, 1
        %s845 = smul.addr %s844, 4
        %s846 = smul.addr %s845, 4
        %s847 = scalar_lea.vmem %s12, %s846
      $region84: #{seq2seq_forward.3} parent=47 // pred_fallthru
        _
      // Predicated region
      $region85: #{seq2seq_forward.3} parent=47 // pred_check
        %p848 = pneg %p372
      $region86: #{seq2seq_forward.3} parent=47 // pred_check_branch
        %850 = sbr.rel (%p848) target = $region88
      $region87: #{seq2seq_forward.3} parent=47 // pred_region
        %p851 = scmp.lt.s32.totalorder %s34, 1
        %s852 = scalar_select %p851, %s34, 1
        %s853 = scalar_lea.vmem %s13, %s852
      $region88: #{seq2seq_forward.3} parent=47 // pred_fallthru
        _
      // Predicated region
      $region89: #{seq2seq_forward.3} parent=47 // pred_check
        %p854 = pneg %p398
      $region90: #{seq2seq_forward.3} parent=47 // pred_check_branch
        %856 = sbr.rel (%p854) target = $region92
      $region91: #{seq2seq_forward.3} parent=47 // pred_region
        %p857 = scmp.lt.s32.totalorder %s34, 1
        %s858 = scalar_select %p857, %s34, 1
        %s859 = smul.addr %s858, 4
        %s860 = smul.addr %s859, 4
        %s861 = scalar_lea.vmem %s14, %s860
      $region92: #{seq2seq_forward.3} parent=47 // pred_fallthru
        _
      // Predicated region
      $region93: #{seq2seq_forward.3} parent=47 // pred_check
        %p862 = pneg %p424
      $region94: #{seq2seq_forward.3} parent=47 // pred_check_branch
        %864 = sbr.rel (%p862) target = $region96
      $region95: #{seq2seq_forward.3} parent=47 // pred_region
        %p865 = scmp.lt.s32.totalorder %s34, 1
        %s866 = scalar_select %p865, %s34, 1
        %s867 = scalar_lea.vmem %s15, %s866
      $region96: #{seq2seq_forward.3} parent=47 // pred_fallthru
        _
      // Predicated region
      $region97: #{seq2seq_forward.3} parent=47 // pred_check
        %p868 = pneg %p450
      $region98: #{seq2seq_forward.3} parent=47 // pred_check_branch
        %870 = sbr.rel (%p868) target = $region100
      $region99: #{seq2seq_forward.3} parent=47 // pred_region
        %p871 = scmp.lt.s32.totalorder %s34, 1
        %s872 = scalar_select %p871, %s34, 1
        %s873 = scalar_lea.vmem %s16, %s872
      $region100: #{seq2seq_forward.3} parent=47 // pred_fallthru
        _
      // Predicated region
      $region101: #{seq2seq_forward.3} parent=47 // pred_check
        %p874 = pneg %p476
      $region102: #{seq2seq_forward.3} parent=47 // pred_check_branch
        %876 = sbr.rel (%p874) target = $region104
      $region103: #{seq2seq_forward.3} parent=47 // pred_region
        %p877 = scmp.lt.s32.totalorder %s34, 1
        %s878 = scalar_select %p877, %s34, 1
        %s879 = scalar_lea.vmem %s17, %s878
      $region104: #{seq2seq_forward.3} parent=47 // pred_fallthru
        _
      // Predicated region
      $region105: #{seq2seq_forward.3} parent=47 // pred_check
        %p880 = pneg %p502
      $region106: #{seq2seq_forward.3} parent=47 // pred_check_branch
        %882 = sbr.rel (%p880) target = $region108
      $region107: #{seq2seq_forward.3} parent=47 // pred_region
        %p883 = scmp.lt.s32.totalorder %s34, 1
        %s884 = scalar_select %p883, %s34, 1
        %s885 = smul.addr %s884, 4
        %s886 = smul.addr %s885, 4
        %s887 = scalar_lea.vmem %s18, %s886
      $region108: #{seq2seq_forward.3} parent=47 // pred_fallthru
        _
      // Predicated region
      $region109: #{seq2seq_forward.3} parent=47 // pred_check
        %p888 = pneg %p528
      $region110: #{seq2seq_forward.3} parent=47 // pred_check_branch
        %890 = sbr.rel (%p888) target = $region112
      $region111: #{seq2seq_forward.3} parent=47 // pred_region
        %p891 = scmp.lt.s32.totalorder %s34, 1
        %s892 = scalar_select %p891, %s34, 1
        %s893 = scalar_lea.vmem %s19, %s892
      $region112: #{seq2seq_forward.3} parent=47 // pred_fallthru
        _
      // Predicated region
      $region113: #{seq2seq_forward.3} parent=47 // pred_check
        %p894 = pneg %p554
      $region114: #{seq2seq_forward.3} parent=47 // pred_check_branch
        %896 = sbr.rel (%p894) target = $region116
      $region115: #{seq2seq_forward.3} parent=47 // pred_region
        %p897 = scmp.lt.s32.totalorder %s34, 1
        %s898 = scalar_select %p897, %s34, 1
        %s899 = smul.addr %s898, 8
        %s900 = smul.addr %s899, 4
        %s901 = scalar_lea.vmem %s20, %s900
      $region116: #{seq2seq_forward.3} parent=47 // pred_fallthru
        _
      // Predicated region
      $region117: #{seq2seq_forward.3} parent=47 // pred_check
        %p902 = pneg %p580
      $region118: #{seq2seq_forward.3} parent=47 // pred_check_branch
        %904 = sbr.rel (%p902) target = $region120
      $region119: #{seq2seq_forward.3} parent=47 // pred_region
        %p905 = scmp.lt.s32.totalorder %s34, 1
        %s906 = scalar_select %p905, %s34, 1
        %s907 = scalar_lea.vmem %s21, %s906
      $region120: #{seq2seq_forward.3} parent=47 // pred_fallthru
        _
      // Predicated region
      $region121: #{seq2seq_forward.3} parent=47 // pred_check
        %p908 = pneg %p606
      $region122: #{seq2seq_forward.3} parent=47 // pred_check_branch
        %910 = sbr.rel (%p908) target = $region124
      $region123: #{seq2seq_forward.3} parent=47 // pred_region
        %p911 = scmp.lt.s32.totalorder %s34, 1
        %s912 = scalar_select %p911, %s34, 1
        %s913 = scalar_lea.vmem %s22, %s912
      $region124: #{seq2seq_forward.3} parent=47 // pred_fallthru
        _
      // Predicated region
      $region125: #{seq2seq_forward.3} parent=47 // pred_check
        %p914 = pneg %p632
      $region126: #{seq2seq_forward.3} parent=47 // pred_check_branch
        %916 = sbr.rel (%p914) target = $region128
      $region127: #{seq2seq_forward.3} parent=47 // pred_region
        %p917 = scmp.lt.s32.totalorder %s34, 1
        %s918 = scalar_select %p917, %s34, 1
        %s919 = scalar_lea.vmem %s23, %s918
      $region128: #{seq2seq_forward.3} parent=47 // pred_fallthru
        _
    $region48: #{seq2seq_forward.3} parent=5 // pred_fallthru
      _
    %p920 = scmp.le.s32.totalorder 1, %s34
    %p921 = scmp.lt.s32.totalorder %s34, 3
    %p922 = pnand %p920, %p921
    %p923 = pneg %p922
    // Predicated region
    $region129: #{seq2seq_forward.3} parent=5 // pred_check
      _
    $region130: #{seq2seq_forward.3} parent=5 // pred_check_branch
      %925 = sbr.rel (%p922) target = $region132
    $region131: #{seq2seq_forward.3} parent=5 // pred_region
      %s926 = ssub.s32 %s34, 1
      %p927 = pneg %p55
      %p928 = pneg %p52
      %p929 = pneg %p76
      %p930 = pneg %p73
      %p931 = pneg %p97
      %p932 = pneg %p94
      %p933 = pneg %p118
      %p934 = pneg %p115
      %p935 = scmp.lt.s32.totalorder %s39, 1
      %s936 = scalar_select %p935, %s39, 1
      %s937 = smul.addr %s936, 4
      %s938 = smul.addr %s937, 4
      %s939 = scalar_lea.vmem %s4, %s938
      %p940 = pneg %p144
      %p941 = pneg %p141
      %p942 = scmp.lt.s32.totalorder %s39, 1
      %s943 = scalar_select %p942, %s39, 1
      %s944 = scalar_lea.vmem %s5, %s943
      %p945 = pneg %p170
      %p946 = pneg %p167
      %p947 = scmp.lt.s32.totalorder %s39, 1
      %s948 = scalar_select %p947, %s39, 1
      %s949 = smul.addr %s948, 4
      %s950 = smul.addr %s949, 4
      %s951 = scalar_lea.vmem %s6, %s950
      %p952 = pneg %p196
      %p953 = pneg %p193
      %p954 = scmp.lt.s32.totalorder %s39, 1
      %s955 = scalar_select %p954, %s39, 1
      %s956 = scalar_lea.vmem %s7, %s955
      %p957 = pneg %p222
      %p958 = pneg %p219
      %p959 = scmp.lt.s32.totalorder %s39, 1
      %s960 = scalar_select %p959, %s39, 1
      %s961 = scalar_lea.vmem %s8, %s960
      %p962 = pneg %p248
      %p963 = pneg %p245
      %p964 = scmp.lt.s32.totalorder %s39, 1
      %s965 = scalar_select %p964, %s39, 1
      %s966 = scalar_lea.vmem %s9, %s965
      %p967 = pneg %p274
      %p968 = pneg %p271
      %p969 = scmp.lt.s32.totalorder %s39, 1
      %s970 = scalar_select %p969, %s39, 1
      %s971 = smul.addr %s970, 4
      %s972 = smul.addr %s971, 4
      %s973 = scalar_lea.vmem %s10, %s972
      %p974 = pneg %p300
      %p975 = pneg %p297
      %p976 = scmp.lt.s32.totalorder %s39, 1
      %s977 = scalar_select %p976, %s39, 1
      %s978 = scalar_lea.vmem %s11, %s977
      %p979 = pneg %p326
      %p980 = pneg %p323
      %p981 = scmp.lt.s32.totalorder %s39, 1
      %s982 = scalar_select %p981, %s39, 1
      %s983 = smul.addr %s982, 4
      %s984 = smul.addr %s983, 4
      %s985 = scalar_lea.vmem %s12, %s984
      %p986 = pneg %p352
      %p987 = pneg %p349
      %p988 = scmp.lt.s32.totalorder %s39, 1
      %s989 = scalar_select %p988, %s39, 1
      %s990 = scalar_lea.vmem %s13, %s989
      %p991 = pneg %p378
      %p992 = pneg %p375
      %p993 = scmp.lt.s32.totalorder %s39, 1
      %s994 = scalar_select %p993, %s39, 1
      %s995 = smul.addr %s994, 4
      %s996 = smul.addr %s995, 4
      %s997 = scalar_lea.vmem %s14, %s996
      %p998 = pneg %p404
      %p999 = pneg %p401
      %p1000 = scmp.lt.s32.totalorder %s39, 1
      %s1001 = scalar_select %p1000, %s39, 1
      %s1002 = scalar_lea.vmem %s15, %s1001
      %p1003 = pneg %p430
      %p1004 = pneg %p427
      %p1005 = scmp.lt.s32.totalorder %s39, 1
      %s1006 = scalar_select %p1005, %s39, 1
      %s1007 = scalar_lea.vmem %s16, %s1006
      %p1008 = pneg %p456
      %p1009 = pneg %p453
      %p1010 = scmp.lt.s32.totalorder %s39, 1
      %s1011 = scalar_select %p1010, %s39, 1
      %s1012 = scalar_lea.vmem %s17, %s1011
      %p1013 = pneg %p482
      %p1014 = pneg %p479
      %p1015 = scmp.lt.s32.totalorder %s39, 1
      %s1016 = scalar_select %p1015, %s39, 1
      %s1017 = smul.addr %s1016, 4
      %s1018 = smul.addr %s1017, 4
      %s1019 = scalar_lea.vmem %s18, %s1018
      %p1020 = pneg %p508
      %p1021 = pneg %p505
      %p1022 = scmp.lt.s32.totalorder %s39, 1
      %s1023 = scalar_select %p1022, %s39, 1
      %s1024 = scalar_lea.vmem %s19, %s1023
      %p1025 = pneg %p534
      %p1026 = pneg %p531
      %p1027 = scmp.lt.s32.totalorder %s39, 1
      %s1028 = scalar_select %p1027, %s39, 1
      %s1029 = smul.addr %s1028, 8
      %s1030 = smul.addr %s1029, 4
      %s1031 = scalar_lea.vmem %s20, %s1030
      %p1032 = pneg %p560
      %p1033 = pneg %p557
      %p1034 = scmp.lt.s32.totalorder %s39, 1
      %s1035 = scalar_select %p1034, %s39, 1
      %s1036 = scalar_lea.vmem %s21, %s1035
      %p1037 = pneg %p586
      %p1038 = pneg %p583
      %p1039 = scmp.lt.s32.totalorder %s39, 1
      %s1040 = scalar_select %p1039, %s39, 1
      %s1041 = scalar_lea.vmem %s22, %s1040
      %p1042 = pneg %p612
      %p1043 = pneg %p609
      %p1044 = scmp.lt.s32.totalorder %s39, 1
      %s1045 = scalar_select %p1044, %s39, 1
      %s1046 = scalar_lea.vmem %s23, %s1045
      %p1047 = pneg %p638
      %p1048 = pneg %p635
      %p1049 = pneg %p659
      %p1050 = pneg %p656
      %p1051 = pneg %p680
      %p1052 = pneg %p677
      %p1053 = pneg %p701
      %p1054 = pneg %p698
      %p1055 = pneg %p722
      %p1056 = pneg %p719
      %p1057 = pneg %p743
      %p1058 = pneg %p740
      %p1059 = scmp.lt.s32.totalorder %s39, 1
      %s1060 = scalar_select %p1059, %s39, 1
      %s1061 = smul.addr %s1060, 4
      %s1062 = smul.addr %s1061, 4
      %s1063 = scalar_lea.vmem %s4, %s1062
      %p1064 = scmp.lt.s32.totalorder %s39, 1
      %s1065 = scalar_select %p1064, %s39, 1
      %s1066 = scalar_lea.vmem %s5, %s1065
      %p1067 = scmp.lt.s32.totalorder %s39, 1
      %s1068 = scalar_select %p1067, %s39, 1
      %s1069 = smul.addr %s1068, 4
      %s1070 = smul.addr %s1069, 4
      %s1071 = scalar_lea.vmem %s6, %s1070
      %p1072 = scmp.lt.s32.totalorder %s39, 1
      %s1073 = scalar_select %p1072, %s39, 1
      %s1074 = scalar_lea.vmem %s7, %s1073
      %p1075 = scmp.lt.s32.totalorder %s39, 1
      %s1076 = scalar_select %p1075, %s39, 1
      %s1077 = scalar_lea.vmem %s8, %s1076
      %p1078 = scmp.lt.s32.totalorder %s39, 1
      %s1079 = scalar_select %p1078, %s39, 1
      %s1080 = scalar_lea.vmem %s9, %s1079
      %p1081 = scmp.lt.s32.totalorder %s39, 1
      %s1082 = scalar_select %p1081, %s39, 1
      %s1083 = smul.addr %s1082, 4
      %s1084 = smul.addr %s1083, 4
      %s1085 = scalar_lea.vmem %s10, %s1084
      %p1086 = scmp.lt.s32.totalorder %s39, 1
      %s1087 = scalar_select %p1086, %s39, 1
      %s1088 = scalar_lea.vmem %s11, %s1087
      %p1089 = scmp.lt.s32.totalorder %s39, 1
      %s1090 = scalar_select %p1089, %s39, 1
      %s1091 = smul.addr %s1090, 4
      %s1092 = smul.addr %s1091, 4
      %s1093 = scalar_lea.vmem %s12, %s1092
      %p1094 = scmp.lt.s32.totalorder %s39, 1
      %s1095 = scalar_select %p1094, %s39, 1
      %s1096 = scalar_lea.vmem %s13, %s1095
      %p1097 = scmp.lt.s32.totalorder %s39, 1
      %s1098 = scalar_select %p1097, %s39, 1
      %s1099 = smul.addr %s1098, 4
      %s1100 = smul.addr %s1099, 4
      %s1101 = scalar_lea.vmem %s14, %s1100
      %p1102 = scmp.lt.s32.totalorder %s39, 1
      %s1103 = scalar_select %p1102, %s39, 1
      %s1104 = scalar_lea.vmem %s15, %s1103
      %p1105 = scmp.lt.s32.totalorder %s39, 1
      %s1106 = scalar_select %p1105, %s39, 1
      %s1107 = scalar_lea.vmem %s16, %s1106
      %p1108 = scmp.lt.s32.totalorder %s39, 1
      %s1109 = scalar_select %p1108, %s39, 1
      %s1110 = scalar_lea.vmem %s17, %s1109
      %p1111 = scmp.lt.s32.totalorder %s39, 1
      %s1112 = scalar_select %p1111, %s39, 1
      %s1113 = smul.addr %s1112, 4
      %s1114 = smul.addr %s1113, 4
      %s1115 = scalar_lea.vmem %s18, %s1114
      %p1116 = scmp.lt.s32.totalorder %s39, 1
      %s1117 = scalar_select %p1116, %s39, 1
      %s1118 = scalar_lea.vmem %s19, %s1117
      %p1119 = scmp.lt.s32.totalorder %s39, 1
      %s1120 = scalar_select %p1119, %s39, 1
      %s1121 = smul.addr %s1120, 8
      %s1122 = smul.addr %s1121, 4
      %s1123 = scalar_lea.vmem %s20, %s1122
      %p1124 = scmp.lt.s32.totalorder %s39, 1
      %s1125 = scalar_select %p1124, %s39, 1
      %s1126 = scalar_lea.vmem %s21, %s1125
      %p1127 = scmp.lt.s32.totalorder %s39, 1
      %s1128 = scalar_select %p1127, %s39, 1
      %s1129 = scalar_lea.vmem %s22, %s1128
      %p1130 = scmp.lt.s32.totalorder %s39, 1
      %s1131 = scalar_select %p1130, %s39, 1
      %s1132 = scalar_lea.vmem %s23, %s1131
      %p1134 = scmp.eq.s32.totalorder %s39, 0
      // Predicated region
      $region133: #{seq2seq_forward.3} parent=131 // pred_check
        %p1135 = pneg %p1134
      $region134: #{seq2seq_forward.3} parent=131 // pred_check_branch
        %1137 = sbr.rel (%p1135) target = $region136
      $region135: #{seq2seq_forward.3} parent=131 // pred_region
        %v1138 = vld [vmem:[%s0] sm:$0xff]
        %v1139 = vld [vmem:[%s0 + $0x8] sm:$0xff]
        %vm1140 = vcmask 261120
        %1141 = vst.msk [vmem:[#allocation2] sm:$0xff] %vm1140, %v1138
        %1142 = vst.msk [vmem:[#allocation2 + $0x8] sm:$0xff] %vm1140, %v1139
      $region136: #{seq2seq_forward.3} parent=131 // pred_fallthru
        _
      %v1143 = vld [vmem:[#allocation2] sm:$0xff]
      %v1144 = vld [vmem:[#allocation2 + $0x8] sm:$0xff]
      %v1145 = vld [vmem:[%s1] sm:$0xff]
      %v1146 = vld [vmem:[%s1 + $0x8] sm:$0xff]
      %v1147 = vld [vmem:[%s1063] sm:$0xf]
      %v1148 = vld [vmem:[%s1063 + $0x4] sm:$0xf]
      %v1149 = vld [vmem:[%s1063 + $0x8] sm:$0xf]
      %v1150 = vld [vmem:[%s1063 + $0xc] sm:$0xf]
      %v1151 = vld [vmem:[%s1066] sm:$0x1]
      %v1152 = vpack.c.bf16 %v1144, %v1143
      %v1154 = vlaneseq
      %v1155 = vshrl.u32 %v1154, 7
      %v1156 = vsub.s32 0, %v1155
      %v1157 = vrot.slane %v1151, %v1156
      %v1163 = vunpack.c.l.b16 %v1147
      %v1164 = vunpack.c.l.b16 %v1148
      %v1165 = vunpack.c.l.b16 %v1149
      %v1166 = vunpack.c.l.b16 %v1150
      %v1167 = vpack.c.b16 %v1164, %v1163
      %v1168 = vpack.c.b16 %v1166, %v1165
      %vm1171 = vcmask 261120
      %v1173 = vsel %vm1171, %v1152, 0
      %1175 = vmatprep.subr.bf16.mxu0 0
      %1176 = vmatpush1.bf16.msra.mxu0 %v1167
      %1177 = vmatprep.subr.bf16.mxu0 0
      %1178 = vmatpush1.bf16.msra.mxu0 %v1168
      %1179 = vmatprep.subr.bf16.mxu0 0
      %1180 = vmatpush1.bf16.msra.mxu0 0
      %1181 = vmatprep.subr.bf16.mxu0 0
      %1182 = vmatpush1.bf16.msra.mxu0 0
      %1183 = vmatprep.subr.bf16.mxu0 0
      %1184 = vmatpush1.bf16.msra.mxu0 0
      %1185 = vmatprep.subr.bf16.mxu0 0
      %1186 = vmatpush1.bf16.msra.mxu0 0
      %1187 = vmatprep.subr.bf16.mxu0 0
      %1188 = vmatpush1.bf16.msra.mxu0 0
      %1189 = vmatprep.subr.bf16.mxu0 0
      %1190 = vmatpush1.bf16.msra.mxu0 0
      %1191 = vmatprep.subr.bf16.mxu0 0
      %1192 = vmatpush1.bf16.msra.mxu0 0
      %1193 = vmatprep.subr.bf16.mxu0 0
      %1194 = vmatpush1.bf16.msra.mxu0 0
      %1195 = vmatprep.subr.bf16.mxu0 0
      %1196 = vmatpush1.bf16.msra.mxu0 0
      %1197 = vmatprep.subr.bf16.mxu0 0
      %1198 = vmatpush1.bf16.msra.mxu0 0
      %1199 = vmatprep.subr.bf16.mxu0 0
      %1200 = vmatpush1.bf16.msra.mxu0 0
      %1201 = vmatprep.subr.bf16.mxu0 0
      %1202 = vmatpush1.bf16.msra.mxu0 0
      %1203 = vmatprep.subr.bf16.mxu0 0
      %1204 = vmatpush1.bf16.msra.mxu0 0
      %1205 = vmatprep.subr.bf16.mxu0 0
      %1206 = vmatpush1.bf16.msra.mxu0 0
      %1207 = vmatprep.mubr.bf16.mxu0 0
      %1208 = vmatmul.mubr.bf16.gmra.mrb[0].mxu0 %v1173
      %v1209 = vpop.f32.mrb[0].mxu0
      %v1210 = vadd.f32 %v1157, %v1209
      %v1211 = vpop.f32.mrb[0].mxu0
      %v1212 = vpop.f32.mrb[0].mxu0
      %v1213 = vadd.f32 %v1157, %v1212
      %v1214 = vpop.f32.mrb[0].mxu0
      %1215 = vdwg.mxu0
      %v1216 = vld [vmem:[%s2] sm:$0xff]
      %v1217 = vld [vmem:[%s2 + $0x8] sm:$0xff]
      %v1218 = vpack.c.bf16 %v1213, %v1210
      %v1220 = vunpack.c.l.b16 %v1218
      %v1221 = vunpack.c.h.b16 %v1218
      %v1222 = vpack.c.b16 %v1220, %v1220
      %v1223 = vpack.c.b16 %v1221, %v1221
      %1224 = vrot.lane.b32.xlu0 %v1222, 96
      %v1225 = vpop.permute.xlu0 %1224
      %vm1226 = vcmask 64512
      %v1228 = vsel %vm1226, %v1222, 0
      %v1231 = vsel %vm1226, %v1225, 0
      %1233 = vmatprep.subr.bf16.mxu0 0
      %1234 = vmatpush1.bf16.xpose.msra.mxu0 %v1231
      %1235 = vmatprep.subr.bf16.mxu0 0
      %1236 = vmatpush1.bf16.xpose.msra.mxu0 0
      %1237 = vmatprep.subr.bf16.mxu0 0
      %1238 = vmatpush1.bf16.xpose.msra.mxu0 0
      %1239 = vmatprep.subr.bf16.mxu0 0
      %1240 = vmatpush1.bf16.xpose.msra.mxu0 0
      %1241 = vmatprep.subr.bf16.mxu0 0
      %1242 = vmatpush1.bf16.xpose.msra.mxu0 0
      %1243 = vmatprep.subr.bf16.mxu0 0
      %1244 = vmatpush1.bf16.xpose.msra.mxu0 0
      %1245 = vmatprep.subr.bf16.mxu0 0
      %1246 = vmatpush1.bf16.xpose.msra.mxu0 0
      %1247 = vmatprep.subr.bf16.mxu0 0
      %1248 = vmatpush1.bf16.xpose.msra.mxu0 0
      %1249 = vmatprep.subr.bf16.mxu0 0
      %1250 = vmatpush1.bf16.xpose.msra.mxu0 0
      %1251 = vmatprep.subr.bf16.mxu0 0
      %1252 = vmatpush1.bf16.xpose.msra.mxu0 0
      %1253 = vmatprep.subr.bf16.mxu0 0
      %1254 = vmatpush1.bf16.xpose.msra.mxu0 0
      %1255 = vmatprep.subr.bf16.mxu0 0
      %1256 = vmatpush1.bf16.xpose.msra.mxu0 0
      %1257 = vmatprep.subr.bf16.mxu0 0
      %1258 = vmatpush1.bf16.xpose.msra.mxu0 0
      %1259 = vmatprep.subr.bf16.mxu0 0
      %1260 = vmatpush1.bf16.xpose.msra.mxu0 0
      %1261 = vmatprep.subr.bf16.mxu0 0
      %1262 = vmatpush1.bf16.xpose.msra.mxu0 0
      %1263 = vmatprep.subr.bf16.mxu0 0
      %1264 = vmatpush1.bf16.xpose.msra.mxu0 0
      %1265 = vmatprep.mubr.bf16.mxu0 0
      %1266 = vmatmul.mubr.bf16.gmra.mrb[0].mxu0 %v1228
      %v1267 = vpop.f32.mrb[0].mxu0
      %v1268 = vadd.f32 %v1216, %v1267
      %v1269 = vpop.f32.mrb[0].mxu0
      %v1270 = vpop.f32.mrb[0].mxu0
      %v1271 = vpop.f32.mrb[0].mxu0
      %1272 = vdwg.mxu0
      %1273 = vrot.lane.b32.xlu0 %v1223, 96
      %v1274 = vpop.permute.xlu0 %1273
      %v1276 = vsel %vm1226, %v1223, 0
      %v1279 = vsel %vm1226, %v1274, 0
      %1281 = vmatprep.subr.bf16.mxu0 0
      %1282 = vmatpush1.bf16.xpose.msra.mxu0 %v1279
      %1283 = vmatprep.subr.bf16.mxu0 0
      %1284 = vmatpush1.bf16.xpose.msra.mxu0 0
      %1285 = vmatprep.subr.bf16.mxu0 0
      %1286 = vmatpush1.bf16.xpose.msra.mxu0 0
      %1287 = vmatprep.subr.bf16.mxu0 0
      %1288 = vmatpush1.bf16.xpose.msra.mxu0 0
      %1289 = vmatprep.subr.bf16.mxu0 0
      %1290 = vmatpush1.bf16.xpose.msra.mxu0 0
      %1291 = vmatprep.subr.bf16.mxu0 0
      %1292 = vmatpush1.bf16.xpose.msra.mxu0 0
      %1293 = vmatprep.subr.bf16.mxu0 0
      %1294 = vmatpush1.bf16.xpose.msra.mxu0 0
      %1295 = vmatprep.subr.bf16.mxu0 0
      %1296 = vmatpush1.bf16.xpose.msra.mxu0 0
      %1297 = vmatprep.subr.bf16.mxu0 0
      %1298 = vmatpush1.bf16.xpose.msra.mxu0 0
      %1299 = vmatprep.subr.bf16.mxu0 0
      %1300 = vmatpush1.bf16.xpose.msra.mxu0 0
      %1301 = vmatprep.subr.bf16.mxu0 0
      %1302 = vmatpush1.bf16.xpose.msra.mxu0 0
      %1303 = vmatprep.subr.bf16.mxu0 0
      %1304 = vmatpush1.bf16.xpose.msra.mxu0 0
      %1305 = vmatprep.subr.bf16.mxu0 0
      %1306 = vmatpush1.bf16.xpose.msra.mxu0 0
      %1307 = vmatprep.subr.bf16.mxu0 0
      %1308 = vmatpush1.bf16.xpose.msra.mxu0 0
      %1309 = vmatprep.subr.bf16.mxu0 0
      %1310 = vmatpush1.bf16.xpose.msra.mxu0 0
      %1311 = vmatprep.subr.bf16.mxu0 0
      %1312 = vmatpush1.bf16.xpose.msra.mxu0 0
      %1313 = vmatprep.mubr.bf16.mxu0 0
      %1314 = vmatmul.mubr.bf16.gmra.mrb[0].mxu0 %v1276
      %v1315 = vpop.f32.mrb[0].mxu0
      %v1316 = vadd.f32 %v1217, %v1315
      %v1317 = vpop.f32.mrb[0].mxu0
      %v1318 = vpop.f32.mrb[0].mxu0
      %v1319 = vpop.f32.mrb[0].mxu0
      %1320 = vdwg.mxu0
      %v1321 = vsel %vm1226, %v1268, -inf
      %1322 = vmax.xlane.f32.xlu0 %v1321
      %v1323 = vpop.xlane.xlu0 %1322
      %v1324 = vsel %vm1226, %v1316, -inf
      %1325 = vmax.xlane.f32.xlu0 %v1324
      %v1326 = vpop.xlane.xlu0 %1325
      %v1327 = vsub.f32 %v1268, %v1323
      %v1328 = vsub.f32 %v1316, %v1326
      %v1329 = vmul.f32 %v1327, 1.442695
      %v1330 = vpow.pop %v1329
      %v1331 = vmul.f32 %v1328, 1.442695
      %v1332 = vpow.pop %v1331
      %v1333 = vsel %vm1226, %v1330, 0.0
      %1334 = vadd.xlane.f32.xlu0 %v1333
      %v1335 = vpop.xlane.xlu0 %1334
      %v1336 = vsel %vm1226, %v1332, 0.0
      %1337 = vadd.xlane.f32.xlu0 %v1336
      %v1338 = vpop.xlane.xlu0 %1337
      %v1339 = vrcp.pop %v1335
      %v1340 = vrcp.pop %v1338
      %v1341 = vmul.f32 %v1330, %v1339
      %v1342 = vmul.f32 %v1332, %v1340
      %v1343 = vpack.c.bf16 %v1341, %v1341
      %v1344 = vpack.c.bf16 %v1342, %v1342
      %1345 = vrot.lane.b32.xlu0 %v1222, 64
      %v1346 = vpop.permute.xlu0 %1345
      %v1348 = vsel %vm1226, %v1343, 0
      %vm1350 = vcmask 1043456
      %v1352 = vsel %vm1350, %v1346, 0
      %1354 = vmatprep.subr.bf16.mxu0 0
      %1355 = vmatpush1.bf16.msra.mxu0 %v1352
      %1356 = vmatprep.subr.bf16.mxu0 0
      %1357 = vmatpush1.bf16.msra.mxu0 0
      %1358 = vmatprep.subr.bf16.mxu0 0
      %1359 = vmatpush1.bf16.msra.mxu0 0
      %1360 = vmatprep.subr.bf16.mxu0 0
      %1361 = vmatpush1.bf16.msra.mxu0 0
      %1362 = vmatprep.subr.bf16.mxu0 0
      %1363 = vmatpush1.bf16.msra.mxu0 0
      %1364 = vmatprep.subr.bf16.mxu0 0
      %1365 = vmatpush1.bf16.msra.mxu0 0
      %1366 = vmatprep.subr.bf16.mxu0 0
      %1367 = vmatpush1.bf16.msra.mxu0 0
      %1368 = vmatprep.subr.bf16.mxu0 0
      %1369 = vmatpush1.bf16.msra.mxu0 0
      %1370 = vmatprep.subr.bf16.mxu0 0
      %1371 = vmatpush1.bf16.msra.mxu0 0
      %1372 = vmatprep.subr.bf16.mxu0 0
      %1373 = vmatpush1.bf16.msra.mxu0 0
      %1374 = vmatprep.subr.bf16.mxu0 0
      %1375 = vmatpush1.bf16.msra.mxu0 0
      %1376 = vmatprep.subr.bf16.mxu0 0
      %1377 = vmatpush1.bf16.msra.mxu0 0
      %1378 = vmatprep.subr.bf16.mxu0 0
      %1379 = vmatpush1.bf16.msra.mxu0 0
      %1380 = vmatprep.subr.bf16.mxu0 0
      %1381 = vmatpush1.bf16.msra.mxu0 0
      %1382 = vmatprep.subr.bf16.mxu0 0
      %1383 = vmatpush1.bf16.msra.mxu0 0
      %1384 = vmatprep.subr.bf16.mxu0 0
      %1385 = vmatpush1.bf16.msra.mxu0 0
      %1386 = vmatprep.mubr.bf16.mxu0 0
      %1387 = vmatmul.mubr.bf16.gmra.mrb[0].mxu0 %v1348
      %v1388 = vpop.f32.mrb[0].mxu0
      %v1389 = vadd.f32 0.0, %v1388
      %v1390 = vpop.f32.mrb[0].mxu0
      %v1391 = vpop.f32.mrb[0].mxu0
      %v1392 = vpop.f32.mrb[0].mxu0
      %1393 = vdwg.mxu0
      %1394 = vrot.lane.b32.xlu0 %v1223, 64
      %v1395 = vpop.permute.xlu0 %1394
      %v1397 = vsel %vm1226, %v1344, 0
      %v1400 = vsel %vm1350, %v1395, 0
      %1402 = vmatprep.subr.bf16.mxu0 0
      %1403 = vmatpush1.bf16.msra.mxu0 %v1400
      %1404 = vmatprep.subr.bf16.mxu0 0
      %1405 = vmatpush1.bf16.msra.mxu0 0
      %1406 = vmatprep.subr.bf16.mxu0 0
      %1407 = vmatpush1.bf16.msra.mxu0 0
      %1408 = vmatprep.subr.bf16.mxu0 0
      %1409 = vmatpush1.bf16.msra.mxu0 0
      %1410 = vmatprep.subr.bf16.mxu0 0
      %1411 = vmatpush1.bf16.msra.mxu0 0
      %1412 = vmatprep.subr.bf16.mxu0 0
      %1413 = vmatpush1.bf16.msra.mxu0 0
      %1414 = vmatprep.subr.bf16.mxu0 0
      %1415 = vmatpush1.bf16.msra.mxu0 0
      %1416 = vmatprep.subr.bf16.mxu0 0
      %1417 = vmatpush1.bf16.msra.mxu0 0
      %1418 = vmatprep.subr.bf16.mxu0 0
      %1419 = vmatpush1.bf16.msra.mxu0 0
      %1420 = vmatprep.subr.bf16.mxu0 0
      %1421 = vmatpush1.bf16.msra.mxu0 0
      %1422 = vmatprep.subr.bf16.mxu0 0
      %1423 = vmatpush1.bf16.msra.mxu0 0
      %1424 = vmatprep.subr.bf16.mxu0 0
      %1425 = vmatpush1.bf16.msra.mxu0 0
      %1426 = vmatprep.subr.bf16.mxu0 0
      %1427 = vmatpush1.bf16.msra.mxu0 0
      %1428 = vmatprep.subr.bf16.mxu0 0
      %1429 = vmatpush1.bf16.msra.mxu0 0
      %1430 = vmatprep.subr.bf16.mxu0 0
      %1431 = vmatpush1.bf16.msra.mxu0 0
      %1432 = vmatprep.subr.bf16.mxu0 0
      %1433 = vmatpush1.bf16.msra.mxu0 0
      %1434 = vmatprep.mubr.bf16.mxu0 0
      %1435 = vmatmul.mubr.bf16.gmra.mrb[0].mxu0 %v1397
      %v1436 = vpop.f32.mrb[0].mxu0
      %v1437 = vadd.f32 0.0, %v1436
      %v1438 = vpop.f32.mrb[0].mxu0
      %v1439 = vpop.f32.mrb[0].mxu0
      %v1440 = vpop.f32.mrb[0].mxu0
      %1441 = vdwg.mxu0
      %1442 = vrot.lane.b32.xlu0 %v1222, 120
      %v1443 = vpop.permute.xlu0 %1442
      %1444 = vrot.lane.b32.xlu0 %v1222, 88
      %v1445 = vpop.permute.xlu0 %1444
      %v1447 = vsel %vm1226, %v1443, 0
      %v1450 = vsel %vm1226, %v1445, 0
      %1452 = vmatprep.subr.bf16.mxu0 0
      %1453 = vmatpush1.bf16.xpose.msra.mxu0 %v1450
      %1454 = vmatprep.subr.bf16.mxu0 0
      %1455 = vmatpush1.bf16.xpose.msra.mxu0 0
      %1456 = vmatprep.subr.bf16.mxu0 0
      %1457 = vmatpush1.bf16.xpose.msra.mxu0 0
      %1458 = vmatprep.subr.bf16.mxu0 0
      %1459 = vmatpush1.bf16.xpose.msra.mxu0 0
      %1460 = vmatprep.subr.bf16.mxu0 0
      %1461 = vmatpush1.bf16.xpose.msra.mxu0 0
      %1462 = vmatprep.subr.bf16.mxu0 0
      %1463 = vmatpush1.bf16.xpose.msra.mxu0 0
      %1464 = vmatprep.subr.bf16.mxu0 0
      %1465 = vmatpush1.bf16.xpose.msra.mxu0 0
      %1466 = vmatprep.subr.bf16.mxu0 0
      %1467 = vmatpush1.bf16.xpose.msra.mxu0 0
      %1468 = vmatprep.subr.bf16.mxu0 0
      %1469 = vmatpush1.bf16.xpose.msra.mxu0 0
      %1470 = vmatprep.subr.bf16.mxu0 0
      %1471 = vmatpush1.bf16.xpose.msra.mxu0 0
      %1472 = vmatprep.subr.bf16.mxu0 0
      %1473 = vmatpush1.bf16.xpose.msra.mxu0 0
      %1474 = vmatprep.subr.bf16.mxu0 0
      %1475 = vmatpush1.bf16.xpose.msra.mxu0 0
      %1476 = vmatprep.subr.bf16.mxu0 0
      %1477 = vmatpush1.bf16.xpose.msra.mxu0 0
      %1478 = vmatprep.subr.bf16.mxu0 0
      %1479 = vmatpush1.bf16.xpose.msra.mxu0 0
      %1480 = vmatprep.subr.bf16.mxu0 0
      %1481 = vmatpush1.bf16.xpose.msra.mxu0 0
      %1482 = vmatprep.subr.bf16.mxu0 0
      %1483 = vmatpush1.bf16.xpose.msra.mxu0 0
      %1484 = vmatprep.mubr.bf16.mxu0 0
      %1485 = vmatmul.mubr.bf16.gmra.mrb[0].mxu0 %v1447
      %v1486 = vpop.f32.mrb[0].mxu0
      %v1487 = vadd.f32 %v1216, %v1486
      %v1488 = vpop.f32.mrb[0].mxu0
      %v1489 = vpop.f32.mrb[0].mxu0
      %v1490 = vpop.f32.mrb[0].mxu0
      %1491 = vdwg.mxu0
      %1492 = vrot.lane.b32.xlu0 %v1223, 120
      %v1493 = vpop.permute.xlu0 %1492
      %1494 = vrot.lane.b32.xlu0 %v1223, 88
      %v1495 = vpop.permute.xlu0 %1494
      %v1497 = vsel %vm1226, %v1493, 0
      %v1500 = vsel %vm1226, %v1495, 0
      %1502 = vmatprep.subr.bf16.mxu0 0
      %1503 = vmatpush1.bf16.xpose.msra.mxu0 %v1500
      %1504 = vmatprep.subr.bf16.mxu0 0
      %1505 = vmatpush1.bf16.xpose.msra.mxu0 0
      %1506 = vmatprep.subr.bf16.mxu0 0
      %1507 = vmatpush1.bf16.xpose.msra.mxu0 0
      %1508 = vmatprep.subr.bf16.mxu0 0
      %1509 = vmatpush1.bf16.xpose.msra.mxu0 0
      %1510 = vmatprep.subr.bf16.mxu0 0
      %1511 = vmatpush1.bf16.xpose.msra.mxu0 0
      %1512 = vmatprep.subr.bf16.mxu0 0
      %1513 = vmatpush1.bf16.xpose.msra.mxu0 0
      %1514 = vmatprep.subr.bf16.mxu0 0
      %1515 = vmatpush1.bf16.xpose.msra.mxu0 0
      %1516 = vmatprep.subr.bf16.mxu0 0
      %1517 = vmatpush1.bf16.xpose.msra.mxu0 0
      %1518 = vmatprep.subr.bf16.mxu0 0
      %1519 = vmatpush1.bf16.xpose.msra.mxu0 0
      %1520 = vmatprep.subr.bf16.mxu0 0
      %1521 = vmatpush1.bf16.xpose.msra.mxu0 0
      %1522 = vmatprep.subr.bf16.mxu0 0
      %1523 = vmatpush1.bf16.xpose.msra.mxu0 0
      %1524 = vmatprep.subr.bf16.mxu0 0
      %1525 = vmatpush1.bf16.xpose.msra.mxu0 0
      %1526 = vmatprep.subr.bf16.mxu0 0
      %1527 = vmatpush1.bf16.xpose.msra.mxu0 0
      %1528 = vmatprep.subr.bf16.mxu0 0
      %1529 = vmatpush1.bf16.xpose.msra.mxu0 0
      %1530 = vmatprep.subr.bf16.mxu0 0
      %1531 = vmatpush1.bf16.xpose.msra.mxu0 0
      %1532 = vmatprep.subr.bf16.mxu0 0
      %1533 = vmatpush1.bf16.xpose.msra.mxu0 0
      %1534 = vmatprep.mubr.bf16.mxu0 0
      %1535 = vmatmul.mubr.bf16.gmra.mrb[0].mxu0 %v1497
      %v1536 = vpop.f32.mrb[0].mxu0
      %v1537 = vadd.f32 %v1217, %v1536
      %v1538 = vpop.f32.mrb[0].mxu0
      %v1539 = vpop.f32.mrb[0].mxu0
      %v1540 = vpop.f32.mrb[0].mxu0
      %1541 = vdwg.mxu0
      %v1542 = vsel %vm1226, %v1487, -inf
      %1543 = vmax.xlane.f32.xlu0 %v1542
      %v1544 = vpop.xlane.xlu0 %1543
      %v1545 = vsel %vm1226, %v1537, -inf
      %1546 = vmax.xlane.f32.xlu0 %v1545
      %v1547 = vpop.xlane.xlu0 %1546
      %v1548 = vsub.f32 %v1487, %v1544
      %v1549 = vsub.f32 %v1537, %v1547
      %v1550 = vmul.f32 %v1548, 1.442695
      %v1551 = vpow.pop %v1550
      %v1552 = vmul.f32 %v1549, 1.442695
      %v1553 = vpow.pop %v1552
      %v1554 = vsel %vm1226, %v1551, 0.0
      %1555 = vadd.xlane.f32.xlu0 %v1554
      %v1556 = vpop.xlane.xlu0 %1555
      %v1557 = vsel %vm1226, %v1553, 0.0
      %1558 = vadd.xlane.f32.xlu0 %v1557
      %v1559 = vpop.xlane.xlu0 %1558
      %v1560 = vrcp.pop %v1556
      %v1561 = vrcp.pop %v1559
      %v1562 = vmul.f32 %v1551, %v1560
      %v1563 = vmul.f32 %v1553, %v1561
      %v1564 = vpack.c.bf16 %v1562, %v1562
      %v1565 = vpack.c.bf16 %v1563, %v1563
      %1566 = vrot.lane.b32.xlu0 %v1222, 56
      %v1567 = vpop.permute.xlu0 %1566
      %v1569 = vsel %vm1226, %v1564, 0
      %v1572 = vsel %vm1350, %v1567, 0
      %1574 = vmatprep.subr.bf16.mxu0 0
      %1575 = vmatpush1.bf16.msra.mxu0 %v1572
      %1576 = vmatprep.subr.bf16.mxu0 0
      %1577 = vmatpush1.bf16.msra.mxu0 0
      %1578 = vmatprep.subr.bf16.mxu0 0
      %1579 = vmatpush1.bf16.msra.mxu0 0
      %1580 = vmatprep.subr.bf16.mxu0 0
      %1581 = vmatpush1.bf16.msra.mxu0 0
      %1582 = vmatprep.subr.bf16.mxu0 0
      %1583 = vmatpush1.bf16.msra.mxu0 0
      %1584 = vmatprep.subr.bf16.mxu0 0
      %1585 = vmatpush1.bf16.msra.mxu0 0
      %1586 = vmatprep.subr.bf16.mxu0 0
      %1587 = vmatpush1.bf16.msra.mxu0 0
      %1588 = vmatprep.subr.bf16.mxu0 0
      %1589 = vmatpush1.bf16.msra.mxu0 0
      %1590 = vmatprep.subr.bf16.mxu0 0
      %1591 = vmatpush1.bf16.msra.mxu0 0
      %1592 = vmatprep.subr.bf16.mxu0 0
      %1593 = vmatpush1.bf16.msra.mxu0 0
      %1594 = vmatprep.subr.bf16.mxu0 0
      %1595 = vmatpush1.bf16.msra.mxu0 0
      %1596 = vmatprep.subr.bf16.mxu0 0
      %1597 = vmatpush1.bf16.msra.mxu0 0
      %1598 = vmatprep.subr.bf16.mxu0 0
      %1599 = vmatpush1.bf16.msra.mxu0 0
      %1600 = vmatprep.subr.bf16.mxu0 0
      %1601 = vmatpush1.bf16.msra.mxu0 0
      %1602 = vmatprep.subr.bf16.mxu0 0
      %1603 = vmatpush1.bf16.msra.mxu0 0
      %1604 = vmatprep.subr.bf16.mxu0 0
      %1605 = vmatpush1.bf16.msra.mxu0 0
      %1606 = vmatprep.mubr.bf16.mxu0 0
      %1607 = vmatmul.mubr.bf16.gmra.mrb[0].mxu0 %v1569
      %v1608 = vpop.f32.mrb[0].mxu0
      %v1609 = vadd.f32 0.0, %v1608
      %v1610 = vpop.f32.mrb[0].mxu0
      %v1611 = vpop.f32.mrb[0].mxu0
      %v1612 = vpop.f32.mrb[0].mxu0
      %1613 = vdwg.mxu0
      %1614 = vrot.lane.b32.xlu0 %v1223, 56
      %v1615 = vpop.permute.xlu0 %1614
      %v1617 = vsel %vm1226, %v1565, 0
      %v1620 = vsel %vm1350, %v1615, 0
      %1622 = vmatprep.subr.bf16.mxu0 0
      %1623 = vmatpush1.bf16.msra.mxu0 %v1620
      %1624 = vmatprep.subr.bf16.mxu0 0
      %1625 = vmatpush1.bf16.msra.mxu0 0
      %1626 = vmatprep.subr.bf16.mxu0 0
      %1627 = vmatpush1.bf16.msra.mxu0 0
      %1628 = vmatprep.subr.bf16.mxu0 0
      %1629 = vmatpush1.bf16.msra.mxu0 0
      %1630 = vmatprep.subr.bf16.mxu0 0
      %1631 = vmatpush1.bf16.msra.mxu0 0
      %1632 = vmatprep.subr.bf16.mxu0 0
      %1633 = vmatpush1.bf16.msra.mxu0 0
      %1634 = vmatprep.subr.bf16.mxu0 0
      %1635 = vmatpush1.bf16.msra.mxu0 0
      %1636 = vmatprep.subr.bf16.mxu0 0
      %1637 = vmatpush1.bf16.msra.mxu0 0
      %1638 = vmatprep.subr.bf16.mxu0 0
      %1639 = vmatpush1.bf16.msra.mxu0 0
      %1640 = vmatprep.subr.bf16.mxu0 0
      %1641 = vmatpush1.bf16.msra.mxu0 0
      %1642 = vmatprep.subr.bf16.mxu0 0
      %1643 = vmatpush1.bf16.msra.mxu0 0
      %1644 = vmatprep.subr.bf16.mxu0 0
      %1645 = vmatpush1.bf16.msra.mxu0 0
      %1646 = vmatprep.subr.bf16.mxu0 0
      %1647 = vmatpush1.bf16.msra.mxu0 0
      %1648 = vmatprep.subr.bf16.mxu0 0
      %1649 = vmatpush1.bf16.msra.mxu0 0
      %1650 = vmatprep.subr.bf16.mxu0 0
      %1651 = vmatpush1.bf16.msra.mxu0 0
      %1652 = vmatprep.subr.bf16.mxu0 0
      %1653 = vmatpush1.bf16.msra.mxu0 0
      %1654 = vmatprep.mubr.bf16.mxu0 0
      %1655 = vmatmul.mubr.bf16.gmra.mrb[0].mxu0 %v1617
      %v1656 = vpop.f32.mrb[0].mxu0
      %v1657 = vadd.f32 0.0, %v1656
      %v1658 = vpop.f32.mrb[0].mxu0
      %v1659 = vpop.f32.mrb[0].mxu0
      %v1660 = vpop.f32.mrb[0].mxu0
      %1661 = vdwg.mxu0
      %1662 = vrot.lane.b32.xlu0 %v1222, 112
      %v1663 = vpop.permute.xlu0 %1662
      %1664 = vrot.lane.b32.xlu0 %v1222, 80
      %v1665 = vpop.permute.xlu0 %1664
      %v1667 = vsel %vm1226, %v1663, 0
      %v1670 = vsel %vm1226, %v1665, 0
      %1672 = vmatprep.subr.bf16.mxu0 0
      %1673 = vmatpush1.bf16.xpose.msra.mxu0 %v1670
      %1674 = vmatprep.subr.bf16.mxu0 0
      %1675 = vmatpush1.bf16.xpose.msra.mxu0 0
      %1676 = vmatprep.subr.bf16.mxu0 0
      %1677 = vmatpush1.bf16.xpose.msra.mxu0 0
      %1678 = vmatprep.subr.bf16.mxu0 0
      %1679 = vmatpush1.bf16.xpose.msra.mxu0 0
      %1680 = vmatprep.subr.bf16.mxu0 0
      %1681 = vmatpush1.bf16.xpose.msra.mxu0 0
      %1682 = vmatprep.subr.bf16.mxu0 0
      %1683 = vmatpush1.bf16.xpose.msra.mxu0 0
      %1684 = vmatprep.subr.bf16.mxu0 0
      %1685 = vmatpush1.bf16.xpose.msra.mxu0 0
      %1686 = vmatprep.subr.bf16.mxu0 0
      %1687 = vmatpush1.bf16.xpose.msra.mxu0 0
      %1688 = vmatprep.subr.bf16.mxu0 0
      %1689 = vmatpush1.bf16.xpose.msra.mxu0 0
      %1690 = vmatprep.subr.bf16.mxu0 0
      %1691 = vmatpush1.bf16.xpose.msra.mxu0 0
      %1692 = vmatprep.subr.bf16.mxu0 0
      %1693 = vmatpush1.bf16.xpose.msra.mxu0 0
      %1694 = vmatprep.subr.bf16.mxu0 0
      %1695 = vmatpush1.bf16.xpose.msra.mxu0 0
      %1696 = vmatprep.subr.bf16.mxu0 0
      %1697 = vmatpush1.bf16.xpose.msra.mxu0 0
      %1698 = vmatprep.subr.bf16.mxu0 0
      %1699 = vmatpush1.bf16.xpose.msra.mxu0 0
      %1700 = vmatprep.subr.bf16.mxu0 0
      %1701 = vmatpush1.bf16.xpose.msra.mxu0 0
      %1702 = vmatprep.subr.bf16.mxu0 0
      %1703 = vmatpush1.bf16.xpose.msra.mxu0 0
      %1704 = vmatprep.mubr.bf16.mxu0 0
      %1705 = vmatmul.mubr.bf16.gmra.mrb[0].mxu0 %v1667
      %v1706 = vpop.f32.mrb[0].mxu0
      %v1707 = vadd.f32 %v1216, %v1706
      %v1708 = vpop.f32.mrb[0].mxu0
      %v1709 = vpop.f32.mrb[0].mxu0
      %v1710 = vpop.f32.mrb[0].mxu0
      %1711 = vdwg.mxu0
      %1712 = vrot.lane.b32.xlu0 %v1223, 112
      %v1713 = vpop.permute.xlu0 %1712
      %1714 = vrot.lane.b32.xlu0 %v1223, 80
      %v1715 = vpop.permute.xlu0 %1714
      %v1717 = vsel %vm1226, %v1713, 0
      %v1720 = vsel %vm1226, %v1715, 0
      %1722 = vmatprep.subr.bf16.mxu0 0
      %1723 = vmatpush1.bf16.xpose.msra.mxu0 %v1720
      %1724 = vmatprep.subr.bf16.mxu0 0
      %1725 = vmatpush1.bf16.xpose.msra.mxu0 0
      %1726 = vmatprep.subr.bf16.mxu0 0
      %1727 = vmatpush1.bf16.xpose.msra.mxu0 0
      %1728 = vmatprep.subr.bf16.mxu0 0
      %1729 = vmatpush1.bf16.xpose.msra.mxu0 0
      %1730 = vmatprep.subr.bf16.mxu0 0
      %1731 = vmatpush1.bf16.xpose.msra.mxu0 0
      %1732 = vmatprep.subr.bf16.mxu0 0
      %1733 = vmatpush1.bf16.xpose.msra.mxu0 0
      %1734 = vmatprep.subr.bf16.mxu0 0
      %1735 = vmatpush1.bf16.xpose.msra.mxu0 0
      %1736 = vmatprep.subr.bf16.mxu0 0
      %1737 = vmatpush1.bf16.xpose.msra.mxu0 0
      %1738 = vmatprep.subr.bf16.mxu0 0
      %1739 = vmatpush1.bf16.xpose.msra.mxu0 0
      %1740 = vmatprep.subr.bf16.mxu0 0
      %1741 = vmatpush1.bf16.xpose.msra.mxu0 0
      %1742 = vmatprep.subr.bf16.mxu0 0
      %1743 = vmatpush1.bf16.xpose.msra.mxu0 0
      %1744 = vmatprep.subr.bf16.mxu0 0
      %1745 = vmatpush1.bf16.xpose.msra.mxu0 0
      %1746 = vmatprep.subr.bf16.mxu0 0
      %1747 = vmatpush1.bf16.xpose.msra.mxu0 0
      %1748 = vmatprep.subr.bf16.mxu0 0
      %1749 = vmatpush1.bf16.xpose.msra.mxu0 0
      %1750 = vmatprep.subr.bf16.mxu0 0
      %1751 = vmatpush1.bf16.xpose.msra.mxu0 0
      %1752 = vmatprep.subr.bf16.mxu0 0
      %1753 = vmatpush1.bf16.xpose.msra.mxu0 0
      %1754 = vmatprep.mubr.bf16.mxu0 0
      %1755 = vmatmul.mubr.bf16.gmra.mrb[0].mxu0 %v1717
      %v1756 = vpop.f32.mrb[0].mxu0
      %v1757 = vadd.f32 %v1217, %v1756
      %v1758 = vpop.f32.mrb[0].mxu0
      %v1759 = vpop.f32.mrb[0].mxu0
      %v1760 = vpop.f32.mrb[0].mxu0
      %1761 = vdwg.mxu0
      %v1762 = vsel %vm1226, %v1707, -inf
      %1763 = vmax.xlane.f32.xlu0 %v1762
      %v1764 = vpop.xlane.xlu0 %1763
      %v1765 = vsel %vm1226, %v1757, -inf
      %1766 = vmax.xlane.f32.xlu0 %v1765
      %v1767 = vpop.xlane.xlu0 %1766
      %v1768 = vsub.f32 %v1707, %v1764
      %v1769 = vsub.f32 %v1757, %v1767
      %v1770 = vmul.f32 %v1768, 1.442695
      %v1771 = vpow.pop %v1770
      %v1772 = vmul.f32 %v1769, 1.442695
      %v1773 = vpow.pop %v1772
      %v1774 = vsel %vm1226, %v1771, 0.0
      %1775 = vadd.xlane.f32.xlu0 %v1774
      %v1776 = vpop.xlane.xlu0 %1775
      %v1777 = vsel %vm1226, %v1773, 0.0
      %1778 = vadd.xlane.f32.xlu0 %v1777
      %v1779 = vpop.xlane.xlu0 %1778
      %v1780 = vrcp.pop %v1776
      %v1781 = vrcp.pop %v1779
      %v1782 = vmul.f32 %v1771, %v1780
      %v1783 = vmul.f32 %v1773, %v1781
      %v1784 = vpack.c.bf16 %v1782, %v1782
      %v1785 = vpack.c.bf16 %v1783, %v1783
      %1786 = vrot.lane.b32.xlu0 %v1222, 48
      %v1787 = vpop.permute.xlu0 %1786
      %v1789 = vsel %vm1226, %v1784, 0
      %v1792 = vsel %vm1350, %v1787, 0
      %1794 = vmatprep.subr.bf16.mxu0 0
      %1795 = vmatpush1.bf16.msra.mxu0 %v1792
      %1796 = vmatprep.subr.bf16.mxu0 0
      %1797 = vmatpush1.bf16.msra.mxu0 0
      %1798 = vmatprep.subr.bf16.mxu0 0
      %1799 = vmatpush1.bf16.msra.mxu0 0
      %1800 = vmatprep.subr.bf16.mxu0 0
      %1801 = vmatpush1.bf16.msra.mxu0 0
      %1802 = vmatprep.subr.bf16.mxu0 0
      %1803 = vmatpush1.bf16.msra.mxu0 0
      %1804 = vmatprep.subr.bf16.mxu0 0
      %1805 = vmatpush1.bf16.msra.mxu0 0
      %1806 = vmatprep.subr.bf16.mxu0 0
      %1807 = vmatpush1.bf16.msra.mxu0 0
      %1808 = vmatprep.subr.bf16.mxu0 0
      %1809 = vmatpush1.bf16.msra.mxu0 0
      %1810 = vmatprep.subr.bf16.mxu0 0
      %1811 = vmatpush1.bf16.msra.mxu0 0
      %1812 = vmatprep.subr.bf16.mxu0 0
      %1813 = vmatpush1.bf16.msra.mxu0 0
      %1814 = vmatprep.subr.bf16.mxu0 0
      %1815 = vmatpush1.bf16.msra.mxu0 0
      %1816 = vmatprep.subr.bf16.mxu0 0
      %1817 = vmatpush1.bf16.msra.mxu0 0
      %1818 = vmatprep.subr.bf16.mxu0 0
      %1819 = vmatpush1.bf16.msra.mxu0 0
      %1820 = vmatprep.subr.bf16.mxu0 0
      %1821 = vmatpush1.bf16.msra.mxu0 0
      %1822 = vmatprep.subr.bf16.mxu0 0
      %1823 = vmatpush1.bf16.msra.mxu0 0
      %1824 = vmatprep.subr.bf16.mxu0 0
      %1825 = vmatpush1.bf16.msra.mxu0 0
      %1826 = vmatprep.mubr.bf16.mxu0 0
      %1827 = vmatmul.mubr.bf16.gmra.mrb[0].mxu0 %v1789
      %v1828 = vpop.f32.mrb[0].mxu0
      %v1829 = vadd.f32 0.0, %v1828
      %v1830 = vpop.f32.mrb[0].mxu0
      %v1831 = vpop.f32.mrb[0].mxu0
      %v1832 = vpop.f32.mrb[0].mxu0
      %1833 = vdwg.mxu0
      %1834 = vrot.lane.b32.xlu0 %v1223, 48
      %v1835 = vpop.permute.xlu0 %1834
      %v1837 = vsel %vm1226, %v1785, 0
      %v1840 = vsel %vm1350, %v1835, 0
      %1842 = vmatprep.subr.bf16.mxu0 0
      %1843 = vmatpush1.bf16.msra.mxu0 %v1840
      %1844 = vmatprep.subr.bf16.mxu0 0
      %1845 = vmatpush1.bf16.msra.mxu0 0
      %1846 = vmatprep.subr.bf16.mxu0 0
      %1847 = vmatpush1.bf16.msra.mxu0 0
      %1848 = vmatprep.subr.bf16.mxu0 0
      %1849 = vmatpush1.bf16.msra.mxu0 0
      %1850 = vmatprep.subr.bf16.mxu0 0
      %1851 = vmatpush1.bf16.msra.mxu0 0
      %1852 = vmatprep.subr.bf16.mxu0 0
      %1853 = vmatpush1.bf16.msra.mxu0 0
      %1854 = vmatprep.subr.bf16.mxu0 0
      %1855 = vmatpush1.bf16.msra.mxu0 0
      %1856 = vmatprep.subr.bf16.mxu0 0
      %1857 = vmatpush1.bf16.msra.mxu0 0
      %1858 = vmatprep.subr.bf16.mxu0 0
      %1859 = vmatpush1.bf16.msra.mxu0 0
      %1860 = vmatprep.subr.bf16.mxu0 0
      %1861 = vmatpush1.bf16.msra.mxu0 0
      %1862 = vmatprep.subr.bf16.mxu0 0
      %1863 = vmatpush1.bf16.msra.mxu0 0
      %1864 = vmatprep.subr.bf16.mxu0 0
      %1865 = vmatpush1.bf16.msra.mxu0 0
      %1866 = vmatprep.subr.bf16.mxu0 0
      %1867 = vmatpush1.bf16.msra.mxu0 0
      %1868 = vmatprep.subr.bf16.mxu0 0
      %1869 = vmatpush1.bf16.msra.mxu0 0
      %1870 = vmatprep.subr.bf16.mxu0 0
      %1871 = vmatpush1.bf16.msra.mxu0 0
      %1872 = vmatprep.subr.bf16.mxu0 0
      %1873 = vmatpush1.bf16.msra.mxu0 0
      %1874 = vmatprep.mubr.bf16.mxu0 0
      %1875 = vmatmul.mubr.bf16.gmra.mrb[0].mxu0 %v1837
      %v1876 = vpop.f32.mrb[0].mxu0
      %v1877 = vadd.f32 0.0, %v1876
      %v1878 = vpop.f32.mrb[0].mxu0
      %v1879 = vpop.f32.mrb[0].mxu0
      %v1880 = vpop.f32.mrb[0].mxu0
      %1881 = vdwg.mxu0
      %1882 = vrot.lane.b32.xlu0 %v1222, 104
      %v1883 = vpop.permute.xlu0 %1882
      %1884 = vrot.lane.b32.xlu0 %v1222, 72
      %v1885 = vpop.permute.xlu0 %1884
      %v1887 = vsel %vm1226, %v1883, 0
      %v1890 = vsel %vm1226, %v1885, 0
      %1892 = vmatprep.subr.bf16.mxu0 0
      %1893 = vmatpush1.bf16.xpose.msra.mxu0 %v1890
      %1894 = vmatprep.subr.bf16.mxu0 0
      %1895 = vmatpush1.bf16.xpose.msra.mxu0 0
      %1896 = vmatprep.subr.bf16.mxu0 0
      %1897 = vmatpush1.bf16.xpose.msra.mxu0 0
      %1898 = vmatprep.subr.bf16.mxu0 0
      %1899 = vmatpush1.bf16.xpose.msra.mxu0 0
      %1900 = vmatprep.subr.bf16.mxu0 0
      %1901 = vmatpush1.bf16.xpose.msra.mxu0 0
      %1902 = vmatprep.subr.bf16.mxu0 0
      %1903 = vmatpush1.bf16.xpose.msra.mxu0 0
      %1904 = vmatprep.subr.bf16.mxu0 0
      %1905 = vmatpush1.bf16.xpose.msra.mxu0 0
      %1906 = vmatprep.subr.bf16.mxu0 0
      %1907 = vmatpush1.bf16.xpose.msra.mxu0 0
      %1908 = vmatprep.subr.bf16.mxu0 0
      %1909 = vmatpush1.bf16.xpose.msra.mxu0 0
      %1910 = vmatprep.subr.bf16.mxu0 0
      %1911 = vmatpush1.bf16.xpose.msra.mxu0 0
      %1912 = vmatprep.subr.bf16.mxu0 0
      %1913 = vmatpush1.bf16.xpose.msra.mxu0 0
      %1914 = vmatprep.subr.bf16.mxu0 0
      %1915 = vmatpush1.bf16.xpose.msra.mxu0 0
      %1916 = vmatprep.subr.bf16.mxu0 0
      %1917 = vmatpush1.bf16.xpose.msra.mxu0 0
      %1918 = vmatprep.subr.bf16.mxu0 0
      %1919 = vmatpush1.bf16.xpose.msra.mxu0 0
      %1920 = vmatprep.subr.bf16.mxu0 0
      %1921 = vmatpush1.bf16.xpose.msra.mxu0 0
      %1922 = vmatprep.subr.bf16.mxu0 0
      %1923 = vmatpush1.bf16.xpose.msra.mxu0 0
      %1924 = vmatprep.mubr.bf16.mxu0 0
      %1925 = vmatmul.mubr.bf16.gmra.mrb[0].mxu0 %v1887
      %v1926 = vpop.f32.mrb[0].mxu0
      %v1927 = vadd.f32 %v1216, %v1926
      %v1928 = vpop.f32.mrb[0].mxu0
      %v1929 = vpop.f32.mrb[0].mxu0
      %v1930 = vpop.f32.mrb[0].mxu0
      %1931 = vdwg.mxu0
      %1932 = vrot.lane.b32.xlu0 %v1223, 104
      %v1933 = vpop.permute.xlu0 %1932
      %1934 = vrot.lane.b32.xlu0 %v1223, 72
      %v1935 = vpop.permute.xlu0 %1934
      %v1937 = vsel %vm1226, %v1933, 0
      %v1940 = vsel %vm1226, %v1935, 0
      %1942 = vmatprep.subr.bf16.mxu0 0
      %1943 = vmatpush1.bf16.xpose.msra.mxu0 %v1940
      %1944 = vmatprep.subr.bf16.mxu0 0
      %1945 = vmatpush1.bf16.xpose.msra.mxu0 0
      %1946 = vmatprep.subr.bf16.mxu0 0
      %1947 = vmatpush1.bf16.xpose.msra.mxu0 0
      %1948 = vmatprep.subr.bf16.mxu0 0
      %1949 = vmatpush1.bf16.xpose.msra.mxu0 0
      %1950 = vmatprep.subr.bf16.mxu0 0
      %1951 = vmatpush1.bf16.xpose.msra.mxu0 0
      %1952 = vmatprep.subr.bf16.mxu0 0
      %1953 = vmatpush1.bf16.xpose.msra.mxu0 0
      %1954 = vmatprep.subr.bf16.mxu0 0
      %1955 = vmatpush1.bf16.xpose.msra.mxu0 0
      %1956 = vmatprep.subr.bf16.mxu0 0
      %1957 = vmatpush1.bf16.xpose.msra.mxu0 0
      %1958 = vmatprep.subr.bf16.mxu0 0
      %1959 = vmatpush1.bf16.xpose.msra.mxu0 0
      %1960 = vmatprep.subr.bf16.mxu0 0
      %1961 = vmatpush1.bf16.xpose.msra.mxu0 0
      %1962 = vmatprep.subr.bf16.mxu0 0
      %1963 = vmatpush1.bf16.xpose.msra.mxu0 0
      %1964 = vmatprep.subr.bf16.mxu0 0
      %1965 = vmatpush1.bf16.xpose.msra.mxu0 0
      %1966 = vmatprep.subr.bf16.mxu0 0
      %1967 = vmatpush1.bf16.xpose.msra.mxu0 0
      %1968 = vmatprep.subr.bf16.mxu0 0
      %1969 = vmatpush1.bf16.xpose.msra.mxu0 0
      %1970 = vmatprep.subr.bf16.mxu0 0
      %1971 = vmatpush1.bf16.xpose.msra.mxu0 0
      %1972 = vmatprep.subr.bf16.mxu0 0
      %1973 = vmatpush1.bf16.xpose.msra.mxu0 0
      %1974 = vmatprep.mubr.bf16.mxu0 0
      %1975 = vmatmul.mubr.bf16.gmra.mrb[0].mxu0 %v1937
      %v1976 = vpop.f32.mrb[0].mxu0
      %v1977 = vadd.f32 %v1217, %v1976
      %v1978 = vpop.f32.mrb[0].mxu0
      %v1979 = vpop.f32.mrb[0].mxu0
      %v1980 = vpop.f32.mrb[0].mxu0
      %1981 = vdwg.mxu0
      %v1982 = vsel %vm1226, %v1927, -inf
      %1983 = vmax.xlane.f32.xlu0 %v1982
      %v1984 = vpop.xlane.xlu0 %1983
      %v1985 = vsel %vm1226, %v1977, -inf
      %1986 = vmax.xlane.f32.xlu0 %v1985
      %v1987 = vpop.xlane.xlu0 %1986
      %v1988 = vsub.f32 %v1927, %v1984
      %v1989 = vsub.f32 %v1977, %v1987
      %v1990 = vmul.f32 %v1988, 1.442695
      %v1991 = vpow.pop %v1990
      %v1992 = vmul.f32 %v1989, 1.442695
      %v1993 = vpow.pop %v1992
      %v1994 = vsel %vm1226, %v1991, 0.0
      %1995 = vadd.xlane.f32.xlu0 %v1994
      %v1996 = vpop.xlane.xlu0 %1995
      %v1997 = vsel %vm1226, %v1993, 0.0
      %1998 = vadd.xlane.f32.xlu0 %v1997
      %v1999 = vpop.xlane.xlu0 %1998
      %v2000 = vrcp.pop %v1996
      %v2001 = vrcp.pop %v1999
      %v2002 = vmul.f32 %v1991, %v2000
      %v2003 = vmul.f32 %v1993, %v2001
      %v2004 = vpack.c.bf16 %v2002, %v2002
      %v2005 = vpack.c.bf16 %v2003, %v2003
      %2006 = vrot.lane.b32.xlu0 %v1222, 40
      %v2007 = vpop.permute.xlu0 %2006
      %v2009 = vsel %vm1226, %v2004, 0
      %v2012 = vsel %vm1350, %v2007, 0
      %2014 = vmatprep.subr.bf16.mxu0 0
      %2015 = vmatpush1.bf16.msra.mxu0 %v2012
      %2016 = vmatprep.subr.bf16.mxu0 0
      %2017 = vmatpush1.bf16.msra.mxu0 0
      %2018 = vmatprep.subr.bf16.mxu0 0
      %2019 = vmatpush1.bf16.msra.mxu0 0
      %2020 = vmatprep.subr.bf16.mxu0 0
      %2021 = vmatpush1.bf16.msra.mxu0 0
      %2022 = vmatprep.subr.bf16.mxu0 0
      %2023 = vmatpush1.bf16.msra.mxu0 0
      %2024 = vmatprep.subr.bf16.mxu0 0
      %2025 = vmatpush1.bf16.msra.mxu0 0
      %2026 = vmatprep.subr.bf16.mxu0 0
      %2027 = vmatpush1.bf16.msra.mxu0 0
      %2028 = vmatprep.subr.bf16.mxu0 0
      %2029 = vmatpush1.bf16.msra.mxu0 0
      %2030 = vmatprep.subr.bf16.mxu0 0
      %2031 = vmatpush1.bf16.msra.mxu0 0
      %2032 = vmatprep.subr.bf16.mxu0 0
      %2033 = vmatpush1.bf16.msra.mxu0 0
      %2034 = vmatprep.subr.bf16.mxu0 0
      %2035 = vmatpush1.bf16.msra.mxu0 0
      %2036 = vmatprep.subr.bf16.mxu0 0
      %2037 = vmatpush1.bf16.msra.mxu0 0
      %2038 = vmatprep.subr.bf16.mxu0 0
      %2039 = vmatpush1.bf16.msra.mxu0 0
      %2040 = vmatprep.subr.bf16.mxu0 0
      %2041 = vmatpush1.bf16.msra.mxu0 0
      %2042 = vmatprep.subr.bf16.mxu0 0
      %2043 = vmatpush1.bf16.msra.mxu0 0
      %2044 = vmatprep.subr.bf16.mxu0 0
      %2045 = vmatpush1.bf16.msra.mxu0 0
      %2046 = vmatprep.mubr.bf16.mxu0 0
      %2047 = vmatmul.mubr.bf16.gmra.mrb[0].mxu0 %v2009
      %v2048 = vpop.f32.mrb[0].mxu0
      %v2049 = vadd.f32 0.0, %v2048
      %v2050 = vpop.f32.mrb[0].mxu0
      %v2051 = vpop.f32.mrb[0].mxu0
      %v2052 = vpop.f32.mrb[0].mxu0
      %2053 = vdwg.mxu0
      %2054 = vrot.lane.b32.xlu0 %v1223, 40
      %v2055 = vpop.permute.xlu0 %2054
      %v2057 = vsel %vm1226, %v2005, 0
      %v2060 = vsel %vm1350, %v2055, 0
      %2062 = vmatprep.subr.bf16.mxu0 0
      %2063 = vmatpush1.bf16.msra.mxu0 %v2060
      %2064 = vmatprep.subr.bf16.mxu0 0
      %2065 = vmatpush1.bf16.msra.mxu0 0
      %2066 = vmatprep.subr.bf16.mxu0 0
      %2067 = vmatpush1.bf16.msra.mxu0 0
      %2068 = vmatprep.subr.bf16.mxu0 0
      %2069 = vmatpush1.bf16.msra.mxu0 0
      %2070 = vmatprep.subr.bf16.mxu0 0
      %2071 = vmatpush1.bf16.msra.mxu0 0
      %2072 = vmatprep.subr.bf16.mxu0 0
      %2073 = vmatpush1.bf16.msra.mxu0 0
      %2074 = vmatprep.subr.bf16.mxu0 0
      %2075 = vmatpush1.bf16.msra.mxu0 0
      %2076 = vmatprep.subr.bf16.mxu0 0
      %2077 = vmatpush1.bf16.msra.mxu0 0
      %2078 = vmatprep.subr.bf16.mxu0 0
      %2079 = vmatpush1.bf16.msra.mxu0 0
      %2080 = vmatprep.subr.bf16.mxu0 0
      %2081 = vmatpush1.bf16.msra.mxu0 0
      %2082 = vmatprep.subr.bf16.mxu0 0
      %2083 = vmatpush1.bf16.msra.mxu0 0
      %2084 = vmatprep.subr.bf16.mxu0 0
      %2085 = vmatpush1.bf16.msra.mxu0 0
      %2086 = vmatprep.subr.bf16.mxu0 0
      %2087 = vmatpush1.bf16.msra.mxu0 0
      %2088 = vmatprep.subr.bf16.mxu0 0
      %2089 = vmatpush1.bf16.msra.mxu0 0
      %2090 = vmatprep.subr.bf16.mxu0 0
      %2091 = vmatpush1.bf16.msra.mxu0 0
      %2092 = vmatprep.subr.bf16.mxu0 0
      %2093 = vmatpush1.bf16.msra.mxu0 0
      %2094 = vmatprep.mubr.bf16.mxu0 0
      %2095 = vmatmul.mubr.bf16.gmra.mrb[0].mxu0 %v2057
      %v2096 = vpop.f32.mrb[0].mxu0
      %v2097 = vadd.f32 0.0, %v2096
      %v2098 = vpop.f32.mrb[0].mxu0
      %v2099 = vpop.f32.mrb[0].mxu0
      %v2100 = vpop.f32.mrb[0].mxu0
      %2101 = vdwg.mxu0
      %2104 = vrot.lane.b32.xlu0 %v1609, 8
      %v2105 = vpop.permute.xlu0 %2104
      %2106 = vrot.lane.b32.xlu0 %v1657, 8
      %v2107 = vpop.permute.xlu0 %2106
      %2112 = vrot.lane.b32.xlu0 %v1829, 16
      %v2113 = vpop.permute.xlu0 %2112
      %2114 = vrot.lane.b32.xlu0 %v1877, 16
      %v2115 = vpop.permute.xlu0 %2114
      %2120 = vrot.lane.b32.xlu0 %v2049, 24
      %v2121 = vpop.permute.xlu0 %2120
      %2122 = vrot.lane.b32.xlu0 %v2097, 24
      %v2123 = vpop.permute.xlu0 %2122
      %v2126 = vsel %vm1226, %v1389, %v2105
      %v2127 = vsel %vm1226, %v1437, %v2107
      %vm2128 = vcmask 130048
      %v2129 = vsel %vm2128, %v2126, %v2113
      %v2130 = vsel %vm2128, %v2127, %v2115
      %vm2131 = vcmask 195584
      %v2132 = vsel %vm2131, %v2129, %v2121
      %v2133 = vsel %vm2131, %v2130, %v2123
      %v2134 = vld [vmem:[%s1071] sm:$0xf]
      %v2135 = vld [vmem:[%s1071 + $0x4] sm:$0xf]
      %v2136 = vld [vmem:[%s1071 + $0x8] sm:$0xf]
      %v2137 = vld [vmem:[%s1071 + $0xc] sm:$0xf]
      %v2138 = vld [vmem:[%s1074] sm:$0x1]
      %v2139 = vpack.c.bf16 %v2133, %v2132
      %v2141 = vlaneseq
      %v2142 = vshrl.u32 %v2141, 7
      %v2143 = vsub.s32 0, %v2142
      %v2144 = vrot.slane %v2138, %v2143
      %v2150 = vunpack.c.l.b16 %v2134
      %v2151 = vunpack.c.l.b16 %v2135
      %v2152 = vunpack.c.l.b16 %v2136
      %v2153 = vunpack.c.l.b16 %v2137
      %v2154 = vpack.c.b16 %v2151, %v2150
      %v2155 = vpack.c.b16 %v2153, %v2152
      %v2159 = vsel %vm1171, %v2139, 0
      %2161 = vmatprep.subr.bf16.mxu0 0
      %2162 = vmatpush1.bf16.msra.mxu0 %v2154
      %2163 = vmatprep.subr.bf16.mxu0 0
      %2164 = vmatpush1.bf16.msra.mxu0 %v2155
      %2165 = vmatprep.subr.bf16.mxu0 0
      %2166 = vmatpush1.bf16.msra.mxu0 0
      %2167 = vmatprep.subr.bf16.mxu0 0
      %2168 = vmatpush1.bf16.msra.mxu0 0
      %2169 = vmatprep.subr.bf16.mxu0 0
      %2170 = vmatpush1.bf16.msra.mxu0 0
      %2171 = vmatprep.subr.bf16.mxu0 0
      %2172 = vmatpush1.bf16.msra.mxu0 0
      %2173 = vmatprep.subr.bf16.mxu0 0
      %2174 = vmatpush1.bf16.msra.mxu0 0
      %2175 = vmatprep.subr.bf16.mxu0 0
      %2176 = vmatpush1.bf16.msra.mxu0 0
      %2177 = vmatprep.subr.bf16.mxu0 0
      %2178 = vmatpush1.bf16.msra.mxu0 0
      %2179 = vmatprep.subr.bf16.mxu0 0
      %2180 = vmatpush1.bf16.msra.mxu0 0
      %2181 = vmatprep.subr.bf16.mxu0 0
      %2182 = vmatpush1.bf16.msra.mxu0 0
      %2183 = vmatprep.subr.bf16.mxu0 0
      %2184 = vmatpush1.bf16.msra.mxu0 0
      %2185 = vmatprep.subr.bf16.mxu0 0
      %2186 = vmatpush1.bf16.msra.mxu0 0
      %2187 = vmatprep.subr.bf16.mxu0 0
      %2188 = vmatpush1.bf16.msra.mxu0 0
      %2189 = vmatprep.subr.bf16.mxu0 0
      %2190 = vmatpush1.bf16.msra.mxu0 0
      %2191 = vmatprep.subr.bf16.mxu0 0
      %2192 = vmatpush1.bf16.msra.mxu0 0
      %2193 = vmatprep.mubr.bf16.mxu0 0
      %2194 = vmatmul.mubr.bf16.gmra.mrb[0].mxu0 %v2159
      %v2195 = vpop.f32.mrb[0].mxu0
      %v2196 = vadd.f32 %v2144, %v2195
      %v2197 = vpop.f32.mrb[0].mxu0
      %v2198 = vpop.f32.mrb[0].mxu0
      %v2199 = vadd.f32 %v2144, %v2198
      %v2200 = vpop.f32.mrb[0].mxu0
      %2201 = vdwg.mxu0
      %v2202 = vadd.f32 %v1143, %v2196
      %v2203 = vadd.f32 %v1144, %v2199
      %v2204 = vld [vmem:[%s1077] sm:$0x1]
      %v2205 = vld [vmem:[%s1080] sm:$0x1]
      %v2206 = vsel %vm1171, %v2202, 0.0
      %2207 = vadd.xlane.f32.xlu0 %v2206
      %v2208 = vpop.xlane.xlu0 %2207
      %v2209 = vsel %vm1171, %v2203, 0.0
      %2210 = vadd.xlane.f32.xlu0 %v2209
      %v2211 = vpop.xlane.xlu0 %2210
      %v2212 = vrcp.pop 32.0
      %v2213 = vmul.f32 %v2208, %v2212
      %v2214 = vmul.f32 %v2211, %v2212
      %v2215 = vsub.f32 %v2202, %v2213
      %v2216 = vsub.f32 %v2203, %v2214
      %v2217 = vmul.f32 %v2215, %v2215
      %v2218 = vmul.f32 %v2216, %v2216
      %v2219 = vsel %vm1171, %v2217, 0.0
      %2220 = vadd.xlane.f32.xlu0 %v2219
      %v2221 = vpop.xlane.xlu0 %2220
      %v2222 = vsel %vm1171, %v2218, 0.0
      %2223 = vadd.xlane.f32.xlu0 %v2222
      %v2224 = vpop.xlane.xlu0 %2223
      %v2225 = vmul.f32 %v2221, %v2212
      %v2226 = vmul.f32 %v2224, %v2212
      %v2227 = vadd.f32 %v2225, 1e-05
      %v2228 = vadd.f32 %v2226, 1e-05
      %v2229 = vrsqrt.pop %v2227
      %v2230 = vrsqrt.pop %v2228
      %v2231 = vmul.f32 %v2215, %v2229
      %v2232 = vmul.f32 %v2216, %v2230
      %v2234 = vlaneseq
      %v2235 = vshrl.u32 %v2234, 7
      %v2236 = vsub.s32 0, %v2235
      %v2237 = vrot.slane %v2204, %v2236
      %v2239 = vmul.f32 %v2231, %v2237
      %v2240 = vmul.f32 %v2232, %v2237
      %v2242 = vlaneseq
      %v2243 = vshrl.u32 %v2242, 7
      %v2244 = vsub.s32 0, %v2243
      %v2245 = vrot.slane %v2205, %v2244
      %v2247 = vadd.f32 %v2239, %v2245
      %v2248 = vadd.f32 %v2240, %v2245
      %v2249 = vld [vmem:[%s1085] sm:$0xf]
      %v2250 = vld [vmem:[%s1085 + $0x4] sm:$0xf]
      %v2251 = vld [vmem:[%s1085 + $0x8] sm:$0xf]
      %v2252 = vld [vmem:[%s1085 + $0xc] sm:$0xf]
      %v2253 = vld [vmem:[%s1088] sm:$0x1]
      %v2254 = vpack.c.bf16 %v2248, %v2247
      %v2256 = vlaneseq
      %v2257 = vshrl.u32 %v2256, 7
      %v2258 = vsub.s32 0, %v2257
      %v2259 = vrot.slane %v2253, %v2258
      %v2265 = vunpack.c.l.b16 %v2249
      %v2266 = vunpack.c.l.b16 %v2250
      %v2267 = vunpack.c.l.b16 %v2251
      %v2268 = vunpack.c.l.b16 %v2252
      %v2269 = vpack.c.b16 %v2266, %v2265
      %v2270 = vpack.c.b16 %v2268, %v2267
      %v2274 = vsel %vm1171, %v2254, 0
      %2276 = vmatprep.subr.bf16.mxu0 0
      %2277 = vmatpush1.bf16.msra.mxu0 %v2269
      %2278 = vmatprep.subr.bf16.mxu0 0
      %2279 = vmatpush1.bf16.msra.mxu0 %v2270
      %2280 = vmatprep.subr.bf16.mxu0 0
      %2281 = vmatpush1.bf16.msra.mxu0 0
      %2282 = vmatprep.subr.bf16.mxu0 0
      %2283 = vmatpush1.bf16.msra.mxu0 0
      %2284 = vmatprep.subr.bf16.mxu0 0
      %2285 = vmatpush1.bf16.msra.mxu0 0
      %2286 = vmatprep.subr.bf16.mxu0 0
      %2287 = vmatpush1.bf16.msra.mxu0 0
      %2288 = vmatprep.subr.bf16.mxu0 0
      %2289 = vmatpush1.bf16.msra.mxu0 0
      %2290 = vmatprep.subr.bf16.mxu0 0
      %2291 = vmatpush1.bf16.msra.mxu0 0
      %2292 = vmatprep.subr.bf16.mxu0 0
      %2293 = vmatpush1.bf16.msra.mxu0 0
      %2294 = vmatprep.subr.bf16.mxu0 0
      %2295 = vmatpush1.bf16.msra.mxu0 0
      %2296 = vmatprep.subr.bf16.mxu0 0
      %2297 = vmatpush1.bf16.msra.mxu0 0
      %2298 = vmatprep.subr.bf16.mxu0 0
      %2299 = vmatpush1.bf16.msra.mxu0 0
      %2300 = vmatprep.subr.bf16.mxu0 0
      %2301 = vmatpush1.bf16.msra.mxu0 0
      %2302 = vmatprep.subr.bf16.mxu0 0
      %2303 = vmatpush1.bf16.msra.mxu0 0
      %2304 = vmatprep.subr.bf16.mxu0 0
      %2305 = vmatpush1.bf16.msra.mxu0 0
      %2306 = vmatprep.subr.bf16.mxu0 0
      %2307 = vmatpush1.bf16.msra.mxu0 0
      %2308 = vmatprep.mubr.bf16.mxu0 0
      %2309 = vmatmul.mubr.bf16.gmra.mrb[0].mxu0 %v2274
      %v2310 = vpop.f32.mrb[0].mxu0
      %v2311 = vadd.f32 %v2259, %v2310
      %v2312 = vpop.f32.mrb[0].mxu0
      %v2313 = vpop.f32.mrb[0].mxu0
      %v2314 = vadd.f32 %v2259, %v2313
      %v2315 = vpop.f32.mrb[0].mxu0
      %2316 = vdwg.mxu0
      %v2317 = vld [vmem:[%s1093] sm:$0xf]
      %v2318 = vld [vmem:[%s1093 + $0x4] sm:$0xf]
      %v2319 = vld [vmem:[%s1093 + $0x8] sm:$0xf]
      %v2320 = vld [vmem:[%s1093 + $0xc] sm:$0xf]
      %v2321 = vld [vmem:[%s1096] sm:$0x1]
      %v2322 = vpack.c.bf16 %v1146, %v1145
      %v2324 = vlaneseq
      %v2325 = vshrl.u32 %v2324, 7
      %v2326 = vsub.s32 0, %v2325
      %v2327 = vrot.slane %v2321, %v2326
      %v2333 = vunpack.c.l.b16 %v2317
      %v2334 = vunpack.c.l.b16 %v2318
      %v2335 = vunpack.c.l.b16 %v2319
      %v2336 = vunpack.c.l.b16 %v2320
      %v2337 = vpack.c.b16 %v2334, %v2333
      %v2338 = vpack.c.b16 %v2336, %v2335
      %v2342 = vsel %vm1171, %v2322, 0
      %2344 = vmatprep.subr.bf16.mxu0 0
      %2345 = vmatpush1.bf16.msra.mxu0 %v2337
      %2346 = vmatprep.subr.bf16.mxu0 0
      %2347 = vmatpush1.bf16.msra.mxu0 %v2338
      %2348 = vmatprep.subr.bf16.mxu0 0
      %2349 = vmatpush1.bf16.msra.mxu0 0
      %2350 = vmatprep.subr.bf16.mxu0 0
      %2351 = vmatpush1.bf16.msra.mxu0 0
      %2352 = vmatprep.subr.bf16.mxu0 0
      %2353 = vmatpush1.bf16.msra.mxu0 0
      %2354 = vmatprep.subr.bf16.mxu0 0
      %2355 = vmatpush1.bf16.msra.mxu0 0
      %2356 = vmatprep.subr.bf16.mxu0 0
      %2357 = vmatpush1.bf16.msra.mxu0 0
      %2358 = vmatprep.subr.bf16.mxu0 0
      %2359 = vmatpush1.bf16.msra.mxu0 0
      %2360 = vmatprep.subr.bf16.mxu0 0
      %2361 = vmatpush1.bf16.msra.mxu0 0
      %2362 = vmatprep.subr.bf16.mxu0 0
      %2363 = vmatpush1.bf16.msra.mxu0 0
      %2364 = vmatprep.subr.bf16.mxu0 0
      %2365 = vmatpush1.bf16.msra.mxu0 0
      %2366 = vmatprep.subr.bf16.mxu0 0
      %2367 = vmatpush1.bf16.msra.mxu0 0
      %2368 = vmatprep.subr.bf16.mxu0 0
      %2369 = vmatpush1.bf16.msra.mxu0 0
      %2370 = vmatprep.subr.bf16.mxu0 0
      %2371 = vmatpush1.bf16.msra.mxu0 0
      %2372 = vmatprep.subr.bf16.mxu0 0
      %2373 = vmatpush1.bf16.msra.mxu0 0
      %2374 = vmatprep.subr.bf16.mxu0 0
      %2375 = vmatpush1.bf16.msra.mxu0 0
      %2376 = vmatprep.mubr.bf16.mxu0 0
      %2377 = vmatmul.mubr.bf16.gmra.mrb[0].mxu0 %v2342
      %v2378 = vpop.f32.mrb[0].mxu0
      %v2379 = vadd.f32 %v2327, %v2378
      %v2380 = vpop.f32.mrb[0].mxu0
      %v2381 = vpop.f32.mrb[0].mxu0
      %v2382 = vadd.f32 %v2327, %v2381
      %v2383 = vpop.f32.mrb[0].mxu0
      %2384 = vdwg.mxu0
      %v2385 = vld [vmem:[%s3] sm:$0x1]
      %v2386 = vld [vmem:[%s3 + $0x1] sm:$0x1]
      %v2387 = vpack.c.bf16 %v2314, %v2311
      %v2388 = vpack.c.bf16 %v2382, %v2379
      %v2390 = vunpack.c.l.b16 %v2387
      %v2391 = vunpack.c.h.b16 %v2387
      %v2392 = vpack.c.b16 %v2390, %v2390
      %v2393 = vpack.c.b16 %v2391, %v2391
      %v2395 = vunpack.c.l.b16 %v2388
      %v2396 = vunpack.c.h.b16 %v2388
      %v2397 = vpack.c.b16 %v2395, %v2395
      %v2398 = vpack.c.b16 %v2396, %v2396
      %v2401 = vlaneseq
      %v2402 = vshrl.u32 %v2401, 7
      %v2403 = vsub.s32 0, %v2402
      %v2404 = vrot.slane %v2385, %v2403
      %v2405 = vlaneseq
      %v2406 = vshrl.u32 %v2405, 7
      %v2407 = vsub.s32 0, %v2406
      %v2408 = vrot.slane %v2386, %v2407
      %v2412 = vsel %vm1226, %v2392, 0
      %v2415 = vsel %vm1226, %v2397, 0
      %2417 = vmatprep.subr.bf16.mxu0 0
      %2418 = vmatpush1.bf16.xpose.msra.mxu0 %v2415
      %2419 = vmatprep.subr.bf16.mxu0 0
      %2420 = vmatpush1.bf16.xpose.msra.mxu0 0
      %2421 = vmatprep.subr.bf16.mxu0 0
      %2422 = vmatpush1.bf16.xpose.msra.mxu0 0
      %2423 = vmatprep.subr.bf16.mxu0 0
      %2424 = vmatpush1.bf16.xpose.msra.mxu0 0
      %2425 = vmatprep.subr.bf16.mxu0 0
      %2426 = vmatpush1.bf16.xpose.msra.mxu0 0
      %2427 = vmatprep.subr.bf16.mxu0 0
      %2428 = vmatpush1.bf16.xpose.msra.mxu0 0
      %2429 = vmatprep.subr.bf16.mxu0 0
      %2430 = vmatpush1.bf16.xpose.msra.mxu0 0
      %2431 = vmatprep.subr.bf16.mxu0 0
      %2432 = vmatpush1.bf16.xpose.msra.mxu0 0
      %2433 = vmatprep.subr.bf16.mxu0 0
      %2434 = vmatpush1.bf16.xpose.msra.mxu0 0
      %2435 = vmatprep.subr.bf16.mxu0 0
      %2436 = vmatpush1.bf16.xpose.msra.mxu0 0
      %2437 = vmatprep.subr.bf16.mxu0 0
      %2438 = vmatpush1.bf16.xpose.msra.mxu0 0
      %2439 = vmatprep.subr.bf16.mxu0 0
      %2440 = vmatpush1.bf16.xpose.msra.mxu0 0
      %2441 = vmatprep.subr.bf16.mxu0 0
      %2442 = vmatpush1.bf16.xpose.msra.mxu0 0
      %2443 = vmatprep.subr.bf16.mxu0 0
      %2444 = vmatpush1.bf16.xpose.msra.mxu0 0
      %2445 = vmatprep.subr.bf16.mxu0 0
      %2446 = vmatpush1.bf16.xpose.msra.mxu0 0
      %2447 = vmatprep.subr.bf16.mxu0 0
      %2448 = vmatpush1.bf16.xpose.msra.mxu0 0
      %2449 = vmatprep.mubr.bf16.mxu0 0
      %2450 = vmatmul.mubr.bf16.gmra.mrb[0].mxu0 %v2412
      %v2451 = vpop.f32.mrb[0].mxu0
      %v2452 = vadd.f32 %v2404, %v2451
      %v2453 = vpop.f32.mrb[0].mxu0
      %v2454 = vpop.f32.mrb[0].mxu0
      %v2455 = vpop.f32.mrb[0].mxu0
      %2456 = vdwg.mxu0
      %v2458 = vsel %vm1226, %v2393, 0
      %v2461 = vsel %vm1226, %v2398, 0
      %2463 = vmatprep.subr.bf16.mxu0 0
      %2464 = vmatpush1.bf16.xpose.msra.mxu0 %v2461
      %2465 = vmatprep.subr.bf16.mxu0 0
      %2466 = vmatpush1.bf16.xpose.msra.mxu0 0
      %2467 = vmatprep.subr.bf16.mxu0 0
      %2468 = vmatpush1.bf16.xpose.msra.mxu0 0
      %2469 = vmatprep.subr.bf16.mxu0 0
      %2470 = vmatpush1.bf16.xpose.msra.mxu0 0
      %2471 = vmatprep.subr.bf16.mxu0 0
      %2472 = vmatpush1.bf16.xpose.msra.mxu0 0
      %2473 = vmatprep.subr.bf16.mxu0 0
      %2474 = vmatpush1.bf16.xpose.msra.mxu0 0
      %2475 = vmatprep.subr.bf16.mxu0 0
      %2476 = vmatpush1.bf16.xpose.msra.mxu0 0
      %2477 = vmatprep.subr.bf16.mxu0 0
      %2478 = vmatpush1.bf16.xpose.msra.mxu0 0
      %2479 = vmatprep.subr.bf16.mxu0 0
      %2480 = vmatpush1.bf16.xpose.msra.mxu0 0
      %2481 = vmatprep.subr.bf16.mxu0 0
      %2482 = vmatpush1.bf16.xpose.msra.mxu0 0
      %2483 = vmatprep.subr.bf16.mxu0 0
      %2484 = vmatpush1.bf16.xpose.msra.mxu0 0
      %2485 = vmatprep.subr.bf16.mxu0 0
      %2486 = vmatpush1.bf16.xpose.msra.mxu0 0
      %2487 = vmatprep.subr.bf16.mxu0 0
      %2488 = vmatpush1.bf16.xpose.msra.mxu0 0
      %2489 = vmatprep.subr.bf16.mxu0 0
      %2490 = vmatpush1.bf16.xpose.msra.mxu0 0
      %2491 = vmatprep.subr.bf16.mxu0 0
      %2492 = vmatpush1.bf16.xpose.msra.mxu0 0
      %2493 = vmatprep.subr.bf16.mxu0 0
      %2494 = vmatpush1.bf16.xpose.msra.mxu0 0
      %2495 = vmatprep.mubr.bf16.mxu0 0
      %2496 = vmatmul.mubr.bf16.gmra.mrb[0].mxu0 %v2458
      %v2497 = vpop.f32.mrb[0].mxu0
      %v2498 = vadd.f32 %v2408, %v2497
      %v2499 = vpop.f32.mrb[0].mxu0
      %v2500 = vpop.f32.mrb[0].mxu0
      %v2501 = vpop.f32.mrb[0].mxu0
      %2502 = vdwg.mxu0
      %v2503 = vsel %vm1226, %v2452, -inf
      %2504 = vmax.xlane.f32.xlu0 %v2503
      %v2505 = vpop.xlane.xlu0 %2504
      %v2506 = vsel %vm1226, %v2498, -inf
      %2507 = vmax.xlane.f32.xlu0 %v2506
      %v2508 = vpop.xlane.xlu0 %2507
      %v2509 = vsub.f32 %v2452, %v2505
      %v2510 = vsub.f32 %v2498, %v2508
      %v2511 = vmul.f32 %v2509, 1.442695
      %v2512 = vpow.pop %v2511
      %v2513 = vmul.f32 %v2510, 1.442695
      %v2514 = vpow.pop %v2513
      %v2515 = vsel %vm1226, %v2512, 0.0
      %2516 = vadd.xlane.f32.xlu0 %v2515
      %v2517 = vpop.xlane.xlu0 %2516
      %v2518 = vsel %vm1226, %v2514, 0.0
      %2519 = vadd.xlane.f32.xlu0 %v2518
      %v2520 = vpop.xlane.xlu0 %2519
      %v2521 = vrcp.pop %v2517
      %v2522 = vrcp.pop %v2520
      %v2523 = vmul.f32 %v2512, %v2521
      %v2524 = vmul.f32 %v2514, %v2522
      %v2525 = vpack.c.bf16 %v2523, %v2523
      %v2526 = vpack.c.bf16 %v2524, %v2524
      %2527 = vrot.lane.b32.xlu0 %v2397, 96
      %v2528 = vpop.permute.xlu0 %2527
      %v2530 = vsel %vm1226, %v2525, 0
      %v2533 = vsel %vm1350, %v2528, 0
      %2535 = vmatprep.subr.bf16.mxu0 0
      %2536 = vmatpush1.bf16.msra.mxu0 %v2533
      %2537 = vmatprep.subr.bf16.mxu0 0
      %2538 = vmatpush1.bf16.msra.mxu0 0
      %2539 = vmatprep.subr.bf16.mxu0 0
      %2540 = vmatpush1.bf16.msra.mxu0 0
      %2541 = vmatprep.subr.bf16.mxu0 0
      %2542 = vmatpush1.bf16.msra.mxu0 0
      %2543 = vmatprep.subr.bf16.mxu0 0
      %2544 = vmatpush1.bf16.msra.mxu0 0
      %2545 = vmatprep.subr.bf16.mxu0 0
      %2546 = vmatpush1.bf16.msra.mxu0 0
      %2547 = vmatprep.subr.bf16.mxu0 0
      %2548 = vmatpush1.bf16.msra.mxu0 0
      %2549 = vmatprep.subr.bf16.mxu0 0
      %2550 = vmatpush1.bf16.msra.mxu0 0
      %2551 = vmatprep.subr.bf16.mxu0 0
      %2552 = vmatpush1.bf16.msra.mxu0 0
      %2553 = vmatprep.subr.bf16.mxu0 0
      %2554 = vmatpush1.bf16.msra.mxu0 0
      %2555 = vmatprep.subr.bf16.mxu0 0
      %2556 = vmatpush1.bf16.msra.mxu0 0
      %2557 = vmatprep.subr.bf16.mxu0 0
      %2558 = vmatpush1.bf16.msra.mxu0 0
      %2559 = vmatprep.subr.bf16.mxu0 0
      %2560 = vmatpush1.bf16.msra.mxu0 0
      %2561 = vmatprep.subr.bf16.mxu0 0
      %2562 = vmatpush1.bf16.msra.mxu0 0
      %2563 = vmatprep.subr.bf16.mxu0 0
      %2564 = vmatpush1.bf16.msra.mxu0 0
      %2565 = vmatprep.subr.bf16.mxu0 0
      %2566 = vmatpush1.bf16.msra.mxu0 0
      %2567 = vmatprep.mubr.bf16.mxu0 0
      %2568 = vmatmul.mubr.bf16.gmra.mrb[0].mxu0 %v2530
      %v2569 = vpop.f32.mrb[0].mxu0
      %v2570 = vadd.f32 0.0, %v2569
      %v2571 = vpop.f32.mrb[0].mxu0
      %v2572 = vpop.f32.mrb[0].mxu0
      %v2573 = vpop.f32.mrb[0].mxu0
      %2574 = vdwg.mxu0
      %2575 = vrot.lane.b32.xlu0 %v2398, 96
      %v2576 = vpop.permute.xlu0 %2575
      %v2578 = vsel %vm1226, %v2526, 0
      %v2581 = vsel %vm1350, %v2576, 0
      %2583 = vmatprep.subr.bf16.mxu0 0
      %2584 = vmatpush1.bf16.msra.mxu0 %v2581
      %2585 = vmatprep.subr.bf16.mxu0 0
      %2586 = vmatpush1.bf16.msra.mxu0 0
      %2587 = vmatprep.subr.bf16.mxu0 0
      %2588 = vmatpush1.bf16.msra.mxu0 0
      %2589 = vmatprep.subr.bf16.mxu0 0
      %2590 = vmatpush1.bf16.msra.mxu0 0
      %2591 = vmatprep.subr.bf16.mxu0 0
      %2592 = vmatpush1.bf16.msra.mxu0 0
      %2593 = vmatprep.subr.bf16.mxu0 0
      %2594 = vmatpush1.bf16.msra.mxu0 0
      %2595 = vmatprep.subr.bf16.mxu0 0
      %2596 = vmatpush1.bf16.msra.mxu0 0
      %2597 = vmatprep.subr.bf16.mxu0 0
      %2598 = vmatpush1.bf16.msra.mxu0 0
      %2599 = vmatprep.subr.bf16.mxu0 0
      %2600 = vmatpush1.bf16.msra.mxu0 0
      %2601 = vmatprep.subr.bf16.mxu0 0
      %2602 = vmatpush1.bf16.msra.mxu0 0
      %2603 = vmatprep.subr.bf16.mxu0 0
      %2604 = vmatpush1.bf16.msra.mxu0 0
      %2605 = vmatprep.subr.bf16.mxu0 0
      %2606 = vmatpush1.bf16.msra.mxu0 0
      %2607 = vmatprep.subr.bf16.mxu0 0
      %2608 = vmatpush1.bf16.msra.mxu0 0
      %2609 = vmatprep.subr.bf16.mxu0 0
      %2610 = vmatpush1.bf16.msra.mxu0 0
      %2611 = vmatprep.subr.bf16.mxu0 0
      %2612 = vmatpush1.bf16.msra.mxu0 0
      %2613 = vmatprep.subr.bf16.mxu0 0
      %2614 = vmatpush1.bf16.msra.mxu0 0
      %2615 = vmatprep.mubr.bf16.mxu0 0
      %2616 = vmatmul.mubr.bf16.gmra.mrb[0].mxu0 %v2578
      %v2617 = vpop.f32.mrb[0].mxu0
      %v2618 = vadd.f32 0.0, %v2617
      %v2619 = vpop.f32.mrb[0].mxu0
      %v2620 = vpop.f32.mrb[0].mxu0
      %v2621 = vpop.f32.mrb[0].mxu0
      %2622 = vdwg.mxu0
      %2623 = vrot.lane.b32.xlu0 %v2392, 120
      %v2624 = vpop.permute.xlu0 %2623
      %2625 = vrot.lane.b32.xlu0 %v2397, 120
      %v2626 = vpop.permute.xlu0 %2625
      %v2628 = vsel %vm1226, %v2624, 0
      %v2631 = vsel %vm1226, %v2626, 0
      %2633 = vmatprep.subr.bf16.mxu0 0
      %2634 = vmatpush1.bf16.xpose.msra.mxu0 %v2631
      %2635 = vmatprep.subr.bf16.mxu0 0
      %2636 = vmatpush1.bf16.xpose.msra.mxu0 0
      %2637 = vmatprep.subr.bf16.mxu0 0
      %2638 = vmatpush1.bf16.xpose.msra.mxu0 0
      %2639 = vmatprep.subr.bf16.mxu0 0
      %2640 = vmatpush1.bf16.xpose.msra.mxu0 0
      %2641 = vmatprep.subr.bf16.mxu0 0
      %2642 = vmatpush1.bf16.xpose.msra.mxu0 0
      %2643 = vmatprep.subr.bf16.mxu0 0
      %2644 = vmatpush1.bf16.xpose.msra.mxu0 0
      %2645 = vmatprep.subr.bf16.mxu0 0
      %2646 = vmatpush1.bf16.xpose.msra.mxu0 0
      %2647 = vmatprep.subr.bf16.mxu0 0
      %2648 = vmatpush1.bf16.xpose.msra.mxu0 0
      %2649 = vmatprep.subr.bf16.mxu0 0
      %2650 = vmatpush1.bf16.xpose.msra.mxu0 0
      %2651 = vmatprep.subr.bf16.mxu0 0
      %2652 = vmatpush1.bf16.xpose.msra.mxu0 0
      %2653 = vmatprep.subr.bf16.mxu0 0
      %2654 = vmatpush1.bf16.xpose.msra.mxu0 0
      %2655 = vmatprep.subr.bf16.mxu0 0
      %2656 = vmatpush1.bf16.xpose.msra.mxu0 0
      %2657 = vmatprep.subr.bf16.mxu0 0
      %2658 = vmatpush1.bf16.xpose.msra.mxu0 0
      %2659 = vmatprep.subr.bf16.mxu0 0
      %2660 = vmatpush1.bf16.xpose.msra.mxu0 0
      %2661 = vmatprep.subr.bf16.mxu0 0
      %2662 = vmatpush1.bf16.xpose.msra.mxu0 0
      %2663 = vmatprep.subr.bf16.mxu0 0
      %2664 = vmatpush1.bf16.xpose.msra.mxu0 0
      %2665 = vmatprep.mubr.bf16.mxu0 0
      %2666 = vmatmul.mubr.bf16.gmra.mrb[0].mxu0 %v2628
      %v2667 = vpop.f32.mrb[0].mxu0
      %v2668 = vadd.f32 %v2404, %v2667
      %v2669 = vpop.f32.mrb[0].mxu0
      %v2670 = vpop.f32.mrb[0].mxu0
      %v2671 = vpop.f32.mrb[0].mxu0
      %2672 = vdwg.mxu0
      %2673 = vrot.lane.b32.xlu0 %v2393, 120
      %v2674 = vpop.permute.xlu0 %2673
      %2675 = vrot.lane.b32.xlu0 %v2398, 120
      %v2676 = vpop.permute.xlu0 %2675
      %v2678 = vsel %vm1226, %v2674, 0
      %v2681 = vsel %vm1226, %v2676, 0
      %2683 = vmatprep.subr.bf16.mxu0 0
      %2684 = vmatpush1.bf16.xpose.msra.mxu0 %v2681
      %2685 = vmatprep.subr.bf16.mxu0 0
      %2686 = vmatpush1.bf16.xpose.msra.mxu0 0
      %2687 = vmatprep.subr.bf16.mxu0 0
      %2688 = vmatpush1.bf16.xpose.msra.mxu0 0
      %2689 = vmatprep.subr.bf16.mxu0 0
      %2690 = vmatpush1.bf16.xpose.msra.mxu0 0
      %2691 = vmatprep.subr.bf16.mxu0 0
      %2692 = vmatpush1.bf16.xpose.msra.mxu0 0
      %2693 = vmatprep.subr.bf16.mxu0 0
      %2694 = vmatpush1.bf16.xpose.msra.mxu0 0
      %2695 = vmatprep.subr.bf16.mxu0 0
      %2696 = vmatpush1.bf16.xpose.msra.mxu0 0
      %2697 = vmatprep.subr.bf16.mxu0 0
      %2698 = vmatpush1.bf16.xpose.msra.mxu0 0
      %2699 = vmatprep.subr.bf16.mxu0 0
      %2700 = vmatpush1.bf16.xpose.msra.mxu0 0
      %2701 = vmatprep.subr.bf16.mxu0 0
      %2702 = vmatpush1.bf16.xpose.msra.mxu0 0
      %2703 = vmatprep.subr.bf16.mxu0 0
      %2704 = vmatpush1.bf16.xpose.msra.mxu0 0
      %2705 = vmatprep.subr.bf16.mxu0 0
      %2706 = vmatpush1.bf16.xpose.msra.mxu0 0
      %2707 = vmatprep.subr.bf16.mxu0 0
      %2708 = vmatpush1.bf16.xpose.msra.mxu0 0
      %2709 = vmatprep.subr.bf16.mxu0 0
      %2710 = vmatpush1.bf16.xpose.msra.mxu0 0
      %2711 = vmatprep.subr.bf16.mxu0 0
      %2712 = vmatpush1.bf16.xpose.msra.mxu0 0
      %2713 = vmatprep.subr.bf16.mxu0 0
      %2714 = vmatpush1.bf16.xpose.msra.mxu0 0
      %2715 = vmatprep.mubr.bf16.mxu0 0
      %2716 = vmatmul.mubr.bf16.gmra.mrb[0].mxu0 %v2678
      %v2717 = vpop.f32.mrb[0].mxu0
      %v2718 = vadd.f32 %v2408, %v2717
      %v2719 = vpop.f32.mrb[0].mxu0
      %v2720 = vpop.f32.mrb[0].mxu0
      %v2721 = vpop.f32.mrb[0].mxu0
      %2722 = vdwg.mxu0
      %v2723 = vsel %vm1226, %v2668, -inf
      %2724 = vmax.xlane.f32.xlu0 %v2723
      %v2725 = vpop.xlane.xlu0 %2724
      %v2726 = vsel %vm1226, %v2718, -inf
      %2727 = vmax.xlane.f32.xlu0 %v2726
      %v2728 = vpop.xlane.xlu0 %2727
      %v2729 = vsub.f32 %v2668, %v2725
      %v2730 = vsub.f32 %v2718, %v2728
      %v2731 = vmul.f32 %v2729, 1.442695
      %v2732 = vpow.pop %v2731
      %v2733 = vmul.f32 %v2730, 1.442695
      %v2734 = vpow.pop %v2733
      %v2735 = vsel %vm1226, %v2732, 0.0
      %2736 = vadd.xlane.f32.xlu0 %v2735
      %v2737 = vpop.xlane.xlu0 %2736
      %v2738 = vsel %vm1226, %v2734, 0.0
      %2739 = vadd.xlane.f32.xlu0 %v2738
      %v2740 = vpop.xlane.xlu0 %2739
      %v2741 = vrcp.pop %v2737
      %v2742 = vrcp.pop %v2740
      %v2743 = vmul.f32 %v2732, %v2741
      %v2744 = vmul.f32 %v2734, %v2742
      %v2745 = vpack.c.bf16 %v2743, %v2743
      %v2746 = vpack.c.bf16 %v2744, %v2744
      %2747 = vrot.lane.b32.xlu0 %v2397, 88
      %v2748 = vpop.permute.xlu0 %2747
      %v2750 = vsel %vm1226, %v2745, 0
      %v2753 = vsel %vm1350, %v2748, 0
      %2755 = vmatprep.subr.bf16.mxu0 0
      %2756 = vmatpush1.bf16.msra.mxu0 %v2753
      %2757 = vmatprep.subr.bf16.mxu0 0
      %2758 = vmatpush1.bf16.msra.mxu0 0
      %2759 = vmatprep.subr.bf16.mxu0 0
      %2760 = vmatpush1.bf16.msra.mxu0 0
      %2761 = vmatprep.subr.bf16.mxu0 0
      %2762 = vmatpush1.bf16.msra.mxu0 0
      %2763 = vmatprep.subr.bf16.mxu0 0
      %2764 = vmatpush1.bf16.msra.mxu0 0
      %2765 = vmatprep.subr.bf16.mxu0 0
      %2766 = vmatpush1.bf16.msra.mxu0 0
      %2767 = vmatprep.subr.bf16.mxu0 0
      %2768 = vmatpush1.bf16.msra.mxu0 0
      %2769 = vmatprep.subr.bf16.mxu0 0
      %2770 = vmatpush1.bf16.msra.mxu0 0
      %2771 = vmatprep.subr.bf16.mxu0 0
      %2772 = vmatpush1.bf16.msra.mxu0 0
      %2773 = vmatprep.subr.bf16.mxu0 0
      %2774 = vmatpush1.bf16.msra.mxu0 0
      %2775 = vmatprep.subr.bf16.mxu0 0
      %2776 = vmatpush1.bf16.msra.mxu0 0
      %2777 = vmatprep.subr.bf16.mxu0 0
      %2778 = vmatpush1.bf16.msra.mxu0 0
      %2779 = vmatprep.subr.bf16.mxu0 0
      %2780 = vmatpush1.bf16.msra.mxu0 0
      %2781 = vmatprep.subr.bf16.mxu0 0
      %2782 = vmatpush1.bf16.msra.mxu0 0
      %2783 = vmatprep.subr.bf16.mxu0 0
      %2784 = vmatpush1.bf16.msra.mxu0 0
      %2785 = vmatprep.subr.bf16.mxu0 0
      %2786 = vmatpush1.bf16.msra.mxu0 0
      %2787 = vmatprep.mubr.bf16.mxu0 0
      %2788 = vmatmul.mubr.bf16.gmra.mrb[0].mxu0 %v2750
      %v2789 = vpop.f32.mrb[0].mxu0
      %v2790 = vadd.f32 0.0, %v2789
      %v2791 = vpop.f32.mrb[0].mxu0
      %v2792 = vpop.f32.mrb[0].mxu0
      %v2793 = vpop.f32.mrb[0].mxu0
      %2794 = vdwg.mxu0
      %2795 = vrot.lane.b32.xlu0 %v2398, 88
      %v2796 = vpop.permute.xlu0 %2795
      %v2798 = vsel %vm1226, %v2746, 0
      %v2801 = vsel %vm1350, %v2796, 0
      %2803 = vmatprep.subr.bf16.mxu0 0
      %2804 = vmatpush1.bf16.msra.mxu0 %v2801
      %2805 = vmatprep.subr.bf16.mxu0 0
      %2806 = vmatpush1.bf16.msra.mxu0 0
      %2807 = vmatprep.subr.bf16.mxu0 0
      %2808 = vmatpush1.bf16.msra.mxu0 0
      %2809 = vmatprep.subr.bf16.mxu0 0
      %2810 = vmatpush1.bf16.msra.mxu0 0
      %2811 = vmatprep.subr.bf16.mxu0 0
      %2812 = vmatpush1.bf16.msra.mxu0 0
      %2813 = vmatprep.subr.bf16.mxu0 0
      %2814 = vmatpush1.bf16.msra.mxu0 0
      %2815 = vmatprep.subr.bf16.mxu0 0
      %2816 = vmatpush1.bf16.msra.mxu0 0
      %2817 = vmatprep.subr.bf16.mxu0 0
      %2818 = vmatpush1.bf16.msra.mxu0 0
      %2819 = vmatprep.subr.bf16.mxu0 0
      %2820 = vmatpush1.bf16.msra.mxu0 0
      %2821 = vmatprep.subr.bf16.mxu0 0
      %2822 = vmatpush1.bf16.msra.mxu0 0
      %2823 = vmatprep.subr.bf16.mxu0 0
      %2824 = vmatpush1.bf16.msra.mxu0 0
      %2825 = vmatprep.subr.bf16.mxu0 0
      %2826 = vmatpush1.bf16.msra.mxu0 0
      %2827 = vmatprep.subr.bf16.mxu0 0
      %2828 = vmatpush1.bf16.msra.mxu0 0
      %2829 = vmatprep.subr.bf16.mxu0 0
      %2830 = vmatpush1.bf16.msra.mxu0 0
      %2831 = vmatprep.subr.bf16.mxu0 0
      %2832 = vmatpush1.bf16.msra.mxu0 0
      %2833 = vmatprep.subr.bf16.mxu0 0
      %2834 = vmatpush1.bf16.msra.mxu0 0
      %2835 = vmatprep.mubr.bf16.mxu0 0
      %2836 = vmatmul.mubr.bf16.gmra.mrb[0].mxu0 %v2798
      %v2837 = vpop.f32.mrb[0].mxu0
      %v2838 = vadd.f32 0.0, %v2837
      %v2839 = vpop.f32.mrb[0].mxu0
      %v2840 = vpop.f32.mrb[0].mxu0
      %v2841 = vpop.f32.mrb[0].mxu0
      %2842 = vdwg.mxu0
      %2843 = vrot.lane.b32.xlu0 %v2392, 112
      %v2844 = vpop.permute.xlu0 %2843
      %2845 = vrot.lane.b32.xlu0 %v2397, 112
      %v2846 = vpop.permute.xlu0 %2845
      %v2848 = vsel %vm1226, %v2844, 0
      %v2851 = vsel %vm1226, %v2846, 0
      %2853 = vmatprep.subr.bf16.mxu0 0
      %2854 = vmatpush1.bf16.xpose.msra.mxu0 %v2851
      %2855 = vmatprep.subr.bf16.mxu0 0
      %2856 = vmatpush1.bf16.xpose.msra.mxu0 0
      %2857 = vmatprep.subr.bf16.mxu0 0
      %2858 = vmatpush1.bf16.xpose.msra.mxu0 0
      %2859 = vmatprep.subr.bf16.mxu0 0
      %2860 = vmatpush1.bf16.xpose.msra.mxu0 0
      %2861 = vmatprep.subr.bf16.mxu0 0
      %2862 = vmatpush1.bf16.xpose.msra.mxu0 0
      %2863 = vmatprep.subr.bf16.mxu0 0
      %2864 = vmatpush1.bf16.xpose.msra.mxu0 0
      %2865 = vmatprep.subr.bf16.mxu0 0
      %2866 = vmatpush1.bf16.xpose.msra.mxu0 0
      %2867 = vmatprep.subr.bf16.mxu0 0
      %2868 = vmatpush1.bf16.xpose.msra.mxu0 0
      %2869 = vmatprep.subr.bf16.mxu0 0
      %2870 = vmatpush1.bf16.xpose.msra.mxu0 0
      %2871 = vmatprep.subr.bf16.mxu0 0
      %2872 = vmatpush1.bf16.xpose.msra.mxu0 0
      %2873 = vmatprep.subr.bf16.mxu0 0
      %2874 = vmatpush1.bf16.xpose.msra.mxu0 0
      %2875 = vmatprep.subr.bf16.mxu0 0
      %2876 = vmatpush1.bf16.xpose.msra.mxu0 0
      %2877 = vmatprep.subr.bf16.mxu0 0
      %2878 = vmatpush1.bf16.xpose.msra.mxu0 0
      %2879 = vmatprep.subr.bf16.mxu0 0
      %2880 = vmatpush1.bf16.xpose.msra.mxu0 0
      %2881 = vmatprep.subr.bf16.mxu0 0
      %2882 = vmatpush1.bf16.xpose.msra.mxu0 0
      %2883 = vmatprep.subr.bf16.mxu0 0
      %2884 = vmatpush1.bf16.xpose.msra.mxu0 0
      %2885 = vmatprep.mubr.bf16.mxu0 0
      %2886 = vmatmul.mubr.bf16.gmra.mrb[0].mxu0 %v2848
      %v2887 = vpop.f32.mrb[0].mxu0
      %v2888 = vadd.f32 %v2404, %v2887
      %v2889 = vpop.f32.mrb[0].mxu0
      %v2890 = vpop.f32.mrb[0].mxu0
      %v2891 = vpop.f32.mrb[0].mxu0
      %2892 = vdwg.mxu0
      %2893 = vrot.lane.b32.xlu0 %v2393, 112
      %v2894 = vpop.permute.xlu0 %2893
      %2895 = vrot.lane.b32.xlu0 %v2398, 112
      %v2896 = vpop.permute.xlu0 %2895
      %v2898 = vsel %vm1226, %v2894, 0
      %v2901 = vsel %vm1226, %v2896, 0
      %2903 = vmatprep.subr.bf16.mxu0 0
      %2904 = vmatpush1.bf16.xpose.msra.mxu0 %v2901
      %2905 = vmatprep.subr.bf16.mxu0 0
      %2906 = vmatpush1.bf16.xpose.msra.mxu0 0
      %2907 = vmatprep.subr.bf16.mxu0 0
      %2908 = vmatpush1.bf16.xpose.msra.mxu0 0
      %2909 = vmatprep.subr.bf16.mxu0 0
      %2910 = vmatpush1.bf16.xpose.msra.mxu0 0
      %2911 = vmatprep.subr.bf16.mxu0 0
      %2912 = vmatpush1.bf16.xpose.msra.mxu0 0
      %2913 = vmatprep.subr.bf16.mxu0 0
      %2914 = vmatpush1.bf16.xpose.msra.mxu0 0
      %2915 = vmatprep.subr.bf16.mxu0 0
      %2916 = vmatpush1.bf16.xpose.msra.mxu0 0
      %2917 = vmatprep.subr.bf16.mxu0 0
      %2918 = vmatpush1.bf16.xpose.msra.mxu0 0
      %2919 = vmatprep.subr.bf16.mxu0 0
      %2920 = vmatpush1.bf16.xpose.msra.mxu0 0
      %2921 = vmatprep.subr.bf16.mxu0 0
      %2922 = vmatpush1.bf16.xpose.msra.mxu0 0
      %2923 = vmatprep.subr.bf16.mxu0 0
      %2924 = vmatpush1.bf16.xpose.msra.mxu0 0
      %2925 = vmatprep.subr.bf16.mxu0 0
      %2926 = vmatpush1.bf16.xpose.msra.mxu0 0
      %2927 = vmatprep.subr.bf16.mxu0 0
      %2928 = vmatpush1.bf16.xpose.msra.mxu0 0
      %2929 = vmatprep.subr.bf16.mxu0 0
      %2930 = vmatpush1.bf16.xpose.msra.mxu0 0
      %2931 = vmatprep.subr.bf16.mxu0 0
      %2932 = vmatpush1.bf16.xpose.msra.mxu0 0
      %2933 = vmatprep.subr.bf16.mxu0 0
      %2934 = vmatpush1.bf16.xpose.msra.mxu0 0
      %2935 = vmatprep.mubr.bf16.mxu0 0
      %2936 = vmatmul.mubr.bf16.gmra.mrb[0].mxu0 %v2898
      %v2937 = vpop.f32.mrb[0].mxu0
      %v2938 = vadd.f32 %v2408, %v2937
      %v2939 = vpop.f32.mrb[0].mxu0
      %v2940 = vpop.f32.mrb[0].mxu0
      %v2941 = vpop.f32.mrb[0].mxu0
      %2942 = vdwg.mxu0
      %v2943 = vsel %vm1226, %v2888, -inf
      %2944 = vmax.xlane.f32.xlu0 %v2943
      %v2945 = vpop.xlane.xlu0 %2944
      %v2946 = vsel %vm1226, %v2938, -inf
      %2947 = vmax.xlane.f32.xlu0 %v2946
      %v2948 = vpop.xlane.xlu0 %2947
      %v2949 = vsub.f32 %v2888, %v2945
      %v2950 = vsub.f32 %v2938, %v2948
      %v2951 = vmul.f32 %v2949, 1.442695
      %v2952 = vpow.pop %v2951
      %v2953 = vmul.f32 %v2950, 1.442695
      %v2954 = vpow.pop %v2953
      %v2955 = vsel %vm1226, %v2952, 0.0
      %2956 = vadd.xlane.f32.xlu0 %v2955
      %v2957 = vpop.xlane.xlu0 %2956
      %v2958 = vsel %vm1226, %v2954, 0.0
      %2959 = vadd.xlane.f32.xlu0 %v2958
      %v2960 = vpop.xlane.xlu0 %2959
      %v2961 = vrcp.pop %v2957
      %v2962 = vrcp.pop %v2960
      %v2963 = vmul.f32 %v2952, %v2961
      %v2964 = vmul.f32 %v2954, %v2962
      %v2965 = vpack.c.bf16 %v2963, %v2963
      %v2966 = vpack.c.bf16 %v2964, %v2964
      %2967 = vrot.lane.b32.xlu0 %v2397, 80
      %v2968 = vpop.permute.xlu0 %2967
      %v2970 = vsel %vm1226, %v2965, 0
      %v2973 = vsel %vm1350, %v2968, 0
      %2975 = vmatprep.subr.bf16.mxu0 0
      %2976 = vmatpush1.bf16.msra.mxu0 %v2973
      %2977 = vmatprep.subr.bf16.mxu0 0
      %2978 = vmatpush1.bf16.msra.mxu0 0
      %2979 = vmatprep.subr.bf16.mxu0 0
      %2980 = vmatpush1.bf16.msra.mxu0 0
      %2981 = vmatprep.subr.bf16.mxu0 0
      %2982 = vmatpush1.bf16.msra.mxu0 0
      %2983 = vmatprep.subr.bf16.mxu0 0
      %2984 = vmatpush1.bf16.msra.mxu0 0
      %2985 = vmatprep.subr.bf16.mxu0 0
      %2986 = vmatpush1.bf16.msra.mxu0 0
      %2987 = vmatprep.subr.bf16.mxu0 0
      %2988 = vmatpush1.bf16.msra.mxu0 0
      %2989 = vmatprep.subr.bf16.mxu0 0
      %2990 = vmatpush1.bf16.msra.mxu0 0
      %2991 = vmatprep.subr.bf16.mxu0 0
      %2992 = vmatpush1.bf16.msra.mxu0 0
      %2993 = vmatprep.subr.bf16.mxu0 0
      %2994 = vmatpush1.bf16.msra.mxu0 0
      %2995 = vmatprep.subr.bf16.mxu0 0
      %2996 = vmatpush1.bf16.msra.mxu0 0
      %2997 = vmatprep.subr.bf16.mxu0 0
      %2998 = vmatpush1.bf16.msra.mxu0 0
      %2999 = vmatprep.subr.bf16.mxu0 0
      %3000 = vmatpush1.bf16.msra.mxu0 0
      %3001 = vmatprep.subr.bf16.mxu0 0
      %3002 = vmatpush1.bf16.msra.mxu0 0
      %3003 = vmatprep.subr.bf16.mxu0 0
      %3004 = vmatpush1.bf16.msra.mxu0 0
      %3005 = vmatprep.subr.bf16.mxu0 0
      %3006 = vmatpush1.bf16.msra.mxu0 0
      %3007 = vmatprep.mubr.bf16.mxu0 0
      %3008 = vmatmul.mubr.bf16.gmra.mrb[0].mxu0 %v2970
      %v3009 = vpop.f32.mrb[0].mxu0
      %v3010 = vadd.f32 0.0, %v3009
      %v3011 = vpop.f32.mrb[0].mxu0
      %v3012 = vpop.f32.mrb[0].mxu0
      %v3013 = vpop.f32.mrb[0].mxu0
      %3014 = vdwg.mxu0
      %3015 = vrot.lane.b32.xlu0 %v2398, 80
      %v3016 = vpop.permute.xlu0 %3015
      %v3018 = vsel %vm1226, %v2966, 0
      %v3021 = vsel %vm1350, %v3016, 0
      %3023 = vmatprep.subr.bf16.mxu0 0
      %3024 = vmatpush1.bf16.msra.mxu0 %v3021
      %3025 = vmatprep.subr.bf16.mxu0 0
      %3026 = vmatpush1.bf16.msra.mxu0 0
      %3027 = vmatprep.subr.bf16.mxu0 0
      %3028 = vmatpush1.bf16.msra.mxu0 0
      %3029 = vmatprep.subr.bf16.mxu0 0
      %3030 = vmatpush1.bf16.msra.mxu0 0
      %3031 = vmatprep.subr.bf16.mxu0 0
      %3032 = vmatpush1.bf16.msra.mxu0 0
      %3033 = vmatprep.subr.bf16.mxu0 0
      %3034 = vmatpush1.bf16.msra.mxu0 0
      %3035 = vmatprep.subr.bf16.mxu0 0
      %3036 = vmatpush1.bf16.msra.mxu0 0
      %3037 = vmatprep.subr.bf16.mxu0 0
      %3038 = vmatpush1.bf16.msra.mxu0 0
      %3039 = vmatprep.subr.bf16.mxu0 0
      %3040 = vmatpush1.bf16.msra.mxu0 0
      %3041 = vmatprep.subr.bf16.mxu0 0
      %3042 = vmatpush1.bf16.msra.mxu0 0
      %3043 = vmatprep.subr.bf16.mxu0 0
      %3044 = vmatpush1.bf16.msra.mxu0 0
      %3045 = vmatprep.subr.bf16.mxu0 0
      %3046 = vmatpush1.bf16.msra.mxu0 0
      %3047 = vmatprep.subr.bf16.mxu0 0
      %3048 = vmatpush1.bf16.msra.mxu0 0
      %3049 = vmatprep.subr.bf16.mxu0 0
      %3050 = vmatpush1.bf16.msra.mxu0 0
      %3051 = vmatprep.subr.bf16.mxu0 0
      %3052 = vmatpush1.bf16.msra.mxu0 0
      %3053 = vmatprep.subr.bf16.mxu0 0
      %3054 = vmatpush1.bf16.msra.mxu0 0
      %3055 = vmatprep.mubr.bf16.mxu0 0
      %3056 = vmatmul.mubr.bf16.gmra.mrb[0].mxu0 %v3018
      %v3057 = vpop.f32.mrb[0].mxu0
      %v3058 = vadd.f32 0.0, %v3057
      %v3059 = vpop.f32.mrb[0].mxu0
      %v3060 = vpop.f32.mrb[0].mxu0
      %v3061 = vpop.f32.mrb[0].mxu0
      %3062 = vdwg.mxu0
      %3063 = vrot.lane.b32.xlu0 %v2392, 104
      %v3064 = vpop.permute.xlu0 %3063
      %3065 = vrot.lane.b32.xlu0 %v2397, 104
      %v3066 = vpop.permute.xlu0 %3065
      %v3068 = vsel %vm1226, %v3064, 0
      %v3071 = vsel %vm1226, %v3066, 0
      %3073 = vmatprep.subr.bf16.mxu0 0
      %3074 = vmatpush1.bf16.xpose.msra.mxu0 %v3071
      %3075 = vmatprep.subr.bf16.mxu0 0
      %3076 = vmatpush1.bf16.xpose.msra.mxu0 0
      %3077 = vmatprep.subr.bf16.mxu0 0
      %3078 = vmatpush1.bf16.xpose.msra.mxu0 0
      %3079 = vmatprep.subr.bf16.mxu0 0
      %3080 = vmatpush1.bf16.xpose.msra.mxu0 0
      %3081 = vmatprep.subr.bf16.mxu0 0
      %3082 = vmatpush1.bf16.xpose.msra.mxu0 0
      %3083 = vmatprep.subr.bf16.mxu0 0
      %3084 = vmatpush1.bf16.xpose.msra.mxu0 0
      %3085 = vmatprep.subr.bf16.mxu0 0
      %3086 = vmatpush1.bf16.xpose.msra.mxu0 0
      %3087 = vmatprep.subr.bf16.mxu0 0
      %3088 = vmatpush1.bf16.xpose.msra.mxu0 0
      %3089 = vmatprep.subr.bf16.mxu0 0
      %3090 = vmatpush1.bf16.xpose.msra.mxu0 0
      %3091 = vmatprep.subr.bf16.mxu0 0
      %3092 = vmatpush1.bf16.xpose.msra.mxu0 0
      %3093 = vmatprep.subr.bf16.mxu0 0
      %3094 = vmatpush1.bf16.xpose.msra.mxu0 0
      %3095 = vmatprep.subr.bf16.mxu0 0
      %3096 = vmatpush1.bf16.xpose.msra.mxu0 0
      %3097 = vmatprep.subr.bf16.mxu0 0
      %3098 = vmatpush1.bf16.xpose.msra.mxu0 0
      %3099 = vmatprep.subr.bf16.mxu0 0
      %3100 = vmatpush1.bf16.xpose.msra.mxu0 0
      %3101 = vmatprep.subr.bf16.mxu0 0
      %3102 = vmatpush1.bf16.xpose.msra.mxu0 0
      %3103 = vmatprep.subr.bf16.mxu0 0
      %3104 = vmatpush1.bf16.xpose.msra.mxu0 0
      %3105 = vmatprep.mubr.bf16.mxu0 0
      %3106 = vmatmul.mubr.bf16.gmra.mrb[0].mxu0 %v3068
      %v3107 = vpop.f32.mrb[0].mxu0
      %v3108 = vadd.f32 %v2404, %v3107
      %v3109 = vpop.f32.mrb[0].mxu0
      %v3110 = vpop.f32.mrb[0].mxu0
      %v3111 = vpop.f32.mrb[0].mxu0
      %3112 = vdwg.mxu0
      %3113 = vrot.lane.b32.xlu0 %v2393, 104
      %v3114 = vpop.permute.xlu0 %3113
      %3115 = vrot.lane.b32.xlu0 %v2398, 104
      %v3116 = vpop.permute.xlu0 %3115
      %v3118 = vsel %vm1226, %v3114, 0
      %v3121 = vsel %vm1226, %v3116, 0
      %3123 = vmatprep.subr.bf16.mxu0 0
      %3124 = vmatpush1.bf16.xpose.msra.mxu0 %v3121
      %3125 = vmatprep.subr.bf16.mxu0 0
      %3126 = vmatpush1.bf16.xpose.msra.mxu0 0
      %3127 = vmatprep.subr.bf16.mxu0 0
      %3128 = vmatpush1.bf16.xpose.msra.mxu0 0
      %3129 = vmatprep.subr.bf16.mxu0 0
      %3130 = vmatpush1.bf16.xpose.msra.mxu0 0
      %3131 = vmatprep.subr.bf16.mxu0 0
      %3132 = vmatpush1.bf16.xpose.msra.mxu0 0
      %3133 = vmatprep.subr.bf16.mxu0 0
      %3134 = vmatpush1.bf16.xpose.msra.mxu0 0
      %3135 = vmatprep.subr.bf16.mxu0 0
      %3136 = vmatpush1.bf16.xpose.msra.mxu0 0
      %3137 = vmatprep.subr.bf16.mxu0 0
      %3138 = vmatpush1.bf16.xpose.msra.mxu0 0
      %3139 = vmatprep.subr.bf16.mxu0 0
      %3140 = vmatpush1.bf16.xpose.msra.mxu0 0
      %3141 = vmatprep.subr.bf16.mxu0 0
      %3142 = vmatpush1.bf16.xpose.msra.mxu0 0
      %3143 = vmatprep.subr.bf16.mxu0 0
      %3144 = vmatpush1.bf16.xpose.msra.mxu0 0
      %3145 = vmatprep.subr.bf16.mxu0 0
      %3146 = vmatpush1.bf16.xpose.msra.mxu0 0
      %3147 = vmatprep.subr.bf16.mxu0 0
      %3148 = vmatpush1.bf16.xpose.msra.mxu0 0
      %3149 = vmatprep.subr.bf16.mxu0 0
      %3150 = vmatpush1.bf16.xpose.msra.mxu0 0
      %3151 = vmatprep.subr.bf16.mxu0 0
      %3152 = vmatpush1.bf16.xpose.msra.mxu0 0
      %3153 = vmatprep.subr.bf16.mxu0 0
      %3154 = vmatpush1.bf16.xpose.msra.mxu0 0
      %3155 = vmatprep.mubr.bf16.mxu0 0
      %3156 = vmatmul.mubr.bf16.gmra.mrb[0].mxu0 %v3118
      %v3157 = vpop.f32.mrb[0].mxu0
      %v3158 = vadd.f32 %v2408, %v3157
      %v3159 = vpop.f32.mrb[0].mxu0
      %v3160 = vpop.f32.mrb[0].mxu0
      %v3161 = vpop.f32.mrb[0].mxu0
      %3162 = vdwg.mxu0
      %v3163 = vsel %vm1226, %v3108, -inf
      %3164 = vmax.xlane.f32.xlu0 %v3163
      %v3165 = vpop.xlane.xlu0 %3164
      %v3166 = vsel %vm1226, %v3158, -inf
      %3167 = vmax.xlane.f32.xlu0 %v3166
      %v3168 = vpop.xlane.xlu0 %3167
      %v3169 = vsub.f32 %v3108, %v3165
      %v3170 = vsub.f32 %v3158, %v3168
      %v3171 = vmul.f32 %v3169, 1.442695
      %v3172 = vpow.pop %v3171
      %v3173 = vmul.f32 %v3170, 1.442695
      %v3174 = vpow.pop %v3173
      %v3175 = vsel %vm1226, %v3172, 0.0
      %3176 = vadd.xlane.f32.xlu0 %v3175
      %v3177 = vpop.xlane.xlu0 %3176
      %v3178 = vsel %vm1226, %v3174, 0.0
      %3179 = vadd.xlane.f32.xlu0 %v3178
      %v3180 = vpop.xlane.xlu0 %3179
      %v3181 = vrcp.pop %v3177
      %v3182 = vrcp.pop %v3180
      %v3183 = vmul.f32 %v3172, %v3181
      %v3184 = vmul.f32 %v3174, %v3182
      %v3185 = vpack.c.bf16 %v3183, %v3183
      %v3186 = vpack.c.bf16 %v3184, %v3184
      %3187 = vrot.lane.b32.xlu0 %v2397, 72
      %v3188 = vpop.permute.xlu0 %3187
      %v3190 = vsel %vm1226, %v3185, 0
      %v3193 = vsel %vm1350, %v3188, 0
      %3195 = vmatprep.subr.bf16.mxu0 0
      %3196 = vmatpush1.bf16.msra.mxu0 %v3193
      %3197 = vmatprep.subr.bf16.mxu0 0
      %3198 = vmatpush1.bf16.msra.mxu0 0
      %3199 = vmatprep.subr.bf16.mxu0 0
      %3200 = vmatpush1.bf16.msra.mxu0 0
      %3201 = vmatprep.subr.bf16.mxu0 0
      %3202 = vmatpush1.bf16.msra.mxu0 0
      %3203 = vmatprep.subr.bf16.mxu0 0
      %3204 = vmatpush1.bf16.msra.mxu0 0
      %3205 = vmatprep.subr.bf16.mxu0 0
      %3206 = vmatpush1.bf16.msra.mxu0 0
      %3207 = vmatprep.subr.bf16.mxu0 0
      %3208 = vmatpush1.bf16.msra.mxu0 0
      %3209 = vmatprep.subr.bf16.mxu0 0
      %3210 = vmatpush1.bf16.msra.mxu0 0
      %3211 = vmatprep.subr.bf16.mxu0 0
      %3212 = vmatpush1.bf16.msra.mxu0 0
      %3213 = vmatprep.subr.bf16.mxu0 0
      %3214 = vmatpush1.bf16.msra.mxu0 0
      %3215 = vmatprep.subr.bf16.mxu0 0
      %3216 = vmatpush1.bf16.msra.mxu0 0
      %3217 = vmatprep.subr.bf16.mxu0 0
      %3218 = vmatpush1.bf16.msra.mxu0 0
      %3219 = vmatprep.subr.bf16.mxu0 0
      %3220 = vmatpush1.bf16.msra.mxu0 0
      %3221 = vmatprep.subr.bf16.mxu0 0
      %3222 = vmatpush1.bf16.msra.mxu0 0
      %3223 = vmatprep.subr.bf16.mxu0 0
      %3224 = vmatpush1.bf16.msra.mxu0 0
      %3225 = vmatprep.subr.bf16.mxu0 0
      %3226 = vmatpush1.bf16.msra.mxu0 0
      %3227 = vmatprep.mubr.bf16.mxu0 0
      %3228 = vmatmul.mubr.bf16.gmra.mrb[0].mxu0 %v3190
      %v3229 = vpop.f32.mrb[0].mxu0
      %v3230 = vadd.f32 0.0, %v3229
      %v3231 = vpop.f32.mrb[0].mxu0
      %v3232 = vpop.f32.mrb[0].mxu0
      %v3233 = vpop.f32.mrb[0].mxu0
      %3234 = vdwg.mxu0
      %3235 = vrot.lane.b32.xlu0 %v2398, 72
      %v3236 = vpop.permute.xlu0 %3235
      %v3238 = vsel %vm1226, %v3186, 0
      %v3241 = vsel %vm1350, %v3236, 0
      %3243 = vmatprep.subr.bf16.mxu0 0
      %3244 = vmatpush1.bf16.msra.mxu0 %v3241
      %3245 = vmatprep.subr.bf16.mxu0 0
      %3246 = vmatpush1.bf16.msra.mxu0 0
      %3247 = vmatprep.subr.bf16.mxu0 0
      %3248 = vmatpush1.bf16.msra.mxu0 0
      %3249 = vmatprep.subr.bf16.mxu0 0
      %3250 = vmatpush1.bf16.msra.mxu0 0
      %3251 = vmatprep.subr.bf16.mxu0 0
      %3252 = vmatpush1.bf16.msra.mxu0 0
      %3253 = vmatprep.subr.bf16.mxu0 0
      %3254 = vmatpush1.bf16.msra.mxu0 0
      %3255 = vmatprep.subr.bf16.mxu0 0
      %3256 = vmatpush1.bf16.msra.mxu0 0
      %3257 = vmatprep.subr.bf16.mxu0 0
      %3258 = vmatpush1.bf16.msra.mxu0 0
      %3259 = vmatprep.subr.bf16.mxu0 0
      %3260 = vmatpush1.bf16.msra.mxu0 0
      %3261 = vmatprep.subr.bf16.mxu0 0
      %3262 = vmatpush1.bf16.msra.mxu0 0
      %3263 = vmatprep.subr.bf16.mxu0 0
      %3264 = vmatpush1.bf16.msra.mxu0 0
      %3265 = vmatprep.subr.bf16.mxu0 0
      %3266 = vmatpush1.bf16.msra.mxu0 0
      %3267 = vmatprep.subr.bf16.mxu0 0
      %3268 = vmatpush1.bf16.msra.mxu0 0
      %3269 = vmatprep.subr.bf16.mxu0 0
      %3270 = vmatpush1.bf16.msra.mxu0 0
      %3271 = vmatprep.subr.bf16.mxu0 0
      %3272 = vmatpush1.bf16.msra.mxu0 0
      %3273 = vmatprep.subr.bf16.mxu0 0
      %3274 = vmatpush1.bf16.msra.mxu0 0
      %3275 = vmatprep.mubr.bf16.mxu0 0
      %3276 = vmatmul.mubr.bf16.gmra.mrb[0].mxu0 %v3238
      %v3277 = vpop.f32.mrb[0].mxu0
      %v3278 = vadd.f32 0.0, %v3277
      %v3279 = vpop.f32.mrb[0].mxu0
      %v3280 = vpop.f32.mrb[0].mxu0
      %v3281 = vpop.f32.mrb[0].mxu0
      %3282 = vdwg.mxu0
      %3285 = vrot.lane.b32.xlu0 %v2790, 8
      %v3286 = vpop.permute.xlu0 %3285
      %3287 = vrot.lane.b32.xlu0 %v2838, 8
      %v3288 = vpop.permute.xlu0 %3287
      %3293 = vrot.lane.b32.xlu0 %v3010, 16
      %v3294 = vpop.permute.xlu0 %3293
      %3295 = vrot.lane.b32.xlu0 %v3058, 16
      %v3296 = vpop.permute.xlu0 %3295
      %3301 = vrot.lane.b32.xlu0 %v3230, 24
      %v3302 = vpop.permute.xlu0 %3301
      %3303 = vrot.lane.b32.xlu0 %v3278, 24
      %v3304 = vpop.permute.xlu0 %3303
      %v3307 = vsel %vm1226, %v2570, %v3286
      %v3308 = vsel %vm1226, %v2618, %v3288
      %v3309 = vsel %vm2128, %v3307, %v3294
      %v3310 = vsel %vm2128, %v3308, %v3296
      %v3311 = vsel %vm2131, %v3309, %v3302
      %v3312 = vsel %vm2131, %v3310, %v3304
      %v3313 = vld [vmem:[%s1101] sm:$0xf]
      %v3314 = vld [vmem:[%s1101 + $0x4] sm:$0xf]
      %v3315 = vld [vmem:[%s1101 + $0x8] sm:$0xf]
      %v3316 = vld [vmem:[%s1101 + $0xc] sm:$0xf]
      %v3317 = vld [vmem:[%s1104] sm:$0x1]
      %v3318 = vpack.c.bf16 %v3312, %v3311
      %v3320 = vlaneseq
      %v3321 = vshrl.u32 %v3320, 7
      %v3322 = vsub.s32 0, %v3321
      %v3323 = vrot.slane %v3317, %v3322
      %v3329 = vunpack.c.l.b16 %v3313
      %v3330 = vunpack.c.l.b16 %v3314
      %v3331 = vunpack.c.l.b16 %v3315
      %v3332 = vunpack.c.l.b16 %v3316
      %v3333 = vpack.c.b16 %v3330, %v3329
      %v3334 = vpack.c.b16 %v3332, %v3331
      %v3338 = vsel %vm1171, %v3318, 0
      %3340 = vmatprep.subr.bf16.mxu0 0
      %3341 = vmatpush1.bf16.msra.mxu0 %v3333
      %3342 = vmatprep.subr.bf16.mxu0 0
      %3343 = vmatpush1.bf16.msra.mxu0 %v3334
      %3344 = vmatprep.subr.bf16.mxu0 0
      %3345 = vmatpush1.bf16.msra.mxu0 0
      %3346 = vmatprep.subr.bf16.mxu0 0
      %3347 = vmatpush1.bf16.msra.mxu0 0
      %3348 = vmatprep.subr.bf16.mxu0 0
      %3349 = vmatpush1.bf16.msra.mxu0 0
      %3350 = vmatprep.subr.bf16.mxu0 0
      %3351 = vmatpush1.bf16.msra.mxu0 0
      %3352 = vmatprep.subr.bf16.mxu0 0
      %3353 = vmatpush1.bf16.msra.mxu0 0
      %3354 = vmatprep.subr.bf16.mxu0 0
      %3355 = vmatpush1.bf16.msra.mxu0 0
      %3356 = vmatprep.subr.bf16.mxu0 0
      %3357 = vmatpush1.bf16.msra.mxu0 0
      %3358 = vmatprep.subr.bf16.mxu0 0
      %3359 = vmatpush1.bf16.msra.mxu0 0
      %3360 = vmatprep.subr.bf16.mxu0 0
      %3361 = vmatpush1.bf16.msra.mxu0 0
      %3362 = vmatprep.subr.bf16.mxu0 0
      %3363 = vmatpush1.bf16.msra.mxu0 0
      %3364 = vmatprep.subr.bf16.mxu0 0
      %3365 = vmatpush1.bf16.msra.mxu0 0
      %3366 = vmatprep.subr.bf16.mxu0 0
      %3367 = vmatpush1.bf16.msra.mxu0 0
      %3368 = vmatprep.subr.bf16.mxu0 0
      %3369 = vmatpush1.bf16.msra.mxu0 0
      %3370 = vmatprep.subr.bf16.mxu0 0
      %3371 = vmatpush1.bf16.msra.mxu0 0
      %3372 = vmatprep.mubr.bf16.mxu0 0
      %3373 = vmatmul.mubr.bf16.gmra.mrb[0].mxu0 %v3338
      %v3374 = vpop.f32.mrb[0].mxu0
      %v3375 = vadd.f32 %v3323, %v3374
      %v3376 = vpop.f32.mrb[0].mxu0
      %v3377 = vpop.f32.mrb[0].mxu0
      %v3378 = vadd.f32 %v3323, %v3377
      %v3379 = vpop.f32.mrb[0].mxu0
      %3380 = vdwg.mxu0
      %v3381 = vadd.f32 %v2247, %v3375
      %v3382 = vadd.f32 %v2248, %v3378
      %v3383 = vld [vmem:[%s1107] sm:$0x1]
      %v3384 = vld [vmem:[%s1110] sm:$0x1]
      %v3385 = vsel %vm1171, %v3381, 0.0
      %3386 = vadd.xlane.f32.xlu0 %v3385
      %v3387 = vpop.xlane.xlu0 %3386
      %v3388 = vsel %vm1171, %v3382, 0.0
      %3389 = vadd.xlane.f32.xlu0 %v3388
      %v3390 = vpop.xlane.xlu0 %3389
      %v3391 = vmul.f32 %v3387, %v2212
      %v3392 = vmul.f32 %v3390, %v2212
      %v3393 = vsub.f32 %v3381, %v3391
      %v3394 = vsub.f32 %v3382, %v3392
      %v3395 = vmul.f32 %v3393, %v3393
      %v3396 = vmul.f32 %v3394, %v3394
      %v3397 = vsel %vm1171, %v3395, 0.0
      %3398 = vadd.xlane.f32.xlu0 %v3397
      %v3399 = vpop.xlane.xlu0 %3398
      %v3400 = vsel %vm1171, %v3396, 0.0
      %3401 = vadd.xlane.f32.xlu0 %v3400
      %v3402 = vpop.xlane.xlu0 %3401
      %v3403 = vmul.f32 %v3399, %v2212
      %v3404 = vmul.f32 %v3402, %v2212
      %v3405 = vadd.f32 %v3403, 1e-05
      %v3406 = vadd.f32 %v3404, 1e-05
      %v3407 = vrsqrt.pop %v3405
      %v3408 = vrsqrt.pop %v3406
      %v3409 = vmul.f32 %v3393, %v3407
      %v3410 = vmul.f32 %v3394, %v3408
      %v3412 = vlaneseq
      %v3413 = vshrl.u32 %v3412, 7
      %v3414 = vsub.s32 0, %v3413
      %v3415 = vrot.slane %v3383, %v3414
      %v3417 = vmul.f32 %v3409, %v3415
      %v3418 = vmul.f32 %v3410, %v3415
      %v3420 = vlaneseq
      %v3421 = vshrl.u32 %v3420, 7
      %v3422 = vsub.s32 0, %v3421
      %v3423 = vrot.slane %v3384, %v3422
      %v3425 = vadd.f32 %v3417, %v3423
      %v3426 = vadd.f32 %v3418, %v3423
      %v3427 = vld [vmem:[%s1115] sm:$0xf]
      %v3428 = vld [vmem:[%s1115 + $0x4] sm:$0xf]
      %v3429 = vld [vmem:[%s1115 + $0x8] sm:$0xf]
      %v3430 = vld [vmem:[%s1115 + $0xc] sm:$0xf]
      %v3431 = vld [vmem:[%s1118] sm:$0x1]
      %v3432 = vpack.c.bf16 %v3426, %v3425
      %v3434 = vlaneseq
      %v3435 = vshrl.u32 %v3434, 7
      %v3436 = vsub.s32 0, %v3435
      %v3437 = vrot.slane %v3431, %v3436
      %v3443 = vunpack.c.l.b16 %v3427
      %v3444 = vunpack.c.l.b16 %v3428
      %v3445 = vunpack.c.l.b16 %v3429
      %v3446 = vunpack.c.l.b16 %v3430
      %v3447 = vpack.c.b16 %v3444, %v3443
      %v3448 = vpack.c.b16 %v3446, %v3445
      %v3452 = vsel %vm1171, %v3432, 0
      %3454 = vmatprep.subr.bf16.mxu0 0
      %3455 = vmatpush1.bf16.msra.mxu0 %v3447
      %3456 = vmatprep.subr.bf16.mxu0 0
      %3457 = vmatpush1.bf16.msra.mxu0 %v3448
      %3458 = vmatprep.subr.bf16.mxu0 0
      %3459 = vmatpush1.bf16.msra.mxu0 0
      %3460 = vmatprep.subr.bf16.mxu0 0
      %3461 = vmatpush1.bf16.msra.mxu0 0
      %3462 = vmatprep.subr.bf16.mxu0 0
      %3463 = vmatpush1.bf16.msra.mxu0 0
      %3464 = vmatprep.subr.bf16.mxu0 0
      %3465 = vmatpush1.bf16.msra.mxu0 0
      %3466 = vmatprep.subr.bf16.mxu0 0
      %3467 = vmatpush1.bf16.msra.mxu0 0
      %3468 = vmatprep.subr.bf16.mxu0 0
      %3469 = vmatpush1.bf16.msra.mxu0 0
      %3470 = vmatprep.subr.bf16.mxu0 0
      %3471 = vmatpush1.bf16.msra.mxu0 0
      %3472 = vmatprep.subr.bf16.mxu0 0
      %3473 = vmatpush1.bf16.msra.mxu0 0
      %3474 = vmatprep.subr.bf16.mxu0 0
      %3475 = vmatpush1.bf16.msra.mxu0 0
      %3476 = vmatprep.subr.bf16.mxu0 0
      %3477 = vmatpush1.bf16.msra.mxu0 0
      %3478 = vmatprep.subr.bf16.mxu0 0
      %3479 = vmatpush1.bf16.msra.mxu0 0
      %3480 = vmatprep.subr.bf16.mxu0 0
      %3481 = vmatpush1.bf16.msra.mxu0 0
      %3482 = vmatprep.subr.bf16.mxu0 0
      %3483 = vmatpush1.bf16.msra.mxu0 0
      %3484 = vmatprep.subr.bf16.mxu0 0
      %3485 = vmatpush1.bf16.msra.mxu0 0
      %3486 = vmatprep.mubr.bf16.mxu0 0
      %3487 = vmatmul.mubr.bf16.gmra.mrb[0].mxu0 %v3452
      %v3488 = vpop.f32.mrb[0].mxu0
      %v3489 = vadd.f32 %v3437, %v3488
      %v3490 = vpop.f32.mrb[0].mxu0
      %v3491 = vpop.f32.mrb[0].mxu0
      %v3492 = vadd.f32 %v3437, %v3491
      %v3493 = vpop.f32.mrb[0].mxu0
      %3494 = vdwg.mxu0
      %v3495 = vmax.f32 %v3489, 0.0
      %v3496 = vmax.f32 %v3492, 0.0
      %v3497 = vld [vmem:[%s1123] sm:$0xf]
      %v3498 = vld [vmem:[%s1123 + $0x4] sm:$0xf]
      %v3499 = vld [vmem:[%s1123 + $0x8] sm:$0xf]
      %v3500 = vld [vmem:[%s1123 + $0xc] sm:$0xf]
      %v3501 = vld [vmem:[%s1123 + $0x10] sm:$0xf]
      %v3502 = vld [vmem:[%s1123 + $0x14] sm:$0xf]
      %v3503 = vld [vmem:[%s1123 + $0x18] sm:$0xf]
      %v3504 = vld [vmem:[%s1123 + $0x1c] sm:$0xf]
      %v3505 = vld [vmem:[%s1126] sm:$0x1]
      %v3506 = vpack.c.bf16 %v3496, %v3495
      %v3508 = vlaneseq
      %v3509 = vshrl.u32 %v3508, 7
      %v3510 = vsub.s32 0, %v3509
      %v3511 = vrot.slane %v3505, %v3510
      %v3521 = vunpack.c.l.b16 %v3497
      %v3522 = vunpack.c.l.b16 %v3498
      %v3523 = vunpack.c.l.b16 %v3499
      %v3524 = vunpack.c.l.b16 %v3500
      %v3525 = vunpack.c.l.b16 %v3501
      %v3526 = vunpack.c.l.b16 %v3502
      %v3527 = vunpack.c.l.b16 %v3503
      %v3528 = vunpack.c.l.b16 %v3504
      %v3529 = vpack.c.b16 %v3522, %v3521
      %v3530 = vpack.c.b16 %v3524, %v3523
      %v3531 = vpack.c.b16 %v3526, %v3525
      %v3532 = vpack.c.b16 %v3528, %v3527
      %vm3537 = vcmask 523264
      %v3539 = vsel %vm3537, %v3506, 0
      %3541 = vmatprep.subr.bf16.mxu0 0
      %3542 = vmatpush1.bf16.msra.mxu0 %v3529
      %3543 = vmatprep.subr.bf16.mxu0 0
      %3544 = vmatpush1.bf16.msra.mxu0 %v3530
      %3545 = vmatprep.subr.bf16.mxu0 0
      %3546 = vmatpush1.bf16.msra.mxu0 %v3531
      %3547 = vmatprep.subr.bf16.mxu0 0
      %3548 = vmatpush1.bf16.msra.mxu0 %v3532
      %3549 = vmatprep.subr.bf16.mxu0 0
      %3550 = vmatpush1.bf16.msra.mxu0 0
      %3551 = vmatprep.subr.bf16.mxu0 0
      %3552 = vmatpush1.bf16.msra.mxu0 0
      %3553 = vmatprep.subr.bf16.mxu0 0
      %3554 = vmatpush1.bf16.msra.mxu0 0
      %3555 = vmatprep.subr.bf16.mxu0 0
      %3556 = vmatpush1.bf16.msra.mxu0 0
      %3557 = vmatprep.subr.bf16.mxu0 0
      %3558 = vmatpush1.bf16.msra.mxu0 0
      %3559 = vmatprep.subr.bf16.mxu0 0
      %3560 = vmatpush1.bf16.msra.mxu0 0
      %3561 = vmatprep.subr.bf16.mxu0 0
      %3562 = vmatpush1.bf16.msra.mxu0 0
      %3563 = vmatprep.subr.bf16.mxu0 0
      %3564 = vmatpush1.bf16.msra.mxu0 0
      %3565 = vmatprep.subr.bf16.mxu0 0
      %3566 = vmatpush1.bf16.msra.mxu0 0
      %3567 = vmatprep.subr.bf16.mxu0 0
      %3568 = vmatpush1.bf16.msra.mxu0 0
      %3569 = vmatprep.subr.bf16.mxu0 0
      %3570 = vmatpush1.bf16.msra.mxu0 0
      %3571 = vmatprep.subr.bf16.mxu0 0
      %3572 = vmatpush1.bf16.msra.mxu0 0
      %3573 = vmatprep.mubr.bf16.mxu0 0
      %3574 = vmatmul.mubr.bf16.gmra.mrb[0].mxu0 %v3539
      %v3575 = vpop.f32.mrb[0].mxu0
      %v3576 = vadd.f32 %v3511, %v3575
      %v3577 = vpop.f32.mrb[0].mxu0
      %v3578 = vpop.f32.mrb[0].mxu0
      %v3579 = vadd.f32 %v3511, %v3578
      %v3580 = vpop.f32.mrb[0].mxu0
      %3581 = vdwg.mxu0
      %v3582 = vadd.f32 %v3425, %v3576
      %v3583 = vadd.f32 %v3426, %v3579
      %v3584 = vld [vmem:[%s1129] sm:$0x1]
      %v3585 = vld [vmem:[%s1132] sm:$0x1]
      %v3586 = vsel %vm1171, %v3582, 0.0
      %3587 = vadd.xlane.f32.xlu0 %v3586
      %v3588 = vpop.xlane.xlu0 %3587
      %v3589 = vsel %vm1171, %v3583, 0.0
      %3590 = vadd.xlane.f32.xlu0 %v3589
      %v3591 = vpop.xlane.xlu0 %3590
      %v3592 = vmul.f32 %v3588, %v2212
      %v3593 = vmul.f32 %v3591, %v2212
      %v3594 = vsub.f32 %v3582, %v3592
      %v3595 = vsub.f32 %v3583, %v3593
      %v3596 = vmul.f32 %v3594, %v3594
      %v3597 = vmul.f32 %v3595, %v3595
      %v3598 = vsel %vm1171, %v3596, 0.0
      %3599 = vadd.xlane.f32.xlu0 %v3598
      %v3600 = vpop.xlane.xlu0 %3599
      %v3601 = vsel %vm1171, %v3597, 0.0
      %3602 = vadd.xlane.f32.xlu0 %v3601
      %v3603 = vpop.xlane.xlu0 %3602
      %v3604 = vmul.f32 %v3600, %v2212
      %v3605 = vmul.f32 %v3603, %v2212
      %v3606 = vadd.f32 %v3604, 1e-05
      %v3607 = vadd.f32 %v3605, 1e-05
      %v3608 = vrsqrt.pop %v3606
      %v3609 = vrsqrt.pop %v3607
      %v3610 = vmul.f32 %v3594, %v3608
      %v3611 = vmul.f32 %v3595, %v3609
      %v3613 = vlaneseq
      %v3614 = vshrl.u32 %v3613, 7
      %v3615 = vsub.s32 0, %v3614
      %v3616 = vrot.slane %v3584, %v3615
      %v3618 = vmul.f32 %v3610, %v3616
      %v3619 = vmul.f32 %v3611, %v3616
      %v3621 = vlaneseq
      %v3622 = vshrl.u32 %v3621, 7
      %v3623 = vsub.s32 0, %v3622
      %v3624 = vrot.slane %v3585, %v3623
      %v3626 = vadd.f32 %v3618, %v3624
      %v3627 = vadd.f32 %v3619, %v3624
      %3628 = vst.msk [vmem:[#allocation2] sm:$0xff] %vm1171, %v3626
      %3629 = vst.msk [vmem:[#allocation2 + $0x8] sm:$0xff] %vm1171, %v3627
      %p3630 = scmp.eq.s32.totalorder %s39, 1
      // Predicated region
      $region137: #{seq2seq_forward.3} parent=131 // pred_check
        %p3631 = pneg %p3630
      $region138: #{seq2seq_forward.3} parent=131 // pred_check_branch
        %3633 = sbr.rel (%p3631) target = $region140
      $region139: #{seq2seq_forward.3} parent=131 // pred_region
        %v3634 = vld [vmem:[%s24] sm:$0x1]
        %v3635 = vld [vmem:[%s25] sm:$0x1]
        %v3636 = vsel %vm1171, %v3626, 0.0
        %3637 = vadd.xlane.f32.xlu0 %v3636
        %v3638 = vpop.xlane.xlu0 %3637
        %v3639 = vsel %vm1171, %v3627, 0.0
        %3640 = vadd.xlane.f32.xlu0 %v3639
        %v3641 = vpop.xlane.xlu0 %3640
        %v3642 = vmul.f32 %v3638, %v2212
        %v3643 = vmul.f32 %v3641, %v2212
        %v3644 = vsub.f32 %v3626, %v3642
        %v3645 = vsub.f32 %v3627, %v3643
        %v3646 = vmul.f32 %v3644, %v3644
        %v3647 = vmul.f32 %v3645, %v3645
        %v3648 = vsel %vm1171, %v3646, 0.0
        %3649 = vadd.xlane.f32.xlu0 %v3648
        %v3650 = vpop.xlane.xlu0 %3649
        %v3651 = vsel %vm1171, %v3647, 0.0
        %3652 = vadd.xlane.f32.xlu0 %v3651
        %v3653 = vpop.xlane.xlu0 %3652
        %v3654 = vmul.f32 %v3650, %v2212
        %v3655 = vmul.f32 %v3653, %v2212
        %v3656 = vadd.f32 %v3654, 1e-05
        %v3657 = vadd.f32 %v3655, 1e-05
        %v3658 = vrsqrt.pop %v3656
        %v3659 = vrsqrt.pop %v3657
        %v3660 = vmul.f32 %v3644, %v3658
        %v3661 = vmul.f32 %v3645, %v3659
        %v3663 = vlaneseq
        %v3664 = vshrl.u32 %v3663, 7
        %v3665 = vsub.s32 0, %v3664
        %v3666 = vrot.slane %v3634, %v3665
        %v3668 = vmul.f32 %v3660, %v3666
        %v3669 = vmul.f32 %v3661, %v3666
        %v3671 = vlaneseq
        %v3672 = vshrl.u32 %v3671, 7
        %v3673 = vsub.s32 0, %v3672
        %v3674 = vrot.slane %v3635, %v3673
        %v3676 = vadd.f32 %v3668, %v3674
        %v3677 = vadd.f32 %v3669, %v3674
        %v3678 = vld [vmem:[%s26] sm:$0xf]
        %v3679 = vld [vmem:[%s26 + $0x4] sm:$0xf]
        %v3680 = vld [vmem:[%s26 + $0x8] sm:$0xf]
        %v3681 = vld [vmem:[%s26 + $0xc] sm:$0xf]
        %v3682 = vld [vmem:[%s27] sm:$0x1]
        %v3683 = vpack.c.bf16 %v3677, %v3676
        %v3685 = vlaneseq
        %v3686 = vshrl.u32 %v3685, 7
        %v3687 = vsub.s32 0, %v3686
        %v3688 = vrot.slane %v3682, %v3687
        %v3694 = vunpack.c.l.b16 %v3678
        %v3695 = vunpack.c.l.b16 %v3679
        %v3696 = vunpack.c.l.b16 %v3680
        %v3697 = vunpack.c.l.b16 %v3681
        %v3698 = vpack.c.b16 %v3695, %v3694
        %v3699 = vpack.c.b16 %v3697, %v3696
        %v3703 = vsel %vm1171, %v3683, 0
        %3705 = vmatprep.subr.bf16.mxu0 0
        %3706 = vmatpush1.bf16.msra.mxu0 %v3698
        %3707 = vmatprep.subr.bf16.mxu0 0
        %3708 = vmatpush1.bf16.msra.mxu0 %v3699
        %3709 = vmatprep.subr.bf16.mxu0 0
        %3710 = vmatpush1.bf16.msra.mxu0 0
        %3711 = vmatprep.subr.bf16.mxu0 0
        %3712 = vmatpush1.bf16.msra.mxu0 0
        %3713 = vmatprep.subr.bf16.mxu0 0
        %3714 = vmatpush1.bf16.msra.mxu0 0
        %3715 = vmatprep.subr.bf16.mxu0 0
        %3716 = vmatpush1.bf16.msra.mxu0 0
        %3717 = vmatprep.subr.bf16.mxu0 0
        %3718 = vmatpush1.bf16.msra.mxu0 0
        %3719 = vmatprep.subr.bf16.mxu0 0
        %3720 = vmatpush1.bf16.msra.mxu0 0
        %3721 = vmatprep.subr.bf16.mxu0 0
        %3722 = vmatpush1.bf16.msra.mxu0 0
        %3723 = vmatprep.subr.bf16.mxu0 0
        %3724 = vmatpush1.bf16.msra.mxu0 0
        %3725 = vmatprep.subr.bf16.mxu0 0
        %3726 = vmatpush1.bf16.msra.mxu0 0
        %3727 = vmatprep.subr.bf16.mxu0 0
        %3728 = vmatpush1.bf16.msra.mxu0 0
        %3729 = vmatprep.subr.bf16.mxu0 0
        %3730 = vmatpush1.bf16.msra.mxu0 0
        %3731 = vmatprep.subr.bf16.mxu0 0
        %3732 = vmatpush1.bf16.msra.mxu0 0
        %3733 = vmatprep.subr.bf16.mxu0 0
        %3734 = vmatpush1.bf16.msra.mxu0 0
        %3735 = vmatprep.subr.bf16.mxu0 0
        %3736 = vmatpush1.bf16.msra.mxu0 0
        %3737 = vmatprep.mubr.bf16.mxu0 0
        %3738 = vmatmul.mubr.bf16.gmra.mrb[0].mxu0 %v3703
        %v3739 = vpop.f32.mrb[0].mxu0
        %v3740 = vadd.f32 %v3688, %v3739
        %v3741 = vpop.f32.mrb[0].mxu0
        %v3742 = vpop.f32.mrb[0].mxu0
        %v3743 = vadd.f32 %v3688, %v3742
        %v3744 = vpop.f32.mrb[0].mxu0
        %3745 = vdwg.mxu0
        %3746 = vst [vmem:[%s28] sm:$0xff] %v3740
        %3747 = vst [vmem:[%s28 + $0x8] sm:$0xff] %v3743
      $region140: #{seq2seq_forward.3} parent=131 // pred_fallthru
        _
      // Predicated region
      $region141: #{seq2seq_forward.3} parent=131 // pred_check
        %p3748 = pneg %p740
      $region142: #{seq2seq_forward.3} parent=131 // pred_check_branch
        %3750 = sbr.rel (%p3748) target = $region144
      $region143: #{seq2seq_forward.3} parent=131 // pred_region
        _
      $region144: #{seq2seq_forward.3} parent=131 // pred_fallthru
        _
      // Predicated region
      $region145: #{seq2seq_forward.3} parent=131 // pred_check
        %p3751 = pneg %p740
      $region146: #{seq2seq_forward.3} parent=131 // pred_check_branch
        %3753 = sbr.rel (%p3751) target = $region148
      $region147: #{seq2seq_forward.3} parent=131 // pred_region
        _
      $region148: #{seq2seq_forward.3} parent=131 // pred_fallthru
        _
    $region132: #{seq2seq_forward.3} parent=5 // pred_fallthru
      _
    %p3754 = scmp.le.s32.totalorder 2, %s34
    // Predicated region
    $region149: #{seq2seq_forward.3} parent=5 // pred_check
      %p3755 = pneg %p3754
    $region150: #{seq2seq_forward.3} parent=5 // pred_check_branch
      %3757 = sbr.rel (%p3755) target = $region152
    $region151: #{seq2seq_forward.3} parent=5 // pred_region
      %s3758 = ssub.s32 %s34, 2
    $region152: #{seq2seq_forward.3} parent=5 // pred_fallthru
      _
  $region6: #{seq2seq_forward.3} parent=0 // loop_footer
    %s38 = sadd.s32 1, %s34
  $region7: #{seq2seq_forward.3} parent=0 // loop_footer_branch
    %33 = sbr.rel target = $region3
  $region8: #{seq2seq_forward.3} parent=0 // loop_exit
    _

</llo_original>
